<compile_context>
chip_gen: v6e
topology: v6e:2x2x1
jax: 0.10.0
libtpu: 0.0.40
codegen_flags: <defaults>
</compile_context>

<pallas_src>
import functools

import jax
import jax.numpy as jnp
from jax.experimental import pallas as pl
from jax.experimental.pallas import tpu as pltpu

EPS = 1e-5
LANE = 128
VMEM_LIMIT = 48 * 1024 * 1024


def _round_up(x, m):
    return ((x + m - 1) // m) * m


# ---------------------------------------------------------------------------
# Kernels
# ---------------------------------------------------------------------------
def _conv3x3_stats_kernel(xp_ref, w_ref, y_ref, st_ref, *, H, W, Cin_p, Cout_p):
    """3x3 conv of one spatially pre-padded bf16 image.

    Taps are K-packed: for each of the 3 row offsets (di) the 3 column shifts
    are concatenated along channels -> one (H*W, 3*Cin) @ (3*Cin, Cout) matmul.
    Also emits this image's per-channel sum / sum-of-squares for BN1.
    """
    acc = jnp.zeros((H * W, Cout_p), jnp.float32)
    for di in range(3):
        rows = xp_ref[0, di:di + H, :, :]                       # (H, W+2, Cin)
        tap = jnp.concatenate(
            [rows[:, 0:W, :], rows[:, 1:W + 1, :], rows[:, 2:W + 2, :]],
            axis=-1)                                            # (H, W, 3*Cin)
        acc = acc + jnp.dot(tap.reshape(H * W, 3 * Cin_p), w_ref[di],
                            preferred_element_type=jnp.float32)
    y_ref[0] = acc.reshape(H, W, Cout_p).astype(y_ref.dtype)    # bf16 intermediate
    s1 = jnp.sum(acc, axis=0, keepdims=True)
    s2 = jnp.sum(acc * acc, axis=0, keepdims=True)
    st_ref[0] = jnp.concatenate([s1, s2], axis=0)               # per-program partial


def _bn_relu_conv3x3_stats_kernel(y1_ref, st1_ref, g1_ref, b1_ref, w_ref,
                                  y2_ref, st2_ref, *, H, W, C_p, inv_count):
    """BN1 (global batch stats) + ReLU + zero-halo rebuild + 3x3 conv (K-packed)
    + per-image sum/sumsq for BN2."""
    # NOTE: one-pass E[x^2]-E[x]^2 in f32; switch to shifted/Welford sums if
    # this ever feeds training at large M.
    mean = st1_ref[0:1, :] * inv_count
    var = st1_ref[1:2, :] * inv_count - mean * mean
    scale = jax.lax.rsqrt(var + EPS) * g1_ref[...]
    shift = b1_ref[...] - mean * scale

    a = y1_ref[0].astype(jnp.float32)                           # (H, W, C)
    a = jnp.maximum(a * scale.reshape(1, 1, C_p) + shift.reshape(1, 1, C_p), 0.0)
    a = a.astype(jnp.bfloat16)
    # Rebuild the 1-px conv zero padding around the activation (true zeros).
    zc = jnp.zeros((H, 1, C_p), jnp.bfloat16)
    a = jnp.concatenate([zc, a, zc], axis=1)                    # (H, W+2, C)
    zr = jnp.zeros((1, W + 2, C_p), jnp.bfloat16)
    a = jnp.concatenate([zr, a, zr], axis=0)                    # (H+2, W+2, C)

    acc = jnp.zeros((H * W, C_p), jnp.float32)
    for di in range(3):
        rows = a[di:di + H, :, :]
        tap = jnp.concatenate(
            [rows[:, 0:W, :], rows[:, 1:W + 1, :], rows[:, 2:W + 2, :]],
            axis=-1)
        acc = acc + jnp.dot(tap.reshape(H * W, 3 * C_p), w_ref[di],
                            preferred_element_type=jnp.float32)
    y2_ref[...] = acc.astype(y2_ref.dtype)                      # bf16 intermediate
    s1 = jnp.sum(acc, axis=0, keepdims=True)
    s2 = jnp.sum(acc * acc, axis=0, keepdims=True)
    st2_ref[0] = jnp.concatenate([s1, s2], axis=0)


def _bn_relu_resconv_add_kernel(y2_ref, st2_ref, g2_ref, b2_ref, x_ref,
                                wres_ref, bres_ref, o_ref, *, inv_count):
    """BN2 + ReLU + residual 1x1 conv (bf16 MXU) + add, tiled over M rows."""
    mean = st2_ref[0:1, :] * inv_count
    var = st2_ref[1:2, :] * inv_count - mean * mean
    scale = jax.lax.rsqrt(var + EPS) * g2_ref[...]
    shift = b2_ref[...] - mean * scale
    y = jnp.maximum(y2_ref[...].astype(jnp.float32) * scale + shift, 0.0)
    r = jnp.dot(x_ref[...], wres_ref[...], preferred_element_type=jnp.float32)
    o_ref[...] = y + r + bres_ref[...]


def _bn_relu_identity_add_kernel(y2_ref, st2_ref, g2_ref, b2_ref, x_ref, o_ref,
                                 *, inv_count):
    """BN2 + ReLU + identity residual add, tiled over M rows."""
    mean = st2_ref[0:1, :] * inv_count
    var = st2_ref[1:2, :] * inv_count - mean * mean
    scale = jax.lax.rsqrt(var + EPS) * g2_ref[...]
    shift = b2_ref[...] - mean * scale
    y = jnp.maximum(y2_ref[...].astype(jnp.float32) * scale + shift, 0.0)
    o_ref[...] = y + x_ref[...].astype(jnp.float32)


# ---------------------------------------------------------------------------
# pallas_call wrappers
# ---------------------------------------------------------------------------
def _conv1(xp, w1, N, H, W, Cin_p, Cout_p):
    kernel = functools.partial(_conv3x3_stats_kernel,
                               H=H, W=W, Cin_p=Cin_p, Cout_p=Cout_p)
    return pl.pallas_call(
        kernel,
        grid=(N,),
        in_specs=[
            pl.BlockSpec((1, H + 2, W + 2, Cin_p), lambda n: (n, 0, 0, 0)),
            pl.BlockSpec((3, 3 * Cin_p, Cout_p), lambda n: (0, 0, 0)),
        ],
        out_specs=[
            pl.BlockSpec((1, H, W, Cout_p), lambda n: (n, 0, 0, 0)),
            pl.BlockSpec((1, 2, Cout_p), lambda n: (n, 0, 0)),   # per-program stats
        ],
        out_shape=[
            jax.ShapeDtypeStruct((N, H, W, Cout_p), jnp.bfloat16),
            jax.ShapeDtypeStruct((N, 2, Cout_p), jnp.float32),
        ],
        compiler_params=pltpu.CompilerParams(
            dimension_semantics=("parallel",),      # partial stats -> no race
            vmem_limit_bytes=VMEM_LIMIT),
    )(xp, w1)


def _conv2(y1, st1, g1, be1, w2, N, H, W, C_p, count):
    kernel = functools.partial(_bn_relu_conv3x3_stats_kernel,
                               H=H, W=W, C_p=C_p, inv_count=1.0 / count)
    M = N * H * W
    return pl.pallas_call(
        kernel,
        grid=(N,),
        in_specs=[
            pl.BlockSpec((1, H, W, C_p), lambda n: (n, 0, 0, 0)),
            pl.BlockSpec((2, C_p), lambda n: (0, 0)),
            pl.BlockSpec((1, C_p), lambda n: (0, 0)),
            pl.BlockSpec((1, C_p), lambda n: (0, 0)),
            pl.BlockSpec((3, 3 * C_p, C_p), lambda n: (0, 0, 0)),
        ],
        out_specs=[
            pl.BlockSpec((H * W, C_p), lambda n: (n, 0)),
            pl.BlockSpec((1, 2, C_p), lambda n: (n, 0, 0)),
        ],
        out_shape=[
            jax.ShapeDtypeStruct((M, C_p), jnp.bfloat16),
            jax.ShapeDtypeStruct((N, 2, C_p), jnp.float32),
        ],
        compiler_params=pltpu.CompilerParams(
            dimension_semantics=("parallel",),
            vmem_limit_bytes=VMEM_LIMIT),
    )(y1, st1, g1, be1, w2)


def _pick_row_tile(M):
    # TODO(synk): switch to pl.cdiv grid + remainder mask for non-divisible M.
    for t in (2048, 1024, 512, 256, 128, 64, 32, 16, 8):
        if M % t == 0:
            return t
    return M


def _finalize(y2, st2, g2, be2, x_flat, wres, bres, M, Cin_p, Cout_p, count):
    TM = _pick_row_tile(M)
    grid = (M // TM,)
    cparams = pltpu.CompilerParams(dimension_semantics=("parallel",),
                                   vmem_limit_bytes=VMEM_LIMIT)
    if wres is not None:
        kernel = functools.partial(_bn_relu_resconv_add_kernel, inv_count=1.0 / count)
        return pl.pallas_call(
            kernel,
            grid=grid,
            in_specs=[
                pl.BlockSpec((TM, Cout_p), lambda i: (i, 0)),
                pl.BlockSpec((2, Cout_p), lambda i: (0, 0)),
                pl.BlockSpec((1, Cout_p), lambda i: (0, 0)),
                pl.BlockSpec((1, Cout_p), lambda i: (0, 0)),
                pl.BlockSpec((TM, Cin_p), lambda i: (i, 0)),
                pl.BlockSpec((Cin_p, Cout_p), lambda i: (0, 0)),
                pl.BlockSpec((1, Cout_p), lambda i: (0, 0)),
            ],
            out_specs=pl.BlockSpec((TM, Cout_p), lambda i: (i, 0)),
            out_shape=jax.ShapeDtypeStruct((M, Cout_p), jnp.float32),
            compiler_params=cparams,
        )(y2, st2, g2, be2, x_flat, wres, bres)
    kernel = functools.partial(_bn_relu_identity_add_kernel, inv_count=1.0 / count)
    return pl.pallas_call(
        kernel,
        grid=grid,
        in_specs=[
            pl.BlockSpec((TM, Cout_p), lambda i: (i, 0)),
            pl.BlockSpec((2, Cout_p), lambda i: (0, 0)),
            pl.BlockSpec((1, Cout_p), lambda i: (0, 0)),
            pl.BlockSpec((1, Cout_p), lambda i: (0, 0)),
            pl.BlockSpec((TM, Cout_p), lambda i: (i, 0)),
        ],
        out_specs=pl.BlockSpec((TM, Cout_p), lambda i: (i, 0)),
        out_shape=jax.ShapeDtypeStruct((M, Cout_p), jnp.float32),
        compiler_params=cparams,
    )(y2, st2, g2, be2, x_flat)


# ---------------------------------------------------------------------------
# Layout plumbing (XLA side) + forward
# ---------------------------------------------------------------------------
def _conv_w_to_packed_taps(w_oihw, Cin_p, Cout_p):
    """PyTorch (Co, Ci, 3, 3) -> (3, 3*Cin_p, Cout_p) bf16, K packed over (kw, Ci).

    K index of w[di] is dj*Cin_p + c, matching the in-kernel tap concatenation.
    """
    Co, Ci, kh, kw = w_oihw.shape                      # kh = kw = 3 supported
    w = jnp.transpose(w_oihw, (2, 3, 1, 0))            # (kh, kw, Ci, Co)
    w = jnp.pad(w, ((0, 0), (0, 0), (0, Cin_p - Ci), (0, Cout_p - Co)))
    return w.reshape(kh, kw * Cin_p, Cout_p).astype(jnp.bfloat16)


def _pad_row(v, C_p):
    v = v.reshape(1, -1).astype(jnp.float32)
    return jnp.pad(v, ((0, 0), (0, C_p - v.shape[1])))


def resnet_block_forward(x_nchw, params):
    N, Ci, H, W = x_nchw.shape
    Co = params["w1"].shape[0]
    Cin_p = _round_up(Ci, LANE)
    Cout_p = _round_up(Co, LANE)
    M = N * H * W

    # NCHW -> NHWC, lane padding, single bf16 cast, 1px spatial halo for conv1.
    x_nhwc = jnp.transpose(x_nchw, (0, 2, 3, 1))
    x_cpad = jnp.pad(x_nhwc, ((0, 0), (0, 0), (0, 0),
                              (0, Cin_p - Ci))).astype(jnp.bfloat16)
    xp = jnp.pad(x_cpad, ((0, 0), (1, 1), (1, 1), (0, 0)))

    w1 = _conv_w_to_packed_taps(params["w1"], Cin_p, Cout_p)
    w2 = _conv_w_to_packed_taps(params["w2"], Cout_p, Cout_p)
    g1, be1 = _pad_row(params["g1"], Cout_p), _pad_row(params["be1"], Cout_p)
    g2, be2 = _pad_row(params["g2"], Cout_p), _pad_row(params["be2"], Cout_p)
    # conv biases b1/b2 omitted: a per-channel constant before training-mode BN
    # is exactly cancelled by the mean subtraction.

    # pass 1: conv1 (K-packed taps, bf16 MXU / f32 acc) + per-image BN1 partials
    y1, st1p = _conv1(xp, w1, N, H, W, Cin_p, Cout_p)
    st1 = jnp.sum(st1p, axis=0)          # tiny (N,2,C)->(2,C) global-stats reduce

    # pass 2: BN1 + ReLU + in-kernel zero halo + conv2 + per-image BN2 partials
    y2, st2p = _conv2(y1, st1, g1, be1, w2, N, H, W, Cout_p, M)
    st2 = jnp.sum(st2p, axis=0)

    # pass 3: BN2 + ReLU + residual (1x1 conv or identity) + add (M-tiled)
    x_flat = x_cpad.reshape(M, Cin_p)
    if Ci != Co:
        wres = params["wres"].reshape(Co, Ci).T                 # (Ci, Co)
        wres = jnp.pad(wres, ((0, Cin_p - Ci),
                              (0, Cout_p - Co))).astype(jnp.bfloat16)
        bres = _pad_row(params["bres"], Cout_p)
        out = _finalize(y2, st2, g2, be2, x_flat, wres, bres, M, Cin_p, Cout_p, M)
    else:
        out = _finalize(y2, st2, g2, be2, x_flat, None, None, M, Cin_p, Cout_p, M)

    out = out.reshape(N, H, W, Cout_p)[..., :Co]
    return jnp.transpose(out, (0, 3, 1, 2))


# ---------------------------------------------------------------------------
# Parameters (PyTorch-native layout) + pure-JAX reference
# ---------------------------------------------------------------------------
def make_params(dim_in, dim_out, key):
    ks = jax.random.split(key, 6)
    params = {
        "w1": jax.random.normal(ks[0], (dim_out, dim_in, 3, 3), jnp.float32) * 0.1,
        "b1": jax.random.normal(ks[1], (dim_out,), jnp.float32) * 0.1,
        "w2": jax.random.normal(ks[2], (dim_out, dim_out, 3, 3), jnp.float32) * 0.1,
        "b2": jax.random.normal(ks[3], (dim_out,), jnp.float32) * 0.1,
        "g1": jnp.ones((dim_out,), jnp.float32),   # BN weight init (PyTorch default)
        "be1": jnp.zeros((dim_out,), jnp.float32),
        "g2": jnp.ones((dim_out,), jnp.float32),
        "be2": jnp.zeros((dim_out,), jnp.float32),
    }
    if dim_in != dim_out:
        params["wres"] = jax.random.normal(ks[4], (dim_out, dim_in, 1, 1), jnp.float32) * 0.1
        params["bres"] = jax.random.normal(ks[5], (dim_out,), jnp.float32) * 0.1
    return params


def reference_forward(x, params):
    def conv3x3(x, w, b):
        y = jax.lax.conv_general_dilated(
            x, w, window_strides=(1, 1), padding=((1, 1), (1, 1)),
            dimension_numbers=("NCHW", "OIHW", "NCHW"))
        return y + b.reshape(1, -1, 1, 1)

    def bn_relu(y, g, b):
        mean = jnp.mean(y, axis=(0, 2, 3), keepdims=True)
        var = jnp.mean((y - mean) ** 2, axis=(0, 2, 3), keepdims=True)
        yn = (y - mean) * jax.lax.rsqrt(var + EPS)
        yn = yn * g.reshape(1, -1, 1, 1) + b.reshape(1, -1, 1, 1)
        return jnp.maximum(yn, 0.0)

    y = bn_relu(conv3x3(x, params["w1"], params["b1"]), params["g1"], params["be1"])
    y = bn_relu(conv3x3(y, params["w2"], params["b2"]), params["g2"], params["be2"])
    if "wres" in params:
        r = jax.lax.conv_general_dilated(
            x, params["wres"], window_strides=(1, 1), padding="VALID",
            dimension_numbers=("NCHW", "OIHW", "NCHW"))
        r = r + params["bres"].reshape(1, -1, 1, 1)
    else:
        r = x
    return y + r


if __name__ == "__main__":
    key = jax.random.PRNGKey(0)
    kx, kp = jax.random.split(key)

    N, dim_in, dim_out, H, W = 2, 4, 8, 16, 16
    x = jax.random.normal(kx, (N, dim_in, H, W), jnp.float32)   # NCHW, like PyTorch
    params = make_params(dim_in, dim_out, kp)

    fwd = jax.jit(resnet_block_forward)
    out = jax.block_until_ready(fwd(x, params))

    assert out.shape == (N, dim_out, H, W)
    assert bool(jnp.all(jnp.isfinite(out)))

    ref = jax.block_until_ready(reference_forward(x, params))
    max_err = float(jnp.max(jnp.abs(out - ref)))
    assert max_err < 5e-2, f"max abs err vs f32 reference: {max_err}"

    print("KERNEL_OK")
</pallas_src>

<mosaic_0001>
module attributes {stable_mosaic.version = 11 : i64} {
  func.func @_conv3x3_stats_kernel(%arg0: i32, %arg1: memref<1x18x18x128xbf16, #tpu.memory_space<vmem>>, %arg2: memref<3x384x128xbf16, #tpu.memory_space<vmem>>, %arg3: memref<1x16x16x128xbf16, #tpu.memory_space<vmem>>, %arg4: memref<1x2x128xf32, #tpu.memory_space<vmem>>) attributes {dimension_semantics = [#tpu.dimension_semantics<parallel>], iteration_bounds = array<i64: 2>, scalar_prefetch = 0 : i64, scratch_operands = 0 : i64, tpu.core_type = #tpu.core_type<tc>, window_params = [{transform_indices = @transform_0, window_bounds = array<i64: 1, 18, 18, 128>}, {pipeline_mode = #tpu.pipeline_mode<synchronous>, transform_indices = @transform_1, window_bounds = array<i64: 3, 384, 128>}, {transform_indices = @transform_2, window_bounds = array<i64: 1, 16, 16, 128>}, {transform_indices = @transform_3, window_bounds = array<i64: 1, 2, 128>}]} {
    %cst = arith.constant 0.000000e+00 : f32
    %0 = vector.broadcast %cst : f32 to vector<256x128xf32>
    %c0 = arith.constant 0 : index
    %c0_0 = arith.constant 0 : index
    %c0_1 = arith.constant 0 : index
    %c0_2 = arith.constant 0 : index
    %1 = vector.load %arg1[%c0, %c0_0, %c0_1, %c0_2] : memref<1x18x18x128xbf16, #tpu.memory_space<vmem>>, vector<1x16x18x128xbf16>
    %2 = vector.shape_cast %1 : vector<1x16x18x128xbf16> to vector<16x18x128xbf16>
    %3 = vector.extract_strided_slice %2 {offsets = [0, 0, 0], sizes = [16, 16, 128], strides = [1, 1, 1]} : vector<16x18x128xbf16> to vector<16x16x128xbf16>
    %4 = vector.extract_strided_slice %2 {offsets = [0, 1, 0], sizes = [16, 16, 128], strides = [1, 1, 1]} : vector<16x18x128xbf16> to vector<16x16x128xbf16>
    %5 = vector.extract_strided_slice %2 {offsets = [0, 2, 0], sizes = [16, 16, 128], strides = [1, 1, 1]} : vector<16x18x128xbf16> to vector<16x16x128xbf16>
    %6 = tpu.concatenate %3, %4, %5 in 2 : vector<16x16x128xbf16>, vector<16x16x128xbf16>, vector<16x16x128xbf16> -> vector<16x16x384xbf16>
    %7 = vector.shape_cast %6 : vector<16x16x384xbf16> to vector<256x384xbf16>
    %c0_3 = arith.constant 0 : index
    %c0_4 = arith.constant 0 : index
    %c0_5 = arith.constant 0 : index
    %8 = vector.load %arg2[%c0_3, %c0_4, %c0_5] : memref<3x384x128xbf16, #tpu.memory_space<vmem>>, vector<1x384x128xbf16>
    %9 = vector.shape_cast %8 : vector<1x384x128xbf16> to vector<384x128xbf16>
    %cst_6 = arith.constant dense<0.000000e+00> : vector<256x128xf32>
    %10 = tpu.matmul %7, %9, %cst_6 {dimension_numbers = #tpu.dot_dimension_numbers<[1], [0], [0], [1], [0, 0, 1, 1], [], []>} : vector<256x384xbf16>, vector<384x128xbf16>, vector<256x128xf32> -> vector<256x128xf32>
    %11 = arith.addf %0, %10 : vector<256x128xf32>
    %c0_7 = arith.constant 0 : index
    %c1 = arith.constant 1 : index
    %c0_8 = arith.constant 0 : index
    %c0_9 = arith.constant 0 : index
    %12 = vector.load %arg1[%c0_7, %c1, %c0_8, %c0_9] : memref<1x18x18x128xbf16, #tpu.memory_space<vmem>>, vector<1x16x18x128xbf16>
    %13 = vector.shape_cast %12 : vector<1x16x18x128xbf16> to vector<16x18x128xbf16>
    %14 = vector.extract_strided_slice %13 {offsets = [0, 0, 0], sizes = [16, 16, 128], strides = [1, 1, 1]} : vector<16x18x128xbf16> to vector<16x16x128xbf16>
    %15 = vector.extract_strided_slice %13 {offsets = [0, 1, 0], sizes = [16, 16, 128], strides = [1, 1, 1]} : vector<16x18x128xbf16> to vector<16x16x128xbf16>
    %16 = vector.extract_strided_slice %13 {offsets = [0, 2, 0], sizes = [16, 16, 128], strides = [1, 1, 1]} : vector<16x18x128xbf16> to vector<16x16x128xbf16>
    %17 = tpu.concatenate %14, %15, %16 in 2 : vector<16x16x128xbf16>, vector<16x16x128xbf16>, vector<16x16x128xbf16> -> vector<16x16x384xbf16>
    %18 = vector.shape_cast %17 : vector<16x16x384xbf16> to vector<256x384xbf16>
    %c1_10 = arith.constant 1 : index
    %c0_11 = arith.constant 0 : index
    %c0_12 = arith.constant 0 : index
    %19 = vector.load %arg2[%c1_10, %c0_11, %c0_12] : memref<3x384x128xbf16, #tpu.memory_space<vmem>>, vector<1x384x128xbf16>
    %20 = vector.shape_cast %19 : vector<1x384x128xbf16> to vector<384x128xbf16>
    %cst_13 = arith.constant dense<0.000000e+00> : vector<256x128xf32>
    %21 = tpu.matmul %18, %20, %cst_13 {dimension_numbers = #tpu.dot_dimension_numbers<[1], [0], [0], [1], [0, 0, 1, 1], [], []>} : vector<256x384xbf16>, vector<384x128xbf16>, vector<256x128xf32> -> vector<256x128xf32>
    %22 = arith.addf %11, %21 : vector<256x128xf32>
    %c0_14 = arith.constant 0 : index
    %c2 = arith.constant 2 : index
    %c0_15 = arith.constant 0 : index
    %c0_16 = arith.constant 0 : index
    %23 = vector.load %arg1[%c0_14, %c2, %c0_15, %c0_16] : memref<1x18x18x128xbf16, #tpu.memory_space<vmem>>, vector<1x16x18x128xbf16>
    %24 = vector.shape_cast %23 : vector<1x16x18x128xbf16> to vector<16x18x128xbf16>
    %25 = vector.extract_strided_slice %24 {offsets = [0, 0, 0], sizes = [16, 16, 128], strides = [1, 1, 1]} : vector<16x18x128xbf16> to vector<16x16x128xbf16>
    %26 = vector.extract_strided_slice %24 {offsets = [0, 1, 0], sizes = [16, 16, 128], strides = [1, 1, 1]} : vector<16x18x128xbf16> to vector<16x16x128xbf16>
    %27 = vector.extract_strided_slice %24 {offsets = [0, 2, 0], sizes = [16, 16, 128], strides = [1, 1, 1]} : vector<16x18x128xbf16> to vector<16x16x128xbf16>
    %28 = tpu.concatenate %25, %26, %27 in 2 : vector<16x16x128xbf16>, vector<16x16x128xbf16>, vector<16x16x128xbf16> -> vector<16x16x384xbf16>
    %29 = vector.shape_cast %28 : vector<16x16x384xbf16> to vector<256x384xbf16>
    %c2_17 = arith.constant 2 : index
    %c0_18 = arith.constant 0 : index
    %c0_19 = arith.constant 0 : index
    %30 = vector.load %arg2[%c2_17, %c0_18, %c0_19] : memref<3x384x128xbf16, #tpu.memory_space<vmem>>, vector<1x384x128xbf16>
    %31 = vector.shape_cast %30 : vector<1x384x128xbf16> to vector<384x128xbf16>
    %cst_20 = arith.constant dense<0.000000e+00> : vector<256x128xf32>
    %32 = tpu.matmul %29, %31, %cst_20 {dimension_numbers = #tpu.dot_dimension_numbers<[1], [0], [0], [1], [0, 0, 1, 1], [], []>} : vector<256x384xbf16>, vector<384x128xbf16>, vector<256x128xf32> -> vector<256x128xf32>
    %33 = arith.addf %22, %32 : vector<256x128xf32>
    %34 = vector.shape_cast %33 : vector<256x128xf32> to vector<16x16x128xf32>
    %35 = arith.truncf %34 : vector<16x16x128xf32> to vector<16x16x128xbf16>
    %c0_21 = arith.constant 0 : index
    %c0_22 = arith.constant 0 : index
    %c0_23 = arith.constant 0 : index
    %c0_24 = arith.constant 0 : index
    %36 = vector.load %arg3[%c0_21, %c0_22, %c0_23, %c0_24] : memref<1x16x16x128xbf16, #tpu.memory_space<vmem>>, vector<1x16x16x128xbf16>
    %37 = vector.shape_cast %36 : vector<1x16x16x128xbf16> to vector<16x16x128xbf16>
    %38 = vector.shape_cast %35 : vector<16x16x128xbf16> to vector<1x16x16x128xbf16>
    tpu.vector_store %arg3[%c0_21, %c0_22, %c0_23, %c0_24], %38 {strides = array<i32>} : memref<1x16x16x128xbf16, #tpu.memory_space<vmem>>, vector<1x16x16x128xbf16>,
    %cst_25 = arith.constant dense<0.000000e+00> : vector<128xf32>
    %39 = vector.multi_reduction <add>, %33, %cst_25 [0] : vector<256x128xf32> to vector<128xf32>
    %40 = vector.shape_cast %39 : vector<128xf32> to vector<1x128xf32>
    %41 = arith.mulf %33, %33 : vector<256x128xf32>
    %cst_26 = arith.constant dense<0.000000e+00> : vector<128xf32>
    %42 = vector.multi_reduction <add>, %41, %cst_26 [0] : vector<256x128xf32> to vector<128xf32>
    %43 = vector.shape_cast %42 : vector<128xf32> to vector<1x128xf32>
    %44 = tpu.concatenate %40, %43 in 0 : vector<1x128xf32>, vector<1x128xf32> -> vector<2x128xf32>
    %c0_27 = arith.constant 0 : index
    %c0_28 = arith.constant 0 : index
    %c0_29 = arith.constant 0 : index
    %45 = vector.load %arg4[%c0_27, %c0_28, %c0_29] : memref<1x2x128xf32, #tpu.memory_space<vmem>>, vector<1x2x128xf32>
    %46 = vector.shape_cast %45 : vector<1x2x128xf32> to vector<2x128xf32>
    %47 = vector.shape_cast %44 : vector<2x128xf32> to vector<1x2x128xf32>
    tpu.vector_store %arg4[%c0_27, %c0_28, %c0_29], %47 {strides = array<i32>} : memref<1x2x128xf32, #tpu.memory_space<vmem>>, vector<1x2x128xf32>,
    return
  }
  func.func @transform_0(%arg0: i32) -> (i32, i32, i32, i32) {
    %c0_i32 = arith.constant 0 : i32
    %c0_i32_0 = arith.constant 0 : i32
    %c0_i32_1 = arith.constant 0 : i32
    %c0_i32_2 = arith.constant 0 : i32
    return %arg0, %c0_i32, %c0_i32_0, %c0_i32_1 : i32, i32, i32, i32
  }
  func.func @transform_1(%arg0: i32) -> (i32, i32, i32) {
    %c0_i32 = arith.constant 0 : i32
    %c0_i32_0 = arith.constant 0 : i32
    %c0_i32_1 = arith.constant 0 : i32
    %c0_i32_2 = arith.constant 0 : i32
    return %c0_i32, %c0_i32_0, %c0_i32_1 : i32, i32, i32
  }
  func.func @transform_2(%arg0: i32) -> (i32, i32, i32, i32) {
    %c0_i32 = arith.constant 0 : i32
    %c0_i32_0 = arith.constant 0 : i32
    %c0_i32_1 = arith.constant 0 : i32
    %c0_i32_2 = arith.constant 0 : i32
    return %arg0, %c0_i32, %c0_i32_0, %c0_i32_1 : i32, i32, i32, i32
  }
  func.func @transform_3(%arg0: i32) -> (i32, i32, i32) {
    %c0_i32 = arith.constant 0 : i32
    %c0_i32_0 = arith.constant 0 : i32
    %c0_i32_1 = arith.constant 0 : i32
    return %arg0, %c0_i32, %c0_i32_0 : i32, i32, i32
  }
}

module attributes {stable_mosaic.version = 11 : i64} {
  func.func @_bn_relu_conv3x3_stats_kernel(%arg0: i32, %arg1: memref<1x16x16x128xbf16, #tpu.memory_space<vmem>>, %arg2: memref<2x128xf32, #tpu.memory_space<vmem>>, %arg3: memref<1x128xf32, #tpu.memory_space<vmem>>, %arg4: memref<1x128xf32, #tpu.memory_space<vmem>>, %arg5: memref<3x384x128xbf16, #tpu.memory_space<vmem>>, %arg6: memref<256x128xbf16, #tpu.memory_space<vmem>>, %arg7: memref<1x2x128xf32, #tpu.memory_space<vmem>>) attributes {dimension_semantics = [#tpu.dimension_semantics<parallel>], iteration_bounds = array<i64: 2>, scalar_prefetch = 0 : i64, scratch_operands = 0 : i64, tpu.core_type = #tpu.core_type<tc>, window_params = [{transform_indices = @transform_0, window_bounds = array<i64: 1, 16, 16, 128>}, {pipeline_mode = #tpu.pipeline_mode<synchronous>, transform_indices = @transform_1, window_bounds = array<i64: 2, 128>}, {pipeline_mode = #tpu.pipeline_mode<synchronous>, transform_indices = @transform_2, window_bounds = array<i64: 1, 128>}, {pipeline_mode = #tpu.pipeline_mode<synchronous>, transform_indices = @transform_3, window_bounds = array<i64: 1, 128>}, {pipeline_mode = #tpu.pipeline_mode<synchronous>, transform_indices = @transform_4, window_bounds = array<i64: 3, 384, 128>}, {transform_indices = @transform_5, window_bounds = array<i64: 256, 128>}, {transform_indices = @transform_6, window_bounds = array<i64: 1, 2, 128>}]} {
    %c0 = arith.constant 0 : index
    %c0_0 = arith.constant 0 : index
    %0 = vector.load %arg2[%c0, %c0_0] : memref<2x128xf32, #tpu.memory_space<vmem>>, vector<1x128xf32>
    %cst = arith.constant 0.001953125 : f32
    %1 = vector.broadcast %cst : f32 to vector<1x128xf32>
    %2 = arith.mulf %0, %1 : vector<1x128xf32>
    %c1 = arith.constant 1 : index
    %c0_1 = arith.constant 0 : index
    %3 = vector.load %arg2[%c1, %c0_1] : memref<2x128xf32, #tpu.memory_space<vmem>>, vector<1x128xf32>
    %cst_2 = arith.constant 0.001953125 : f32
    %4 = vector.broadcast %cst_2 : f32 to vector<1x128xf32>
    %5 = arith.mulf %3, %4 : vector<1x128xf32>
    %6 = arith.mulf %2, %2 : vector<1x128xf32>
    %7 = arith.subf %5, %6 : vector<1x128xf32>
    %cst_3 = arith.constant 9.99999974E-6 : f32
    %8 = vector.broadcast %cst_3 : f32 to vector<1x128xf32>
    %9 = arith.addf %7, %8 : vector<1x128xf32>
    %10 = math.rsqrt %9 : vector<1x128xf32>
    %c0_4 = arith.constant 0 : index
    %c0_5 = arith.constant 0 : index
    %11 = vector.load %arg3[%c0_4, %c0_5] : memref<1x128xf32, #tpu.memory_space<vmem>>, vector<1x128xf32>
    %12 = arith.mulf %10, %11 : vector<1x128xf32>
    %c0_6 = arith.constant 0 : index
    %c0_7 = arith.constant 0 : index
    %13 = vector.load %arg4[%c0_6, %c0_7] : memref<1x128xf32, #tpu.memory_space<vmem>>, vector<1x128xf32>
    %14 = arith.mulf %2, %12 : vector<1x128xf32>
    %15 = arith.subf %13, %14 : vector<1x128xf32>
    %c0_8 = arith.constant 0 : index
    %c0_9 = arith.constant 0 : index
    %c0_10 = arith.constant 0 : index
    %c0_11 = arith.constant 0 : index
    %16 = vector.load %arg1[%c0_8, %c0_9, %c0_10, %c0_11] : memref<1x16x16x128xbf16, #tpu.memory_space<vmem>>, vector<1x16x16x128xbf16>
    %17 = vector.shape_cast %16 : vector<1x16x16x128xbf16> to vector<16x16x128xbf16>
    %18 = arith.extf %17 : vector<16x16x128xbf16> to vector<16x16x128xf32>
    %19 = vector.shape_cast %12 : vector<1x128xf32> to vector<1x1x128xf32>
    %20 = vector.broadcast %19 : vector<1x1x128xf32> to vector<16x16x128xf32>
    %21 = arith.mulf %18, %20 : vector<16x16x128xf32>
    %22 = vector.shape_cast %15 : vector<1x128xf32> to vector<1x1x128xf32>
    %23 = vector.broadcast %22 : vector<1x1x128xf32> to vector<16x16x128xf32>
    %24 = arith.addf %21, %23 : vector<16x16x128xf32>
    %cst_12 = arith.constant 0.000000e+00 : f32
    %25 = vector.broadcast %cst_12 : f32 to vector<16x16x128xf32>
    %26 = arith.maximumf %24, %25 : vector<16x16x128xf32>
    %27 = arith.truncf %26 : vector<16x16x128xf32> to vector<16x16x128xbf16>
    %cst_13 = arith.constant 0.000000e+00 : bf16
    %28 = vector.broadcast %cst_13 : bf16 to vector<16x1x128xbf16>
    %29 = tpu.concatenate %28, %27, %28 in 1 : vector<16x1x128xbf16>, vector<16x16x128xbf16>, vector<16x1x128xbf16> -> vector<16x18x128xbf16>
    %cst_14 = arith.constant 0.000000e+00 : bf16
    %30 = vector.broadcast %cst_14 : bf16 to vector<1x18x128xbf16>
    %31 = tpu.concatenate %30, %29, %30 in 0 : vector<1x18x128xbf16>, vector<16x18x128xbf16>, vector<1x18x128xbf16> -> vector<18x18x128xbf16>
    %cst_15 = arith.constant 0.000000e+00 : f32
    %32 = vector.broadcast %cst_15 : f32 to vector<256x128xf32>
    %33 = vector.extract_strided_slice %31 {offsets = [0, 0, 0], sizes = [16, 18, 128], strides = [1, 1, 1]} : vector<18x18x128xbf16> to vector<16x18x128xbf16>
    %34 = vector.extract_strided_slice %33 {offsets = [0, 0, 0], sizes = [16, 16, 128], strides = [1, 1, 1]} : vector<16x18x128xbf16> to vector<16x16x128xbf16>
    %35 = vector.extract_strided_slice %33 {offsets = [0, 1, 0], sizes = [16, 16, 128], strides = [1, 1, 1]} : vector<16x18x128xbf16> to vector<16x16x128xbf16>
    %36 = vector.extract_strided_slice %33 {offsets = [0, 2, 0], sizes = [16, 16, 128], strides = [1, 1, 1]} : vector<16x18x128xbf16> to vector<16x16x128xbf16>
    %37 = tpu.concatenate %34, %35, %36 in 2 : vector<16x16x128xbf16>, vector<16x16x128xbf16>, vector<16x16x128xbf16> -> vector<16x16x384xbf16>
    %38 = vector.shape_cast %37 : vector<16x16x384xbf16> to vector<256x384xbf16>
    %c0_16 = arith.constant 0 : index
    %c0_17 = arith.constant 0 : index
    %c0_18 = arith.constant 0 : index
    %39 = vector.load %arg5[%c0_16, %c0_17, %c0_18] : memref<3x384x128xbf16, #tpu.memory_space<vmem>>, vector<1x384x128xbf16>
    %40 = vector.shape_cast %39 : vector<1x384x128xbf16> to vector<384x128xbf16>
    %cst_19 = arith.constant dense<0.000000e+00> : vector<256x128xf32>
    %41 = tpu.matmul %38, %40, %cst_19 {dimension_numbers = #tpu.dot_dimension_numbers<[1], [0], [0], [1], [0, 0, 1, 1], [], []>} : vector<256x384xbf16>, vector<384x128xbf16>, vector<256x128xf32> -> vector<256x128xf32>
    %42 = arith.addf %32, %41 : vector<256x128xf32>
    %43 = vector.extract_strided_slice %31 {offsets = [1, 0, 0], sizes = [16, 18, 128], strides = [1, 1, 1]} : vector<18x18x128xbf16> to vector<16x18x128xbf16>
    %44 = vector.extract_strided_slice %43 {offsets = [0, 0, 0], sizes = [16, 16, 128], strides = [1, 1, 1]} : vector<16x18x128xbf16> to vector<16x16x128xbf16>
    %45 = vector.extract_strided_slice %43 {offsets = [0, 1, 0], sizes = [16, 16, 128], strides = [1, 1, 1]} : vector<16x18x128xbf16> to vector<16x16x128xbf16>
    %46 = vector.extract_strided_slice %43 {offsets = [0, 2, 0], sizes = [16, 16, 128], strides = [1, 1, 1]} : vector<16x18x128xbf16> to vector<16x16x128xbf16>
    %47 = tpu.concatenate %44, %45, %46 in 2 : vector<16x16x128xbf16>, vector<16x16x128xbf16>, vector<16x16x128xbf16> -> vector<16x16x384xbf16>
    %48 = vector.shape_cast %47 : vector<16x16x384xbf16> to vector<256x384xbf16>
    %c1_20 = arith.constant 1 : index
    %c0_21 = arith.constant 0 : index
    %c0_22 = arith.constant 0 : index
    %49 = vector.load %arg5[%c1_20, %c0_21, %c0_22] : memref<3x384x128xbf16, #tpu.memory_space<vmem>>, vector<1x384x128xbf16>
    %50 = vector.shape_cast %49 : vector<1x384x128xbf16> to vector<384x128xbf16>
    %cst_23 = arith.constant dense<0.000000e+00> : vector<256x128xf32>
    %51 = tpu.matmul %48, %50, %cst_23 {dimension_numbers = #tpu.dot_dimension_numbers<[1], [0], [0], [1], [0, 0, 1, 1], [], []>} : vector<256x384xbf16>, vector<384x128xbf16>, vector<256x128xf32> -> vector<256x128xf32>
    %52 = arith.addf %42, %51 : vector<256x128xf32>
    %53 = vector.extract_strided_slice %31 {offsets = [2, 0, 0], sizes = [16, 18, 128], strides = [1, 1, 1]} : vector<18x18x128xbf16> to vector<16x18x128xbf16>
    %54 = vector.extract_strided_slice %53 {offsets = [0, 0, 0], sizes = [16, 16, 128], strides = [1, 1, 1]} : vector<16x18x128xbf16> to vector<16x16x128xbf16>
    %55 = vector.extract_strided_slice %53 {offsets = [0, 1, 0], sizes = [16, 16, 128], strides = [1, 1, 1]} : vector<16x18x128xbf16> to vector<16x16x128xbf16>
    %56 = vector.extract_strided_slice %53 {offsets = [0, 2, 0], sizes = [16, 16, 128], strides = [1, 1, 1]} : vector<16x18x128xbf16> to vector<16x16x128xbf16>
    %57 = tpu.concatenate %54, %55, %56 in 2 : vector<16x16x128xbf16>, vector<16x16x128xbf16>, vector<16x16x128xbf16> -> vector<16x16x384xbf16>
    %58 = vector.shape_cast %57 : vector<16x16x384xbf16> to vector<256x384xbf16>
    %c2 = arith.constant 2 : index
    %c0_24 = arith.constant 0 : index
    %c0_25 = arith.constant 0 : index
    %59 = vector.load %arg5[%c2, %c0_24, %c0_25] : memref<3x384x128xbf16, #tpu.memory_space<vmem>>, vector<1x384x128xbf16>
    %60 = vector.shape_cast %59 : vector<1x384x128xbf16> to vector<384x128xbf16>
    %cst_26 = arith.constant dense<0.000000e+00> : vector<256x128xf32>
    %61 = tpu.matmul %58, %60, %cst_26 {dimension_numbers = #tpu.dot_dimension_numbers<[1], [0], [0], [1], [0, 0, 1, 1], [], []>} : vector<256x384xbf16>, vector<384x128xbf16>, vector<256x128xf32> -> vector<256x128xf32>
    %62 = arith.addf %52, %61 : vector<256x128xf32>
    %63 = arith.truncf %62 : vector<256x128xf32> to vector<256x128xbf16>
    %c0_27 = arith.constant 0 : index
    %c0_28 = arith.constant 0 : index
    %64 = vector.load %arg6[%c0_27, %c0_28] : memref<256x128xbf16, #tpu.memory_space<vmem>>, vector<256x128xbf16>
    tpu.vector_store %arg6[%c0_27, %c0_28], %63 {strides = array<i32>} : memref<256x128xbf16, #tpu.memory_space<vmem>>, vector<256x128xbf16>,
    %cst_29 = arith.constant dense<0.000000e+00> : vector<128xf32>
    %65 = vector.multi_reduction <add>, %62, %cst_29 [0] : vector<256x128xf32> to vector<128xf32>
    %66 = vector.shape_cast %65 : vector<128xf32> to vector<1x128xf32>
    %67 = arith.mulf %62, %62 : vector<256x128xf32>
    %cst_30 = arith.constant dense<0.000000e+00> : vector<128xf32>
    %68 = vector.multi_reduction <add>, %67, %cst_30 [0] : vector<256x128xf32> to vector<128xf32>
    %69 = vector.shape_cast %68 : vector<128xf32> to vector<1x128xf32>
    %70 = tpu.concatenate %66, %69 in 0 : vector<1x128xf32>, vector<1x128xf32> -> vector<2x128xf32>
    %c0_31 = arith.constant 0 : index
    %c0_32 = arith.constant 0 : index
    %c0_33 = arith.constant 0 : index
    %71 = vector.load %arg7[%c0_31, %c0_32, %c0_33] : memref<1x2x128xf32, #tpu.memory_space<vmem>>, vector<1x2x128xf32>
    %72 = vector.shape_cast %71 : vector<1x2x128xf32> to vector<2x128xf32>
    %73 = vector.shape_cast %70 : vector<2x128xf32> to vector<1x2x128xf32>
    tpu.vector_store %arg7[%c0_31, %c0_32, %c0_33], %73 {strides = array<i32>} : memref<1x2x128xf32, #tpu.memory_space<vmem>>, vector<1x2x128xf32>,
    return
  }
  func.func @transform_0(%arg0: i32) -> (i32, i32, i32, i32) {
    %c0_i32 = arith.constant 0 : i32
    %c0_i32_0 = arith.constant 0 : i32
    %c0_i32_1 = arith.constant 0 : i32
    %c0_i32_2 = arith.constant 0 : i32
    return %arg0, %c0_i32, %c0_i32_0, %c0_i32_1 : i32, i32, i32, i32
  }
  func.func @transform_1(%arg0: i32) -> (i32, i32) {
    %c0_i32 = arith.constant 0 : i32
    %c0_i32_0 = arith.constant 0 : i32
    %c0_i32_1 = arith.constant 0 : i32
    return %c0_i32, %c0_i32_0 : i32, i32
  }
  func.func @transform_2(%arg0: i32) -> (i32, i32) {
    %c0_i32 = arith.constant 0 : i32
    %c0_i32_0 = arith.constant 0 : i32
    %c0_i32_1 = arith.constant 0 : i32
    return %c0_i32, %c0_i32_0 : i32, i32
  }
  func.func @transform_3(%arg0: i32) -> (i32, i32) {
    %c0_i32 = arith.constant 0 : i32
    %c0_i32_0 = arith.constant 0 : i32
    %c0_i32_1 = arith.constant 0 : i32
    return %c0_i32, %c0_i32_0 : i32, i32
  }
  func.func @transform_4(%arg0: i32) -> (i32, i32, i32) {
    %c0_i32 = arith.constant 0 : i32
    %c0_i32_0 = arith.constant 0 : i32
    %c0_i32_1 = arith.constant 0 : i32
    %c0_i32_2 = arith.constant 0 : i32
    return %c0_i32, %c0_i32_0, %c0_i32_1 : i32, i32, i32
  }
  func.func @transform_5(%arg0: i32) -> (i32, i32) {
    %c0_i32 = arith.constant 0 : i32
    %c0_i32_0 = arith.constant 0 : i32
    return %arg0, %c0_i32 : i32, i32
  }
  func.func @transform_6(%arg0: i32) -> (i32, i32, i32) {
    %c0_i32 = arith.constant 0 : i32
    %c0_i32_0 = arith.constant 0 : i32
    %c0_i32_1 = arith.constant 0 : i32
    return %arg0, %c0_i32, %c0_i32_0 : i32, i32, i32
  }
}

module attributes {stable_mosaic.version = 11 : i64} {
  func.func @_bn_relu_resconv_add_kernel(%arg0: i32, %arg1: memref<512x128xbf16, #tpu.memory_space<vmem>>, %arg2: memref<2x128xf32, #tpu.memory_space<vmem>>, %arg3: memref<1x128xf32, #tpu.memory_space<vmem>>, %arg4: memref<1x128xf32, #tpu.memory_space<vmem>>, %arg5: memref<512x128xbf16, #tpu.memory_space<vmem>>, %arg6: memref<128x128xbf16, #tpu.memory_space<vmem>>, %arg7: memref<1x128xf32, #tpu.memory_space<vmem>>, %arg8: memref<512x128xf32, #tpu.memory_space<vmem>>) attributes {dimension_semantics = [#tpu.dimension_semantics<parallel>], iteration_bounds = array<i64: 1>, scalar_prefetch = 0 : i64, scratch_operands = 0 : i64, tpu.core_type = #tpu.core_type<tc>, window_params = [{transform_indices = @transform_0, window_bounds = array<i64: 512, 128>}, {pipeline_mode = #tpu.pipeline_mode<synchronous>, transform_indices = @transform_1, window_bounds = array<i64: 2, 128>}, {pipeline_mode = #tpu.pipeline_mode<synchronous>, transform_indices = @transform_2, window_bounds = array<i64: 1, 128>}, {pipeline_mode = #tpu.pipeline_mode<synchronous>, transform_indices = @transform_3, window_bounds = array<i64: 1, 128>}, {transform_indices = @transform_4, window_bounds = array<i64: 512, 128>}, {pipeline_mode = #tpu.pipeline_mode<synchronous>, transform_indices = @transform_5, window_bounds = array<i64: 128, 128>}, {pipeline_mode = #tpu.pipeline_mode<synchronous>, transform_indices = @transform_6, window_bounds = array<i64: 1, 128>}, {transform_indices = @transform_7, window_bounds = array<i64: 512, 128>}]} {
    %c0 = arith.constant 0 : index
    %c0_0 = arith.constant 0 : index
    %0 = vector.load %arg2[%c0, %c0_0] : memref<2x128xf32, #tpu.memory_space<vmem>>, vector<1x128xf32>
    %cst = arith.constant 0.001953125 : f32
    %1 = vector.broadcast %cst : f32 to vector<1x128xf32>
    %2 = arith.mulf %0, %1 : vector<1x128xf32>
    %c1 = arith.constant 1 : index
    %c0_1 = arith.constant 0 : index
    %3 = vector.load %arg2[%c1, %c0_1] : memref<2x128xf32, #tpu.memory_space<vmem>>, vector<1x128xf32>
    %cst_2 = arith.constant 0.001953125 : f32
    %4 = vector.broadcast %cst_2 : f32 to vector<1x128xf32>
    %5 = arith.mulf %3, %4 : vector<1x128xf32>
    %6 = arith.mulf %2, %2 : vector<1x128xf32>
    %7 = arith.subf %5, %6 : vector<1x128xf32>
    %cst_3 = arith.constant 9.99999974E-6 : f32
    %8 = vector.broadcast %cst_3 : f32 to vector<1x128xf32>
    %9 = arith.addf %7, %8 : vector<1x128xf32>
    %10 = math.rsqrt %9 : vector<1x128xf32>
    %c0_4 = arith.constant 0 : index
    %c0_5 = arith.constant 0 : index
    %11 = vector.load %arg3[%c0_4, %c0_5] : memref<1x128xf32, #tpu.memory_space<vmem>>, vector<1x128xf32>
    %12 = arith.mulf %10, %11 : vector<1x128xf32>
    %c0_6 = arith.constant 0 : index
    %c0_7 = arith.constant 0 : index
    %13 = vector.load %arg4[%c0_6, %c0_7] : memref<1x128xf32, #tpu.memory_space<vmem>>, vector<1x128xf32>
    %14 = arith.mulf %2, %12 : vector<1x128xf32>
    %15 = arith.subf %13, %14 : vector<1x128xf32>
    %c0_8 = arith.constant 0 : index
    %c0_9 = arith.constant 0 : index
    %16 = vector.load %arg1[%c0_8, %c0_9] : memref<512x128xbf16, #tpu.memory_space<vmem>>, vector<512x128xbf16>
    %17 = arith.extf %16 : vector<512x128xbf16> to vector<512x128xf32>
    %18 = vector.broadcast %12 : vector<1x128xf32> to vector<512x128xf32>
    %19 = arith.mulf %17, %18 : vector<512x128xf32>
    %20 = vector.broadcast %15 : vector<1x128xf32> to vector<512x128xf32>
    %21 = arith.addf %19, %20 : vector<512x128xf32>
    %cst_10 = arith.constant 0.000000e+00 : f32
    %22 = vector.broadcast %cst_10 : f32 to vector<512x128xf32>
    %23 = arith.maximumf %21, %22 : vector<512x128xf32>
    %c0_11 = arith.constant 0 : index
    %c0_12 = arith.constant 0 : index
    %24 = vector.load %arg5[%c0_11, %c0_12] : memref<512x128xbf16, #tpu.memory_space<vmem>>, vector<512x128xbf16>
    %c0_13 = arith.constant 0 : index
    %c0_14 = arith.constant 0 : index
    %25 = vector.load %arg6[%c0_13, %c0_14] : memref<128x128xbf16, #tpu.memory_space<vmem>>, vector<128x128xbf16>
    %cst_15 = arith.constant dense<0.000000e+00> : vector<512x128xf32>
    %26 = tpu.matmul %24, %25, %cst_15 {dimension_numbers = #tpu.dot_dimension_numbers<[1], [0], [0], [1], [0, 0, 1, 1], [], []>} : vector<512x128xbf16>, vector<128x128xbf16>, vector<512x128xf32> -> vector<512x128xf32>
    %27 = arith.addf %23, %26 : vector<512x128xf32>
    %c0_16 = arith.constant 0 : index
    %c0_17 = arith.constant 0 : index
    %28 = vector.load %arg7[%c0_16, %c0_17] : memref<1x128xf32, #tpu.memory_space<vmem>>, vector<1x128xf32>
    %29 = vector.broadcast %28 : vector<1x128xf32> to vector<512x128xf32>
    %30 = arith.addf %27, %29 : vector<512x128xf32>
    %c0_18 = arith.constant 0 : index
    %c0_19 = arith.constant 0 : index
    %31 = vector.load %arg8[%c0_18, %c0_19] : memref<512x128xf32, #tpu.memory_space<vmem>>, vector<512x128xf32>
    tpu.vector_store %arg8[%c0_18, %c0_19], %30 {strides = array<i32>} : memref<512x128xf32, #tpu.memory_space<vmem>>, vector<512x128xf32>,
    return
  }
  func.func @transform_0(%arg0: i32) -> (i32, i32) {
    %c0_i32 = arith.constant 0 : i32
    %c0_i32_0 = arith.constant 0 : i32
    return %arg0, %c0_i32 : i32, i32
  }
  func.func @transform_1(%arg0: i32) -> (i32, i32) {
    %c0_i32 = arith.constant 0 : i32
    %c0_i32_0 = arith.constant 0 : i32
    %c0_i32_1 = arith.constant 0 : i32
    return %c0_i32, %c0_i32_0 : i32, i32
  }
  func.func @transform_2(%arg0: i32) -> (i32, i32) {
    %c0_i32 = arith.constant 0 : i32
    %c0_i32_0 = arith.constant 0 : i32
    %c0_i32_1 = arith.constant 0 : i32
    return %c0_i32, %c0_i32_0 : i32, i32
  }
  func.func @transform_3(%arg0: i32) -> (i32, i32) {
    %c0_i32 = arith.constant 0 : i32
    %c0_i32_0 = arith.constant 0 : i32
    %c0_i32_1 = arith.constant 0 : i32
    return %c0_i32, %c0_i32_0 : i32, i32
  }
  func.func @transform_4(%arg0: i32) -> (i32, i32) {
    %c0_i32 = arith.constant 0 : i32
    %c0_i32_0 = arith.constant 0 : i32
    return %arg0, %c0_i32 : i32, i32
  }
  func.func @transform_5(%arg0: i32) -> (i32, i32) {
    %c0_i32 = arith.constant 0 : i32
    %c0_i32_0 = arith.constant 0 : i32
    %c0_i32_1 = arith.constant 0 : i32
    return %c0_i32, %c0_i32_0 : i32, i32
  }
  func.func @transform_6(%arg0: i32) -> (i32, i32) {
    %c0_i32 = arith.constant 0 : i32
    %c0_i32_0 = arith.constant 0 : i32
    %c0_i32_1 = arith.constant 0 : i32
    return %c0_i32, %c0_i32_0 : i32, i32
  }
  func.func @transform_7(%arg0: i32) -> (i32, i32) {
    %c0_i32 = arith.constant 0 : i32
    %c0_i32_0 = arith.constant 0 : i32
    return %arg0, %c0_i32 : i32, i32
  }
}

</mosaic_0001>

<llo_original>
// kernel: resnet_block_forward.5
$region0: #{resnet_block_forward.5}
  #allocation0 [shape = 'u32[]', space=smem, size = 0x4, offset = 0x4, fixed_abs, tag = 'smem constant byte address 0x4 - core index']
  #allocation1 [shape = 'u32[144,128]{1,0:T(1,128)}', space=vmem, size = 0x12000, scoped, tag = 'internal scratch']
  %s0 = inlined_call_operand.vmem [shape: bf16[512,128], index: 0, kind: input, shape index: {}]
  %s1 = inlined_call_operand.vmem [shape: f32[2,128], index: 1, kind: input, shape index: {}]
  %s2 = inlined_call_operand.vmem [shape: f32[1,128], index: 2, kind: input, shape index: {}]
  %s3 = inlined_call_operand.vmem [shape: f32[1,128], index: 3, kind: input, shape index: {}]
  %s4 = inlined_call_operand.vmem [shape: bf16[512,128], index: 4, kind: input, shape index: {}]
  %s5 = inlined_call_operand.vmem [shape: bf16[128,128], index: 5, kind: input, shape index: {}]
  %s6 = inlined_call_operand.vmem [shape: f32[1,128], index: 6, kind: input, shape index: {}]
  %s7 = inlined_call_operand.vmem [shape: f32[512,128], index: 7, kind: output, shape index: {}]
  %s8 = sld [smem:[#allocation0]]
  $region38: #{resnet_block_forward.5} parent=0
    _
  %s10 = ssub.s32 1, %s8
  %s11 = scalar_select 0, %s10, %s8
  // Predicated region
  $region2: #{resnet_block_forward.5} parent=0 // pred_check
    _
  $region3: #{resnet_block_forward.5} parent=0 // pred_check_branch
    %13 = sbr.rel (0) target = $region5
  $region4: #{resnet_block_forward.5} parent=0 // pred_region
    _
  $region5: #{resnet_block_forward.5} parent=0 // pred_fallthru
    _
  // Predicated region
  $region6: #{resnet_block_forward.5} parent=0 // pred_check
    _
  $region7: #{resnet_block_forward.5} parent=0 // pred_check_branch
    %15 = sbr.rel (0) target = $region9
  $region8: #{resnet_block_forward.5} parent=0 // pred_region
    _
  $region9: #{resnet_block_forward.5} parent=0 // pred_fallthru
    _
  // Predicated region
  $region10: #{resnet_block_forward.5} parent=0 // pred_check
    _
  $region11: #{resnet_block_forward.5} parent=0 // pred_check_branch
    %17 = sbr.rel (0) target = $region13
  $region12: #{resnet_block_forward.5} parent=0 // pred_region
    _
  $region13: #{resnet_block_forward.5} parent=0 // pred_fallthru
    _
  // Predicated region
  $region14: #{resnet_block_forward.5} parent=0 // pred_check
    _
  $region15: #{resnet_block_forward.5} parent=0 // pred_check_branch
    %19 = sbr.rel (0) target = $region17
  $region16: #{resnet_block_forward.5} parent=0 // pred_region
    _
  $region17: #{resnet_block_forward.5} parent=0 // pred_fallthru
    _
  // Predicated region
  $region18: #{resnet_block_forward.5} parent=0 // pred_check
    _
  $region19: #{resnet_block_forward.5} parent=0 // pred_check_branch
    %21 = sbr.rel (0) target = $region21
  $region20: #{resnet_block_forward.5} parent=0 // pred_region
    _
  $region21: #{resnet_block_forward.5} parent=0 // pred_fallthru
    _
  // Predicated region
  $region22: #{resnet_block_forward.5} parent=0 // pred_check
    _
  $region23: #{resnet_block_forward.5} parent=0 // pred_check_branch
    %23 = sbr.rel (0) target = $region25
  $region24: #{resnet_block_forward.5} parent=0 // pred_region
    _
  $region25: #{resnet_block_forward.5} parent=0 // pred_fallthru
    _
  // Predicated region
  $region26: #{resnet_block_forward.5} parent=0 // pred_check
    _
  $region27: #{resnet_block_forward.5} parent=0 // pred_check_branch
    %25 = sbr.rel (0) target = $region29
  $region28: #{resnet_block_forward.5} parent=0 // pred_region
    _
  $region29: #{resnet_block_forward.5} parent=0 // pred_fallthru
    _
  %v27 = vld [vmem:[%s1] sm:$0x1]
  %v28 = vmul.f32 %v27, 0.001953125
  %v29 = vld [vmem:[%s1 + $0x1] sm:$0x1]
  %v30 = vmul.f32 %v29, 0.001953125
  %v31 = vmul.f32 %v28, %v28
  %v32 = vsub.f32 %v30, %v31
  %v33 = vadd.f32 %v32, 1e-05
  %v34 = vrsqrt.pop %v33
  %v35 = vld [vmem:[%s2] sm:$0x1]
  %v36 = vmul.f32 %v34, %v35
  %v37 = vld [vmem:[%s3] sm:$0x1]
  %v38 = vmul.f32 %v28, %v36
  %v39 = vsub.f32 %v37, %v38
  %v40 = vld [vmem:[%s0] sm:$0xf]
  %v41 = vld [vmem:[%s0 + $0x4] sm:$0xf]
  %v42 = vld [vmem:[%s0 + $0x8] sm:$0xf]
  %v43 = vld [vmem:[%s0 + $0xc] sm:$0xf]
  %v44 = vld [vmem:[%s0 + $0x10] sm:$0xf]
  %v45 = vld [vmem:[%s0 + $0x14] sm:$0xf]
  %v46 = vld [vmem:[%s0 + $0x18] sm:$0xf]
  %v47 = vld [vmem:[%s0 + $0x1c] sm:$0xf]
  %v48 = vld [vmem:[%s0 + $0x20] sm:$0xf]
  %v49 = vld [vmem:[%s0 + $0x24] sm:$0xf]
  %v50 = vld [vmem:[%s0 + $0x28] sm:$0xf]
  %v51 = vld [vmem:[%s0 + $0x2c] sm:$0xf]
  %v52 = vld [vmem:[%s0 + $0x30] sm:$0xf]
  %v53 = vld [vmem:[%s0 + $0x34] sm:$0xf]
  %v54 = vld [vmem:[%s0 + $0x38] sm:$0xf]
  %v55 = vld [vmem:[%s0 + $0x3c] sm:$0xf]
  %v56 = vld [vmem:[%s0 + $0x40] sm:$0xf]
  %v57 = vld [vmem:[%s0 + $0x44] sm:$0xf]
  %v58 = vld [vmem:[%s0 + $0x48] sm:$0xf]
  %v59 = vld [vmem:[%s0 + $0x4c] sm:$0xf]
  %v60 = vld [vmem:[%s0 + $0x50] sm:$0xf]
  %v61 = vld [vmem:[%s0 + $0x54] sm:$0xf]
  %v62 = vld [vmem:[%s0 + $0x58] sm:$0xf]
  %v63 = vld [vmem:[%s0 + $0x5c] sm:$0xf]
  %v64 = vld [vmem:[%s0 + $0x60] sm:$0xf]
  %v65 = vld [vmem:[%s0 + $0x64] sm:$0xf]
  %v66 = vld [vmem:[%s0 + $0x68] sm:$0xf]
  %v67 = vld [vmem:[%s0 + $0x6c] sm:$0xf]
  %v68 = vld [vmem:[%s0 + $0x70] sm:$0xf]
  %v69 = vld [vmem:[%s0 + $0x74] sm:$0xf]
  %v70 = vld [vmem:[%s0 + $0x78] sm:$0xf]
  %v71 = vld [vmem:[%s0 + $0x7c] sm:$0xf]
  %v72 = vld [vmem:[%s0 + $0x80] sm:$0xf]
  %v73 = vld [vmem:[%s0 + $0x84] sm:$0xf]
  %v74 = vld [vmem:[%s0 + $0x88] sm:$0xf]
  %v75 = vld [vmem:[%s0 + $0x8c] sm:$0xf]
  %v76 = vld [vmem:[%s0 + $0x90] sm:$0xf]
  %v77 = vld [vmem:[%s0 + $0x94] sm:$0xf]
  %v78 = vld [vmem:[%s0 + $0x98] sm:$0xf]
  %v79 = vld [vmem:[%s0 + $0x9c] sm:$0xf]
  %v80 = vld [vmem:[%s0 + $0xa0] sm:$0xf]
  %v81 = vld [vmem:[%s0 + $0xa4] sm:$0xf]
  %v82 = vld [vmem:[%s0 + $0xa8] sm:$0xf]
  %v83 = vld [vmem:[%s0 + $0xac] sm:$0xf]
  %v84 = vld [vmem:[%s0 + $0xb0] sm:$0xf]
  %v85 = vld [vmem:[%s0 + $0xb4] sm:$0xf]
  %v86 = vld [vmem:[%s0 + $0xb8] sm:$0xf]
  %v87 = vld [vmem:[%s0 + $0xbc] sm:$0xf]
  %v88 = vld [vmem:[%s0 + $0xc0] sm:$0xf]
  %v89 = vld [vmem:[%s0 + $0xc4] sm:$0xf]
  %v90 = vld [vmem:[%s0 + $0xc8] sm:$0xf]
  %v91 = vld [vmem:[%s0 + $0xcc] sm:$0xf]
  %v92 = vld [vmem:[%s0 + $0xd0] sm:$0xf]
  %v93 = vld [vmem:[%s0 + $0xd4] sm:$0xf]
  %v94 = vld [vmem:[%s0 + $0xd8] sm:$0xf]
  %v95 = vld [vmem:[%s0 + $0xdc] sm:$0xf]
  %v96 = vld [vmem:[%s0 + $0xe0] sm:$0xf]
  %v97 = vld [vmem:[%s0 + $0xe4] sm:$0xf]
  %v98 = vld [vmem:[%s0 + $0xe8] sm:$0xf]
  %v99 = vld [vmem:[%s0 + $0xec] sm:$0xf]
  %v100 = vld [vmem:[%s0 + $0xf0] sm:$0xf]
  %v101 = vld [vmem:[%s0 + $0xf4] sm:$0xf]
  %v102 = vld [vmem:[%s0 + $0xf8] sm:$0xf]
  %v103 = vld [vmem:[%s0 + $0xfc] sm:$0xf]
  %v104 = vunpack.c.l.bf16 %v40
  %v105 = vunpack.c.l.bf16 %v41
  %v106 = vunpack.c.l.bf16 %v42
  %v107 = vunpack.c.l.bf16 %v43
  %v108 = vunpack.c.l.bf16 %v44
  %v109 = vunpack.c.l.bf16 %v45
  %v110 = vunpack.c.l.bf16 %v46
  %v111 = vunpack.c.l.bf16 %v47
  %v112 = vunpack.c.l.bf16 %v48
  %v113 = vunpack.c.l.bf16 %v49
  %v114 = vunpack.c.l.bf16 %v50
  %v115 = vunpack.c.l.bf16 %v51
  %v116 = vunpack.c.l.bf16 %v52
  %v117 = vunpack.c.l.bf16 %v53
  %v118 = vunpack.c.l.bf16 %v54
  %v119 = vunpack.c.l.bf16 %v55
  %v120 = vunpack.c.l.bf16 %v56
  %v121 = vunpack.c.l.bf16 %v57
  %v122 = vunpack.c.l.bf16 %v58
  %v123 = vunpack.c.l.bf16 %v59
  %v124 = vunpack.c.l.bf16 %v60
  %v125 = vunpack.c.l.bf16 %v61
  %v126 = vunpack.c.l.bf16 %v62
  %v127 = vunpack.c.l.bf16 %v63
  %v128 = vunpack.c.l.bf16 %v64
  %v129 = vunpack.c.l.bf16 %v65
  %v130 = vunpack.c.l.bf16 %v66
  %v131 = vunpack.c.l.bf16 %v67
  %v132 = vunpack.c.l.bf16 %v68
  %v133 = vunpack.c.l.bf16 %v69
  %v134 = vunpack.c.l.bf16 %v70
  %v135 = vunpack.c.l.bf16 %v71
  %v136 = vunpack.c.l.bf16 %v72
  %v137 = vunpack.c.l.bf16 %v73
  %v138 = vunpack.c.l.bf16 %v74
  %v139 = vunpack.c.l.bf16 %v75
  %v140 = vunpack.c.l.bf16 %v76
  %v141 = vunpack.c.l.bf16 %v77
  %v142 = vunpack.c.l.bf16 %v78
  %v143 = vunpack.c.l.bf16 %v79
  %v144 = vunpack.c.l.bf16 %v80
  %v145 = vunpack.c.l.bf16 %v81
  %v146 = vunpack.c.l.bf16 %v82
  %v147 = vunpack.c.l.bf16 %v83
  %v148 = vunpack.c.l.bf16 %v84
  %v149 = vunpack.c.l.bf16 %v85
  %v150 = vunpack.c.l.bf16 %v86
  %v151 = vunpack.c.l.bf16 %v87
  %v152 = vunpack.c.l.bf16 %v88
  %v153 = vunpack.c.l.bf16 %v89
  %v154 = vunpack.c.l.bf16 %v90
  %v155 = vunpack.c.l.bf16 %v91
  %v156 = vunpack.c.l.bf16 %v92
  %v157 = vunpack.c.l.bf16 %v93
  %v158 = vunpack.c.l.bf16 %v94
  %v159 = vunpack.c.l.bf16 %v95
  %v160 = vunpack.c.l.bf16 %v96
  %v161 = vunpack.c.l.bf16 %v97
  %v162 = vunpack.c.l.bf16 %v98
  %v163 = vunpack.c.l.bf16 %v99
  %v164 = vunpack.c.l.bf16 %v100
  %v165 = vunpack.c.l.bf16 %v101
  %v166 = vunpack.c.l.bf16 %v102
  %v167 = vunpack.c.l.bf16 %v103
  %v168 = vlaneseq
  %v169 = vshrl.u32 %v168, 7
  %v170 = vsub.s32 0, %v169
  %v171 = vrot.slane %v36, %v170
  %v172 = vmul.f32 %v104, %v171
  %v173 = vmul.f32 %v105, %v171
  %v174 = vmul.f32 %v106, %v171
  %v175 = vmul.f32 %v107, %v171
  %v176 = vmul.f32 %v108, %v171
  %v177 = vmul.f32 %v109, %v171
  %v178 = vmul.f32 %v110, %v171
  %v179 = vmul.f32 %v111, %v171
  %v180 = vmul.f32 %v112, %v171
  %v181 = vmul.f32 %v113, %v171
  %v182 = vmul.f32 %v114, %v171
  %v183 = vmul.f32 %v115, %v171
  %v184 = vmul.f32 %v116, %v171
  %v185 = vmul.f32 %v117, %v171
  %v186 = vmul.f32 %v118, %v171
  %v187 = vmul.f32 %v119, %v171
  %v188 = vmul.f32 %v120, %v171
  %v189 = vmul.f32 %v121, %v171
  %v190 = vmul.f32 %v122, %v171
  %v191 = vmul.f32 %v123, %v171
  %v192 = vmul.f32 %v124, %v171
  %v193 = vmul.f32 %v125, %v171
  %v194 = vmul.f32 %v126, %v171
  %v195 = vmul.f32 %v127, %v171
  %v196 = vmul.f32 %v128, %v171
  %v197 = vmul.f32 %v129, %v171
  %v198 = vmul.f32 %v130, %v171
  %v199 = vmul.f32 %v131, %v171
  %v200 = vmul.f32 %v132, %v171
  %v201 = vmul.f32 %v133, %v171
  %v202 = vmul.f32 %v134, %v171
  %v203 = vmul.f32 %v135, %v171
  %v204 = vmul.f32 %v136, %v171
  %v205 = vmul.f32 %v137, %v171
  %v206 = vmul.f32 %v138, %v171
  %v207 = vmul.f32 %v139, %v171
  %v208 = vmul.f32 %v140, %v171
  %v209 = vmul.f32 %v141, %v171
  %v210 = vmul.f32 %v142, %v171
  %v211 = vmul.f32 %v143, %v171
  %v212 = vmul.f32 %v144, %v171
  %v213 = vmul.f32 %v145, %v171
  %v214 = vmul.f32 %v146, %v171
  %v215 = vmul.f32 %v147, %v171
  %v216 = vmul.f32 %v148, %v171
  %v217 = vmul.f32 %v149, %v171
  %v218 = vmul.f32 %v150, %v171
  %v219 = vmul.f32 %v151, %v171
  %v220 = vmul.f32 %v152, %v171
  %v221 = vmul.f32 %v153, %v171
  %v222 = vmul.f32 %v154, %v171
  %v223 = vmul.f32 %v155, %v171
  %v224 = vmul.f32 %v156, %v171
  %v225 = vmul.f32 %v157, %v171
  %v226 = vmul.f32 %v158, %v171
  %v227 = vmul.f32 %v159, %v171
  %v228 = vmul.f32 %v160, %v171
  %v229 = vmul.f32 %v161, %v171
  %v230 = vmul.f32 %v162, %v171
  %v231 = vmul.f32 %v163, %v171
  %v232 = vmul.f32 %v164, %v171
  %v233 = vmul.f32 %v165, %v171
  %v234 = vmul.f32 %v166, %v171
  %v235 = vmul.f32 %v167, %v171
  %v237 = vlaneseq
  %v238 = vshrl.u32 %v237, 7
  %v239 = vsub.s32 0, %v238
  %v240 = vrot.slane %v39, %v239
  %v242 = vadd.f32 %v172, %v240
  %v243 = vadd.f32 %v173, %v240
  %v244 = vadd.f32 %v174, %v240
  %v245 = vadd.f32 %v175, %v240
  %v246 = vadd.f32 %v176, %v240
  %v247 = vadd.f32 %v177, %v240
  %v248 = vadd.f32 %v178, %v240
  %v249 = vadd.f32 %v179, %v240
  %v250 = vadd.f32 %v180, %v240
  %v251 = vadd.f32 %v181, %v240
  %v252 = vadd.f32 %v182, %v240
  %v253 = vadd.f32 %v183, %v240
  %v254 = vadd.f32 %v184, %v240
  %v255 = vadd.f32 %v185, %v240
  %v256 = vadd.f32 %v186, %v240
  %v257 = vadd.f32 %v187, %v240
  %v258 = vadd.f32 %v188, %v240
  %v259 = vadd.f32 %v189, %v240
  %v260 = vadd.f32 %v190, %v240
  %v261 = vadd.f32 %v191, %v240
  %v262 = vadd.f32 %v192, %v240
  %v263 = vadd.f32 %v193, %v240
  %v264 = vadd.f32 %v194, %v240
  %v265 = vadd.f32 %v195, %v240
  %v266 = vadd.f32 %v196, %v240
  %v267 = vadd.f32 %v197, %v240
  %v268 = vadd.f32 %v198, %v240
  %v269 = vadd.f32 %v199, %v240
  %v270 = vadd.f32 %v200, %v240
  %v271 = vadd.f32 %v201, %v240
  %v272 = vadd.f32 %v202, %v240
  %v273 = vadd.f32 %v203, %v240
  %v274 = vadd.f32 %v204, %v240
  %v275 = vadd.f32 %v205, %v240
  %v276 = vadd.f32 %v206, %v240
  %v277 = vadd.f32 %v207, %v240
  %v278 = vadd.f32 %v208, %v240
  %v279 = vadd.f32 %v209, %v240
  %v280 = vadd.f32 %v210, %v240
  %v281 = vadd.f32 %v211, %v240
  %v282 = vadd.f32 %v212, %v240
  %v283 = vadd.f32 %v213, %v240
  %v284 = vadd.f32 %v214, %v240
  %v285 = vadd.f32 %v215, %v240
  %v286 = vadd.f32 %v216, %v240
  %v287 = vadd.f32 %v217, %v240
  %v288 = vadd.f32 %v218, %v240
  %v289 = vadd.f32 %v219, %v240
  %v290 = vadd.f32 %v220, %v240
  %v291 = vadd.f32 %v221, %v240
  %v292 = vadd.f32 %v222, %v240
  %v293 = vadd.f32 %v223, %v240
  %v294 = vadd.f32 %v224, %v240
  %v295 = vadd.f32 %v225, %v240
  %v296 = vadd.f32 %v226, %v240
  %v297 = vadd.f32 %v227, %v240
  %v298 = vadd.f32 %v228, %v240
  %v299 = vadd.f32 %v229, %v240
  %v300 = vadd.f32 %v230, %v240
  %v301 = vadd.f32 %v231, %v240
  %v302 = vadd.f32 %v232, %v240
  %v303 = vadd.f32 %v233, %v240
  %v304 = vadd.f32 %v234, %v240
  %v305 = vadd.f32 %v235, %v240
  %v306 = vmax.f32 %v242, 0.0
  %v307 = vmax.f32 %v243, 0.0
  %v308 = vmax.f32 %v244, 0.0
  %v309 = vmax.f32 %v245, 0.0
  %v310 = vmax.f32 %v246, 0.0
  %v311 = vmax.f32 %v247, 0.0
  %v312 = vmax.f32 %v248, 0.0
  %v313 = vmax.f32 %v249, 0.0
  %v314 = vmax.f32 %v250, 0.0
  %v315 = vmax.f32 %v251, 0.0
  %v316 = vmax.f32 %v252, 0.0
  %v317 = vmax.f32 %v253, 0.0
  %v318 = vmax.f32 %v254, 0.0
  %v319 = vmax.f32 %v255, 0.0
  %v320 = vmax.f32 %v256, 0.0
  %v321 = vmax.f32 %v257, 0.0
  %v322 = vmax.f32 %v258, 0.0
  %v323 = vmax.f32 %v259, 0.0
  %v324 = vmax.f32 %v260, 0.0
  %v325 = vmax.f32 %v261, 0.0
  %v326 = vmax.f32 %v262, 0.0
  %v327 = vmax.f32 %v263, 0.0
  %v328 = vmax.f32 %v264, 0.0
  %v329 = vmax.f32 %v265, 0.0
  %v330 = vmax.f32 %v266, 0.0
  %v331 = vmax.f32 %v267, 0.0
  %v332 = vmax.f32 %v268, 0.0
  %v333 = vmax.f32 %v269, 0.0
  %v334 = vmax.f32 %v270, 0.0
  %v335 = vmax.f32 %v271, 0.0
  %v336 = vmax.f32 %v272, 0.0
  %v337 = vmax.f32 %v273, 0.0
  %v338 = vmax.f32 %v274, 0.0
  %v339 = vmax.f32 %v275, 0.0
  %v340 = vmax.f32 %v276, 0.0
  %v341 = vmax.f32 %v277, 0.0
  %v342 = vmax.f32 %v278, 0.0
  %v343 = vmax.f32 %v279, 0.0
  %v344 = vmax.f32 %v280, 0.0
  %v345 = vmax.f32 %v281, 0.0
  %v346 = vmax.f32 %v282, 0.0
  %v347 = vmax.f32 %v283, 0.0
  %v348 = vmax.f32 %v284, 0.0
  %v349 = vmax.f32 %v285, 0.0
  %v350 = vmax.f32 %v286, 0.0
  %v351 = vmax.f32 %v287, 0.0
  %v352 = vmax.f32 %v288, 0.0
  %v353 = vmax.f32 %v289, 0.0
  %v354 = vmax.f32 %v290, 0.0
  %v355 = vmax.f32 %v291, 0.0
  %v356 = vmax.f32 %v292, 0.0
  %v357 = vmax.f32 %v293, 0.0
  %v358 = vmax.f32 %v294, 0.0
  %v359 = vmax.f32 %v295, 0.0
  %v360 = vmax.f32 %v296, 0.0
  %v361 = vmax.f32 %v297, 0.0
  %v362 = vmax.f32 %v298, 0.0
  %v363 = vmax.f32 %v299, 0.0
  %v364 = vmax.f32 %v300, 0.0
  %v365 = vmax.f32 %v301, 0.0
  %v366 = vmax.f32 %v302, 0.0
  %v367 = vmax.f32 %v303, 0.0
  %v368 = vmax.f32 %v304, 0.0
  %v369 = vmax.f32 %v305, 0.0
  %v370 = vld [vmem:[%s4] sm:$0xf]
  %v371 = vld [vmem:[%s4 + $0x4] sm:$0xf]
  %v372 = vld [vmem:[%s4 + $0x8] sm:$0xf]
  %v373 = vld [vmem:[%s4 + $0xc] sm:$0xf]
  %v374 = vld [vmem:[%s4 + $0x10] sm:$0xf]
  %v375 = vld [vmem:[%s4 + $0x14] sm:$0xf]
  %v376 = vld [vmem:[%s4 + $0x18] sm:$0xf]
  %v377 = vld [vmem:[%s4 + $0x1c] sm:$0xf]
  %v378 = vld [vmem:[%s4 + $0x20] sm:$0xf]
  %v379 = vld [vmem:[%s4 + $0x24] sm:$0xf]
  %v380 = vld [vmem:[%s4 + $0x28] sm:$0xf]
  %v381 = vld [vmem:[%s4 + $0x2c] sm:$0xf]
  %v382 = vld [vmem:[%s4 + $0x30] sm:$0xf]
  %v383 = vld [vmem:[%s4 + $0x34] sm:$0xf]
  %v384 = vld [vmem:[%s4 + $0x38] sm:$0xf]
  %v385 = vld [vmem:[%s4 + $0x3c] sm:$0xf]
  %v386 = vld [vmem:[%s4 + $0x40] sm:$0xf]
  %v387 = vld [vmem:[%s4 + $0x44] sm:$0xf]
  %v388 = vld [vmem:[%s4 + $0x48] sm:$0xf]
  %v389 = vld [vmem:[%s4 + $0x4c] sm:$0xf]
  %v390 = vld [vmem:[%s4 + $0x50] sm:$0xf]
  %v391 = vld [vmem:[%s4 + $0x54] sm:$0xf]
  %v392 = vld [vmem:[%s4 + $0x58] sm:$0xf]
  %v393 = vld [vmem:[%s4 + $0x5c] sm:$0xf]
  %v394 = vld [vmem:[%s4 + $0x60] sm:$0xf]
  %v395 = vld [vmem:[%s4 + $0x64] sm:$0xf]
  %v396 = vld [vmem:[%s4 + $0x68] sm:$0xf]
  %v397 = vld [vmem:[%s4 + $0x6c] sm:$0xf]
  %v398 = vld [vmem:[%s4 + $0x70] sm:$0xf]
  %v399 = vld [vmem:[%s4 + $0x74] sm:$0xf]
  %v400 = vld [vmem:[%s4 + $0x78] sm:$0xf]
  %v401 = vld [vmem:[%s4 + $0x7c] sm:$0xf]
  %v402 = vld [vmem:[%s4 + $0x80] sm:$0xf]
  %v403 = vld [vmem:[%s4 + $0x84] sm:$0xf]
  %v404 = vld [vmem:[%s4 + $0x88] sm:$0xf]
  %v405 = vld [vmem:[%s4 + $0x8c] sm:$0xf]
  %v406 = vld [vmem:[%s4 + $0x90] sm:$0xf]
  %v407 = vld [vmem:[%s4 + $0x94] sm:$0xf]
  %v408 = vld [vmem:[%s4 + $0x98] sm:$0xf]
  %v409 = vld [vmem:[%s4 + $0x9c] sm:$0xf]
  %v410 = vld [vmem:[%s4 + $0xa0] sm:$0xf]
  %v411 = vld [vmem:[%s4 + $0xa4] sm:$0xf]
  %v412 = vld [vmem:[%s4 + $0xa8] sm:$0xf]
  %v413 = vld [vmem:[%s4 + $0xac] sm:$0xf]
  %v414 = vld [vmem:[%s4 + $0xb0] sm:$0xf]
  %v415 = vld [vmem:[%s4 + $0xb4] sm:$0xf]
  %v416 = vld [vmem:[%s4 + $0xb8] sm:$0xf]
  %v417 = vld [vmem:[%s4 + $0xbc] sm:$0xf]
  %v418 = vld [vmem:[%s4 + $0xc0] sm:$0xf]
  %v419 = vld [vmem:[%s4 + $0xc4] sm:$0xf]
  %v420 = vld [vmem:[%s4 + $0xc8] sm:$0xf]
  %v421 = vld [vmem:[%s4 + $0xcc] sm:$0xf]
  %v422 = vld [vmem:[%s4 + $0xd0] sm:$0xf]
  %v423 = vld [vmem:[%s4 + $0xd4] sm:$0xf]
  %v424 = vld [vmem:[%s4 + $0xd8] sm:$0xf]
  %v425 = vld [vmem:[%s4 + $0xdc] sm:$0xf]
  %v426 = vld [vmem:[%s4 + $0xe0] sm:$0xf]
  %v427 = vld [vmem:[%s4 + $0xe4] sm:$0xf]
  %v428 = vld [vmem:[%s4 + $0xe8] sm:$0xf]
  %v429 = vld [vmem:[%s4 + $0xec] sm:$0xf]
  %v430 = vld [vmem:[%s4 + $0xf0] sm:$0xf]
  %v431 = vld [vmem:[%s4 + $0xf4] sm:$0xf]
  %v432 = vld [vmem:[%s4 + $0xf8] sm:$0xf]
  %v433 = vld [vmem:[%s4 + $0xfc] sm:$0xf]
  %v434 = vld [vmem:[%s5] sm:$0xf]
  %v435 = vld [vmem:[%s5 + $0x4] sm:$0xf]
  %v436 = vld [vmem:[%s5 + $0x8] sm:$0xf]
  %v437 = vld [vmem:[%s5 + $0xc] sm:$0xf]
  %v438 = vld [vmem:[%s5 + $0x10] sm:$0xf]
  %v439 = vld [vmem:[%s5 + $0x14] sm:$0xf]
  %v440 = vld [vmem:[%s5 + $0x18] sm:$0xf]
  %v441 = vld [vmem:[%s5 + $0x1c] sm:$0xf]
  %v442 = vld [vmem:[%s5 + $0x20] sm:$0xf]
  %v443 = vld [vmem:[%s5 + $0x24] sm:$0xf]
  %v444 = vld [vmem:[%s5 + $0x28] sm:$0xf]
  %v445 = vld [vmem:[%s5 + $0x2c] sm:$0xf]
  %v446 = vld [vmem:[%s5 + $0x30] sm:$0xf]
  %v447 = vld [vmem:[%s5 + $0x34] sm:$0xf]
  %v448 = vld [vmem:[%s5 + $0x38] sm:$0xf]
  %v449 = vld [vmem:[%s5 + $0x3c] sm:$0xf]
  %v514 = vunpack.c.l.b16 %v370
  %v515 = vunpack.c.l.b16 %v371
  %v516 = vunpack.c.l.b16 %v372
  %v517 = vunpack.c.l.b16 %v373
  %v518 = vunpack.c.l.b16 %v374
  %v519 = vunpack.c.l.b16 %v375
  %v520 = vunpack.c.l.b16 %v376
  %v521 = vunpack.c.l.b16 %v377
  %v522 = vunpack.c.l.b16 %v378
  %v523 = vunpack.c.l.b16 %v379
  %v524 = vunpack.c.l.b16 %v380
  %v525 = vunpack.c.l.b16 %v381
  %v526 = vunpack.c.l.b16 %v382
  %v527 = vunpack.c.l.b16 %v383
  %v528 = vunpack.c.l.b16 %v384
  %v529 = vunpack.c.l.b16 %v385
  %v530 = vunpack.c.l.b16 %v386
  %v531 = vunpack.c.l.b16 %v387
  %v532 = vunpack.c.l.b16 %v388
  %v533 = vunpack.c.l.b16 %v389
  %v534 = vunpack.c.l.b16 %v390
  %v535 = vunpack.c.l.b16 %v391
  %v536 = vunpack.c.l.b16 %v392
  %v537 = vunpack.c.l.b16 %v393
  %v538 = vunpack.c.l.b16 %v394
  %v539 = vunpack.c.l.b16 %v395
  %v540 = vunpack.c.l.b16 %v396
  %v541 = vunpack.c.l.b16 %v397
  %v542 = vunpack.c.l.b16 %v398
  %v543 = vunpack.c.l.b16 %v399
  %v544 = vunpack.c.l.b16 %v400
  %v545 = vunpack.c.l.b16 %v401
  %v546 = vunpack.c.l.b16 %v402
  %v547 = vunpack.c.l.b16 %v403
  %v548 = vunpack.c.l.b16 %v404
  %v549 = vunpack.c.l.b16 %v405
  %v550 = vunpack.c.l.b16 %v406
  %v551 = vunpack.c.l.b16 %v407
  %v552 = vunpack.c.l.b16 %v408
  %v553 = vunpack.c.l.b16 %v409
  %v554 = vunpack.c.l.b16 %v410
  %v555 = vunpack.c.l.b16 %v411
  %v556 = vunpack.c.l.b16 %v412
  %v557 = vunpack.c.l.b16 %v413
  %v558 = vunpack.c.l.b16 %v414
  %v559 = vunpack.c.l.b16 %v415
  %v560 = vunpack.c.l.b16 %v416
  %v561 = vunpack.c.l.b16 %v417
  %v562 = vunpack.c.l.b16 %v418
  %v563 = vunpack.c.l.b16 %v419
  %v564 = vunpack.c.l.b16 %v420
  %v565 = vunpack.c.l.b16 %v421
  %v566 = vunpack.c.l.b16 %v422
  %v567 = vunpack.c.l.b16 %v423
  %v568 = vunpack.c.l.b16 %v424
  %v569 = vunpack.c.l.b16 %v425
  %v570 = vunpack.c.l.b16 %v426
  %v571 = vunpack.c.l.b16 %v427
  %v572 = vunpack.c.l.b16 %v428
  %v573 = vunpack.c.l.b16 %v429
  %v574 = vunpack.c.l.b16 %v430
  %v575 = vunpack.c.l.b16 %v431
  %v576 = vunpack.c.l.b16 %v432
  %v577 = vunpack.c.l.b16 %v433
  %v578 = vpack.c.b16 %v515, %v514
  %v579 = vpack.c.b16 %v517, %v516
  %v580 = vpack.c.b16 %v519, %v518
  %v581 = vpack.c.b16 %v521, %v520
  %v582 = vpack.c.b16 %v523, %v522
  %v583 = vpack.c.b16 %v525, %v524
  %v584 = vpack.c.b16 %v527, %v526
  %v585 = vpack.c.b16 %v529, %v528
  %v586 = vpack.c.b16 %v531, %v530
  %v587 = vpack.c.b16 %v533, %v532
  %v588 = vpack.c.b16 %v535, %v534
  %v589 = vpack.c.b16 %v537, %v536
  %v590 = vpack.c.b16 %v539, %v538
  %v591 = vpack.c.b16 %v541, %v540
  %v592 = vpack.c.b16 %v543, %v542
  %v593 = vpack.c.b16 %v545, %v544
  %v594 = vpack.c.b16 %v547, %v546
  %v595 = vpack.c.b16 %v549, %v548
  %v596 = vpack.c.b16 %v551, %v550
  %v597 = vpack.c.b16 %v553, %v552
  %v598 = vpack.c.b16 %v555, %v554
  %v599 = vpack.c.b16 %v557, %v556
  %v600 = vpack.c.b16 %v559, %v558
  %v601 = vpack.c.b16 %v561, %v560
  %v602 = vpack.c.b16 %v563, %v562
  %v603 = vpack.c.b16 %v565, %v564
  %v604 = vpack.c.b16 %v567, %v566
  %v605 = vpack.c.b16 %v569, %v568
  %v606 = vpack.c.b16 %v571, %v570
  %v607 = vpack.c.b16 %v573, %v572
  %v608 = vpack.c.b16 %v575, %v574
  %v609 = vpack.c.b16 %v577, %v576
  %v658 = vunpack.c.l.b16 %v434
  %v659 = vunpack.c.l.b16 %v435
  %v660 = vunpack.c.l.b16 %v436
  %v661 = vunpack.c.l.b16 %v437
  %v662 = vunpack.c.l.b16 %v438
  %v663 = vunpack.c.l.b16 %v439
  %v664 = vunpack.c.l.b16 %v440
  %v665 = vunpack.c.l.b16 %v441
  %v666 = vunpack.c.l.b16 %v442
  %v667 = vunpack.c.l.b16 %v443
  %v668 = vunpack.c.l.b16 %v444
  %v669 = vunpack.c.l.b16 %v445
  %v670 = vunpack.c.l.b16 %v446
  %v671 = vunpack.c.l.b16 %v447
  %v672 = vunpack.c.l.b16 %v448
  %v673 = vunpack.c.l.b16 %v449
  %v674 = vpack.c.b16 %v659, %v658
  %v675 = vpack.c.b16 %v661, %v660
  %v676 = vpack.c.b16 %v663, %v662
  %v677 = vpack.c.b16 %v665, %v664
  %v678 = vpack.c.b16 %v667, %v666
  %v679 = vpack.c.b16 %v669, %v668
  %v680 = vpack.c.b16 %v671, %v670
  %v681 = vpack.c.b16 %v673, %v672
  %690 = vmatprep.subr.bf16.mxu0 0
  %691 = vmatpush1.bf16.msra.mxu0 %v681
  %692 = vmatprep.subr.bf16.mxu0 0
  %693 = vmatpush1.bf16.msra.mxu0 %v680
  %694 = vmatprep.subr.bf16.mxu0 0
  %695 = vmatpush1.bf16.msra.mxu0 %v679
  %696 = vmatprep.subr.bf16.mxu0 0
  %697 = vmatpush1.bf16.msra.mxu0 %v678
  %698 = vmatprep.subr.bf16.mxu0 0
  %699 = vmatpush1.bf16.msra.mxu0 %v677
  %700 = vmatprep.subr.bf16.mxu0 0
  %701 = vmatpush1.bf16.msra.mxu0 %v676
  %702 = vmatprep.subr.bf16.mxu0 0
  %703 = vmatpush1.bf16.msra.mxu0 %v675
  %704 = vmatprep.subr.bf16.mxu0 0
  %705 = vmatpush1.bf16.msra.mxu0 %v674
  %706 = vmatprep.subr.bf16.mxu0 0
  %707 = vmatpush2.bf16.msra.mxu0 0
  %708 = vmatprep.subr.bf16.mxu0 0
  %709 = vmatpush2.bf16.msra.mxu0 0
  %710 = vmatprep.subr.bf16.mxu0 0
  %711 = vmatpush2.bf16.msra.mxu0 0
  %712 = vmatprep.subr.bf16.mxu0 0
  %713 = vmatpush2.bf16.msra.mxu0 0
  %714 = vmatprep.subr.bf16.mxu0 0
  %715 = vmatpush2.bf16.msra.mxu0 0
  %716 = vmatprep.subr.bf16.mxu0 0
  %717 = vmatpush2.bf16.msra.mxu0 0
  %718 = vmatprep.subr.bf16.mxu0 0
  %719 = vmatpush2.bf16.msra.mxu0 0
  %720 = vmatprep.subr.bf16.mxu0 0
  %721 = vmatpush2.bf16.msra.mxu0 0
  %722 = vmatprep.mubr.bf16.mxu0 0
  %723 = vmatmul.mubr.bf16.gmra.mxu0 %v578
  %v724 = vpop.f32.mrf.mxu0
  %v725 = vadd.f32 0.0, %v724
  %v726 = vpop.f32.mrf.mxu0
  %v727 = vpop.f32.mrf.mxu0
  %v728 = vadd.f32 0.0, %v727
  %v729 = vpop.f32.mrf.mxu0
  %730 = vmatprep.mubr.bf16.mxu0 0
  %731 = vmatmul.mubr.bf16.gmra.mxu0 %v579
  %v732 = vpop.f32.mrf.mxu0
  %v733 = vadd.f32 0.0, %v732
  %v734 = vpop.f32.mrf.mxu0
  %v735 = vpop.f32.mrf.mxu0
  %v736 = vadd.f32 0.0, %v735
  %v737 = vpop.f32.mrf.mxu0
  %738 = vmatprep.mubr.bf16.mxu0 0
  %739 = vmatmul.mubr.bf16.gmra.mxu0 %v580
  %v740 = vpop.f32.mrf.mxu0
  %v741 = vadd.f32 0.0, %v740
  %v742 = vpop.f32.mrf.mxu0
  %v743 = vpop.f32.mrf.mxu0
  %v744 = vadd.f32 0.0, %v743
  %v745 = vpop.f32.mrf.mxu0
  %746 = vmatprep.mubr.bf16.mxu0 0
  %747 = vmatmul.mubr.bf16.gmra.mxu0 %v581
  %v748 = vpop.f32.mrf.mxu0
  %v749 = vadd.f32 0.0, %v748
  %v750 = vpop.f32.mrf.mxu0
  %v751 = vpop.f32.mrf.mxu0
  %v752 = vadd.f32 0.0, %v751
  %v753 = vpop.f32.mrf.mxu0
  %754 = vmatprep.mubr.bf16.mxu0 0
  %755 = vmatmul.mubr.bf16.gmra.mxu0 %v582
  %v756 = vpop.f32.mrf.mxu0
  %v757 = vadd.f32 0.0, %v756
  %v758 = vpop.f32.mrf.mxu0
  %v759 = vpop.f32.mrf.mxu0
  %v760 = vadd.f32 0.0, %v759
  %v761 = vpop.f32.mrf.mxu0
  %762 = vmatprep.mubr.bf16.mxu0 0
  %763 = vmatmul.mubr.bf16.gmra.mxu0 %v583
  %v764 = vpop.f32.mrf.mxu0
  %v765 = vadd.f32 0.0, %v764
  %v766 = vpop.f32.mrf.mxu0
  %v767 = vpop.f32.mrf.mxu0
  %v768 = vadd.f32 0.0, %v767
  %v769 = vpop.f32.mrf.mxu0
  %770 = vmatprep.mubr.bf16.mxu0 0
  %771 = vmatmul.mubr.bf16.gmra.mxu0 %v584
  %v772 = vpop.f32.mrf.mxu0
  %v773 = vadd.f32 0.0, %v772
  %v774 = vpop.f32.mrf.mxu0
  %v775 = vpop.f32.mrf.mxu0
  %v776 = vadd.f32 0.0, %v775
  %v777 = vpop.f32.mrf.mxu0
  %778 = vmatprep.mubr.bf16.mxu0 0
  %779 = vmatmul.mubr.bf16.gmra.mxu0 %v585
  %v780 = vpop.f32.mrf.mxu0
  %v781 = vadd.f32 0.0, %v780
  %v782 = vpop.f32.mrf.mxu0
  %v783 = vpop.f32.mrf.mxu0
  %v784 = vadd.f32 0.0, %v783
  %v785 = vpop.f32.mrf.mxu0
  %786 = vmatprep.mubr.bf16.mxu0 0
  %787 = vmatmul.mubr.bf16.gmra.mxu0 %v586
  %v788 = vpop.f32.mrf.mxu0
  %v789 = vadd.f32 0.0, %v788
  %v790 = vpop.f32.mrf.mxu0
  %v791 = vpop.f32.mrf.mxu0
  %v792 = vadd.f32 0.0, %v791
  %v793 = vpop.f32.mrf.mxu0
  %794 = vmatprep.mubr.bf16.mxu0 0
  %795 = vmatmul.mubr.bf16.gmra.mxu0 %v587
  %v796 = vpop.f32.mrf.mxu0
  %v797 = vadd.f32 0.0, %v796
  %v798 = vpop.f32.mrf.mxu0
  %v799 = vpop.f32.mrf.mxu0
  %v800 = vadd.f32 0.0, %v799
  %v801 = vpop.f32.mrf.mxu0
  %802 = vmatprep.mubr.bf16.mxu0 0
  %803 = vmatmul.mubr.bf16.gmra.mxu0 %v588
  %v804 = vpop.f32.mrf.mxu0
  %v805 = vadd.f32 0.0, %v804
  %v806 = vpop.f32.mrf.mxu0
  %v807 = vpop.f32.mrf.mxu0
  %v808 = vadd.f32 0.0, %v807
  %v809 = vpop.f32.mrf.mxu0
  %810 = vmatprep.mubr.bf16.mxu0 0
  %811 = vmatmul.mubr.bf16.gmra.mxu0 %v589
  %v812 = vpop.f32.mrf.mxu0
  %v813 = vadd.f32 0.0, %v812
  %v814 = vpop.f32.mrf.mxu0
  %v815 = vpop.f32.mrf.mxu0
  %v816 = vadd.f32 0.0, %v815
  %v817 = vpop.f32.mrf.mxu0
  %818 = vmatprep.mubr.bf16.mxu0 0
  %819 = vmatmul.mubr.bf16.gmra.mxu0 %v590
  %v820 = vpop.f32.mrf.mxu0
  %v821 = vadd.f32 0.0, %v820
  %v822 = vpop.f32.mrf.mxu0
  %v823 = vpop.f32.mrf.mxu0
  %v824 = vadd.f32 0.0, %v823
  %v825 = vpop.f32.mrf.mxu0
  %826 = vmatprep.mubr.bf16.mxu0 0
  %827 = vmatmul.mubr.bf16.gmra.mxu0 %v591
  %v828 = vpop.f32.mrf.mxu0
  %v829 = vadd.f32 0.0, %v828
  %v830 = vpop.f32.mrf.mxu0
  %v831 = vpop.f32.mrf.mxu0
  %v832 = vadd.f32 0.0, %v831
  %v833 = vpop.f32.mrf.mxu0
  %834 = vmatprep.mubr.bf16.mxu0 0
  %835 = vmatmul.mubr.bf16.gmra.mxu0 %v592
  %v836 = vpop.f32.mrf.mxu0
  %v837 = vadd.f32 0.0, %v836
  %v838 = vpop.f32.mrf.mxu0
  %v839 = vpop.f32.mrf.mxu0
  %v840 = vadd.f32 0.0, %v839
  %v841 = vpop.f32.mrf.mxu0
  %842 = vmatprep.mubr.bf16.mxu0 0
  %843 = vmatmul.mubr.bf16.gmra.mxu0 %v593
  %v844 = vpop.f32.mrf.mxu0
  %v845 = vadd.f32 0.0, %v844
  %v846 = vpop.f32.mrf.mxu0
  %v847 = vpop.f32.mrf.mxu0
  %v848 = vadd.f32 0.0, %v847
  %v849 = vpop.f32.mrf.mxu0
  %850 = vmatprep.mubr.bf16.mxu0 0
  %851 = vmatmul.mubr.bf16.gmra.mxu0 %v594
  %v852 = vpop.f32.mrf.mxu0
  %v853 = vadd.f32 0.0, %v852
  %v854 = vpop.f32.mrf.mxu0
  %v855 = vpop.f32.mrf.mxu0
  %v856 = vadd.f32 0.0, %v855
  %v857 = vpop.f32.mrf.mxu0
  %858 = vmatprep.mubr.bf16.mxu0 0
  %859 = vmatmul.mubr.bf16.gmra.mxu0 %v595
  %v860 = vpop.f32.mrf.mxu0
  %v861 = vadd.f32 0.0, %v860
  %v862 = vpop.f32.mrf.mxu0
  %v863 = vpop.f32.mrf.mxu0
  %v864 = vadd.f32 0.0, %v863
  %v865 = vpop.f32.mrf.mxu0
  %866 = vmatprep.mubr.bf16.mxu0 0
  %867 = vmatmul.mubr.bf16.gmra.mxu0 %v596
  %v868 = vpop.f32.mrf.mxu0
  %v869 = vadd.f32 0.0, %v868
  %v870 = vpop.f32.mrf.mxu0
  %v871 = vpop.f32.mrf.mxu0
  %v872 = vadd.f32 0.0, %v871
  %v873 = vpop.f32.mrf.mxu0
  %874 = vmatprep.mubr.bf16.mxu0 0
  %875 = vmatmul.mubr.bf16.gmra.mxu0 %v597
  %v876 = vpop.f32.mrf.mxu0
  %v877 = vadd.f32 0.0, %v876
  %v878 = vpop.f32.mrf.mxu0
  %v879 = vpop.f32.mrf.mxu0
  %v880 = vadd.f32 0.0, %v879
  %v881 = vpop.f32.mrf.mxu0
  %882 = vmatprep.mubr.bf16.mxu0 0
  %883 = vmatmul.mubr.bf16.gmra.mxu0 %v598
  %v884 = vpop.f32.mrf.mxu0
  %v885 = vadd.f32 0.0, %v884
  %v886 = vpop.f32.mrf.mxu0
  %v887 = vpop.f32.mrf.mxu0
  %v888 = vadd.f32 0.0, %v887
  %v889 = vpop.f32.mrf.mxu0
  %890 = vmatprep.mubr.bf16.mxu0 0
  %891 = vmatmul.mubr.bf16.gmra.mxu0 %v599
  %v892 = vpop.f32.mrf.mxu0
  %v893 = vadd.f32 0.0, %v892
  %v894 = vpop.f32.mrf.mxu0
  %v895 = vpop.f32.mrf.mxu0
  %v896 = vadd.f32 0.0, %v895
  %v897 = vpop.f32.mrf.mxu0
  %898 = vmatprep.mubr.bf16.mxu0 0
  %899 = vmatmul.mubr.bf16.gmra.mxu0 %v600
  %v900 = vpop.f32.mrf.mxu0
  %v901 = vadd.f32 0.0, %v900
  %v902 = vpop.f32.mrf.mxu0
  %v903 = vpop.f32.mrf.mxu0
  %v904 = vadd.f32 0.0, %v903
  %v905 = vpop.f32.mrf.mxu0
  %906 = vmatprep.mubr.bf16.mxu0 0
  %907 = vmatmul.mubr.bf16.gmra.mxu0 %v601
  %v908 = vpop.f32.mrf.mxu0
  %v909 = vadd.f32 0.0, %v908
  %v910 = vpop.f32.mrf.mxu0
  %v911 = vpop.f32.mrf.mxu0
  %v912 = vadd.f32 0.0, %v911
  %v913 = vpop.f32.mrf.mxu0
  %914 = vmatprep.mubr.bf16.mxu0 0
  %915 = vmatmul.mubr.bf16.gmra.mxu0 %v602
  %v916 = vpop.f32.mrf.mxu0
  %v917 = vadd.f32 0.0, %v916
  %v918 = vpop.f32.mrf.mxu0
  %v919 = vpop.f32.mrf.mxu0
  %v920 = vadd.f32 0.0, %v919
  %v921 = vpop.f32.mrf.mxu0
  %922 = vmatprep.mubr.bf16.mxu0 0
  %923 = vmatmul.mubr.bf16.gmra.mxu0 %v603
  %v924 = vpop.f32.mrf.mxu0
  %v925 = vadd.f32 0.0, %v924
  %v926 = vpop.f32.mrf.mxu0
  %v927 = vpop.f32.mrf.mxu0
  %v928 = vadd.f32 0.0, %v927
  %v929 = vpop.f32.mrf.mxu0
  %930 = vmatprep.mubr.bf16.mxu0 0
  %931 = vmatmul.mubr.bf16.gmra.mxu0 %v604
  %v932 = vpop.f32.mrf.mxu0
  %v933 = vadd.f32 0.0, %v932
  %v934 = vpop.f32.mrf.mxu0
  %v935 = vpop.f32.mrf.mxu0
  %v936 = vadd.f32 0.0, %v935
  %v937 = vpop.f32.mrf.mxu0
  %938 = vmatprep.mubr.bf16.mxu0 0
  %939 = vmatmul.mubr.bf16.gmra.mxu0 %v605
  %v940 = vpop.f32.mrf.mxu0
  %v941 = vadd.f32 0.0, %v940
  %v942 = vpop.f32.mrf.mxu0
  %v943 = vpop.f32.mrf.mxu0
  %v944 = vadd.f32 0.0, %v943
  %v945 = vpop.f32.mrf.mxu0
  %946 = vmatprep.mubr.bf16.mxu0 0
  %947 = vmatmul.mubr.bf16.gmra.mxu0 %v606
  %v948 = vpop.f32.mrf.mxu0
  %v949 = vadd.f32 0.0, %v948
  %v950 = vpop.f32.mrf.mxu0
  %v951 = vpop.f32.mrf.mxu0
  %v952 = vadd.f32 0.0, %v951
  %v953 = vpop.f32.mrf.mxu0
  %954 = vmatprep.mubr.bf16.mxu0 0
  %955 = vmatmul.mubr.bf16.gmra.mxu0 %v607
  %v956 = vpop.f32.mrf.mxu0
  %v957 = vadd.f32 0.0, %v956
  %v958 = vpop.f32.mrf.mxu0
  %v959 = vpop.f32.mrf.mxu0
  %v960 = vadd.f32 0.0, %v959
  %v961 = vpop.f32.mrf.mxu0
  %962 = vmatprep.mubr.bf16.mxu0 0
  %963 = vmatmul.mubr.bf16.gmra.mxu0 %v608
  %v964 = vpop.f32.mrf.mxu0
  %v965 = vadd.f32 0.0, %v964
  %v966 = vpop.f32.mrf.mxu0
  %v967 = vpop.f32.mrf.mxu0
  %v968 = vadd.f32 0.0, %v967
  %v969 = vpop.f32.mrf.mxu0
  %970 = vmatprep.mubr.bf16.mxu0 0
  %971 = vmatmul.mubr.bf16.gmra.mxu0 %v609
  %v972 = vpop.f32.mrf.mxu0
  %v973 = vadd.f32 0.0, %v972
  %v974 = vpop.f32.mrf.mxu0
  %v975 = vpop.f32.mrf.mxu0
  %v976 = vadd.f32 0.0, %v975
  %v977 = vpop.f32.mrf.mxu0
  %978 = vdwg.mxu0
  %v979 = vadd.f32 %v306, %v725
  %v980 = vadd.f32 %v307, %v728
  %v981 = vadd.f32 %v308, %v733
  %v982 = vadd.f32 %v309, %v736
  %v983 = vadd.f32 %v310, %v741
  %v984 = vadd.f32 %v311, %v744
  %v985 = vadd.f32 %v312, %v749
  %v986 = vadd.f32 %v313, %v752
  %v987 = vadd.f32 %v314, %v757
  %v988 = vadd.f32 %v315, %v760
  %v989 = vadd.f32 %v316, %v765
  %v990 = vadd.f32 %v317, %v768
  %v991 = vadd.f32 %v318, %v773
  %v992 = vadd.f32 %v319, %v776
  %v993 = vadd.f32 %v320, %v781
  %v994 = vadd.f32 %v321, %v784
  %v995 = vadd.f32 %v322, %v789
  %v996 = vadd.f32 %v323, %v792
  %v997 = vadd.f32 %v324, %v797
  %v998 = vadd.f32 %v325, %v800
  %v999 = vadd.f32 %v326, %v805
  %v1000 = vadd.f32 %v327, %v808
  %v1001 = vadd.f32 %v328, %v813
  %v1002 = vadd.f32 %v329, %v816
  %v1003 = vadd.f32 %v330, %v821
  %v1004 = vadd.f32 %v331, %v824
  %v1005 = vadd.f32 %v332, %v829
  %v1006 = vadd.f32 %v333, %v832
  %v1007 = vadd.f32 %v334, %v837
  %v1008 = vadd.f32 %v335, %v840
  %v1009 = vadd.f32 %v336, %v845
  %v1010 = vadd.f32 %v337, %v848
  %v1011 = vadd.f32 %v338, %v853
  %v1012 = vadd.f32 %v339, %v856
  %v1013 = vadd.f32 %v340, %v861
  %v1014 = vadd.f32 %v341, %v864
  %v1015 = vadd.f32 %v342, %v869
  %v1016 = vadd.f32 %v343, %v872
  %v1017 = vadd.f32 %v344, %v877
  %v1018 = vadd.f32 %v345, %v880
  %v1019 = vadd.f32 %v346, %v885
  %v1020 = vadd.f32 %v347, %v888
  %v1021 = vadd.f32 %v348, %v893
  %v1022 = vadd.f32 %v349, %v896
  %v1023 = vadd.f32 %v350, %v901
  %v1024 = vadd.f32 %v351, %v904
  %v1025 = vadd.f32 %v352, %v909
  %v1026 = vadd.f32 %v353, %v912
  %v1027 = vadd.f32 %v354, %v917
  %v1028 = vadd.f32 %v355, %v920
  %v1029 = vadd.f32 %v356, %v925
  %v1030 = vadd.f32 %v357, %v928
  %v1031 = vadd.f32 %v358, %v933
  %v1032 = vadd.f32 %v359, %v936
  %v1033 = vadd.f32 %v360, %v941
  %v1034 = vadd.f32 %v361, %v944
  %v1035 = vadd.f32 %v362, %v949
  %v1036 = vadd.f32 %v363, %v952
  %v1037 = vadd.f32 %v364, %v957
  %v1038 = vadd.f32 %v365, %v960
  %v1039 = vadd.f32 %v366, %v965
  %v1040 = vadd.f32 %v367, %v968
  %v1041 = vadd.f32 %v368, %v973
  %v1042 = vadd.f32 %v369, %v976
  %v1043 = vld [vmem:[%s6] sm:$0x1]
  %v1045 = vlaneseq
  %v1046 = vshrl.u32 %v1045, 7
  %v1047 = vsub.s32 0, %v1046
  %v1048 = vrot.slane %v1043, %v1047
  %v1050 = vadd.f32 %v979, %v1048
  %v1051 = vadd.f32 %v980, %v1048
  %v1052 = vadd.f32 %v981, %v1048
  %v1053 = vadd.f32 %v982, %v1048
  %v1054 = vadd.f32 %v983, %v1048
  %v1055 = vadd.f32 %v984, %v1048
  %v1056 = vadd.f32 %v985, %v1048
  %v1057 = vadd.f32 %v986, %v1048
  %v1058 = vadd.f32 %v987, %v1048
  %v1059 = vadd.f32 %v988, %v1048
  %v1060 = vadd.f32 %v989, %v1048
  %v1061 = vadd.f32 %v990, %v1048
  %v1062 = vadd.f32 %v991, %v1048
  %v1063 = vadd.f32 %v992, %v1048
  %v1064 = vadd.f32 %v993, %v1048
  %v1065 = vadd.f32 %v994, %v1048
  %v1066 = vadd.f32 %v995, %v1048
  %v1067 = vadd.f32 %v996, %v1048
  %v1068 = vadd.f32 %v997, %v1048
  %v1069 = vadd.f32 %v998, %v1048
  %v1070 = vadd.f32 %v999, %v1048
  %v1071 = vadd.f32 %v1000, %v1048
  %v1072 = vadd.f32 %v1001, %v1048
  %v1073 = vadd.f32 %v1002, %v1048
  %v1074 = vadd.f32 %v1003, %v1048
  %v1075 = vadd.f32 %v1004, %v1048
  %v1076 = vadd.f32 %v1005, %v1048
  %v1077 = vadd.f32 %v1006, %v1048
  %v1078 = vadd.f32 %v1007, %v1048
  %v1079 = vadd.f32 %v1008, %v1048
  %v1080 = vadd.f32 %v1009, %v1048
  %v1081 = vadd.f32 %v1010, %v1048
  %v1082 = vadd.f32 %v1011, %v1048
  %v1083 = vadd.f32 %v1012, %v1048
  %v1084 = vadd.f32 %v1013, %v1048
  %v1085 = vadd.f32 %v1014, %v1048
  %v1086 = vadd.f32 %v1015, %v1048
  %v1087 = vadd.f32 %v1016, %v1048
  %v1088 = vadd.f32 %v1017, %v1048
  %v1089 = vadd.f32 %v1018, %v1048
  %v1090 = vadd.f32 %v1019, %v1048
  %v1091 = vadd.f32 %v1020, %v1048
  %v1092 = vadd.f32 %v1021, %v1048
  %v1093 = vadd.f32 %v1022, %v1048
  %v1094 = vadd.f32 %v1023, %v1048
  %v1095 = vadd.f32 %v1024, %v1048
  %v1096 = vadd.f32 %v1025, %v1048
  %v1097 = vadd.f32 %v1026, %v1048
  %v1098 = vadd.f32 %v1027, %v1048
  %v1099 = vadd.f32 %v1028, %v1048
  %v1100 = vadd.f32 %v1029, %v1048
  %v1101 = vadd.f32 %v1030, %v1048
  %v1102 = vadd.f32 %v1031, %v1048
  %v1103 = vadd.f32 %v1032, %v1048
  %v1104 = vadd.f32 %v1033, %v1048
  %v1105 = vadd.f32 %v1034, %v1048
  %v1106 = vadd.f32 %v1035, %v1048
  %v1107 = vadd.f32 %v1036, %v1048
  %v1108 = vadd.f32 %v1037, %v1048
  %v1109 = vadd.f32 %v1038, %v1048
  %v1110 = vadd.f32 %v1039, %v1048
  %v1111 = vadd.f32 %v1040, %v1048
  %v1112 = vadd.f32 %v1041, %v1048
  %v1113 = vadd.f32 %v1042, %v1048
  %1114 = vst [vmem:[%s7] sm:$0xff] %v1050
  %1115 = vst [vmem:[%s7 + $0x8] sm:$0xff] %v1051
  %1116 = vst [vmem:[%s7 + $0x10] sm:$0xff] %v1052
  %1117 = vst [vmem:[%s7 + $0x18] sm:$0xff] %v1053
  %1118 = vst [vmem:[%s7 + $0x20] sm:$0xff] %v1054
  %1119 = vst [vmem:[%s7 + $0x28] sm:$0xff] %v1055
  %1120 = vst [vmem:[%s7 + $0x30] sm:$0xff] %v1056
  %1121 = vst [vmem:[%s7 + $0x38] sm:$0xff] %v1057
  %1122 = vst [vmem:[%s7 + $0x40] sm:$0xff] %v1058
  %1123 = vst [vmem:[%s7 + $0x48] sm:$0xff] %v1059
  %1124 = vst [vmem:[%s7 + $0x50] sm:$0xff] %v1060
  %1125 = vst [vmem:[%s7 + $0x58] sm:$0xff] %v1061
  %1126 = vst [vmem:[%s7 + $0x60] sm:$0xff] %v1062
  %1127 = vst [vmem:[%s7 + $0x68] sm:$0xff] %v1063
  %1128 = vst [vmem:[%s7 + $0x70] sm:$0xff] %v1064
  %1129 = vst [vmem:[%s7 + $0x78] sm:$0xff] %v1065
  %1130 = vst [vmem:[%s7 + $0x80] sm:$0xff] %v1066
  %1131 = vst [vmem:[%s7 + $0x88] sm:$0xff] %v1067
  %1132 = vst [vmem:[%s7 + $0x90] sm:$0xff] %v1068
  %1133 = vst [vmem:[%s7 + $0x98] sm:$0xff] %v1069
  %1134 = vst [vmem:[%s7 + $0xa0] sm:$0xff] %v1070
  %1135 = vst [vmem:[%s7 + $0xa8] sm:$0xff] %v1071
  %1136 = vst [vmem:[%s7 + $0xb0] sm:$0xff] %v1072
  %1137 = vst [vmem:[%s7 + $0xb8] sm:$0xff] %v1073
  %1138 = vst [vmem:[%s7 + $0xc0] sm:$0xff] %v1074
  %1139 = vst [vmem:[%s7 + $0xc8] sm:$0xff] %v1075
  %1140 = vst [vmem:[%s7 + $0xd0] sm:$0xff] %v1076
  %1141 = vst [vmem:[%s7 + $0xd8] sm:$0xff] %v1077
  %1142 = vst [vmem:[%s7 + $0xe0] sm:$0xff] %v1078
  %1143 = vst [vmem:[%s7 + $0xe8] sm:$0xff] %v1079
  %1144 = vst [vmem:[%s7 + $0xf0] sm:$0xff] %v1080
  %1145 = vst [vmem:[%s7 + $0xf8] sm:$0xff] %v1081
  %1146 = vst [vmem:[%s7 + $0x100] sm:$0xff] %v1082
  %1147 = vst [vmem:[%s7 + $0x108] sm:$0xff] %v1083
  %1148 = vst [vmem:[%s7 + $0x110] sm:$0xff] %v1084
  %1149 = vst [vmem:[%s7 + $0x118] sm:$0xff] %v1085
  %1150 = vst [vmem:[%s7 + $0x120] sm:$0xff] %v1086
  %1151 = vst [vmem:[%s7 + $0x128] sm:$0xff] %v1087
  %1152 = vst [vmem:[%s7 + $0x130] sm:$0xff] %v1088
  %1153 = vst [vmem:[%s7 + $0x138] sm:$0xff] %v1089
  %1154 = vst [vmem:[%s7 + $0x140] sm:$0xff] %v1090
  %1155 = vst [vmem:[%s7 + $0x148] sm:$0xff] %v1091
  %1156 = vst [vmem:[%s7 + $0x150] sm:$0xff] %v1092
  %1157 = vst [vmem:[%s7 + $0x158] sm:$0xff] %v1093
  %1158 = vst [vmem:[%s7 + $0x160] sm:$0xff] %v1094
  %1159 = vst [vmem:[%s7 + $0x168] sm:$0xff] %v1095
  %1160 = vst [vmem:[%s7 + $0x170] sm:$0xff] %v1096
  %1161 = vst [vmem:[%s7 + $0x178] sm:$0xff] %v1097
  %1162 = vst [vmem:[%s7 + $0x180] sm:$0xff] %v1098
  %1163 = vst [vmem:[%s7 + $0x188] sm:$0xff] %v1099
  %1164 = vst [vmem:[%s7 + $0x190] sm:$0xff] %v1100
  %1165 = vst [vmem:[%s7 + $0x198] sm:$0xff] %v1101
  %1166 = vst [vmem:[%s7 + $0x1a0] sm:$0xff] %v1102
  %1167 = vst [vmem:[%s7 + $0x1a8] sm:$0xff] %v1103
  %1168 = vst [vmem:[%s7 + $0x1b0] sm:$0xff] %v1104
  %1169 = vst [vmem:[%s7 + $0x1b8] sm:$0xff] %v1105
  %1170 = vst [vmem:[%s7 + $0x1c0] sm:$0xff] %v1106
  %1171 = vst [vmem:[%s7 + $0x1c8] sm:$0xff] %v1107
  %1172 = vst [vmem:[%s7 + $0x1d0] sm:$0xff] %v1108
  %1173 = vst [vmem:[%s7 + $0x1d8] sm:$0xff] %v1109
  %1174 = vst [vmem:[%s7 + $0x1e0] sm:$0xff] %v1110
  %1175 = vst [vmem:[%s7 + $0x1e8] sm:$0xff] %v1111
  %1176 = vst [vmem:[%s7 + $0x1f0] sm:$0xff] %v1112
  %1177 = vst [vmem:[%s7 + $0x1f8] sm:$0xff] %v1113
  // Predicated region
  $region30: #{resnet_block_forward.5} parent=0 // pred_check
    _
  $region31: #{resnet_block_forward.5} parent=0 // pred_check_branch
    %1179 = sbr.rel (0) target = $region33
  $region32: #{resnet_block_forward.5} parent=0 // pred_region
    _
  $region33: #{resnet_block_forward.5} parent=0 // pred_fallthru
    _
  // Predicated region
  $region34: #{resnet_block_forward.5} parent=0 // pred_check
    _
  $region35: #{resnet_block_forward.5} parent=0 // pred_check_branch
    %1181 = sbr.rel (0) target = $region37
  $region36: #{resnet_block_forward.5} parent=0 // pred_region
    _
  $region37: #{resnet_block_forward.5} parent=0 // pred_fallthru
    _

// kernel: resnet_block_forward.4
$region0: #{resnet_block_forward.4}
  #allocation0 [shape = 'u32[]', space=smem, size = 0x4, offset = 0x4, fixed_abs, tag = 'smem constant byte address 0x4 - core index']
  #allocation1 [shape = 'u32[144,128]{1,0:T(1,128)}', space=vmem, size = 0x12000, scoped, tag = 'internal scratch']
  %s0 = inlined_call_operand.vmem [shape: bf16[2,16,16,128], index: 0, kind: input, shape index: {}]
  %s1 = inlined_call_operand.vmem [shape: f32[2,128], index: 1, kind: input, shape index: {}]
  %s2 = inlined_call_operand.vmem [shape: f32[1,128], index: 2, kind: input, shape index: {}]
  %s3 = inlined_call_operand.vmem [shape: f32[1,128], index: 3, kind: input, shape index: {}]
  %s4 = inlined_call_operand.vmem [shape: bf16[3,384,128], index: 4, kind: input, shape index: {}]
  %s5 = inlined_call_operand.vmem [shape: bf16[512,128], index: 5, kind: output, shape index: {0}]
  %s6 = inlined_call_operand.vmem [shape: f32[2,2,128], index: 6, kind: output, shape index: {1}]
  %7 = xla_tuple %s5, %s6
  %s8 = sld [smem:[#allocation0]]
  $region61: #{resnet_block_forward.4} parent=0
    _
  %s10 = ssub.s32 1, %s8
  %s11 = scalar_select 0, %s10, %s8
  loop: start=0, step=1, limit=4
  $region2: #{resnet_block_forward.4} parent=0 // loop_pre_header
    _
  $region3: #{resnet_block_forward.4} parent=0 // loop_header
    %s13 = sphi 0, %s17
    %p14 = scmp.ge.s32.totalorder %s13, 4
    %s23 = sphi 0, %s25
    %s26 = sphi 0, %s23
    %s27 = sphi 0, %s26
    %s43 = sphi 0, %s27
    %s47 = sphi 0, %s47
    %s49 = sphi 0, %s47
    %s50 = sphi 0, %s49
    %s64 = sphi 0, %s50
    %s68 = sphi 0, %s68
    %s70 = sphi 0, %s68
    %s71 = sphi 0, %s70
    %s85 = sphi 0, %s71
    %s89 = sphi 0, %s89
    %s91 = sphi 0, %s89
    %s92 = sphi 0, %s91
    %s106 = sphi 0, %s92
    %s110 = sphi 0, %s110
    %s112 = sphi 0, %s110
    %s113 = sphi 0, %s112
    %s127 = sphi 0, %s113
    %s133 = sphi 0, %s135
    %s136 = sphi 0, %s133
    %s137 = sphi 0, %s136
    %s153 = sphi 0, %s137
    %s159 = sphi 0, %s161
    %s162 = sphi 0, %s159
    %s163 = sphi 0, %s162
    %s179 = sphi 0, %s163
  $region4: #{resnet_block_forward.4} parent=0 // loop_header_branch
    %16 = sbr.rel (%p14) target = $region8
  $region5: #{resnet_block_forward.4} parent=0 // loop_body
    %s18 = ssub.s32 %s13, 1
    %s19 = ssub.s32 %s13, 2
    %s20 = sadd.s32 %s13, 1
    %s21 = ssub.s32 %s13, %s20
    %p22 = scmp.eq.s32.totalorder %s21, 0
    %s24 = sadd.s32 %s23, 1
    %s25 = scalar_select %p22, %s23, %s24
    %p28 = pneg %p22
    %p29 = scmp.eq.s32.totalorder %s13, 1
    %p30 = por %p28, %p29
    %p31 = scmp.ne.s32.totalorder %s23, %s26
    %p32 = scmp.eq.s32.totalorder %s13, 0
    %p33 = por %p31, %p32
    %p34 = scmp.ne.s32.totalorder %s23, %s26
    %p35 = scmp.eq.s32.totalorder %s18, 1
    %p36 = por %p34, %p35
    %p37 = scmp.ne.s32.totalorder %s26, %s27
    %p38 = scmp.eq.s32.totalorder %s18, 0
    %p39 = por %p37, %p38
    %p40 = scmp.ne.s32.totalorder %s26, %s27
    %p41 = scmp.eq.s32.totalorder %s19, 1
    %p42 = por %p40, %p41
    %p44 = scmp.ne.s32.totalorder %s27, %s43
    %p45 = scmp.eq.s32.totalorder %s19, 0
    %p46 = por %p44, %p45
    %s48 = sadd.s32 %s47, 1
    %p51 = scmp.eq.s32.totalorder %s13, 1
    %p52 = scmp.ne.s32.totalorder %s47, %s49
    %p53 = scmp.eq.s32.totalorder %s13, 0
    %p54 = por %p52, %p53
    %p55 = scmp.ne.s32.totalorder %s47, %s49
    %p56 = scmp.eq.s32.totalorder %s18, 1
    %p57 = por %p55, %p56
    %p58 = scmp.ne.s32.totalorder %s49, %s50
    %p59 = scmp.eq.s32.totalorder %s18, 0
    %p60 = por %p58, %p59
    %p61 = scmp.ne.s32.totalorder %s49, %s50
    %p62 = scmp.eq.s32.totalorder %s19, 1
    %p63 = por %p61, %p62
    %p65 = scmp.ne.s32.totalorder %s50, %s64
    %p66 = scmp.eq.s32.totalorder %s19, 0
    %p67 = por %p65, %p66
    %s69 = sadd.s32 %s68, 1
    %p72 = scmp.eq.s32.totalorder %s13, 1
    %p73 = scmp.ne.s32.totalorder %s68, %s70
    %p74 = scmp.eq.s32.totalorder %s13, 0
    %p75 = por %p73, %p74
    %p76 = scmp.ne.s32.totalorder %s68, %s70
    %p77 = scmp.eq.s32.totalorder %s18, 1
    %p78 = por %p76, %p77
    %p79 = scmp.ne.s32.totalorder %s70, %s71
    %p80 = scmp.eq.s32.totalorder %s18, 0
    %p81 = por %p79, %p80
    %p82 = scmp.ne.s32.totalorder %s70, %s71
    %p83 = scmp.eq.s32.totalorder %s19, 1
    %p84 = por %p82, %p83
    %p86 = scmp.ne.s32.totalorder %s71, %s85
    %p87 = scmp.eq.s32.totalorder %s19, 0
    %p88 = por %p86, %p87
    %s90 = sadd.s32 %s89, 1
    %p93 = scmp.eq.s32.totalorder %s13, 1
    %p94 = scmp.ne.s32.totalorder %s89, %s91
    %p95 = scmp.eq.s32.totalorder %s13, 0
    %p96 = por %p94, %p95
    %p97 = scmp.ne.s32.totalorder %s89, %s91
    %p98 = scmp.eq.s32.totalorder %s18, 1
    %p99 = por %p97, %p98
    %p100 = scmp.ne.s32.totalorder %s91, %s92
    %p101 = scmp.eq.s32.totalorder %s18, 0
    %p102 = por %p100, %p101
    %p103 = scmp.ne.s32.totalorder %s91, %s92
    %p104 = scmp.eq.s32.totalorder %s19, 1
    %p105 = por %p103, %p104
    %p107 = scmp.ne.s32.totalorder %s92, %s106
    %p108 = scmp.eq.s32.totalorder %s19, 0
    %p109 = por %p107, %p108
    %s111 = sadd.s32 %s110, 1
    %p114 = scmp.eq.s32.totalorder %s13, 1
    %p115 = scmp.ne.s32.totalorder %s110, %s112
    %p116 = scmp.eq.s32.totalorder %s13, 0
    %p117 = por %p115, %p116
    %p118 = scmp.ne.s32.totalorder %s110, %s112
    %p119 = scmp.eq.s32.totalorder %s18, 1
    %p120 = por %p118, %p119
    %p121 = scmp.ne.s32.totalorder %s112, %s113
    %p122 = scmp.eq.s32.totalorder %s18, 0
    %p123 = por %p121, %p122
    %p124 = scmp.ne.s32.totalorder %s112, %s113
    %p125 = scmp.eq.s32.totalorder %s19, 1
    %p126 = por %p124, %p125
    %p128 = scmp.ne.s32.totalorder %s113, %s127
    %p129 = scmp.eq.s32.totalorder %s19, 0
    %p130 = por %p128, %p129
    %s131 = ssub.s32 %s13, %s20
    %p132 = scmp.eq.s32.totalorder %s131, 0
    %s134 = sadd.s32 %s133, 1
    %s135 = scalar_select %p132, %s133, %s134
    %p138 = pneg %p132
    %p139 = scmp.eq.s32.totalorder %s13, 1
    %p140 = por %p138, %p139
    %p141 = scmp.ne.s32.totalorder %s133, %s136
    %p142 = scmp.eq.s32.totalorder %s13, 0
    %p143 = por %p141, %p142
    %p144 = scmp.ne.s32.totalorder %s133, %s136
    %p145 = scmp.eq.s32.totalorder %s18, 1
    %p146 = por %p144, %p145
    %p147 = scmp.ne.s32.totalorder %s136, %s137
    %p148 = scmp.eq.s32.totalorder %s18, 0
    %p149 = por %p147, %p148
    %p150 = scmp.ne.s32.totalorder %s136, %s137
    %p151 = scmp.eq.s32.totalorder %s19, 1
    %p152 = por %p150, %p151
    %p154 = scmp.ne.s32.totalorder %s137, %s153
    %p155 = scmp.eq.s32.totalorder %s19, 0
    %p156 = por %p154, %p155
    %s157 = ssub.s32 %s13, %s20
    %p158 = scmp.eq.s32.totalorder %s157, 0
    %s160 = sadd.s32 %s159, 1
    %s161 = scalar_select %p158, %s159, %s160
    %p164 = pneg %p158
    %p165 = scmp.eq.s32.totalorder %s13, 1
    %p166 = por %p164, %p165
    %p167 = scmp.ne.s32.totalorder %s159, %s162
    %p168 = scmp.eq.s32.totalorder %s13, 0
    %p169 = por %p167, %p168
    %p170 = scmp.ne.s32.totalorder %s159, %s162
    %p171 = scmp.eq.s32.totalorder %s18, 1
    %p172 = por %p170, %p171
    %p173 = scmp.ne.s32.totalorder %s162, %s163
    %p174 = scmp.eq.s32.totalorder %s18, 0
    %p175 = por %p173, %p174
    %p176 = scmp.ne.s32.totalorder %s162, %s163
    %p177 = scmp.eq.s32.totalorder %s19, 1
    %p178 = por %p176, %p177
    %p180 = scmp.ne.s32.totalorder %s163, %s179
    %p181 = scmp.eq.s32.totalorder %s19, 0
    %p182 = por %p180, %p181
    %p183 = scmp.le.s32.totalorder 1, %s13
    %p184 = scmp.lt.s32.totalorder %s13, 3
    %p185 = pnand %p183, %p184
    %p186 = pneg %p185
    // Predicated region
    $region9: #{resnet_block_forward.4} parent=5 // pred_check
      _
    $region10: #{resnet_block_forward.4} parent=5 // pred_check_branch
      %188 = sbr.rel (%p185) target = $region12
    $region11: #{resnet_block_forward.4} parent=5 // pred_region
      %s189 = ssub.s32 %s13, 1
      // Predicated region
      $region13: #{resnet_block_forward.4} parent=11 // pred_check
        %p190 = pneg %p60
      $region14: #{resnet_block_forward.4} parent=11 // pred_check_branch
        %192 = sbr.rel (%p190) target = $region16
      $region15: #{resnet_block_forward.4} parent=11 // pred_region
        _
      $region16: #{resnet_block_forward.4} parent=11 // pred_fallthru
        _
      // Predicated region
      $region17: #{resnet_block_forward.4} parent=11 // pred_check
        %p193 = pneg %p81
      $region18: #{resnet_block_forward.4} parent=11 // pred_check_branch
        %195 = sbr.rel (%p193) target = $region20
      $region19: #{resnet_block_forward.4} parent=11 // pred_region
        _
      $region20: #{resnet_block_forward.4} parent=11 // pred_fallthru
        _
      // Predicated region
      $region21: #{resnet_block_forward.4} parent=11 // pred_check
        %p196 = pneg %p102
      $region22: #{resnet_block_forward.4} parent=11 // pred_check_branch
        %198 = sbr.rel (%p196) target = $region24
      $region23: #{resnet_block_forward.4} parent=11 // pred_region
        _
      $region24: #{resnet_block_forward.4} parent=11 // pred_fallthru
        _
      // Predicated region
      $region25: #{resnet_block_forward.4} parent=11 // pred_check
        %p199 = pneg %p123
      $region26: #{resnet_block_forward.4} parent=11 // pred_check_branch
        %201 = sbr.rel (%p199) target = $region28
      $region27: #{resnet_block_forward.4} parent=11 // pred_region
        _
      $region28: #{resnet_block_forward.4} parent=11 // pred_fallthru
        _
    $region12: #{resnet_block_forward.4} parent=5 // pred_fallthru
      _
    %p202 = scmp.lt.s32.totalorder %s13, 2
    // Predicated region
    $region29: #{resnet_block_forward.4} parent=5 // pred_check
      %p203 = pneg %p202
    $region30: #{resnet_block_forward.4} parent=5 // pred_check_branch
      %205 = sbr.rel (%p203) target = $region32
    $region31: #{resnet_block_forward.4} parent=5 // pred_region
      // Predicated region
      $region33: #{resnet_block_forward.4} parent=31 // pred_check
        %p206 = pneg %p33
      $region34: #{resnet_block_forward.4} parent=31 // pred_check_branch
        %208 = sbr.rel (%p206) target = $region36
      $region35: #{resnet_block_forward.4} parent=31 // pred_region
        %p209 = scmp.lt.s32.totalorder %s13, 1
        %s210 = scalar_select %p209, %s13, 1
        %s211 = smul.addr %s210, 32
        %s212 = smul.addr %s211, 4
        %s213 = scalar_lea.vmem %s0, %s212
      $region36: #{resnet_block_forward.4} parent=31 // pred_fallthru
        _
    $region32: #{resnet_block_forward.4} parent=5 // pred_fallthru
      _
    %p214 = scmp.le.s32.totalorder 1, %s13
    %p215 = scmp.lt.s32.totalorder %s13, 3
    %p216 = pnand %p214, %p215
    %p217 = pneg %p216
    // Predicated region
    $region37: #{resnet_block_forward.4} parent=5 // pred_check
      _
    $region38: #{resnet_block_forward.4} parent=5 // pred_check_branch
      %219 = sbr.rel (%p216) target = $region40
    $region39: #{resnet_block_forward.4} parent=5 // pred_region
      %s220 = ssub.s32 %s13, 1
      %p221 = scmp.lt.s32.totalorder %s18, 1
      %s222 = scalar_select %p221, %s18, 1
      %s223 = smul.addr %s222, 32
      %s224 = smul.addr %s223, 4
      %s225 = scalar_lea.vmem %s0, %s224
      %p226 = pneg %p39
      %p227 = pneg %p36
      %p228 = pneg %p60
      %p229 = pneg %p57
      %p230 = pneg %p81
      %p231 = pneg %p78
      %p232 = pneg %p102
      %p233 = pneg %p99
      %p234 = pneg %p123
      %p235 = pneg %p120
      %p236 = pneg %p149
      %p237 = pneg %p146
      %s238 = smul.u32 32, %s18
      %p239 = scmp.lt.s32.totalorder %s238, 63
      %s240 = scalar_select %p239, %s238, 63
      %s241 = smul.addr %s240, 4
      %s242 = scalar_lea.vmem %s5, %s241
      %p243 = pneg %p175
      %p244 = pneg %p172
      %p245 = scmp.lt.s32.totalorder %s18, 1
      %s246 = scalar_select %p245, %s18, 1
      %s247 = smul.addr %s246, 2
      %s248 = scalar_lea.vmem %s6, %s247
      %p249 = scmp.lt.s32.totalorder %s18, 1
      %s250 = scalar_select %p249, %s18, 1
      %s251 = smul.addr %s250, 32
      %s252 = smul.addr %s251, 4
      %s253 = scalar_lea.vmem %s0, %s252
      %s254 = smul.u32 32, %s18
      %p255 = scmp.lt.s32.totalorder %s254, 63
      %s256 = scalar_select %p255, %s254, 63
      %s257 = smul.addr %s256, 4
      %s258 = scalar_lea.vmem %s5, %s257
      %s259 = smul.u32 32, %s18
      %p260 = scmp.lt.s32.totalorder %s18, 1
      %s261 = scalar_select %p260, %s18, 1
      %s262 = smul.addr %s261, 2
      %s263 = scalar_lea.vmem %s6, %s262
      %v265 = vld [vmem:[%s1] sm:$0x1]
      %v266 = vmul.f32 %v265, 0.001953125
      %v267 = vld [vmem:[%s1 + $0x1] sm:$0x1]
      %v268 = vmul.f32 %v267, 0.001953125
      %v269 = vmul.f32 %v266, %v266
      %v270 = vsub.f32 %v268, %v269
      %v271 = vadd.f32 %v270, 1e-05
      %v272 = vrsqrt.pop %v271
      %v273 = vld [vmem:[%s2] sm:$0x1]
      %v274 = vmul.f32 %v272, %v273
      %v275 = vld [vmem:[%s3] sm:$0x1]
      %v276 = vmul.f32 %v266, %v274
      %v277 = vsub.f32 %v275, %v276
      %v278 = vld [vmem:[%s253] sm:$0xf]
      %v279 = vld [vmem:[%s253 + $0x4] sm:$0xf]
      %v280 = vld [vmem:[%s253 + $0x8] sm:$0xf]
      %v281 = vld [vmem:[%s253 + $0xc] sm:$0xf]
      %v282 = vld [vmem:[%s253 + $0x10] sm:$0xf]
      %v283 = vld [vmem:[%s253 + $0x14] sm:$0xf]
      %v284 = vld [vmem:[%s253 + $0x18] sm:$0xf]
      %v285 = vld [vmem:[%s253 + $0x1c] sm:$0xf]
      %v286 = vld [vmem:[%s253 + $0x20] sm:$0xf]
      %v287 = vld [vmem:[%s253 + $0x24] sm:$0xf]
      %v288 = vld [vmem:[%s253 + $0x28] sm:$0xf]
      %v289 = vld [vmem:[%s253 + $0x2c] sm:$0xf]
      %v290 = vld [vmem:[%s253 + $0x30] sm:$0xf]
      %v291 = vld [vmem:[%s253 + $0x34] sm:$0xf]
      %v292 = vld [vmem:[%s253 + $0x38] sm:$0xf]
      %v293 = vld [vmem:[%s253 + $0x3c] sm:$0xf]
      %v294 = vld [vmem:[%s253 + $0x40] sm:$0xf]
      %v295 = vld [vmem:[%s253 + $0x44] sm:$0xf]
      %v296 = vld [vmem:[%s253 + $0x48] sm:$0xf]
      %v297 = vld [vmem:[%s253 + $0x4c] sm:$0xf]
      %v298 = vld [vmem:[%s253 + $0x50] sm:$0xf]
      %v299 = vld [vmem:[%s253 + $0x54] sm:$0xf]
      %v300 = vld [vmem:[%s253 + $0x58] sm:$0xf]
      %v301 = vld [vmem:[%s253 + $0x5c] sm:$0xf]
      %v302 = vld [vmem:[%s253 + $0x60] sm:$0xf]
      %v303 = vld [vmem:[%s253 + $0x64] sm:$0xf]
      %v304 = vld [vmem:[%s253 + $0x68] sm:$0xf]
      %v305 = vld [vmem:[%s253 + $0x6c] sm:$0xf]
      %v306 = vld [vmem:[%s253 + $0x70] sm:$0xf]
      %v307 = vld [vmem:[%s253 + $0x74] sm:$0xf]
      %v308 = vld [vmem:[%s253 + $0x78] sm:$0xf]
      %v309 = vld [vmem:[%s253 + $0x7c] sm:$0xf]
      %v310 = vunpack.c.l.bf16 %v278
      %v311 = vunpack.c.l.bf16 %v279
      %v312 = vunpack.c.l.bf16 %v280
      %v313 = vunpack.c.l.bf16 %v281
      %v314 = vunpack.c.l.bf16 %v282
      %v315 = vunpack.c.l.bf16 %v283
      %v316 = vunpack.c.l.bf16 %v284
      %v317 = vunpack.c.l.bf16 %v285
      %v318 = vunpack.c.l.bf16 %v286
      %v319 = vunpack.c.l.bf16 %v287
      %v320 = vunpack.c.l.bf16 %v288
      %v321 = vunpack.c.l.bf16 %v289
      %v322 = vunpack.c.l.bf16 %v290
      %v323 = vunpack.c.l.bf16 %v291
      %v324 = vunpack.c.l.bf16 %v292
      %v325 = vunpack.c.l.bf16 %v293
      %v326 = vunpack.c.l.bf16 %v294
      %v327 = vunpack.c.l.bf16 %v295
      %v328 = vunpack.c.l.bf16 %v296
      %v329 = vunpack.c.l.bf16 %v297
      %v330 = vunpack.c.l.bf16 %v298
      %v331 = vunpack.c.l.bf16 %v299
      %v332 = vunpack.c.l.bf16 %v300
      %v333 = vunpack.c.l.bf16 %v301
      %v334 = vunpack.c.l.bf16 %v302
      %v335 = vunpack.c.l.bf16 %v303
      %v336 = vunpack.c.l.bf16 %v304
      %v337 = vunpack.c.l.bf16 %v305
      %v338 = vunpack.c.l.bf16 %v306
      %v339 = vunpack.c.l.bf16 %v307
      %v340 = vunpack.c.l.bf16 %v308
      %v341 = vunpack.c.l.bf16 %v309
      %v342 = vlaneseq
      %v343 = vshrl.u32 %v342, 7
      %v344 = vsub.s32 0, %v343
      %v345 = vrot.slane %v274, %v344
      %v346 = vmul.f32 %v310, %v345
      %v347 = vmul.f32 %v311, %v345
      %v348 = vmul.f32 %v312, %v345
      %v349 = vmul.f32 %v313, %v345
      %v350 = vmul.f32 %v314, %v345
      %v351 = vmul.f32 %v315, %v345
      %v352 = vmul.f32 %v316, %v345
      %v353 = vmul.f32 %v317, %v345
      %v354 = vmul.f32 %v318, %v345
      %v355 = vmul.f32 %v319, %v345
      %v356 = vmul.f32 %v320, %v345
      %v357 = vmul.f32 %v321, %v345
      %v358 = vmul.f32 %v322, %v345
      %v359 = vmul.f32 %v323, %v345
      %v360 = vmul.f32 %v324, %v345
      %v361 = vmul.f32 %v325, %v345
      %v362 = vmul.f32 %v326, %v345
      %v363 = vmul.f32 %v327, %v345
      %v364 = vmul.f32 %v328, %v345
      %v365 = vmul.f32 %v329, %v345
      %v366 = vmul.f32 %v330, %v345
      %v367 = vmul.f32 %v331, %v345
      %v368 = vmul.f32 %v332, %v345
      %v369 = vmul.f32 %v333, %v345
      %v370 = vmul.f32 %v334, %v345
      %v371 = vmul.f32 %v335, %v345
      %v372 = vmul.f32 %v336, %v345
      %v373 = vmul.f32 %v337, %v345
      %v374 = vmul.f32 %v338, %v345
      %v375 = vmul.f32 %v339, %v345
      %v376 = vmul.f32 %v340, %v345
      %v377 = vmul.f32 %v341, %v345
      %v379 = vlaneseq
      %v380 = vshrl.u32 %v379, 7
      %v381 = vsub.s32 0, %v380
      %v382 = vrot.slane %v277, %v381
      %v384 = vadd.f32 %v346, %v382
      %v385 = vadd.f32 %v347, %v382
      %v386 = vadd.f32 %v348, %v382
      %v387 = vadd.f32 %v349, %v382
      %v388 = vadd.f32 %v350, %v382
      %v389 = vadd.f32 %v351, %v382
      %v390 = vadd.f32 %v352, %v382
      %v391 = vadd.f32 %v353, %v382
      %v392 = vadd.f32 %v354, %v382
      %v393 = vadd.f32 %v355, %v382
      %v394 = vadd.f32 %v356, %v382
      %v395 = vadd.f32 %v357, %v382
      %v396 = vadd.f32 %v358, %v382
      %v397 = vadd.f32 %v359, %v382
      %v398 = vadd.f32 %v360, %v382
      %v399 = vadd.f32 %v361, %v382
      %v400 = vadd.f32 %v362, %v382
      %v401 = vadd.f32 %v363, %v382
      %v402 = vadd.f32 %v364, %v382
      %v403 = vadd.f32 %v365, %v382
      %v404 = vadd.f32 %v366, %v382
      %v405 = vadd.f32 %v367, %v382
      %v406 = vadd.f32 %v368, %v382
      %v407 = vadd.f32 %v369, %v382
      %v408 = vadd.f32 %v370, %v382
      %v409 = vadd.f32 %v371, %v382
      %v410 = vadd.f32 %v372, %v382
      %v411 = vadd.f32 %v373, %v382
      %v412 = vadd.f32 %v374, %v382
      %v413 = vadd.f32 %v375, %v382
      %v414 = vadd.f32 %v376, %v382
      %v415 = vadd.f32 %v377, %v382
      %v416 = vmax.f32 %v384, 0.0
      %v417 = vmax.f32 %v385, 0.0
      %v418 = vmax.f32 %v386, 0.0
      %v419 = vmax.f32 %v387, 0.0
      %v420 = vmax.f32 %v388, 0.0
      %v421 = vmax.f32 %v389, 0.0
      %v422 = vmax.f32 %v390, 0.0
      %v423 = vmax.f32 %v391, 0.0
      %v424 = vmax.f32 %v392, 0.0
      %v425 = vmax.f32 %v393, 0.0
      %v426 = vmax.f32 %v394, 0.0
      %v427 = vmax.f32 %v395, 0.0
      %v428 = vmax.f32 %v396, 0.0
      %v429 = vmax.f32 %v397, 0.0
      %v430 = vmax.f32 %v398, 0.0
      %v431 = vmax.f32 %v399, 0.0
      %v432 = vmax.f32 %v400, 0.0
      %v433 = vmax.f32 %v401, 0.0
      %v434 = vmax.f32 %v402, 0.0
      %v435 = vmax.f32 %v403, 0.0
      %v436 = vmax.f32 %v404, 0.0
      %v437 = vmax.f32 %v405, 0.0
      %v438 = vmax.f32 %v406, 0.0
      %v439 = vmax.f32 %v407, 0.0
      %v440 = vmax.f32 %v408, 0.0
      %v441 = vmax.f32 %v409, 0.0
      %v442 = vmax.f32 %v410, 0.0
      %v443 = vmax.f32 %v411, 0.0
      %v444 = vmax.f32 %v412, 0.0
      %v445 = vmax.f32 %v413, 0.0
      %v446 = vmax.f32 %v414, 0.0
      %v447 = vmax.f32 %v415, 0.0
      %v448 = vpack.c.bf16 %v417, %v416
      %v449 = vpack.c.bf16 %v419, %v418
      %v450 = vpack.c.bf16 %v421, %v420
      %v451 = vpack.c.bf16 %v423, %v422
      %v452 = vpack.c.bf16 %v425, %v424
      %v453 = vpack.c.bf16 %v427, %v426
      %v454 = vpack.c.bf16 %v429, %v428
      %v455 = vpack.c.bf16 %v431, %v430
      %v456 = vpack.c.bf16 %v433, %v432
      %v457 = vpack.c.bf16 %v435, %v434
      %v458 = vpack.c.bf16 %v437, %v436
      %v459 = vpack.c.bf16 %v439, %v438
      %v460 = vpack.c.bf16 %v441, %v440
      %v461 = vpack.c.bf16 %v443, %v442
      %v462 = vpack.c.bf16 %v445, %v444
      %v463 = vpack.c.bf16 %v447, %v446
      %v465 = vshrl.u32 %v448, 16
      %v467 = vrot.slane %v465, 7
      %v468 = vshll.u32 %v448, 16
      %v470 = vor.u32 %v467, %v468
      %v472 = vshrl.u32 %v449, 16
      %v474 = vrot.slane %v472, 7
      %v475 = vshll.u32 %v449, 16
      %v477 = vor.u32 %v474, %v475
      %v479 = vshrl.u32 %v450, 16
      %v481 = vrot.slane %v479, 7
      %v482 = vshll.u32 %v450, 16
      %v484 = vor.u32 %v481, %v482
      %v486 = vshrl.u32 %v451, 16
      %v488 = vrot.slane %v486, 7
      %v489 = vshll.u32 %v451, 16
      %v491 = vor.u32 %v488, %v489
      %v493 = vshrl.u32 %v452, 16
      %v495 = vrot.slane %v493, 7
      %v496 = vshll.u32 %v452, 16
      %v498 = vor.u32 %v495, %v496
      %v500 = vshrl.u32 %v453, 16
      %v502 = vrot.slane %v500, 7
      %v503 = vshll.u32 %v453, 16
      %v505 = vor.u32 %v502, %v503
      %v507 = vshrl.u32 %v454, 16
      %v509 = vrot.slane %v507, 7
      %v510 = vshll.u32 %v454, 16
      %v512 = vor.u32 %v509, %v510
      %v514 = vshrl.u32 %v455, 16
      %v516 = vrot.slane %v514, 7
      %v517 = vshll.u32 %v455, 16
      %v519 = vor.u32 %v516, %v517
      %v521 = vshrl.u32 %v456, 16
      %v523 = vrot.slane %v521, 7
      %v524 = vshll.u32 %v456, 16
      %v526 = vor.u32 %v523, %v524
      %v528 = vshrl.u32 %v457, 16
      %v530 = vrot.slane %v528, 7
      %v531 = vshll.u32 %v457, 16
      %v533 = vor.u32 %v530, %v531
      %v535 = vshrl.u32 %v458, 16
      %v537 = vrot.slane %v535, 7
      %v538 = vshll.u32 %v458, 16
      %v540 = vor.u32 %v537, %v538
      %v542 = vshrl.u32 %v459, 16
      %v544 = vrot.slane %v542, 7
      %v545 = vshll.u32 %v459, 16
      %v547 = vor.u32 %v544, %v545
      %v549 = vshrl.u32 %v460, 16
      %v551 = vrot.slane %v549, 7
      %v552 = vshll.u32 %v460, 16
      %v554 = vor.u32 %v551, %v552
      %v556 = vshrl.u32 %v461, 16
      %v558 = vrot.slane %v556, 7
      %v559 = vshll.u32 %v461, 16
      %v561 = vor.u32 %v558, %v559
      %v563 = vshrl.u32 %v462, 16
      %v565 = vrot.slane %v563, 7
      %v566 = vshll.u32 %v462, 16
      %v568 = vor.u32 %v565, %v566
      %v570 = vshrl.u32 %v463, 16
      %v572 = vrot.slane %v570, 7
      %v573 = vshll.u32 %v463, 16
      %v575 = vor.u32 %v572, %v573
      %vm608 = vcmask 1040384
      %vm609 = vsmask.f32 256
      %vm610 = vmand %vm608, %vm609
      %v611 = vsel %vm610, 0, %v470
      %v612 = vsel %vm610, 0, %v477
      %v613 = vsel %vm610, 0, %v484
      %v614 = vsel %vm610, 0, %v491
      %v615 = vsel %vm610, 0, %v498
      %v616 = vsel %vm610, 0, %v505
      %v617 = vsel %vm610, 0, %v512
      %v618 = vsel %vm610, 0, %v519
      %v619 = vsel %vm610, 0, %v526
      %v620 = vsel %vm610, 0, %v533
      %v621 = vsel %vm610, 0, %v540
      %v622 = vsel %vm610, 0, %v547
      %v623 = vsel %vm610, 0, %v554
      %v624 = vsel %vm610, 0, %v561
      %v625 = vsel %vm610, 0, %v568
      %v626 = vsel %vm610, 0, %v575
      %v627 = vsel %vm610, %v467, 0
      %v628 = vsel %vm610, %v474, 0
      %v629 = vsel %vm610, %v481, 0
      %v630 = vsel %vm610, %v488, 0
      %v631 = vsel %vm610, %v495, 0
      %v632 = vsel %vm610, %v502, 0
      %v633 = vsel %vm610, %v509, 0
      %v634 = vsel %vm610, %v516, 0
      %v635 = vsel %vm610, %v523, 0
      %v636 = vsel %vm610, %v530, 0
      %v637 = vsel %vm610, %v537, 0
      %v638 = vsel %vm610, %v544, 0
      %v639 = vsel %vm610, %v551, 0
      %v640 = vsel %vm610, %v558, 0
      %v641 = vsel %vm610, %v565, 0
      %v642 = vsel %vm610, %v572, 0
      %vm643 = vsmask.f32 7424
      %v645 = vshrl.u32 0, 16
      %v647 = vshll.u32 0, 16
      %v649 = vrot.slane %v647, 1
      %v650 = vor.u32 %v645, %v649
      %v651 = vsel %vm643, %v650, %v649
      %v653 = vshrl.u32 %v611, 16
      %v655 = vshll.u32 %v611, 16
      %v657 = vrot.slane %v655, 1
      %v658 = vor.u32 %v653, %v657
      %v660 = vshll.u32 %v627, 16
      %v662 = vrot.slane %v660, 1
      %v663 = vsel %vm643, %v658, %v662
      %v665 = vshrl.u32 %v612, 16
      %v667 = vshll.u32 %v612, 16
      %v669 = vrot.slane %v667, 1
      %v670 = vor.u32 %v665, %v669
      %v672 = vshll.u32 %v628, 16
      %v674 = vrot.slane %v672, 1
      %v675 = vsel %vm643, %v670, %v674
      %v677 = vshrl.u32 %v613, 16
      %v679 = vshll.u32 %v613, 16
      %v681 = vrot.slane %v679, 1
      %v682 = vor.u32 %v677, %v681
      %v684 = vshll.u32 %v629, 16
      %v686 = vrot.slane %v684, 1
      %v687 = vsel %vm643, %v682, %v686
      %v689 = vshrl.u32 %v614, 16
      %v691 = vshll.u32 %v614, 16
      %v693 = vrot.slane %v691, 1
      %v694 = vor.u32 %v689, %v693
      %v696 = vshll.u32 %v630, 16
      %v698 = vrot.slane %v696, 1
      %v699 = vsel %vm643, %v694, %v698
      %v701 = vshrl.u32 %v615, 16
      %v703 = vshll.u32 %v615, 16
      %v705 = vrot.slane %v703, 1
      %v706 = vor.u32 %v701, %v705
      %v708 = vshll.u32 %v631, 16
      %v710 = vrot.slane %v708, 1
      %v711 = vsel %vm643, %v706, %v710
      %v713 = vshrl.u32 %v616, 16
      %v715 = vshll.u32 %v616, 16
      %v717 = vrot.slane %v715, 1
      %v718 = vor.u32 %v713, %v717
      %v720 = vshll.u32 %v632, 16
      %v722 = vrot.slane %v720, 1
      %v723 = vsel %vm643, %v718, %v722
      %v725 = vshrl.u32 %v617, 16
      %v727 = vshll.u32 %v617, 16
      %v729 = vrot.slane %v727, 1
      %v730 = vor.u32 %v725, %v729
      %v732 = vshll.u32 %v633, 16
      %v734 = vrot.slane %v732, 1
      %v735 = vsel %vm643, %v730, %v734
      %v737 = vshrl.u32 %v618, 16
      %v739 = vshll.u32 %v618, 16
      %v741 = vrot.slane %v739, 1
      %v742 = vor.u32 %v737, %v741
      %v744 = vshll.u32 %v634, 16
      %v746 = vrot.slane %v744, 1
      %v747 = vsel %vm643, %v742, %v746
      %v749 = vshrl.u32 %v619, 16
      %v751 = vshll.u32 %v619, 16
      %v753 = vrot.slane %v751, 1
      %v754 = vor.u32 %v749, %v753
      %v756 = vshll.u32 %v635, 16
      %v758 = vrot.slane %v756, 1
      %v759 = vsel %vm643, %v754, %v758
      %v761 = vshrl.u32 %v620, 16
      %v763 = vshll.u32 %v620, 16
      %v765 = vrot.slane %v763, 1
      %v766 = vor.u32 %v761, %v765
      %v768 = vshll.u32 %v636, 16
      %v770 = vrot.slane %v768, 1
      %v771 = vsel %vm643, %v766, %v770
      %v773 = vshrl.u32 %v621, 16
      %v775 = vshll.u32 %v621, 16
      %v777 = vrot.slane %v775, 1
      %v778 = vor.u32 %v773, %v777
      %v780 = vshll.u32 %v637, 16
      %v782 = vrot.slane %v780, 1
      %v783 = vsel %vm643, %v778, %v782
      %v785 = vshrl.u32 %v622, 16
      %v787 = vshll.u32 %v622, 16
      %v789 = vrot.slane %v787, 1
      %v790 = vor.u32 %v785, %v789
      %v792 = vshll.u32 %v638, 16
      %v794 = vrot.slane %v792, 1
      %v795 = vsel %vm643, %v790, %v794
      %v797 = vshrl.u32 %v623, 16
      %v799 = vshll.u32 %v623, 16
      %v801 = vrot.slane %v799, 1
      %v802 = vor.u32 %v797, %v801
      %v804 = vshll.u32 %v639, 16
      %v806 = vrot.slane %v804, 1
      %v807 = vsel %vm643, %v802, %v806
      %v809 = vshrl.u32 %v624, 16
      %v811 = vshll.u32 %v624, 16
      %v813 = vrot.slane %v811, 1
      %v814 = vor.u32 %v809, %v813
      %v816 = vshll.u32 %v640, 16
      %v818 = vrot.slane %v816, 1
      %v819 = vsel %vm643, %v814, %v818
      %v821 = vshrl.u32 %v625, 16
      %v823 = vshll.u32 %v625, 16
      %v825 = vrot.slane %v823, 1
      %v826 = vor.u32 %v821, %v825
      %v828 = vshll.u32 %v641, 16
      %v830 = vrot.slane %v828, 1
      %v831 = vsel %vm643, %v826, %v830
      %vm879 = vcmask 1046528
      %v880 = vrot.slane 0, 1
      %v881 = vsel %vm879, %v880, %v880
      %v882 = vrot.slane %v611, 1
      %v883 = vrot.slane %v627, 1
      %v884 = vsel %vm879, %v882, %v883
      %v885 = vrot.slane %v612, 1
      %v886 = vrot.slane %v628, 1
      %v887 = vsel %vm879, %v885, %v886
      %v888 = vrot.slane %v613, 1
      %v889 = vrot.slane %v629, 1
      %v890 = vsel %vm879, %v888, %v889
      %v891 = vrot.slane %v614, 1
      %v892 = vrot.slane %v630, 1
      %v893 = vsel %vm879, %v891, %v892
      %v894 = vrot.slane %v615, 1
      %v895 = vrot.slane %v631, 1
      %v896 = vsel %vm879, %v894, %v895
      %v897 = vrot.slane %v616, 1
      %v898 = vrot.slane %v632, 1
      %v899 = vsel %vm879, %v897, %v898
      %v900 = vrot.slane %v617, 1
      %v901 = vrot.slane %v633, 1
      %v902 = vsel %vm879, %v900, %v901
      %v903 = vrot.slane %v618, 1
      %v904 = vrot.slane %v634, 1
      %v905 = vsel %vm879, %v903, %v904
      %v906 = vrot.slane %v619, 1
      %v907 = vrot.slane %v635, 1
      %v908 = vsel %vm879, %v906, %v907
      %v909 = vrot.slane %v620, 1
      %v910 = vrot.slane %v636, 1
      %v911 = vsel %vm879, %v909, %v910
      %v912 = vrot.slane %v621, 1
      %v913 = vrot.slane %v637, 1
      %v914 = vsel %vm879, %v912, %v913
      %v915 = vrot.slane %v622, 1
      %v916 = vrot.slane %v638, 1
      %v917 = vsel %vm879, %v915, %v916
      %v918 = vrot.slane %v623, 1
      %v919 = vrot.slane %v639, 1
      %v920 = vsel %vm879, %v918, %v919
      %v921 = vrot.slane %v624, 1
      %v922 = vrot.slane %v640, 1
      %v923 = vsel %vm879, %v921, %v922
      %v924 = vrot.slane %v625, 1
      %v925 = vrot.slane %v641, 1
      %v926 = vsel %vm879, %v924, %v925
      %v943 = vld [vmem:[%s4] sm:$0xf]
      %v944 = vld [vmem:[%s4 + $0x4] sm:$0xf]
      %v945 = vld [vmem:[%s4 + $0x8] sm:$0xf]
      %v946 = vld [vmem:[%s4 + $0xc] sm:$0xf]
      %v947 = vld [vmem:[%s4 + $0x10] sm:$0xf]
      %v948 = vld [vmem:[%s4 + $0x14] sm:$0xf]
      %v949 = vld [vmem:[%s4 + $0x18] sm:$0xf]
      %v950 = vld [vmem:[%s4 + $0x1c] sm:$0xf]
      %v951 = vld [vmem:[%s4 + $0x20] sm:$0xf]
      %v952 = vld [vmem:[%s4 + $0x24] sm:$0xf]
      %v953 = vld [vmem:[%s4 + $0x28] sm:$0xf]
      %v954 = vld [vmem:[%s4 + $0x2c] sm:$0xf]
      %v955 = vld [vmem:[%s4 + $0x30] sm:$0xf]
      %v956 = vld [vmem:[%s4 + $0x34] sm:$0xf]
      %v957 = vld [vmem:[%s4 + $0x38] sm:$0xf]
      %v958 = vld [vmem:[%s4 + $0x3c] sm:$0xf]
      %v959 = vld [vmem:[%s4 + $0x40] sm:$0xf]
      %v960 = vld [vmem:[%s4 + $0x44] sm:$0xf]
      %v961 = vld [vmem:[%s4 + $0x48] sm:$0xf]
      %v962 = vld [vmem:[%s4 + $0x4c] sm:$0xf]
      %v963 = vld [vmem:[%s4 + $0x50] sm:$0xf]
      %v964 = vld [vmem:[%s4 + $0x54] sm:$0xf]
      %v965 = vld [vmem:[%s4 + $0x58] sm:$0xf]
      %v966 = vld [vmem:[%s4 + $0x5c] sm:$0xf]
      %v967 = vld [vmem:[%s4 + $0x60] sm:$0xf]
      %v968 = vld [vmem:[%s4 + $0x64] sm:$0xf]
      %v969 = vld [vmem:[%s4 + $0x68] sm:$0xf]
      %v970 = vld [vmem:[%s4 + $0x6c] sm:$0xf]
      %v971 = vld [vmem:[%s4 + $0x70] sm:$0xf]
      %v972 = vld [vmem:[%s4 + $0x74] sm:$0xf]
      %v973 = vld [vmem:[%s4 + $0x78] sm:$0xf]
      %v974 = vld [vmem:[%s4 + $0x7c] sm:$0xf]
      %v975 = vld [vmem:[%s4 + $0x80] sm:$0xf]
      %v976 = vld [vmem:[%s4 + $0x84] sm:$0xf]
      %v977 = vld [vmem:[%s4 + $0x88] sm:$0xf]
      %v978 = vld [vmem:[%s4 + $0x8c] sm:$0xf]
      %v979 = vld [vmem:[%s4 + $0x90] sm:$0xf]
      %v980 = vld [vmem:[%s4 + $0x94] sm:$0xf]
      %v981 = vld [vmem:[%s4 + $0x98] sm:$0xf]
      %v982 = vld [vmem:[%s4 + $0x9c] sm:$0xf]
      %v983 = vld [vmem:[%s4 + $0xa0] sm:$0xf]
      %v984 = vld [vmem:[%s4 + $0xa4] sm:$0xf]
      %v985 = vld [vmem:[%s4 + $0xa8] sm:$0xf]
      %v986 = vld [vmem:[%s4 + $0xac] sm:$0xf]
      %v987 = vld [vmem:[%s4 + $0xb0] sm:$0xf]
      %v988 = vld [vmem:[%s4 + $0xb4] sm:$0xf]
      %v989 = vld [vmem:[%s4 + $0xb8] sm:$0xf]
      %v990 = vld [vmem:[%s4 + $0xbc] sm:$0xf]
      %v992 = vshrl.u32 %v626, 16
      %v994 = vshll.u32 %v626, 16
      %v996 = vrot.slane %v994, 1
      %v997 = vor.u32 %v992, %v996
      %v999 = vshll.u32 %v642, 16
      %v1001 = vrot.slane %v999, 1
      %v1002 = vsel %vm643, %v997, %v1001
      %v1006 = vrot.slane %v626, 1
      %v1007 = vrot.slane %v642, 1
      %v1008 = vsel %vm879, %v1006, %v1007
      %s1010 = scalar_lea.vmem %s4, 192
      %v1011 = vld [vmem:[%s1010] sm:$0xf]
      %v1012 = vld [vmem:[%s1010 + $0x4] sm:$0xf]
      %v1013 = vld [vmem:[%s1010 + $0x8] sm:$0xf]
      %v1014 = vld [vmem:[%s1010 + $0xc] sm:$0xf]
      %v1015 = vld [vmem:[%s1010 + $0x10] sm:$0xf]
      %v1016 = vld [vmem:[%s1010 + $0x14] sm:$0xf]
      %v1017 = vld [vmem:[%s1010 + $0x18] sm:$0xf]
      %v1018 = vld [vmem:[%s1010 + $0x1c] sm:$0xf]
      %v1019 = vld [vmem:[%s1010 + $0x20] sm:$0xf]
      %v1020 = vld [vmem:[%s1010 + $0x24] sm:$0xf]
      %v1021 = vld [vmem:[%s1010 + $0x28] sm:$0xf]
      %v1022 = vld [vmem:[%s1010 + $0x2c] sm:$0xf]
      %v1023 = vld [vmem:[%s1010 + $0x30] sm:$0xf]
      %v1024 = vld [vmem:[%s1010 + $0x34] sm:$0xf]
      %v1025 = vld [vmem:[%s1010 + $0x38] sm:$0xf]
      %v1026 = vld [vmem:[%s1010 + $0x3c] sm:$0xf]
      %v1027 = vld [vmem:[%s1010 + $0x40] sm:$0xf]
      %v1028 = vld [vmem:[%s1010 + $0x44] sm:$0xf]
      %v1029 = vld [vmem:[%s1010 + $0x48] sm:$0xf]
      %v1030 = vld [vmem:[%s1010 + $0x4c] sm:$0xf]
      %v1031 = vld [vmem:[%s1010 + $0x50] sm:$0xf]
      %v1032 = vld [vmem:[%s1010 + $0x54] sm:$0xf]
      %v1033 = vld [vmem:[%s1010 + $0x58] sm:$0xf]
      %v1034 = vld [vmem:[%s1010 + $0x5c] sm:$0xf]
      %v1035 = vld [vmem:[%s1010 + $0x60] sm:$0xf]
      %v1036 = vld [vmem:[%s1010 + $0x64] sm:$0xf]
      %v1037 = vld [vmem:[%s1010 + $0x68] sm:$0xf]
      %v1038 = vld [vmem:[%s1010 + $0x6c] sm:$0xf]
      %v1039 = vld [vmem:[%s1010 + $0x70] sm:$0xf]
      %v1040 = vld [vmem:[%s1010 + $0x74] sm:$0xf]
      %v1041 = vld [vmem:[%s1010 + $0x78] sm:$0xf]
      %v1042 = vld [vmem:[%s1010 + $0x7c] sm:$0xf]
      %v1043 = vld [vmem:[%s1010 + $0x80] sm:$0xf]
      %v1044 = vld [vmem:[%s1010 + $0x84] sm:$0xf]
      %v1045 = vld [vmem:[%s1010 + $0x88] sm:$0xf]
      %v1046 = vld [vmem:[%s1010 + $0x8c] sm:$0xf]
      %v1047 = vld [vmem:[%s1010 + $0x90] sm:$0xf]
      %v1048 = vld [vmem:[%s1010 + $0x94] sm:$0xf]
      %v1049 = vld [vmem:[%s1010 + $0x98] sm:$0xf]
      %v1050 = vld [vmem:[%s1010 + $0x9c] sm:$0xf]
      %v1051 = vld [vmem:[%s1010 + $0xa0] sm:$0xf]
      %v1052 = vld [vmem:[%s1010 + $0xa4] sm:$0xf]
      %v1053 = vld [vmem:[%s1010 + $0xa8] sm:$0xf]
      %v1054 = vld [vmem:[%s1010 + $0xac] sm:$0xf]
      %v1055 = vld [vmem:[%s1010 + $0xb0] sm:$0xf]
      %v1056 = vld [vmem:[%s1010 + $0xb4] sm:$0xf]
      %v1057 = vld [vmem:[%s1010 + $0xb8] sm:$0xf]
      %v1058 = vld [vmem:[%s1010 + $0xbc] sm:$0xf]
      %v1107 = vunpack.c.l.b16 %v1011
      %v1108 = vunpack.c.l.b16 %v1012
      %v1109 = vunpack.c.l.b16 %v1013
      %v1110 = vunpack.c.l.b16 %v1014
      %v1111 = vunpack.c.l.b16 %v1015
      %v1112 = vunpack.c.l.b16 %v1016
      %v1113 = vunpack.c.l.b16 %v1017
      %v1114 = vunpack.c.l.b16 %v1018
      %v1115 = vunpack.c.l.b16 %v1019
      %v1116 = vunpack.c.l.b16 %v1020
      %v1117 = vunpack.c.l.b16 %v1021
      %v1118 = vunpack.c.l.b16 %v1022
      %v1119 = vunpack.c.l.b16 %v1023
      %v1120 = vunpack.c.l.b16 %v1024
      %v1121 = vunpack.c.l.b16 %v1025
      %v1122 = vunpack.c.l.b16 %v1026
      %v1123 = vunpack.c.l.b16 %v1027
      %v1124 = vunpack.c.l.b16 %v1028
      %v1125 = vunpack.c.l.b16 %v1029
      %v1126 = vunpack.c.l.b16 %v1030
      %v1127 = vunpack.c.l.b16 %v1031
      %v1128 = vunpack.c.l.b16 %v1032
      %v1129 = vunpack.c.l.b16 %v1033
      %v1130 = vunpack.c.l.b16 %v1034
      %v1131 = vunpack.c.l.b16 %v1035
      %v1132 = vunpack.c.l.b16 %v1036
      %v1133 = vunpack.c.l.b16 %v1037
      %v1134 = vunpack.c.l.b16 %v1038
      %v1135 = vunpack.c.l.b16 %v1039
      %v1136 = vunpack.c.l.b16 %v1040
      %v1137 = vunpack.c.l.b16 %v1041
      %v1138 = vunpack.c.l.b16 %v1042
      %v1139 = vunpack.c.l.b16 %v1043
      %v1140 = vunpack.c.l.b16 %v1044
      %v1141 = vunpack.c.l.b16 %v1045
      %v1142 = vunpack.c.l.b16 %v1046
      %v1143 = vunpack.c.l.b16 %v1047
      %v1144 = vunpack.c.l.b16 %v1048
      %v1145 = vunpack.c.l.b16 %v1049
      %v1146 = vunpack.c.l.b16 %v1050
      %v1147 = vunpack.c.l.b16 %v1051
      %v1148 = vunpack.c.l.b16 %v1052
      %v1149 = vunpack.c.l.b16 %v1053
      %v1150 = vunpack.c.l.b16 %v1054
      %v1151 = vunpack.c.l.b16 %v1055
      %v1152 = vunpack.c.l.b16 %v1056
      %v1153 = vunpack.c.l.b16 %v1057
      %v1154 = vunpack.c.l.b16 %v1058
      %v1155 = vpack.c.b16 %v1108, %v1107
      %v1156 = vpack.c.b16 %v1110, %v1109
      %v1157 = vpack.c.b16 %v1112, %v1111
      %v1158 = vpack.c.b16 %v1114, %v1113
      %v1159 = vpack.c.b16 %v1116, %v1115
      %v1160 = vpack.c.b16 %v1118, %v1117
      %v1161 = vpack.c.b16 %v1120, %v1119
      %v1162 = vpack.c.b16 %v1122, %v1121
      %v1163 = vpack.c.b16 %v1124, %v1123
      %v1164 = vpack.c.b16 %v1126, %v1125
      %v1165 = vpack.c.b16 %v1128, %v1127
      %v1166 = vpack.c.b16 %v1130, %v1129
      %v1167 = vpack.c.b16 %v1132, %v1131
      %v1168 = vpack.c.b16 %v1134, %v1133
      %v1169 = vpack.c.b16 %v1136, %v1135
      %v1170 = vpack.c.b16 %v1138, %v1137
      %v1171 = vpack.c.b16 %v1140, %v1139
      %v1172 = vpack.c.b16 %v1142, %v1141
      %v1173 = vpack.c.b16 %v1144, %v1143
      %v1174 = vpack.c.b16 %v1146, %v1145
      %v1175 = vpack.c.b16 %v1148, %v1147
      %v1176 = vpack.c.b16 %v1150, %v1149
      %v1177 = vpack.c.b16 %v1152, %v1151
      %v1178 = vpack.c.b16 %v1154, %v1153
      %1203 = vmatprep.subr.bf16.mxu0 0
      %1204 = vmatpush1.bf16.msra.mxu0 %v1162
      %1205 = vmatprep.subr.bf16.mxu0 0
      %1206 = vmatpush1.bf16.msra.mxu0 %v1161
      %1207 = vmatprep.subr.bf16.mxu0 0
      %1208 = vmatpush1.bf16.msra.mxu0 %v1160
      %1209 = vmatprep.subr.bf16.mxu0 0
      %1210 = vmatpush1.bf16.msra.mxu0 %v1159
      %1211 = vmatprep.subr.bf16.mxu0 0
      %1212 = vmatpush1.bf16.msra.mxu0 %v1158
      %1213 = vmatprep.subr.bf16.mxu0 0
      %1214 = vmatpush1.bf16.msra.mxu0 %v1157
      %1215 = vmatprep.subr.bf16.mxu0 0
      %1216 = vmatpush1.bf16.msra.mxu0 %v1156
      %1217 = vmatprep.subr.bf16.mxu0 0
      %1218 = vmatpush1.bf16.msra.mxu0 %v1155
      %1219 = vmatprep.subr.bf16.mxu0 0
      %1220 = vmatpush2.bf16.msra.mxu0 %v1170
      %1221 = vmatprep.subr.bf16.mxu0 0
      %1222 = vmatpush2.bf16.msra.mxu0 %v1169
      %1223 = vmatprep.subr.bf16.mxu0 0
      %1224 = vmatpush2.bf16.msra.mxu0 %v1168
      %1225 = vmatprep.subr.bf16.mxu0 0
      %1226 = vmatpush2.bf16.msra.mxu0 %v1167
      %1227 = vmatprep.subr.bf16.mxu0 0
      %1228 = vmatpush2.bf16.msra.mxu0 %v1166
      %1229 = vmatprep.subr.bf16.mxu0 0
      %1230 = vmatpush2.bf16.msra.mxu0 %v1165
      %1231 = vmatprep.subr.bf16.mxu0 0
      %1232 = vmatpush2.bf16.msra.mxu0 %v1164
      %1233 = vmatprep.subr.bf16.mxu0 0
      %1234 = vmatpush2.bf16.msra.mxu0 %v1163
      %1235 = vmatprep.mubr.bf16.mxu0 %v663
      %1236 = vmatmul.mubr.bf16.gmra.mxu0 %v611
      %v1237 = vpop.f32.mrf.mxu0
      %v1238 = vadd.f32 0.0, %v1237
      %v1239 = vpop.f32.mrf.mxu0
      %v1240 = vpop.f32.mrf.mxu0
      %v1241 = vadd.f32 0.0, %v1240
      %v1242 = vpop.f32.mrf.mxu0
      %1243 = vmatprep.mubr.bf16.mxu0 %v675
      %1244 = vmatmul.mubr.bf16.gmra.mxu0 %v612
      %v1245 = vpop.f32.mrf.mxu0
      %v1246 = vadd.f32 0.0, %v1245
      %v1247 = vpop.f32.mrf.mxu0
      %v1248 = vpop.f32.mrf.mxu0
      %v1249 = vadd.f32 0.0, %v1248
      %v1250 = vpop.f32.mrf.mxu0
      %1251 = vmatprep.mubr.bf16.mxu0 %v687
      %1252 = vmatmul.mubr.bf16.gmra.mxu0 %v613
      %v1253 = vpop.f32.mrf.mxu0
      %v1254 = vadd.f32 0.0, %v1253
      %v1255 = vpop.f32.mrf.mxu0
      %v1256 = vpop.f32.mrf.mxu0
      %v1257 = vadd.f32 0.0, %v1256
      %v1258 = vpop.f32.mrf.mxu0
      %1259 = vmatprep.mubr.bf16.mxu0 %v699
      %1260 = vmatmul.mubr.bf16.gmra.mxu0 %v614
      %v1261 = vpop.f32.mrf.mxu0
      %v1262 = vadd.f32 0.0, %v1261
      %v1263 = vpop.f32.mrf.mxu0
      %v1264 = vpop.f32.mrf.mxu0
      %v1265 = vadd.f32 0.0, %v1264
      %v1266 = vpop.f32.mrf.mxu0
      %1267 = vmatprep.mubr.bf16.mxu0 %v711
      %1268 = vmatmul.mubr.bf16.gmra.mxu0 %v615
      %v1269 = vpop.f32.mrf.mxu0
      %v1270 = vadd.f32 0.0, %v1269
      %v1271 = vpop.f32.mrf.mxu0
      %v1272 = vpop.f32.mrf.mxu0
      %v1273 = vadd.f32 0.0, %v1272
      %v1274 = vpop.f32.mrf.mxu0
      %1275 = vmatprep.mubr.bf16.mxu0 %v723
      %1276 = vmatmul.mubr.bf16.gmra.mxu0 %v616
      %v1277 = vpop.f32.mrf.mxu0
      %v1278 = vadd.f32 0.0, %v1277
      %v1279 = vpop.f32.mrf.mxu0
      %v1280 = vpop.f32.mrf.mxu0
      %v1281 = vadd.f32 0.0, %v1280
      %v1282 = vpop.f32.mrf.mxu0
      %1283 = vmatprep.mubr.bf16.mxu0 %v735
      %1284 = vmatmul.mubr.bf16.gmra.mxu0 %v617
      %v1285 = vpop.f32.mrf.mxu0
      %v1286 = vadd.f32 0.0, %v1285
      %v1287 = vpop.f32.mrf.mxu0
      %v1288 = vpop.f32.mrf.mxu0
      %v1289 = vadd.f32 0.0, %v1288
      %v1290 = vpop.f32.mrf.mxu0
      %1291 = vmatprep.mubr.bf16.mxu0 %v747
      %1292 = vmatmul.mubr.bf16.gmra.mxu0 %v618
      %v1293 = vpop.f32.mrf.mxu0
      %v1294 = vadd.f32 0.0, %v1293
      %v1295 = vpop.f32.mrf.mxu0
      %v1296 = vpop.f32.mrf.mxu0
      %v1297 = vadd.f32 0.0, %v1296
      %v1298 = vpop.f32.mrf.mxu0
      %1299 = vmatprep.mubr.bf16.mxu0 %v759
      %1300 = vmatmul.mubr.bf16.gmra.mxu0 %v619
      %v1301 = vpop.f32.mrf.mxu0
      %v1302 = vadd.f32 0.0, %v1301
      %v1303 = vpop.f32.mrf.mxu0
      %v1304 = vpop.f32.mrf.mxu0
      %v1305 = vadd.f32 0.0, %v1304
      %v1306 = vpop.f32.mrf.mxu0
      %1307 = vmatprep.mubr.bf16.mxu0 %v771
      %1308 = vmatmul.mubr.bf16.gmra.mxu0 %v620
      %v1309 = vpop.f32.mrf.mxu0
      %v1310 = vadd.f32 0.0, %v1309
      %v1311 = vpop.f32.mrf.mxu0
      %v1312 = vpop.f32.mrf.mxu0
      %v1313 = vadd.f32 0.0, %v1312
      %v1314 = vpop.f32.mrf.mxu0
      %1315 = vmatprep.mubr.bf16.mxu0 %v783
      %1316 = vmatmul.mubr.bf16.gmra.mxu0 %v621
      %v1317 = vpop.f32.mrf.mxu0
      %v1318 = vadd.f32 0.0, %v1317
      %v1319 = vpop.f32.mrf.mxu0
      %v1320 = vpop.f32.mrf.mxu0
      %v1321 = vadd.f32 0.0, %v1320
      %v1322 = vpop.f32.mrf.mxu0
      %1323 = vmatprep.mubr.bf16.mxu0 %v795
      %1324 = vmatmul.mubr.bf16.gmra.mxu0 %v622
      %v1325 = vpop.f32.mrf.mxu0
      %v1326 = vadd.f32 0.0, %v1325
      %v1327 = vpop.f32.mrf.mxu0
      %v1328 = vpop.f32.mrf.mxu0
      %v1329 = vadd.f32 0.0, %v1328
      %v1330 = vpop.f32.mrf.mxu0
      %1331 = vmatprep.mubr.bf16.mxu0 %v807
      %1332 = vmatmul.mubr.bf16.gmra.mxu0 %v623
      %v1333 = vpop.f32.mrf.mxu0
      %v1334 = vadd.f32 0.0, %v1333
      %v1335 = vpop.f32.mrf.mxu0
      %v1336 = vpop.f32.mrf.mxu0
      %v1337 = vadd.f32 0.0, %v1336
      %v1338 = vpop.f32.mrf.mxu0
      %1339 = vmatprep.mubr.bf16.mxu0 %v819
      %1340 = vmatmul.mubr.bf16.gmra.mxu0 %v624
      %v1341 = vpop.f32.mrf.mxu0
      %v1342 = vadd.f32 0.0, %v1341
      %v1343 = vpop.f32.mrf.mxu0
      %v1344 = vpop.f32.mrf.mxu0
      %v1345 = vadd.f32 0.0, %v1344
      %v1346 = vpop.f32.mrf.mxu0
      %1347 = vmatprep.mubr.bf16.mxu0 %v831
      %1348 = vmatmul.mubr.bf16.gmra.mxu0 %v625
      %v1349 = vpop.f32.mrf.mxu0
      %v1350 = vadd.f32 0.0, %v1349
      %v1351 = vpop.f32.mrf.mxu0
      %v1352 = vpop.f32.mrf.mxu0
      %v1353 = vadd.f32 0.0, %v1352
      %v1354 = vpop.f32.mrf.mxu0
      %1355 = vmatprep.mubr.bf16.mxu0 %v1002
      %1356 = vmatmul.mubr.bf16.gmra.mxu0 %v626
      %v1357 = vpop.f32.mrf.mxu0
      %v1358 = vadd.f32 0.0, %v1357
      %v1359 = vpop.f32.mrf.mxu0
      %v1360 = vpop.f32.mrf.mxu0
      %v1361 = vadd.f32 0.0, %v1360
      %v1362 = vpop.f32.mrf.mxu0
      %1363 = vdwg.mxu0
      %1364 = vmatprep.subr.bf16.mxu0 0
      %1365 = vmatpush1.bf16.msra.mxu0 %v1178
      %1366 = vmatprep.subr.bf16.mxu0 0
      %1367 = vmatpush1.bf16.msra.mxu0 %v1177
      %1368 = vmatprep.subr.bf16.mxu0 0
      %1369 = vmatpush1.bf16.msra.mxu0 %v1176
      %1370 = vmatprep.subr.bf16.mxu0 0
      %1371 = vmatpush1.bf16.msra.mxu0 %v1175
      %1372 = vmatprep.subr.bf16.mxu0 0
      %1373 = vmatpush1.bf16.msra.mxu0 %v1174
      %1374 = vmatprep.subr.bf16.mxu0 0
      %1375 = vmatpush1.bf16.msra.mxu0 %v1173
      %1376 = vmatprep.subr.bf16.mxu0 0
      %1377 = vmatpush1.bf16.msra.mxu0 %v1172
      %1378 = vmatprep.subr.bf16.mxu0 0
      %1379 = vmatpush1.bf16.msra.mxu0 %v1171
      %1380 = vmatprep.subr.bf16.mxu0 0
      %1381 = vmatpush2.bf16.msra.mxu0 0
      %1382 = vmatprep.subr.bf16.mxu0 0
      %1383 = vmatpush2.bf16.msra.mxu0 0
      %1384 = vmatprep.subr.bf16.mxu0 0
      %1385 = vmatpush2.bf16.msra.mxu0 0
      %1386 = vmatprep.subr.bf16.mxu0 0
      %1387 = vmatpush2.bf16.msra.mxu0 0
      %1388 = vmatprep.subr.bf16.mxu0 0
      %1389 = vmatpush2.bf16.msra.mxu0 0
      %1390 = vmatprep.subr.bf16.mxu0 0
      %1391 = vmatpush2.bf16.msra.mxu0 0
      %1392 = vmatprep.subr.bf16.mxu0 0
      %1393 = vmatpush2.bf16.msra.mxu0 0
      %1394 = vmatprep.subr.bf16.mxu0 0
      %1395 = vmatpush2.bf16.msra.mxu0 0
      %1396 = vmatprep.mubr.bf16.mxu0 0
      %1397 = vmatmul.mubr.bf16.gmra.mxu0 %v884
      %v1398 = vpop.f32.mrf.mxu0
      %v1399 = vadd.f32 %v1238, %v1398
      %v1400 = vpop.f32.mrf.mxu0
      %v1401 = vpop.f32.mrf.mxu0
      %v1402 = vadd.f32 %v1241, %v1401
      %v1403 = vpop.f32.mrf.mxu0
      %1404 = vmatprep.mubr.bf16.mxu0 0
      %1405 = vmatmul.mubr.bf16.gmra.mxu0 %v887
      %v1406 = vpop.f32.mrf.mxu0
      %v1407 = vadd.f32 %v1246, %v1406
      %v1408 = vpop.f32.mrf.mxu0
      %v1409 = vpop.f32.mrf.mxu0
      %v1410 = vadd.f32 %v1249, %v1409
      %v1411 = vpop.f32.mrf.mxu0
      %1412 = vmatprep.mubr.bf16.mxu0 0
      %1413 = vmatmul.mubr.bf16.gmra.mxu0 %v890
      %v1414 = vpop.f32.mrf.mxu0
      %v1415 = vadd.f32 %v1254, %v1414
      %v1416 = vpop.f32.mrf.mxu0
      %v1417 = vpop.f32.mrf.mxu0
      %v1418 = vadd.f32 %v1257, %v1417
      %v1419 = vpop.f32.mrf.mxu0
      %1420 = vmatprep.mubr.bf16.mxu0 0
      %1421 = vmatmul.mubr.bf16.gmra.mxu0 %v893
      %v1422 = vpop.f32.mrf.mxu0
      %v1423 = vadd.f32 %v1262, %v1422
      %v1424 = vpop.f32.mrf.mxu0
      %v1425 = vpop.f32.mrf.mxu0
      %v1426 = vadd.f32 %v1265, %v1425
      %v1427 = vpop.f32.mrf.mxu0
      %1428 = vmatprep.mubr.bf16.mxu0 0
      %1429 = vmatmul.mubr.bf16.gmra.mxu0 %v896
      %v1430 = vpop.f32.mrf.mxu0
      %v1431 = vadd.f32 %v1270, %v1430
      %v1432 = vpop.f32.mrf.mxu0
      %v1433 = vpop.f32.mrf.mxu0
      %v1434 = vadd.f32 %v1273, %v1433
      %v1435 = vpop.f32.mrf.mxu0
      %1436 = vmatprep.mubr.bf16.mxu0 0
      %1437 = vmatmul.mubr.bf16.gmra.mxu0 %v899
      %v1438 = vpop.f32.mrf.mxu0
      %v1439 = vadd.f32 %v1278, %v1438
      %v1440 = vpop.f32.mrf.mxu0
      %v1441 = vpop.f32.mrf.mxu0
      %v1442 = vadd.f32 %v1281, %v1441
      %v1443 = vpop.f32.mrf.mxu0
      %1444 = vmatprep.mubr.bf16.mxu0 0
      %1445 = vmatmul.mubr.bf16.gmra.mxu0 %v902
      %v1446 = vpop.f32.mrf.mxu0
      %v1447 = vadd.f32 %v1286, %v1446
      %v1448 = vpop.f32.mrf.mxu0
      %v1449 = vpop.f32.mrf.mxu0
      %v1450 = vadd.f32 %v1289, %v1449
      %v1451 = vpop.f32.mrf.mxu0
      %1452 = vmatprep.mubr.bf16.mxu0 0
      %1453 = vmatmul.mubr.bf16.gmra.mxu0 %v905
      %v1454 = vpop.f32.mrf.mxu0
      %v1455 = vadd.f32 %v1294, %v1454
      %v1456 = vpop.f32.mrf.mxu0
      %v1457 = vpop.f32.mrf.mxu0
      %v1458 = vadd.f32 %v1297, %v1457
      %v1459 = vpop.f32.mrf.mxu0
      %1460 = vmatprep.mubr.bf16.mxu0 0
      %1461 = vmatmul.mubr.bf16.gmra.mxu0 %v908
      %v1462 = vpop.f32.mrf.mxu0
      %v1463 = vadd.f32 %v1302, %v1462
      %v1464 = vpop.f32.mrf.mxu0
      %v1465 = vpop.f32.mrf.mxu0
      %v1466 = vadd.f32 %v1305, %v1465
      %v1467 = vpop.f32.mrf.mxu0
      %1468 = vmatprep.mubr.bf16.mxu0 0
      %1469 = vmatmul.mubr.bf16.gmra.mxu0 %v911
      %v1470 = vpop.f32.mrf.mxu0
      %v1471 = vadd.f32 %v1310, %v1470
      %v1472 = vpop.f32.mrf.mxu0
      %v1473 = vpop.f32.mrf.mxu0
      %v1474 = vadd.f32 %v1313, %v1473
      %v1475 = vpop.f32.mrf.mxu0
      %1476 = vmatprep.mubr.bf16.mxu0 0
      %1477 = vmatmul.mubr.bf16.gmra.mxu0 %v914
      %v1478 = vpop.f32.mrf.mxu0
      %v1479 = vadd.f32 %v1318, %v1478
      %v1480 = vpop.f32.mrf.mxu0
      %v1481 = vpop.f32.mrf.mxu0
      %v1482 = vadd.f32 %v1321, %v1481
      %v1483 = vpop.f32.mrf.mxu0
      %1484 = vmatprep.mubr.bf16.mxu0 0
      %1485 = vmatmul.mubr.bf16.gmra.mxu0 %v917
      %v1486 = vpop.f32.mrf.mxu0
      %v1487 = vadd.f32 %v1326, %v1486
      %v1488 = vpop.f32.mrf.mxu0
      %v1489 = vpop.f32.mrf.mxu0
      %v1490 = vadd.f32 %v1329, %v1489
      %v1491 = vpop.f32.mrf.mxu0
      %1492 = vmatprep.mubr.bf16.mxu0 0
      %1493 = vmatmul.mubr.bf16.gmra.mxu0 %v920
      %v1494 = vpop.f32.mrf.mxu0
      %v1495 = vadd.f32 %v1334, %v1494
      %v1496 = vpop.f32.mrf.mxu0
      %v1497 = vpop.f32.mrf.mxu0
      %v1498 = vadd.f32 %v1337, %v1497
      %v1499 = vpop.f32.mrf.mxu0
      %1500 = vmatprep.mubr.bf16.mxu0 0
      %1501 = vmatmul.mubr.bf16.gmra.mxu0 %v923
      %v1502 = vpop.f32.mrf.mxu0
      %v1503 = vadd.f32 %v1342, %v1502
      %v1504 = vpop.f32.mrf.mxu0
      %v1505 = vpop.f32.mrf.mxu0
      %v1506 = vadd.f32 %v1345, %v1505
      %v1507 = vpop.f32.mrf.mxu0
      %1508 = vmatprep.mubr.bf16.mxu0 0
      %1509 = vmatmul.mubr.bf16.gmra.mxu0 %v926
      %v1510 = vpop.f32.mrf.mxu0
      %v1511 = vadd.f32 %v1350, %v1510
      %v1512 = vpop.f32.mrf.mxu0
      %v1513 = vpop.f32.mrf.mxu0
      %v1514 = vadd.f32 %v1353, %v1513
      %v1515 = vpop.f32.mrf.mxu0
      %1516 = vmatprep.mubr.bf16.mxu0 0
      %1517 = vmatmul.mubr.bf16.gmra.mxu0 %v1008
      %v1518 = vpop.f32.mrf.mxu0
      %v1519 = vadd.f32 %v1358, %v1518
      %v1520 = vpop.f32.mrf.mxu0
      %v1521 = vpop.f32.mrf.mxu0
      %v1522 = vadd.f32 %v1361, %v1521
      %v1523 = vpop.f32.mrf.mxu0
      %1524 = vdwg.mxu0
      %v1573 = vunpack.c.l.b16 %v943
      %v1574 = vunpack.c.l.b16 %v944
      %v1575 = vunpack.c.l.b16 %v945
      %v1576 = vunpack.c.l.b16 %v946
      %v1577 = vunpack.c.l.b16 %v947
      %v1578 = vunpack.c.l.b16 %v948
      %v1579 = vunpack.c.l.b16 %v949
      %v1580 = vunpack.c.l.b16 %v950
      %v1581 = vunpack.c.l.b16 %v951
      %v1582 = vunpack.c.l.b16 %v952
      %v1583 = vunpack.c.l.b16 %v953
      %v1584 = vunpack.c.l.b16 %v954
      %v1585 = vunpack.c.l.b16 %v955
      %v1586 = vunpack.c.l.b16 %v956
      %v1587 = vunpack.c.l.b16 %v957
      %v1588 = vunpack.c.l.b16 %v958
      %v1589 = vunpack.c.l.b16 %v959
      %v1590 = vunpack.c.l.b16 %v960
      %v1591 = vunpack.c.l.b16 %v961
      %v1592 = vunpack.c.l.b16 %v962
      %v1593 = vunpack.c.l.b16 %v963
      %v1594 = vunpack.c.l.b16 %v964
      %v1595 = vunpack.c.l.b16 %v965
      %v1596 = vunpack.c.l.b16 %v966
      %v1597 = vunpack.c.l.b16 %v967
      %v1598 = vunpack.c.l.b16 %v968
      %v1599 = vunpack.c.l.b16 %v969
      %v1600 = vunpack.c.l.b16 %v970
      %v1601 = vunpack.c.l.b16 %v971
      %v1602 = vunpack.c.l.b16 %v972
      %v1603 = vunpack.c.l.b16 %v973
      %v1604 = vunpack.c.l.b16 %v974
      %v1605 = vunpack.c.l.b16 %v975
      %v1606 = vunpack.c.l.b16 %v976
      %v1607 = vunpack.c.l.b16 %v977
      %v1608 = vunpack.c.l.b16 %v978
      %v1609 = vunpack.c.l.b16 %v979
      %v1610 = vunpack.c.l.b16 %v980
      %v1611 = vunpack.c.l.b16 %v981
      %v1612 = vunpack.c.l.b16 %v982
      %v1613 = vunpack.c.l.b16 %v983
      %v1614 = vunpack.c.l.b16 %v984
      %v1615 = vunpack.c.l.b16 %v985
      %v1616 = vunpack.c.l.b16 %v986
      %v1617 = vunpack.c.l.b16 %v987
      %v1618 = vunpack.c.l.b16 %v988
      %v1619 = vunpack.c.l.b16 %v989
      %v1620 = vunpack.c.l.b16 %v990
      %v1621 = vpack.c.b16 %v1574, %v1573
      %v1622 = vpack.c.b16 %v1576, %v1575
      %v1623 = vpack.c.b16 %v1578, %v1577
      %v1624 = vpack.c.b16 %v1580, %v1579
      %v1625 = vpack.c.b16 %v1582, %v1581
      %v1626 = vpack.c.b16 %v1584, %v1583
      %v1627 = vpack.c.b16 %v1586, %v1585
      %v1628 = vpack.c.b16 %v1588, %v1587
      %v1629 = vpack.c.b16 %v1590, %v1589
      %v1630 = vpack.c.b16 %v1592, %v1591
      %v1631 = vpack.c.b16 %v1594, %v1593
      %v1632 = vpack.c.b16 %v1596, %v1595
      %v1633 = vpack.c.b16 %v1598, %v1597
      %v1634 = vpack.c.b16 %v1600, %v1599
      %v1635 = vpack.c.b16 %v1602, %v1601
      %v1636 = vpack.c.b16 %v1604, %v1603
      %v1637 = vpack.c.b16 %v1606, %v1605
      %v1638 = vpack.c.b16 %v1608, %v1607
      %v1639 = vpack.c.b16 %v1610, %v1609
      %v1640 = vpack.c.b16 %v1612, %v1611
      %v1641 = vpack.c.b16 %v1614, %v1613
      %v1642 = vpack.c.b16 %v1616, %v1615
      %v1643 = vpack.c.b16 %v1618, %v1617
      %v1644 = vpack.c.b16 %v1620, %v1619
      %1669 = vmatprep.subr.bf16.mxu0 0
      %1670 = vmatpush1.bf16.msra.mxu0 %v1628
      %1671 = vmatprep.subr.bf16.mxu0 0
      %1672 = vmatpush1.bf16.msra.mxu0 %v1627
      %1673 = vmatprep.subr.bf16.mxu0 0
      %1674 = vmatpush1.bf16.msra.mxu0 %v1626
      %1675 = vmatprep.subr.bf16.mxu0 0
      %1676 = vmatpush1.bf16.msra.mxu0 %v1625
      %1677 = vmatprep.subr.bf16.mxu0 0
      %1678 = vmatpush1.bf16.msra.mxu0 %v1624
      %1679 = vmatprep.subr.bf16.mxu0 0
      %1680 = vmatpush1.bf16.msra.mxu0 %v1623
      %1681 = vmatprep.subr.bf16.mxu0 0
      %1682 = vmatpush1.bf16.msra.mxu0 %v1622
      %1683 = vmatprep.subr.bf16.mxu0 0
      %1684 = vmatpush1.bf16.msra.mxu0 %v1621
      %1685 = vmatprep.subr.bf16.mxu0 0
      %1686 = vmatpush2.bf16.msra.mxu0 %v1636
      %1687 = vmatprep.subr.bf16.mxu0 0
      %1688 = vmatpush2.bf16.msra.mxu0 %v1635
      %1689 = vmatprep.subr.bf16.mxu0 0
      %1690 = vmatpush2.bf16.msra.mxu0 %v1634
      %1691 = vmatprep.subr.bf16.mxu0 0
      %1692 = vmatpush2.bf16.msra.mxu0 %v1633
      %1693 = vmatprep.subr.bf16.mxu0 0
      %1694 = vmatpush2.bf16.msra.mxu0 %v1632
      %1695 = vmatprep.subr.bf16.mxu0 0
      %1696 = vmatpush2.bf16.msra.mxu0 %v1631
      %1697 = vmatprep.subr.bf16.mxu0 0
      %1698 = vmatpush2.bf16.msra.mxu0 %v1630
      %1699 = vmatprep.subr.bf16.mxu0 0
      %1700 = vmatpush2.bf16.msra.mxu0 %v1629
      %1701 = vmatprep.mubr.bf16.mxu0 %v651
      %1702 = vmatmul.mubr.bf16.gmra.mxu0 0
      %v1703 = vpop.f32.mrf.mxu0
      %v1704 = vadd.f32 %v1399, %v1703
      %v1705 = vpop.f32.mrf.mxu0
      %v1706 = vpop.f32.mrf.mxu0
      %v1707 = vadd.f32 %v1402, %v1706
      %v1708 = vpop.f32.mrf.mxu0
      %1709 = vmatprep.mubr.bf16.mxu0 %v663
      %1710 = vmatmul.mubr.bf16.gmra.mxu0 %v611
      %v1711 = vpop.f32.mrf.mxu0
      %v1712 = vadd.f32 %v1407, %v1711
      %v1713 = vpop.f32.mrf.mxu0
      %v1714 = vpop.f32.mrf.mxu0
      %v1715 = vadd.f32 %v1410, %v1714
      %v1716 = vpop.f32.mrf.mxu0
      %1717 = vmatprep.mubr.bf16.mxu0 %v675
      %1718 = vmatmul.mubr.bf16.gmra.mxu0 %v612
      %v1719 = vpop.f32.mrf.mxu0
      %v1720 = vadd.f32 %v1415, %v1719
      %v1721 = vpop.f32.mrf.mxu0
      %v1722 = vpop.f32.mrf.mxu0
      %v1723 = vadd.f32 %v1418, %v1722
      %v1724 = vpop.f32.mrf.mxu0
      %1725 = vmatprep.mubr.bf16.mxu0 %v687
      %1726 = vmatmul.mubr.bf16.gmra.mxu0 %v613
      %v1727 = vpop.f32.mrf.mxu0
      %v1728 = vadd.f32 %v1423, %v1727
      %v1729 = vpop.f32.mrf.mxu0
      %v1730 = vpop.f32.mrf.mxu0
      %v1731 = vadd.f32 %v1426, %v1730
      %v1732 = vpop.f32.mrf.mxu0
      %1733 = vmatprep.mubr.bf16.mxu0 %v699
      %1734 = vmatmul.mubr.bf16.gmra.mxu0 %v614
      %v1735 = vpop.f32.mrf.mxu0
      %v1736 = vadd.f32 %v1431, %v1735
      %v1737 = vpop.f32.mrf.mxu0
      %v1738 = vpop.f32.mrf.mxu0
      %v1739 = vadd.f32 %v1434, %v1738
      %v1740 = vpop.f32.mrf.mxu0
      %1741 = vmatprep.mubr.bf16.mxu0 %v711
      %1742 = vmatmul.mubr.bf16.gmra.mxu0 %v615
      %v1743 = vpop.f32.mrf.mxu0
      %v1744 = vadd.f32 %v1439, %v1743
      %v1745 = vpop.f32.mrf.mxu0
      %v1746 = vpop.f32.mrf.mxu0
      %v1747 = vadd.f32 %v1442, %v1746
      %v1748 = vpop.f32.mrf.mxu0
      %1749 = vmatprep.mubr.bf16.mxu0 %v723
      %1750 = vmatmul.mubr.bf16.gmra.mxu0 %v616
      %v1751 = vpop.f32.mrf.mxu0
      %v1752 = vadd.f32 %v1447, %v1751
      %v1753 = vpop.f32.mrf.mxu0
      %v1754 = vpop.f32.mrf.mxu0
      %v1755 = vadd.f32 %v1450, %v1754
      %v1756 = vpop.f32.mrf.mxu0
      %1757 = vmatprep.mubr.bf16.mxu0 %v735
      %1758 = vmatmul.mubr.bf16.gmra.mxu0 %v617
      %v1759 = vpop.f32.mrf.mxu0
      %v1760 = vadd.f32 %v1455, %v1759
      %v1761 = vpop.f32.mrf.mxu0
      %v1762 = vpop.f32.mrf.mxu0
      %v1763 = vadd.f32 %v1458, %v1762
      %v1764 = vpop.f32.mrf.mxu0
      %1765 = vmatprep.mubr.bf16.mxu0 %v747
      %1766 = vmatmul.mubr.bf16.gmra.mxu0 %v618
      %v1767 = vpop.f32.mrf.mxu0
      %v1768 = vadd.f32 %v1463, %v1767
      %v1769 = vpop.f32.mrf.mxu0
      %v1770 = vpop.f32.mrf.mxu0
      %v1771 = vadd.f32 %v1466, %v1770
      %v1772 = vpop.f32.mrf.mxu0
      %1773 = vmatprep.mubr.bf16.mxu0 %v759
      %1774 = vmatmul.mubr.bf16.gmra.mxu0 %v619
      %v1775 = vpop.f32.mrf.mxu0
      %v1776 = vadd.f32 %v1471, %v1775
      %v1777 = vpop.f32.mrf.mxu0
      %v1778 = vpop.f32.mrf.mxu0
      %v1779 = vadd.f32 %v1474, %v1778
      %v1780 = vpop.f32.mrf.mxu0
      %1781 = vmatprep.mubr.bf16.mxu0 %v771
      %1782 = vmatmul.mubr.bf16.gmra.mxu0 %v620
      %v1783 = vpop.f32.mrf.mxu0
      %v1784 = vadd.f32 %v1479, %v1783
      %v1785 = vpop.f32.mrf.mxu0
      %v1786 = vpop.f32.mrf.mxu0
      %v1787 = vadd.f32 %v1482, %v1786
      %v1788 = vpop.f32.mrf.mxu0
      %1789 = vmatprep.mubr.bf16.mxu0 %v783
      %1790 = vmatmul.mubr.bf16.gmra.mxu0 %v621
      %v1791 = vpop.f32.mrf.mxu0
      %v1792 = vadd.f32 %v1487, %v1791
      %v1793 = vpop.f32.mrf.mxu0
      %v1794 = vpop.f32.mrf.mxu0
      %v1795 = vadd.f32 %v1490, %v1794
      %v1796 = vpop.f32.mrf.mxu0
      %1797 = vmatprep.mubr.bf16.mxu0 %v795
      %1798 = vmatmul.mubr.bf16.gmra.mxu0 %v622
      %v1799 = vpop.f32.mrf.mxu0
      %v1800 = vadd.f32 %v1495, %v1799
      %v1801 = vpop.f32.mrf.mxu0
      %v1802 = vpop.f32.mrf.mxu0
      %v1803 = vadd.f32 %v1498, %v1802
      %v1804 = vpop.f32.mrf.mxu0
      %1805 = vmatprep.mubr.bf16.mxu0 %v807
      %1806 = vmatmul.mubr.bf16.gmra.mxu0 %v623
      %v1807 = vpop.f32.mrf.mxu0
      %v1808 = vadd.f32 %v1503, %v1807
      %v1809 = vpop.f32.mrf.mxu0
      %v1810 = vpop.f32.mrf.mxu0
      %v1811 = vadd.f32 %v1506, %v1810
      %v1812 = vpop.f32.mrf.mxu0
      %1813 = vmatprep.mubr.bf16.mxu0 %v819
      %1814 = vmatmul.mubr.bf16.gmra.mxu0 %v624
      %v1815 = vpop.f32.mrf.mxu0
      %v1816 = vadd.f32 %v1511, %v1815
      %v1817 = vpop.f32.mrf.mxu0
      %v1818 = vpop.f32.mrf.mxu0
      %v1819 = vadd.f32 %v1514, %v1818
      %v1820 = vpop.f32.mrf.mxu0
      %1821 = vmatprep.mubr.bf16.mxu0 %v831
      %1822 = vmatmul.mubr.bf16.gmra.mxu0 %v625
      %v1823 = vpop.f32.mrf.mxu0
      %v1824 = vadd.f32 %v1519, %v1823
      %v1825 = vpop.f32.mrf.mxu0
      %v1826 = vpop.f32.mrf.mxu0
      %v1827 = vadd.f32 %v1522, %v1826
      %v1828 = vpop.f32.mrf.mxu0
      %1829 = vdwg.mxu0
      %1830 = vmatprep.subr.bf16.mxu0 0
      %1831 = vmatpush1.bf16.msra.mxu0 %v1644
      %1832 = vmatprep.subr.bf16.mxu0 0
      %1833 = vmatpush1.bf16.msra.mxu0 %v1643
      %1834 = vmatprep.subr.bf16.mxu0 0
      %1835 = vmatpush1.bf16.msra.mxu0 %v1642
      %1836 = vmatprep.subr.bf16.mxu0 0
      %1837 = vmatpush1.bf16.msra.mxu0 %v1641
      %1838 = vmatprep.subr.bf16.mxu0 0
      %1839 = vmatpush1.bf16.msra.mxu0 %v1640
      %1840 = vmatprep.subr.bf16.mxu0 0
      %1841 = vmatpush1.bf16.msra.mxu0 %v1639
      %1842 = vmatprep.subr.bf16.mxu0 0
      %1843 = vmatpush1.bf16.msra.mxu0 %v1638
      %1844 = vmatprep.subr.bf16.mxu0 0
      %1845 = vmatpush1.bf16.msra.mxu0 %v1637
      %1846 = vmatprep.subr.bf16.mxu0 0
      %1847 = vmatpush2.bf16.msra.mxu0 0
      %1848 = vmatprep.subr.bf16.mxu0 0
      %1849 = vmatpush2.bf16.msra.mxu0 0
      %1850 = vmatprep.subr.bf16.mxu0 0
      %1851 = vmatpush2.bf16.msra.mxu0 0
      %1852 = vmatprep.subr.bf16.mxu0 0
      %1853 = vmatpush2.bf16.msra.mxu0 0
      %1854 = vmatprep.subr.bf16.mxu0 0
      %1855 = vmatpush2.bf16.msra.mxu0 0
      %1856 = vmatprep.subr.bf16.mxu0 0
      %1857 = vmatpush2.bf16.msra.mxu0 0
      %1858 = vmatprep.subr.bf16.mxu0 0
      %1859 = vmatpush2.bf16.msra.mxu0 0
      %1860 = vmatprep.subr.bf16.mxu0 0
      %1861 = vmatpush2.bf16.msra.mxu0 0
      %1862 = vmatprep.mubr.bf16.mxu0 0
      %1863 = vmatmul.mubr.bf16.gmra.mxu0 %v881
      %v1864 = vpop.f32.mrf.mxu0
      %v1865 = vadd.f32 %v1704, %v1864
      %v1866 = vpop.f32.mrf.mxu0
      %v1867 = vpop.f32.mrf.mxu0
      %v1868 = vadd.f32 %v1707, %v1867
      %v1869 = vpop.f32.mrf.mxu0
      %1870 = vmatprep.mubr.bf16.mxu0 0
      %1871 = vmatmul.mubr.bf16.gmra.mxu0 %v884
      %v1872 = vpop.f32.mrf.mxu0
      %v1873 = vadd.f32 %v1712, %v1872
      %v1874 = vpop.f32.mrf.mxu0
      %v1875 = vpop.f32.mrf.mxu0
      %v1876 = vadd.f32 %v1715, %v1875
      %v1877 = vpop.f32.mrf.mxu0
      %1878 = vmatprep.mubr.bf16.mxu0 0
      %1879 = vmatmul.mubr.bf16.gmra.mxu0 %v887
      %v1880 = vpop.f32.mrf.mxu0
      %v1881 = vadd.f32 %v1720, %v1880
      %v1882 = vpop.f32.mrf.mxu0
      %v1883 = vpop.f32.mrf.mxu0
      %v1884 = vadd.f32 %v1723, %v1883
      %v1885 = vpop.f32.mrf.mxu0
      %1886 = vmatprep.mubr.bf16.mxu0 0
      %1887 = vmatmul.mubr.bf16.gmra.mxu0 %v890
      %v1888 = vpop.f32.mrf.mxu0
      %v1889 = vadd.f32 %v1728, %v1888
      %v1890 = vpop.f32.mrf.mxu0
      %v1891 = vpop.f32.mrf.mxu0
      %v1892 = vadd.f32 %v1731, %v1891
      %v1893 = vpop.f32.mrf.mxu0
      %1894 = vmatprep.mubr.bf16.mxu0 0
      %1895 = vmatmul.mubr.bf16.gmra.mxu0 %v893
      %v1896 = vpop.f32.mrf.mxu0
      %v1897 = vadd.f32 %v1736, %v1896
      %v1898 = vpop.f32.mrf.mxu0
      %v1899 = vpop.f32.mrf.mxu0
      %v1900 = vadd.f32 %v1739, %v1899
      %v1901 = vpop.f32.mrf.mxu0
      %1902 = vmatprep.mubr.bf16.mxu0 0
      %1903 = vmatmul.mubr.bf16.gmra.mxu0 %v896
      %v1904 = vpop.f32.mrf.mxu0
      %v1905 = vadd.f32 %v1744, %v1904
      %v1906 = vpop.f32.mrf.mxu0
      %v1907 = vpop.f32.mrf.mxu0
      %v1908 = vadd.f32 %v1747, %v1907
      %v1909 = vpop.f32.mrf.mxu0
      %1910 = vmatprep.mubr.bf16.mxu0 0
      %1911 = vmatmul.mubr.bf16.gmra.mxu0 %v899
      %v1912 = vpop.f32.mrf.mxu0
      %v1913 = vadd.f32 %v1752, %v1912
      %v1914 = vpop.f32.mrf.mxu0
      %v1915 = vpop.f32.mrf.mxu0
      %v1916 = vadd.f32 %v1755, %v1915
      %v1917 = vpop.f32.mrf.mxu0
      %1918 = vmatprep.mubr.bf16.mxu0 0
      %1919 = vmatmul.mubr.bf16.gmra.mxu0 %v902
      %v1920 = vpop.f32.mrf.mxu0
      %v1921 = vadd.f32 %v1760, %v1920
      %v1922 = vpop.f32.mrf.mxu0
      %v1923 = vpop.f32.mrf.mxu0
      %v1924 = vadd.f32 %v1763, %v1923
      %v1925 = vpop.f32.mrf.mxu0
      %1926 = vmatprep.mubr.bf16.mxu0 0
      %1927 = vmatmul.mubr.bf16.gmra.mxu0 %v905
      %v1928 = vpop.f32.mrf.mxu0
      %v1929 = vadd.f32 %v1768, %v1928
      %v1930 = vpop.f32.mrf.mxu0
      %v1931 = vpop.f32.mrf.mxu0
      %v1932 = vadd.f32 %v1771, %v1931
      %v1933 = vpop.f32.mrf.mxu0
      %1934 = vmatprep.mubr.bf16.mxu0 0
      %1935 = vmatmul.mubr.bf16.gmra.mxu0 %v908
      %v1936 = vpop.f32.mrf.mxu0
      %v1937 = vadd.f32 %v1776, %v1936
      %v1938 = vpop.f32.mrf.mxu0
      %v1939 = vpop.f32.mrf.mxu0
      %v1940 = vadd.f32 %v1779, %v1939
      %v1941 = vpop.f32.mrf.mxu0
      %1942 = vmatprep.mubr.bf16.mxu0 0
      %1943 = vmatmul.mubr.bf16.gmra.mxu0 %v911
      %v1944 = vpop.f32.mrf.mxu0
      %v1945 = vadd.f32 %v1784, %v1944
      %v1946 = vpop.f32.mrf.mxu0
      %v1947 = vpop.f32.mrf.mxu0
      %v1948 = vadd.f32 %v1787, %v1947
      %v1949 = vpop.f32.mrf.mxu0
      %1950 = vmatprep.mubr.bf16.mxu0 0
      %1951 = vmatmul.mubr.bf16.gmra.mxu0 %v914
      %v1952 = vpop.f32.mrf.mxu0
      %v1953 = vadd.f32 %v1792, %v1952
      %v1954 = vpop.f32.mrf.mxu0
      %v1955 = vpop.f32.mrf.mxu0
      %v1956 = vadd.f32 %v1795, %v1955
      %v1957 = vpop.f32.mrf.mxu0
      %1958 = vmatprep.mubr.bf16.mxu0 0
      %1959 = vmatmul.mubr.bf16.gmra.mxu0 %v917
      %v1960 = vpop.f32.mrf.mxu0
      %v1961 = vadd.f32 %v1800, %v1960
      %v1962 = vpop.f32.mrf.mxu0
      %v1963 = vpop.f32.mrf.mxu0
      %v1964 = vadd.f32 %v1803, %v1963
      %v1965 = vpop.f32.mrf.mxu0
      %1966 = vmatprep.mubr.bf16.mxu0 0
      %1967 = vmatmul.mubr.bf16.gmra.mxu0 %v920
      %v1968 = vpop.f32.mrf.mxu0
      %v1969 = vadd.f32 %v1808, %v1968
      %v1970 = vpop.f32.mrf.mxu0
      %v1971 = vpop.f32.mrf.mxu0
      %v1972 = vadd.f32 %v1811, %v1971
      %v1973 = vpop.f32.mrf.mxu0
      %1974 = vmatprep.mubr.bf16.mxu0 0
      %1975 = vmatmul.mubr.bf16.gmra.mxu0 %v923
      %v1976 = vpop.f32.mrf.mxu0
      %v1977 = vadd.f32 %v1816, %v1976
      %v1978 = vpop.f32.mrf.mxu0
      %v1979 = vpop.f32.mrf.mxu0
      %v1980 = vadd.f32 %v1819, %v1979
      %v1981 = vpop.f32.mrf.mxu0
      %1982 = vmatprep.mubr.bf16.mxu0 0
      %1983 = vmatmul.mubr.bf16.gmra.mxu0 %v926
      %v1984 = vpop.f32.mrf.mxu0
      %v1985 = vadd.f32 %v1824, %v1984
      %v1986 = vpop.f32.mrf.mxu0
      %v1987 = vpop.f32.mrf.mxu0
      %v1988 = vadd.f32 %v1827, %v1987
      %v1989 = vpop.f32.mrf.mxu0
      %1990 = vdwg.mxu0
      %s1991 = scalar_lea.vmem %s4, 384
      %v1992 = vld [vmem:[%s1991] sm:$0xf]
      %v1993 = vld [vmem:[%s1991 + $0x4] sm:$0xf]
      %v1994 = vld [vmem:[%s1991 + $0x8] sm:$0xf]
      %v1995 = vld [vmem:[%s1991 + $0xc] sm:$0xf]
      %v1996 = vld [vmem:[%s1991 + $0x10] sm:$0xf]
      %v1997 = vld [vmem:[%s1991 + $0x14] sm:$0xf]
      %v1998 = vld [vmem:[%s1991 + $0x18] sm:$0xf]
      %v1999 = vld [vmem:[%s1991 + $0x1c] sm:$0xf]
      %v2000 = vld [vmem:[%s1991 + $0x20] sm:$0xf]
      %v2001 = vld [vmem:[%s1991 + $0x24] sm:$0xf]
      %v2002 = vld [vmem:[%s1991 + $0x28] sm:$0xf]
      %v2003 = vld [vmem:[%s1991 + $0x2c] sm:$0xf]
      %v2004 = vld [vmem:[%s1991 + $0x30] sm:$0xf]
      %v2005 = vld [vmem:[%s1991 + $0x34] sm:$0xf]
      %v2006 = vld [vmem:[%s1991 + $0x38] sm:$0xf]
      %v2007 = vld [vmem:[%s1991 + $0x3c] sm:$0xf]
      %v2008 = vld [vmem:[%s1991 + $0x40] sm:$0xf]
      %v2009 = vld [vmem:[%s1991 + $0x44] sm:$0xf]
      %v2010 = vld [vmem:[%s1991 + $0x48] sm:$0xf]
      %v2011 = vld [vmem:[%s1991 + $0x4c] sm:$0xf]
      %v2012 = vld [vmem:[%s1991 + $0x50] sm:$0xf]
      %v2013 = vld [vmem:[%s1991 + $0x54] sm:$0xf]
      %v2014 = vld [vmem:[%s1991 + $0x58] sm:$0xf]
      %v2015 = vld [vmem:[%s1991 + $0x5c] sm:$0xf]
      %v2016 = vld [vmem:[%s1991 + $0x60] sm:$0xf]
      %v2017 = vld [vmem:[%s1991 + $0x64] sm:$0xf]
      %v2018 = vld [vmem:[%s1991 + $0x68] sm:$0xf]
      %v2019 = vld [vmem:[%s1991 + $0x6c] sm:$0xf]
      %v2020 = vld [vmem:[%s1991 + $0x70] sm:$0xf]
      %v2021 = vld [vmem:[%s1991 + $0x74] sm:$0xf]
      %v2022 = vld [vmem:[%s1991 + $0x78] sm:$0xf]
      %v2023 = vld [vmem:[%s1991 + $0x7c] sm:$0xf]
      %v2024 = vld [vmem:[%s1991 + $0x80] sm:$0xf]
      %v2025 = vld [vmem:[%s1991 + $0x84] sm:$0xf]
      %v2026 = vld [vmem:[%s1991 + $0x88] sm:$0xf]
      %v2027 = vld [vmem:[%s1991 + $0x8c] sm:$0xf]
      %v2028 = vld [vmem:[%s1991 + $0x90] sm:$0xf]
      %v2029 = vld [vmem:[%s1991 + $0x94] sm:$0xf]
      %v2030 = vld [vmem:[%s1991 + $0x98] sm:$0xf]
      %v2031 = vld [vmem:[%s1991 + $0x9c] sm:$0xf]
      %v2032 = vld [vmem:[%s1991 + $0xa0] sm:$0xf]
      %v2033 = vld [vmem:[%s1991 + $0xa4] sm:$0xf]
      %v2034 = vld [vmem:[%s1991 + $0xa8] sm:$0xf]
      %v2035 = vld [vmem:[%s1991 + $0xac] sm:$0xf]
      %v2036 = vld [vmem:[%s1991 + $0xb0] sm:$0xf]
      %v2037 = vld [vmem:[%s1991 + $0xb4] sm:$0xf]
      %v2038 = vld [vmem:[%s1991 + $0xb8] sm:$0xf]
      %v2039 = vld [vmem:[%s1991 + $0xbc] sm:$0xf]
      %v2088 = vunpack.c.l.b16 %v1992
      %v2089 = vunpack.c.l.b16 %v1993
      %v2090 = vunpack.c.l.b16 %v1994
      %v2091 = vunpack.c.l.b16 %v1995
      %v2092 = vunpack.c.l.b16 %v1996
      %v2093 = vunpack.c.l.b16 %v1997
      %v2094 = vunpack.c.l.b16 %v1998
      %v2095 = vunpack.c.l.b16 %v1999
      %v2096 = vunpack.c.l.b16 %v2000
      %v2097 = vunpack.c.l.b16 %v2001
      %v2098 = vunpack.c.l.b16 %v2002
      %v2099 = vunpack.c.l.b16 %v2003
      %v2100 = vunpack.c.l.b16 %v2004
      %v2101 = vunpack.c.l.b16 %v2005
      %v2102 = vunpack.c.l.b16 %v2006
      %v2103 = vunpack.c.l.b16 %v2007
      %v2104 = vunpack.c.l.b16 %v2008
      %v2105 = vunpack.c.l.b16 %v2009
      %v2106 = vunpack.c.l.b16 %v2010
      %v2107 = vunpack.c.l.b16 %v2011
      %v2108 = vunpack.c.l.b16 %v2012
      %v2109 = vunpack.c.l.b16 %v2013
      %v2110 = vunpack.c.l.b16 %v2014
      %v2111 = vunpack.c.l.b16 %v2015
      %v2112 = vunpack.c.l.b16 %v2016
      %v2113 = vunpack.c.l.b16 %v2017
      %v2114 = vunpack.c.l.b16 %v2018
      %v2115 = vunpack.c.l.b16 %v2019
      %v2116 = vunpack.c.l.b16 %v2020
      %v2117 = vunpack.c.l.b16 %v2021
      %v2118 = vunpack.c.l.b16 %v2022
      %v2119 = vunpack.c.l.b16 %v2023
      %v2120 = vunpack.c.l.b16 %v2024
      %v2121 = vunpack.c.l.b16 %v2025
      %v2122 = vunpack.c.l.b16 %v2026
      %v2123 = vunpack.c.l.b16 %v2027
      %v2124 = vunpack.c.l.b16 %v2028
      %v2125 = vunpack.c.l.b16 %v2029
      %v2126 = vunpack.c.l.b16 %v2030
      %v2127 = vunpack.c.l.b16 %v2031
      %v2128 = vunpack.c.l.b16 %v2032
      %v2129 = vunpack.c.l.b16 %v2033
      %v2130 = vunpack.c.l.b16 %v2034
      %v2131 = vunpack.c.l.b16 %v2035
      %v2132 = vunpack.c.l.b16 %v2036
      %v2133 = vunpack.c.l.b16 %v2037
      %v2134 = vunpack.c.l.b16 %v2038
      %v2135 = vunpack.c.l.b16 %v2039
      %v2136 = vpack.c.b16 %v2089, %v2088
      %v2137 = vpack.c.b16 %v2091, %v2090
      %v2138 = vpack.c.b16 %v2093, %v2092
      %v2139 = vpack.c.b16 %v2095, %v2094
      %v2140 = vpack.c.b16 %v2097, %v2096
      %v2141 = vpack.c.b16 %v2099, %v2098
      %v2142 = vpack.c.b16 %v2101, %v2100
      %v2143 = vpack.c.b16 %v2103, %v2102
      %v2144 = vpack.c.b16 %v2105, %v2104
      %v2145 = vpack.c.b16 %v2107, %v2106
      %v2146 = vpack.c.b16 %v2109, %v2108
      %v2147 = vpack.c.b16 %v2111, %v2110
      %v2148 = vpack.c.b16 %v2113, %v2112
      %v2149 = vpack.c.b16 %v2115, %v2114
      %v2150 = vpack.c.b16 %v2117, %v2116
      %v2151 = vpack.c.b16 %v2119, %v2118
      %v2152 = vpack.c.b16 %v2121, %v2120
      %v2153 = vpack.c.b16 %v2123, %v2122
      %v2154 = vpack.c.b16 %v2125, %v2124
      %v2155 = vpack.c.b16 %v2127, %v2126
      %v2156 = vpack.c.b16 %v2129, %v2128
      %v2157 = vpack.c.b16 %v2131, %v2130
      %v2158 = vpack.c.b16 %v2133, %v2132
      %v2159 = vpack.c.b16 %v2135, %v2134
      %2184 = vmatprep.subr.bf16.mxu0 0
      %2185 = vmatpush1.bf16.msra.mxu0 %v2143
      %2186 = vmatprep.subr.bf16.mxu0 0
      %2187 = vmatpush1.bf16.msra.mxu0 %v2142
      %2188 = vmatprep.subr.bf16.mxu0 0
      %2189 = vmatpush1.bf16.msra.mxu0 %v2141
      %2190 = vmatprep.subr.bf16.mxu0 0
      %2191 = vmatpush1.bf16.msra.mxu0 %v2140
      %2192 = vmatprep.subr.bf16.mxu0 0
      %2193 = vmatpush1.bf16.msra.mxu0 %v2139
      %2194 = vmatprep.subr.bf16.mxu0 0
      %2195 = vmatpush1.bf16.msra.mxu0 %v2138
      %2196 = vmatprep.subr.bf16.mxu0 0
      %2197 = vmatpush1.bf16.msra.mxu0 %v2137
      %2198 = vmatprep.subr.bf16.mxu0 0
      %2199 = vmatpush1.bf16.msra.mxu0 %v2136
      %2200 = vmatprep.subr.bf16.mxu0 0
      %2201 = vmatpush2.bf16.msra.mxu0 %v2151
      %2202 = vmatprep.subr.bf16.mxu0 0
      %2203 = vmatpush2.bf16.msra.mxu0 %v2150
      %2204 = vmatprep.subr.bf16.mxu0 0
      %2205 = vmatpush2.bf16.msra.mxu0 %v2149
      %2206 = vmatprep.subr.bf16.mxu0 0
      %2207 = vmatpush2.bf16.msra.mxu0 %v2148
      %2208 = vmatprep.subr.bf16.mxu0 0
      %2209 = vmatpush2.bf16.msra.mxu0 %v2147
      %2210 = vmatprep.subr.bf16.mxu0 0
      %2211 = vmatpush2.bf16.msra.mxu0 %v2146
      %2212 = vmatprep.subr.bf16.mxu0 0
      %2213 = vmatpush2.bf16.msra.mxu0 %v2145
      %2214 = vmatprep.subr.bf16.mxu0 0
      %2215 = vmatpush2.bf16.msra.mxu0 %v2144
      %2216 = vmatprep.mubr.bf16.mxu0 %v675
      %2217 = vmatmul.mubr.bf16.gmra.mxu0 %v612
      %v2218 = vpop.f32.mrf.mxu0
      %v2219 = vadd.f32 0.0, %v2218
      %v2220 = vpop.f32.mrf.mxu0
      %v2221 = vpop.f32.mrf.mxu0
      %v2222 = vadd.f32 0.0, %v2221
      %v2223 = vpop.f32.mrf.mxu0
      %2224 = vmatprep.mubr.bf16.mxu0 %v687
      %2225 = vmatmul.mubr.bf16.gmra.mxu0 %v613
      %v2226 = vpop.f32.mrf.mxu0
      %v2227 = vadd.f32 0.0, %v2226
      %v2228 = vpop.f32.mrf.mxu0
      %v2229 = vpop.f32.mrf.mxu0
      %v2230 = vadd.f32 0.0, %v2229
      %v2231 = vpop.f32.mrf.mxu0
      %2232 = vmatprep.mubr.bf16.mxu0 %v699
      %2233 = vmatmul.mubr.bf16.gmra.mxu0 %v614
      %v2234 = vpop.f32.mrf.mxu0
      %v2235 = vadd.f32 0.0, %v2234
      %v2236 = vpop.f32.mrf.mxu0
      %v2237 = vpop.f32.mrf.mxu0
      %v2238 = vadd.f32 0.0, %v2237
      %v2239 = vpop.f32.mrf.mxu0
      %2240 = vmatprep.mubr.bf16.mxu0 %v711
      %2241 = vmatmul.mubr.bf16.gmra.mxu0 %v615
      %v2242 = vpop.f32.mrf.mxu0
      %v2243 = vadd.f32 0.0, %v2242
      %v2244 = vpop.f32.mrf.mxu0
      %v2245 = vpop.f32.mrf.mxu0
      %v2246 = vadd.f32 0.0, %v2245
      %v2247 = vpop.f32.mrf.mxu0
      %2248 = vmatprep.mubr.bf16.mxu0 %v723
      %2249 = vmatmul.mubr.bf16.gmra.mxu0 %v616
      %v2250 = vpop.f32.mrf.mxu0
      %v2251 = vadd.f32 0.0, %v2250
      %v2252 = vpop.f32.mrf.mxu0
      %v2253 = vpop.f32.mrf.mxu0
      %v2254 = vadd.f32 0.0, %v2253
      %v2255 = vpop.f32.mrf.mxu0
      %2256 = vmatprep.mubr.bf16.mxu0 %v735
      %2257 = vmatmul.mubr.bf16.gmra.mxu0 %v617
      %v2258 = vpop.f32.mrf.mxu0
      %v2259 = vadd.f32 0.0, %v2258
      %v2260 = vpop.f32.mrf.mxu0
      %v2261 = vpop.f32.mrf.mxu0
      %v2262 = vadd.f32 0.0, %v2261
      %v2263 = vpop.f32.mrf.mxu0
      %2264 = vmatprep.mubr.bf16.mxu0 %v747
      %2265 = vmatmul.mubr.bf16.gmra.mxu0 %v618
      %v2266 = vpop.f32.mrf.mxu0
      %v2267 = vadd.f32 0.0, %v2266
      %v2268 = vpop.f32.mrf.mxu0
      %v2269 = vpop.f32.mrf.mxu0
      %v2270 = vadd.f32 0.0, %v2269
      %v2271 = vpop.f32.mrf.mxu0
      %2272 = vmatprep.mubr.bf16.mxu0 %v759
      %2273 = vmatmul.mubr.bf16.gmra.mxu0 %v619
      %v2274 = vpop.f32.mrf.mxu0
      %v2275 = vadd.f32 0.0, %v2274
      %v2276 = vpop.f32.mrf.mxu0
      %v2277 = vpop.f32.mrf.mxu0
      %v2278 = vadd.f32 0.0, %v2277
      %v2279 = vpop.f32.mrf.mxu0
      %2280 = vmatprep.mubr.bf16.mxu0 %v771
      %2281 = vmatmul.mubr.bf16.gmra.mxu0 %v620
      %v2282 = vpop.f32.mrf.mxu0
      %v2283 = vadd.f32 0.0, %v2282
      %v2284 = vpop.f32.mrf.mxu0
      %v2285 = vpop.f32.mrf.mxu0
      %v2286 = vadd.f32 0.0, %v2285
      %v2287 = vpop.f32.mrf.mxu0
      %2288 = vmatprep.mubr.bf16.mxu0 %v783
      %2289 = vmatmul.mubr.bf16.gmra.mxu0 %v621
      %v2290 = vpop.f32.mrf.mxu0
      %v2291 = vadd.f32 0.0, %v2290
      %v2292 = vpop.f32.mrf.mxu0
      %v2293 = vpop.f32.mrf.mxu0
      %v2294 = vadd.f32 0.0, %v2293
      %v2295 = vpop.f32.mrf.mxu0
      %2296 = vmatprep.mubr.bf16.mxu0 %v795
      %2297 = vmatmul.mubr.bf16.gmra.mxu0 %v622
      %v2298 = vpop.f32.mrf.mxu0
      %v2299 = vadd.f32 0.0, %v2298
      %v2300 = vpop.f32.mrf.mxu0
      %v2301 = vpop.f32.mrf.mxu0
      %v2302 = vadd.f32 0.0, %v2301
      %v2303 = vpop.f32.mrf.mxu0
      %2304 = vmatprep.mubr.bf16.mxu0 %v807
      %2305 = vmatmul.mubr.bf16.gmra.mxu0 %v623
      %v2306 = vpop.f32.mrf.mxu0
      %v2307 = vadd.f32 0.0, %v2306
      %v2308 = vpop.f32.mrf.mxu0
      %v2309 = vpop.f32.mrf.mxu0
      %v2310 = vadd.f32 0.0, %v2309
      %v2311 = vpop.f32.mrf.mxu0
      %2312 = vmatprep.mubr.bf16.mxu0 %v819
      %2313 = vmatmul.mubr.bf16.gmra.mxu0 %v624
      %v2314 = vpop.f32.mrf.mxu0
      %v2315 = vadd.f32 0.0, %v2314
      %v2316 = vpop.f32.mrf.mxu0
      %v2317 = vpop.f32.mrf.mxu0
      %v2318 = vadd.f32 0.0, %v2317
      %v2319 = vpop.f32.mrf.mxu0
      %2320 = vmatprep.mubr.bf16.mxu0 %v831
      %2321 = vmatmul.mubr.bf16.gmra.mxu0 %v625
      %v2322 = vpop.f32.mrf.mxu0
      %v2323 = vadd.f32 0.0, %v2322
      %v2324 = vpop.f32.mrf.mxu0
      %v2325 = vpop.f32.mrf.mxu0
      %v2326 = vadd.f32 0.0, %v2325
      %v2327 = vpop.f32.mrf.mxu0
      %2328 = vmatprep.mubr.bf16.mxu0 %v1002
      %2329 = vmatmul.mubr.bf16.gmra.mxu0 %v626
      %v2330 = vpop.f32.mrf.mxu0
      %v2331 = vadd.f32 0.0, %v2330
      %v2332 = vpop.f32.mrf.mxu0
      %v2333 = vpop.f32.mrf.mxu0
      %v2334 = vadd.f32 0.0, %v2333
      %v2335 = vpop.f32.mrf.mxu0
      %2336 = vmatprep.mubr.bf16.mxu0 %v651
      %2337 = vmatmul.mubr.bf16.gmra.mxu0 0
      %v2338 = vpop.f32.mrf.mxu0
      %v2339 = vadd.f32 0.0, %v2338
      %v2340 = vpop.f32.mrf.mxu0
      %v2341 = vpop.f32.mrf.mxu0
      %v2342 = vadd.f32 0.0, %v2341
      %v2343 = vpop.f32.mrf.mxu0
      %2344 = vdwg.mxu0
      %2345 = vmatprep.subr.bf16.mxu0 0
      %2346 = vmatpush1.bf16.msra.mxu0 %v2159
      %2347 = vmatprep.subr.bf16.mxu0 0
      %2348 = vmatpush1.bf16.msra.mxu0 %v2158
      %2349 = vmatprep.subr.bf16.mxu0 0
      %2350 = vmatpush1.bf16.msra.mxu0 %v2157
      %2351 = vmatprep.subr.bf16.mxu0 0
      %2352 = vmatpush1.bf16.msra.mxu0 %v2156
      %2353 = vmatprep.subr.bf16.mxu0 0
      %2354 = vmatpush1.bf16.msra.mxu0 %v2155
      %2355 = vmatprep.subr.bf16.mxu0 0
      %2356 = vmatpush1.bf16.msra.mxu0 %v2154
      %2357 = vmatprep.subr.bf16.mxu0 0
      %2358 = vmatpush1.bf16.msra.mxu0 %v2153
      %2359 = vmatprep.subr.bf16.mxu0 0
      %2360 = vmatpush1.bf16.msra.mxu0 %v2152
      %2361 = vmatprep.subr.bf16.mxu0 0
      %2362 = vmatpush2.bf16.msra.mxu0 0
      %2363 = vmatprep.subr.bf16.mxu0 0
      %2364 = vmatpush2.bf16.msra.mxu0 0
      %2365 = vmatprep.subr.bf16.mxu0 0
      %2366 = vmatpush2.bf16.msra.mxu0 0
      %2367 = vmatprep.subr.bf16.mxu0 0
      %2368 = vmatpush2.bf16.msra.mxu0 0
      %2369 = vmatprep.subr.bf16.mxu0 0
      %2370 = vmatpush2.bf16.msra.mxu0 0
      %2371 = vmatprep.subr.bf16.mxu0 0
      %2372 = vmatpush2.bf16.msra.mxu0 0
      %2373 = vmatprep.subr.bf16.mxu0 0
      %2374 = vmatpush2.bf16.msra.mxu0 0
      %2375 = vmatprep.subr.bf16.mxu0 0
      %2376 = vmatpush2.bf16.msra.mxu0 0
      %2377 = vmatprep.mubr.bf16.mxu0 0
      %2378 = vmatmul.mubr.bf16.gmra.mxu0 %v887
      %v2379 = vpop.f32.mrf.mxu0
      %v2380 = vadd.f32 %v2219, %v2379
      %v2381 = vpop.f32.mrf.mxu0
      %v2382 = vpop.f32.mrf.mxu0
      %v2383 = vadd.f32 %v2222, %v2382
      %v2384 = vpop.f32.mrf.mxu0
      %2385 = vmatprep.mubr.bf16.mxu0 0
      %2386 = vmatmul.mubr.bf16.gmra.mxu0 %v890
      %v2387 = vpop.f32.mrf.mxu0
      %v2388 = vadd.f32 %v2227, %v2387
      %v2389 = vpop.f32.mrf.mxu0
      %v2390 = vpop.f32.mrf.mxu0
      %v2391 = vadd.f32 %v2230, %v2390
      %v2392 = vpop.f32.mrf.mxu0
      %2393 = vmatprep.mubr.bf16.mxu0 0
      %2394 = vmatmul.mubr.bf16.gmra.mxu0 %v893
      %v2395 = vpop.f32.mrf.mxu0
      %v2396 = vadd.f32 %v2235, %v2395
      %v2397 = vpop.f32.mrf.mxu0
      %v2398 = vpop.f32.mrf.mxu0
      %v2399 = vadd.f32 %v2238, %v2398
      %v2400 = vpop.f32.mrf.mxu0
      %2401 = vmatprep.mubr.bf16.mxu0 0
      %2402 = vmatmul.mubr.bf16.gmra.mxu0 %v896
      %v2403 = vpop.f32.mrf.mxu0
      %v2404 = vadd.f32 %v2243, %v2403
      %v2405 = vpop.f32.mrf.mxu0
      %v2406 = vpop.f32.mrf.mxu0
      %v2407 = vadd.f32 %v2246, %v2406
      %v2408 = vpop.f32.mrf.mxu0
      %2409 = vmatprep.mubr.bf16.mxu0 0
      %2410 = vmatmul.mubr.bf16.gmra.mxu0 %v899
      %v2411 = vpop.f32.mrf.mxu0
      %v2412 = vadd.f32 %v2251, %v2411
      %v2413 = vpop.f32.mrf.mxu0
      %v2414 = vpop.f32.mrf.mxu0
      %v2415 = vadd.f32 %v2254, %v2414
      %v2416 = vpop.f32.mrf.mxu0
      %2417 = vmatprep.mubr.bf16.mxu0 0
      %2418 = vmatmul.mubr.bf16.gmra.mxu0 %v902
      %v2419 = vpop.f32.mrf.mxu0
      %v2420 = vadd.f32 %v2259, %v2419
      %v2421 = vpop.f32.mrf.mxu0
      %v2422 = vpop.f32.mrf.mxu0
      %v2423 = vadd.f32 %v2262, %v2422
      %v2424 = vpop.f32.mrf.mxu0
      %2425 = vmatprep.mubr.bf16.mxu0 0
      %2426 = vmatmul.mubr.bf16.gmra.mxu0 %v905
      %v2427 = vpop.f32.mrf.mxu0
      %v2428 = vadd.f32 %v2267, %v2427
      %v2429 = vpop.f32.mrf.mxu0
      %v2430 = vpop.f32.mrf.mxu0
      %v2431 = vadd.f32 %v2270, %v2430
      %v2432 = vpop.f32.mrf.mxu0
      %2433 = vmatprep.mubr.bf16.mxu0 0
      %2434 = vmatmul.mubr.bf16.gmra.mxu0 %v908
      %v2435 = vpop.f32.mrf.mxu0
      %v2436 = vadd.f32 %v2275, %v2435
      %v2437 = vpop.f32.mrf.mxu0
      %v2438 = vpop.f32.mrf.mxu0
      %v2439 = vadd.f32 %v2278, %v2438
      %v2440 = vpop.f32.mrf.mxu0
      %2441 = vmatprep.mubr.bf16.mxu0 0
      %2442 = vmatmul.mubr.bf16.gmra.mxu0 %v911
      %v2443 = vpop.f32.mrf.mxu0
      %v2444 = vadd.f32 %v2283, %v2443
      %v2445 = vpop.f32.mrf.mxu0
      %v2446 = vpop.f32.mrf.mxu0
      %v2447 = vadd.f32 %v2286, %v2446
      %v2448 = vpop.f32.mrf.mxu0
      %2449 = vmatprep.mubr.bf16.mxu0 0
      %2450 = vmatmul.mubr.bf16.gmra.mxu0 %v914
      %v2451 = vpop.f32.mrf.mxu0
      %v2452 = vadd.f32 %v2291, %v2451
      %v2453 = vpop.f32.mrf.mxu0
      %v2454 = vpop.f32.mrf.mxu0
      %v2455 = vadd.f32 %v2294, %v2454
      %v2456 = vpop.f32.mrf.mxu0
      %2457 = vmatprep.mubr.bf16.mxu0 0
      %2458 = vmatmul.mubr.bf16.gmra.mxu0 %v917
      %v2459 = vpop.f32.mrf.mxu0
      %v2460 = vadd.f32 %v2299, %v2459
      %v2461 = vpop.f32.mrf.mxu0
      %v2462 = vpop.f32.mrf.mxu0
      %v2463 = vadd.f32 %v2302, %v2462
      %v2464 = vpop.f32.mrf.mxu0
      %2465 = vmatprep.mubr.bf16.mxu0 0
      %2466 = vmatmul.mubr.bf16.gmra.mxu0 %v920
      %v2467 = vpop.f32.mrf.mxu0
      %v2468 = vadd.f32 %v2307, %v2467
      %v2469 = vpop.f32.mrf.mxu0
      %v2470 = vpop.f32.mrf.mxu0
      %v2471 = vadd.f32 %v2310, %v2470
      %v2472 = vpop.f32.mrf.mxu0
      %2473 = vmatprep.mubr.bf16.mxu0 0
      %2474 = vmatmul.mubr.bf16.gmra.mxu0 %v923
      %v2475 = vpop.f32.mrf.mxu0
      %v2476 = vadd.f32 %v2315, %v2475
      %v2477 = vpop.f32.mrf.mxu0
      %v2478 = vpop.f32.mrf.mxu0
      %v2479 = vadd.f32 %v2318, %v2478
      %v2480 = vpop.f32.mrf.mxu0
      %2481 = vmatprep.mubr.bf16.mxu0 0
      %2482 = vmatmul.mubr.bf16.gmra.mxu0 %v926
      %v2483 = vpop.f32.mrf.mxu0
      %v2484 = vadd.f32 %v2323, %v2483
      %v2485 = vpop.f32.mrf.mxu0
      %v2486 = vpop.f32.mrf.mxu0
      %v2487 = vadd.f32 %v2326, %v2486
      %v2488 = vpop.f32.mrf.mxu0
      %2489 = vmatprep.mubr.bf16.mxu0 0
      %2490 = vmatmul.mubr.bf16.gmra.mxu0 %v1008
      %v2491 = vpop.f32.mrf.mxu0
      %v2492 = vadd.f32 %v2331, %v2491
      %v2493 = vpop.f32.mrf.mxu0
      %v2494 = vpop.f32.mrf.mxu0
      %v2495 = vadd.f32 %v2334, %v2494
      %v2496 = vpop.f32.mrf.mxu0
      %2497 = vmatprep.mubr.bf16.mxu0 0
      %2498 = vmatmul.mubr.bf16.gmra.mxu0 %v881
      %v2499 = vpop.f32.mrf.mxu0
      %v2500 = vadd.f32 %v2339, %v2499
      %v2501 = vpop.f32.mrf.mxu0
      %v2502 = vpop.f32.mrf.mxu0
      %v2503 = vadd.f32 %v2342, %v2502
      %v2504 = vpop.f32.mrf.mxu0
      %2505 = vdwg.mxu0
      %v2506 = vadd.f32 %v1865, %v2380
      %v2507 = vadd.f32 %v1868, %v2383
      %v2508 = vadd.f32 %v1873, %v2388
      %v2509 = vadd.f32 %v1876, %v2391
      %v2510 = vadd.f32 %v1881, %v2396
      %v2511 = vadd.f32 %v1884, %v2399
      %v2512 = vadd.f32 %v1889, %v2404
      %v2513 = vadd.f32 %v1892, %v2407
      %v2514 = vadd.f32 %v1897, %v2412
      %v2515 = vadd.f32 %v1900, %v2415
      %v2516 = vadd.f32 %v1905, %v2420
      %v2517 = vadd.f32 %v1908, %v2423
      %v2518 = vadd.f32 %v1913, %v2428
      %v2519 = vadd.f32 %v1916, %v2431
      %v2520 = vadd.f32 %v1921, %v2436
      %v2521 = vadd.f32 %v1924, %v2439
      %v2522 = vadd.f32 %v1929, %v2444
      %v2523 = vadd.f32 %v1932, %v2447
      %v2524 = vadd.f32 %v1937, %v2452
      %v2525 = vadd.f32 %v1940, %v2455
      %v2526 = vadd.f32 %v1945, %v2460
      %v2527 = vadd.f32 %v1948, %v2463
      %v2528 = vadd.f32 %v1953, %v2468
      %v2529 = vadd.f32 %v1956, %v2471
      %v2530 = vadd.f32 %v1961, %v2476
      %v2531 = vadd.f32 %v1964, %v2479
      %v2532 = vadd.f32 %v1969, %v2484
      %v2533 = vadd.f32 %v1972, %v2487
      %v2534 = vadd.f32 %v1977, %v2492
      %v2535 = vadd.f32 %v1980, %v2495
      %v2536 = vadd.f32 %v1985, %v2500
      %v2537 = vadd.f32 %v1988, %v2503
      %v2538 = vpack.c.bf16 %v2507, %v2506
      %v2539 = vpack.c.bf16 %v2509, %v2508
      %v2540 = vpack.c.bf16 %v2511, %v2510
      %v2541 = vpack.c.bf16 %v2513, %v2512
      %v2542 = vpack.c.bf16 %v2515, %v2514
      %v2543 = vpack.c.bf16 %v2517, %v2516
      %v2544 = vpack.c.bf16 %v2519, %v2518
      %v2545 = vpack.c.bf16 %v2521, %v2520
      %v2546 = vpack.c.bf16 %v2523, %v2522
      %v2547 = vpack.c.bf16 %v2525, %v2524
      %v2548 = vpack.c.bf16 %v2527, %v2526
      %v2549 = vpack.c.bf16 %v2529, %v2528
      %v2550 = vpack.c.bf16 %v2531, %v2530
      %v2551 = vpack.c.bf16 %v2533, %v2532
      %v2552 = vpack.c.bf16 %v2535, %v2534
      %v2553 = vpack.c.bf16 %v2537, %v2536
      %v2570 = vunpack.c.l.b16 %v2538
      %v2571 = vunpack.c.h.b16 %v2538
      %v2572 = vunpack.c.l.b16 %v2539
      %v2573 = vunpack.c.h.b16 %v2539
      %v2574 = vunpack.c.l.b16 %v2540
      %v2575 = vunpack.c.h.b16 %v2540
      %v2576 = vunpack.c.l.b16 %v2541
      %v2577 = vunpack.c.h.b16 %v2541
      %v2578 = vunpack.c.l.b16 %v2542
      %v2579 = vunpack.c.h.b16 %v2542
      %v2580 = vunpack.c.l.b16 %v2543
      %v2581 = vunpack.c.h.b16 %v2543
      %v2582 = vunpack.c.l.b16 %v2544
      %v2583 = vunpack.c.h.b16 %v2544
      %v2584 = vunpack.c.l.b16 %v2545
      %v2585 = vunpack.c.h.b16 %v2545
      %v2586 = vunpack.c.l.b16 %v2546
      %v2587 = vunpack.c.h.b16 %v2546
      %v2588 = vunpack.c.l.b16 %v2547
      %v2589 = vunpack.c.h.b16 %v2547
      %v2590 = vunpack.c.l.b16 %v2548
      %v2591 = vunpack.c.h.b16 %v2548
      %v2592 = vunpack.c.l.b16 %v2549
      %v2593 = vunpack.c.h.b16 %v2549
      %v2594 = vunpack.c.l.b16 %v2550
      %v2595 = vunpack.c.h.b16 %v2550
      %v2596 = vunpack.c.l.b16 %v2551
      %v2597 = vunpack.c.h.b16 %v2551
      %v2598 = vunpack.c.l.b16 %v2552
      %v2599 = vunpack.c.h.b16 %v2552
      %v2600 = vunpack.c.l.b16 %v2553
      %v2601 = vunpack.c.h.b16 %v2553
      %v2602 = vpack.c.b16 %v2570, %v2570
      %v2603 = vpack.c.b16 %v2571, %v2571
      %v2604 = vpack.c.b16 %v2572, %v2572
      %v2605 = vpack.c.b16 %v2573, %v2573
      %v2606 = vpack.c.b16 %v2574, %v2574
      %v2607 = vpack.c.b16 %v2575, %v2575
      %v2608 = vpack.c.b16 %v2576, %v2576
      %v2609 = vpack.c.b16 %v2577, %v2577
      %v2610 = vpack.c.b16 %v2578, %v2578
      %v2611 = vpack.c.b16 %v2579, %v2579
      %v2612 = vpack.c.b16 %v2580, %v2580
      %v2613 = vpack.c.b16 %v2581, %v2581
      %v2614 = vpack.c.b16 %v2582, %v2582
      %v2615 = vpack.c.b16 %v2583, %v2583
      %v2616 = vpack.c.b16 %v2584, %v2584
      %v2617 = vpack.c.b16 %v2585, %v2585
      %v2618 = vpack.c.b16 %v2586, %v2586
      %v2619 = vpack.c.b16 %v2587, %v2587
      %v2620 = vpack.c.b16 %v2588, %v2588
      %v2621 = vpack.c.b16 %v2589, %v2589
      %v2622 = vpack.c.b16 %v2590, %v2590
      %v2623 = vpack.c.b16 %v2591, %v2591
      %v2624 = vpack.c.b16 %v2592, %v2592
      %v2625 = vpack.c.b16 %v2593, %v2593
      %v2626 = vpack.c.b16 %v2594, %v2594
      %v2627 = vpack.c.b16 %v2595, %v2595
      %v2628 = vpack.c.b16 %v2596, %v2596
      %v2629 = vpack.c.b16 %v2597, %v2597
      %v2630 = vpack.c.b16 %v2598, %v2598
      %v2631 = vpack.c.b16 %v2599, %v2599
      %v2632 = vpack.c.b16 %v2600, %v2600
      %v2633 = vpack.c.b16 %v2601, %v2601
      %2666 = vst [vmem:[%s258] sm:$0xf] %v2602
      %2667 = vst [vmem:[%s258 + $0x4] sm:$0xf] %v2603
      %2668 = vst [vmem:[%s258 + $0x8] sm:$0xf] %v2604
      %2669 = vst [vmem:[%s258 + $0xc] sm:$0xf] %v2605
      %2670 = vst [vmem:[%s258 + $0x10] sm:$0xf] %v2606
      %2671 = vst [vmem:[%s258 + $0x14] sm:$0xf] %v2607
      %2672 = vst [vmem:[%s258 + $0x18] sm:$0xf] %v2608
      %2673 = vst [vmem:[%s258 + $0x1c] sm:$0xf] %v2609
      %2674 = vst [vmem:[%s258 + $0x20] sm:$0xf] %v2610
      %2675 = vst [vmem:[%s258 + $0x24] sm:$0xf] %v2611
      %2676 = vst [vmem:[%s258 + $0x28] sm:$0xf] %v2612
      %2677 = vst [vmem:[%s258 + $0x2c] sm:$0xf] %v2613
      %2678 = vst [vmem:[%s258 + $0x30] sm:$0xf] %v2614
      %2679 = vst [vmem:[%s258 + $0x34] sm:$0xf] %v2615
      %2680 = vst [vmem:[%s258 + $0x38] sm:$0xf] %v2616
      %2681 = vst [vmem:[%s258 + $0x3c] sm:$0xf] %v2617
      %2682 = vst [vmem:[%s258 + $0x40] sm:$0xf] %v2618
      %2683 = vst [vmem:[%s258 + $0x44] sm:$0xf] %v2619
      %2684 = vst [vmem:[%s258 + $0x48] sm:$0xf] %v2620
      %2685 = vst [vmem:[%s258 + $0x4c] sm:$0xf] %v2621
      %2686 = vst [vmem:[%s258 + $0x50] sm:$0xf] %v2622
      %2687 = vst [vmem:[%s258 + $0x54] sm:$0xf] %v2623
      %2688 = vst [vmem:[%s258 + $0x58] sm:$0xf] %v2624
      %2689 = vst [vmem:[%s258 + $0x5c] sm:$0xf] %v2625
      %2690 = vst [vmem:[%s258 + $0x60] sm:$0xf] %v2626
      %2691 = vst [vmem:[%s258 + $0x64] sm:$0xf] %v2627
      %2692 = vst [vmem:[%s258 + $0x68] sm:$0xf] %v2628
      %2693 = vst [vmem:[%s258 + $0x6c] sm:$0xf] %v2629
      %2694 = vst [vmem:[%s258 + $0x70] sm:$0xf] %v2630
      %2695 = vst [vmem:[%s258 + $0x74] sm:$0xf] %v2631
      %2696 = vst [vmem:[%s258 + $0x78] sm:$0xf] %v2632
      %2697 = vst [vmem:[%s258 + $0x7c] sm:$0xf] %v2633
      %v2698 = vadd.f32 %v2506, %v2507
      %v2699 = vadd.f32 %v2698, %v2508
      %v2700 = vadd.f32 %v2699, %v2509
      %v2701 = vadd.f32 %v2700, %v2510
      %v2702 = vadd.f32 %v2701, %v2511
      %v2703 = vadd.f32 %v2702, %v2512
      %v2704 = vadd.f32 %v2703, %v2513
      %v2705 = vadd.f32 %v2704, %v2514
      %v2706 = vadd.f32 %v2705, %v2515
      %v2707 = vadd.f32 %v2706, %v2516
      %v2708 = vadd.f32 %v2707, %v2517
      %v2709 = vadd.f32 %v2708, %v2518
      %v2710 = vadd.f32 %v2709, %v2519
      %v2711 = vadd.f32 %v2710, %v2520
      %v2712 = vadd.f32 %v2711, %v2521
      %v2713 = vadd.f32 %v2712, %v2522
      %v2714 = vadd.f32 %v2713, %v2523
      %v2715 = vadd.f32 %v2714, %v2524
      %v2716 = vadd.f32 %v2715, %v2525
      %v2717 = vadd.f32 %v2716, %v2526
      %v2718 = vadd.f32 %v2717, %v2527
      %v2719 = vadd.f32 %v2718, %v2528
      %v2720 = vadd.f32 %v2719, %v2529
      %v2721 = vadd.f32 %v2720, %v2530
      %v2722 = vadd.f32 %v2721, %v2531
      %v2723 = vadd.f32 %v2722, %v2532
      %v2724 = vadd.f32 %v2723, %v2533
      %v2725 = vadd.f32 %v2724, %v2534
      %v2726 = vadd.f32 %v2725, %v2535
      %v2727 = vadd.f32 %v2726, %v2536
      %v2728 = vadd.f32 %v2727, %v2537
      %v2729 = vrot.slane %v2728, 4
      %v2730 = vadd.f32 %v2728, %v2729
      %v2731 = vrot.slane %v2730, 2
      %v2732 = vadd.f32 %v2730, %v2731
      %v2733 = vrot.slane %v2732, 1
      %v2734 = vadd.f32 %v2732, %v2733
      %v2735 = vmul.f32 %v2506, %v2506
      %v2736 = vmul.f32 %v2507, %v2507
      %v2737 = vmul.f32 %v2508, %v2508
      %v2738 = vmul.f32 %v2509, %v2509
      %v2739 = vmul.f32 %v2510, %v2510
      %v2740 = vmul.f32 %v2511, %v2511
      %v2741 = vmul.f32 %v2512, %v2512
      %v2742 = vmul.f32 %v2513, %v2513
      %v2743 = vmul.f32 %v2514, %v2514
      %v2744 = vmul.f32 %v2515, %v2515
      %v2745 = vmul.f32 %v2516, %v2516
      %v2746 = vmul.f32 %v2517, %v2517
      %v2747 = vmul.f32 %v2518, %v2518
      %v2748 = vmul.f32 %v2519, %v2519
      %v2749 = vmul.f32 %v2520, %v2520
      %v2750 = vmul.f32 %v2521, %v2521
      %v2751 = vmul.f32 %v2522, %v2522
      %v2752 = vmul.f32 %v2523, %v2523
      %v2753 = vmul.f32 %v2524, %v2524
      %v2754 = vmul.f32 %v2525, %v2525
      %v2755 = vmul.f32 %v2526, %v2526
      %v2756 = vmul.f32 %v2527, %v2527
      %v2757 = vmul.f32 %v2528, %v2528
      %v2758 = vmul.f32 %v2529, %v2529
      %v2759 = vmul.f32 %v2530, %v2530
      %v2760 = vmul.f32 %v2531, %v2531
      %v2761 = vmul.f32 %v2532, %v2532
      %v2762 = vmul.f32 %v2533, %v2533
      %v2763 = vmul.f32 %v2534, %v2534
      %v2764 = vmul.f32 %v2535, %v2535
      %v2765 = vmul.f32 %v2536, %v2536
      %v2766 = vmul.f32 %v2537, %v2537
      %v2767 = vadd.f32 %v2735, %v2736
      %v2768 = vadd.f32 %v2767, %v2737
      %v2769 = vadd.f32 %v2768, %v2738
      %v2770 = vadd.f32 %v2769, %v2739
      %v2771 = vadd.f32 %v2770, %v2740
      %v2772 = vadd.f32 %v2771, %v2741
      %v2773 = vadd.f32 %v2772, %v2742
      %v2774 = vadd.f32 %v2773, %v2743
      %v2775 = vadd.f32 %v2774, %v2744
      %v2776 = vadd.f32 %v2775, %v2745
      %v2777 = vadd.f32 %v2776, %v2746
      %v2778 = vadd.f32 %v2777, %v2747
      %v2779 = vadd.f32 %v2778, %v2748
      %v2780 = vadd.f32 %v2779, %v2749
      %v2781 = vadd.f32 %v2780, %v2750
      %v2782 = vadd.f32 %v2781, %v2751
      %v2783 = vadd.f32 %v2782, %v2752
      %v2784 = vadd.f32 %v2783, %v2753
      %v2785 = vadd.f32 %v2784, %v2754
      %v2786 = vadd.f32 %v2785, %v2755
      %v2787 = vadd.f32 %v2786, %v2756
      %v2788 = vadd.f32 %v2787, %v2757
      %v2789 = vadd.f32 %v2788, %v2758
      %v2790 = vadd.f32 %v2789, %v2759
      %v2791 = vadd.f32 %v2790, %v2760
      %v2792 = vadd.f32 %v2791, %v2761
      %v2793 = vadd.f32 %v2792, %v2762
      %v2794 = vadd.f32 %v2793, %v2763
      %v2795 = vadd.f32 %v2794, %v2764
      %v2796 = vadd.f32 %v2795, %v2765
      %v2797 = vadd.f32 %v2796, %v2766
      %v2798 = vrot.slane %v2797, 4
      %v2799 = vadd.f32 %v2797, %v2798
      %v2800 = vrot.slane %v2799, 2
      %v2801 = vadd.f32 %v2799, %v2800
      %v2802 = vrot.slane %v2801, 1
      %v2803 = vadd.f32 %v2801, %v2802
      %vm2804 = vcmask 1040384
      %v2805 = vsel %vm2804, %v2734, %v2803
      %2806 = vst [vmem:[%s263] sm:$0x3] %v2805
      %s2807 = smul.u32 32, %s18
      %p2808 = scmp.lt.s32.totalorder %s2807, 63
      %s2809 = scalar_select %p2808, %s2807, 63
      %s2810 = smul.addr %s2809, 4
      %s2811 = scalar_lea.vmem %s5, %s2810
      %p2812 = scmp.lt.s32.totalorder %s18, 1
      %s2813 = scalar_select %p2812, %s18, 1
      %s2814 = smul.addr %s2813, 2
      %s2815 = scalar_lea.vmem %s6, %s2814
      // Predicated region
      $region41: #{resnet_block_forward.4} parent=39 // pred_check
        %p2816 = pneg %p146
      $region42: #{resnet_block_forward.4} parent=39 // pred_check_branch
        %2818 = sbr.rel (%p2816) target = $region44
      $region43: #{resnet_block_forward.4} parent=39 // pred_region
        %s2819 = smul.u32 32, %s18
      $region44: #{resnet_block_forward.4} parent=39 // pred_fallthru
        _
      // Predicated region
      $region45: #{resnet_block_forward.4} parent=39 // pred_check
        %p2820 = pneg %p172
      $region46: #{resnet_block_forward.4} parent=39 // pred_check_branch
        %2822 = sbr.rel (%p2820) target = $region48
      $region47: #{resnet_block_forward.4} parent=39 // pred_region
        _
      $region48: #{resnet_block_forward.4} parent=39 // pred_fallthru
        _
    $region40: #{resnet_block_forward.4} parent=5 // pred_fallthru
      _
    %p2823 = scmp.le.s32.totalorder 2, %s13
    // Predicated region
    $region49: #{resnet_block_forward.4} parent=5 // pred_check
      %p2824 = pneg %p2823
    $region50: #{resnet_block_forward.4} parent=5 // pred_check_branch
      %2826 = sbr.rel (%p2824) target = $region52
    $region51: #{resnet_block_forward.4} parent=5 // pred_region
      %s2827 = ssub.s32 %s13, 2
      // Predicated region
      $region53: #{resnet_block_forward.4} parent=51 // pred_check
        %p2828 = pneg %p152
      $region54: #{resnet_block_forward.4} parent=51 // pred_check_branch
        %2830 = sbr.rel (%p2828) target = $region56
      $region55: #{resnet_block_forward.4} parent=51 // pred_region
        %s2831 = smul.u32 32, %s19
        %p2832 = scmp.lt.s32.totalorder %s2831, 63
        %s2833 = scalar_select %p2832, %s2831, 63
        %s2834 = smul.addr %s2833, 4
        %s2835 = scalar_lea.vmem %s5, %s2834
      $region56: #{resnet_block_forward.4} parent=51 // pred_fallthru
        _
      // Predicated region
      $region57: #{resnet_block_forward.4} parent=51 // pred_check
        %p2836 = pneg %p178
      $region58: #{resnet_block_forward.4} parent=51 // pred_check_branch
        %2838 = sbr.rel (%p2836) target = $region60
      $region59: #{resnet_block_forward.4} parent=51 // pred_region
        %p2839 = scmp.lt.s32.totalorder %s19, 1
        %s2840 = scalar_select %p2839, %s19, 1
        %s2841 = smul.addr %s2840, 2
        %s2842 = scalar_lea.vmem %s6, %s2841
      $region60: #{resnet_block_forward.4} parent=51 // pred_fallthru
        _
    $region52: #{resnet_block_forward.4} parent=5 // pred_fallthru
      _
  $region6: #{resnet_block_forward.4} parent=0 // loop_footer
    %s17 = sadd.s32 1, %s13
  $region7: #{resnet_block_forward.4} parent=0 // loop_footer_branch
    %12 = sbr.rel target = $region3
  $region8: #{resnet_block_forward.4} parent=0 // loop_exit
    _

// kernel: resnet_block_forward.3
$region0: #{resnet_block_forward.3}
  #allocation0 [shape = 'u32[]', space=smem, size = 0x4, offset = 0x4, fixed_abs, tag = 'smem constant byte address 0x4 - core index']
  #allocation1 [shape = 'u32[144,128]{1,0:T(1,128)}', space=vmem, size = 0x12000, scoped, tag = 'internal scratch']
  %s0 = inlined_call_operand.vmem [shape: bf16[2,18,18,128], index: 0, kind: input, shape index: {}]
  %s1 = inlined_call_operand.vmem [shape: bf16[3,384,128], index: 1, kind: input, shape index: {}]
  %s2 = inlined_call_operand.vmem [shape: bf16[2,16,16,128], index: 2, kind: output, shape index: {0}]
  %s3 = inlined_call_operand.vmem [shape: f32[2,2,128], index: 3, kind: output, shape index: {1}]
  %4 = xla_tuple %s2, %s3
  %s5 = sld [smem:[#allocation0]]
  $region49: #{resnet_block_forward.3} parent=0
    _
  %s7 = ssub.s32 1, %s5
  %s8 = scalar_select 0, %s7, %s5
  loop: start=0, step=1, limit=4
  $region2: #{resnet_block_forward.3} parent=0 // loop_pre_header
    _
  $region3: #{resnet_block_forward.3} parent=0 // loop_header
    %s10 = sphi 0, %s14
    %p11 = scmp.ge.s32.totalorder %s10, 4
    %s20 = sphi 0, %s22
    %s23 = sphi 0, %s20
    %s24 = sphi 0, %s23
    %s40 = sphi 0, %s24
    %s44 = sphi 0, %s44
    %s46 = sphi 0, %s44
    %s47 = sphi 0, %s46
    %s61 = sphi 0, %s47
    %s67 = sphi 0, %s69
    %s70 = sphi 0, %s67
    %s71 = sphi 0, %s70
    %s87 = sphi 0, %s71
    %s93 = sphi 0, %s95
    %s96 = sphi 0, %s93
    %s97 = sphi 0, %s96
    %s113 = sphi 0, %s97
  $region4: #{resnet_block_forward.3} parent=0 // loop_header_branch
    %13 = sbr.rel (%p11) target = $region8
  $region5: #{resnet_block_forward.3} parent=0 // loop_body
    %s15 = ssub.s32 %s10, 1
    %s16 = ssub.s32 %s10, 2
    %s17 = sadd.s32 %s10, 1
    %s18 = ssub.s32 %s10, %s17
    %p19 = scmp.eq.s32.totalorder %s18, 0
    %s21 = sadd.s32 %s20, 1
    %s22 = scalar_select %p19, %s20, %s21
    %p25 = pneg %p19
    %p26 = scmp.eq.s32.totalorder %s10, 1
    %p27 = por %p25, %p26
    %p28 = scmp.ne.s32.totalorder %s20, %s23
    %p29 = scmp.eq.s32.totalorder %s10, 0
    %p30 = por %p28, %p29
    %p31 = scmp.ne.s32.totalorder %s20, %s23
    %p32 = scmp.eq.s32.totalorder %s15, 1
    %p33 = por %p31, %p32
    %p34 = scmp.ne.s32.totalorder %s23, %s24
    %p35 = scmp.eq.s32.totalorder %s15, 0
    %p36 = por %p34, %p35
    %p37 = scmp.ne.s32.totalorder %s23, %s24
    %p38 = scmp.eq.s32.totalorder %s16, 1
    %p39 = por %p37, %p38
    %p41 = scmp.ne.s32.totalorder %s24, %s40
    %p42 = scmp.eq.s32.totalorder %s16, 0
    %p43 = por %p41, %p42
    %s45 = sadd.s32 %s44, 1
    %p48 = scmp.eq.s32.totalorder %s10, 1
    %p49 = scmp.ne.s32.totalorder %s44, %s46
    %p50 = scmp.eq.s32.totalorder %s10, 0
    %p51 = por %p49, %p50
    %p52 = scmp.ne.s32.totalorder %s44, %s46
    %p53 = scmp.eq.s32.totalorder %s15, 1
    %p54 = por %p52, %p53
    %p55 = scmp.ne.s32.totalorder %s46, %s47
    %p56 = scmp.eq.s32.totalorder %s15, 0
    %p57 = por %p55, %p56
    %p58 = scmp.ne.s32.totalorder %s46, %s47
    %p59 = scmp.eq.s32.totalorder %s16, 1
    %p60 = por %p58, %p59
    %p62 = scmp.ne.s32.totalorder %s47, %s61
    %p63 = scmp.eq.s32.totalorder %s16, 0
    %p64 = por %p62, %p63
    %s65 = ssub.s32 %s10, %s17
    %p66 = scmp.eq.s32.totalorder %s65, 0
    %s68 = sadd.s32 %s67, 1
    %s69 = scalar_select %p66, %s67, %s68
    %p72 = pneg %p66
    %p73 = scmp.eq.s32.totalorder %s10, 1
    %p74 = por %p72, %p73
    %p75 = scmp.ne.s32.totalorder %s67, %s70
    %p76 = scmp.eq.s32.totalorder %s10, 0
    %p77 = por %p75, %p76
    %p78 = scmp.ne.s32.totalorder %s67, %s70
    %p79 = scmp.eq.s32.totalorder %s15, 1
    %p80 = por %p78, %p79
    %p81 = scmp.ne.s32.totalorder %s70, %s71
    %p82 = scmp.eq.s32.totalorder %s15, 0
    %p83 = por %p81, %p82
    %p84 = scmp.ne.s32.totalorder %s70, %s71
    %p85 = scmp.eq.s32.totalorder %s16, 1
    %p86 = por %p84, %p85
    %p88 = scmp.ne.s32.totalorder %s71, %s87
    %p89 = scmp.eq.s32.totalorder %s16, 0
    %p90 = por %p88, %p89
    %s91 = ssub.s32 %s10, %s17
    %p92 = scmp.eq.s32.totalorder %s91, 0
    %s94 = sadd.s32 %s93, 1
    %s95 = scalar_select %p92, %s93, %s94
    %p98 = pneg %p92
    %p99 = scmp.eq.s32.totalorder %s10, 1
    %p100 = por %p98, %p99
    %p101 = scmp.ne.s32.totalorder %s93, %s96
    %p102 = scmp.eq.s32.totalorder %s10, 0
    %p103 = por %p101, %p102
    %p104 = scmp.ne.s32.totalorder %s93, %s96
    %p105 = scmp.eq.s32.totalorder %s15, 1
    %p106 = por %p104, %p105
    %p107 = scmp.ne.s32.totalorder %s96, %s97
    %p108 = scmp.eq.s32.totalorder %s15, 0
    %p109 = por %p107, %p108
    %p110 = scmp.ne.s32.totalorder %s96, %s97
    %p111 = scmp.eq.s32.totalorder %s16, 1
    %p112 = por %p110, %p111
    %p114 = scmp.ne.s32.totalorder %s97, %s113
    %p115 = scmp.eq.s32.totalorder %s16, 0
    %p116 = por %p114, %p115
    %p117 = scmp.le.s32.totalorder 1, %s10
    %p118 = scmp.lt.s32.totalorder %s10, 3
    %p119 = pnand %p117, %p118
    %p120 = pneg %p119
    // Predicated region
    $region9: #{resnet_block_forward.3} parent=5 // pred_check
      _
    $region10: #{resnet_block_forward.3} parent=5 // pred_check_branch
      %122 = sbr.rel (%p119) target = $region12
    $region11: #{resnet_block_forward.3} parent=5 // pred_region
      %s123 = ssub.s32 %s10, 1
      // Predicated region
      $region13: #{resnet_block_forward.3} parent=11 // pred_check
        %p124 = pneg %p57
      $region14: #{resnet_block_forward.3} parent=11 // pred_check_branch
        %126 = sbr.rel (%p124) target = $region16
      $region15: #{resnet_block_forward.3} parent=11 // pred_region
        _
      $region16: #{resnet_block_forward.3} parent=11 // pred_fallthru
        _
    $region12: #{resnet_block_forward.3} parent=5 // pred_fallthru
      _
    %p127 = scmp.lt.s32.totalorder %s10, 2
    // Predicated region
    $region17: #{resnet_block_forward.3} parent=5 // pred_check
      %p128 = pneg %p127
    $region18: #{resnet_block_forward.3} parent=5 // pred_check_branch
      %130 = sbr.rel (%p128) target = $region20
    $region19: #{resnet_block_forward.3} parent=5 // pred_region
      // Predicated region
      $region21: #{resnet_block_forward.3} parent=19 // pred_check
        %p131 = pneg %p30
      $region22: #{resnet_block_forward.3} parent=19 // pred_check_branch
        %133 = sbr.rel (%p131) target = $region24
      $region23: #{resnet_block_forward.3} parent=19 // pred_region
        %p134 = scmp.lt.s32.totalorder %s10, 1
        %s135 = scalar_select %p134, %s10, 1
        %s136 = smul.addr %s135, 54
        %s137 = smul.addr %s136, 4
        %s138 = scalar_lea.vmem %s0, %s137
      $region24: #{resnet_block_forward.3} parent=19 // pred_fallthru
        _
    $region20: #{resnet_block_forward.3} parent=5 // pred_fallthru
      _
    %p139 = scmp.le.s32.totalorder 1, %s10
    %p140 = scmp.lt.s32.totalorder %s10, 3
    %p141 = pnand %p139, %p140
    %p142 = pneg %p141
    // Predicated region
    $region25: #{resnet_block_forward.3} parent=5 // pred_check
      _
    $region26: #{resnet_block_forward.3} parent=5 // pred_check_branch
      %144 = sbr.rel (%p141) target = $region28
    $region27: #{resnet_block_forward.3} parent=5 // pred_region
      %s145 = ssub.s32 %s10, 1
      %p146 = scmp.lt.s32.totalorder %s15, 1
      %s147 = scalar_select %p146, %s15, 1
      %s148 = smul.addr %s147, 54
      %s149 = smul.addr %s148, 4
      %s150 = scalar_lea.vmem %s0, %s149
      %p151 = pneg %p36
      %p152 = pneg %p33
      %p153 = pneg %p57
      %p154 = pneg %p54
      %p155 = pneg %p83
      %p156 = pneg %p80
      %p157 = scmp.lt.s32.totalorder %s15, 1
      %s158 = scalar_select %p157, %s15, 1
      %s159 = smul.addr %s158, 32
      %s160 = smul.addr %s159, 4
      %s161 = scalar_lea.vmem %s2, %s160
      %p162 = pneg %p109
      %p163 = pneg %p106
      %p164 = scmp.lt.s32.totalorder %s15, 1
      %s165 = scalar_select %p164, %s15, 1
      %s166 = smul.addr %s165, 2
      %s167 = scalar_lea.vmem %s3, %s166
      %p168 = scmp.lt.s32.totalorder %s15, 1
      %s169 = scalar_select %p168, %s15, 1
      %s170 = smul.addr %s169, 54
      %s171 = smul.addr %s170, 4
      %s172 = scalar_lea.vmem %s0, %s171
      %p173 = scmp.lt.s32.totalorder %s15, 1
      %s174 = scalar_select %p173, %s15, 1
      %s175 = smul.addr %s174, 32
      %s176 = smul.addr %s175, 4
      %s177 = scalar_lea.vmem %s2, %s176
      %p178 = scmp.lt.s32.totalorder %s15, 1
      %s179 = scalar_select %p178, %s15, 1
      %s180 = smul.addr %s179, 2
      %s181 = scalar_lea.vmem %s3, %s180
      %v183 = vld [vmem:[%s172] sm:$0xf]
      %v184 = vld [vmem:[%s172 + $0x4] sm:$0xf]
      %v185 = vld [vmem:[%s172 + $0x8] sm:$0x1]
      %v186 = vld [vmem:[%s172 + $0xc] sm:$0xf]
      %v187 = vld [vmem:[%s172 + $0x10] sm:$0xf]
      %v188 = vld [vmem:[%s172 + $0x14] sm:$0x1]
      %v189 = vld [vmem:[%s172 + $0x18] sm:$0xf]
      %v190 = vld [vmem:[%s172 + $0x1c] sm:$0xf]
      %v191 = vld [vmem:[%s172 + $0x20] sm:$0x1]
      %v192 = vld [vmem:[%s172 + $0x24] sm:$0xf]
      %v193 = vld [vmem:[%s172 + $0x28] sm:$0xf]
      %v194 = vld [vmem:[%s172 + $0x2c] sm:$0x1]
      %v195 = vld [vmem:[%s172 + $0x30] sm:$0xf]
      %v196 = vld [vmem:[%s172 + $0x34] sm:$0xf]
      %v197 = vld [vmem:[%s172 + $0x38] sm:$0x1]
      %v198 = vld [vmem:[%s172 + $0x3c] sm:$0xf]
      %v199 = vld [vmem:[%s172 + $0x40] sm:$0xf]
      %v200 = vld [vmem:[%s172 + $0x44] sm:$0x1]
      %v201 = vld [vmem:[%s172 + $0x48] sm:$0xf]
      %v202 = vld [vmem:[%s172 + $0x4c] sm:$0xf]
      %v203 = vld [vmem:[%s172 + $0x50] sm:$0x1]
      %v204 = vld [vmem:[%s172 + $0x54] sm:$0xf]
      %v205 = vld [vmem:[%s172 + $0x58] sm:$0xf]
      %v206 = vld [vmem:[%s172 + $0x5c] sm:$0x1]
      %v207 = vld [vmem:[%s172 + $0x60] sm:$0xf]
      %v208 = vld [vmem:[%s172 + $0x64] sm:$0xf]
      %v209 = vld [vmem:[%s172 + $0x68] sm:$0x1]
      %v210 = vld [vmem:[%s172 + $0x6c] sm:$0xf]
      %v211 = vld [vmem:[%s172 + $0x70] sm:$0xf]
      %v212 = vld [vmem:[%s172 + $0x74] sm:$0x1]
      %v213 = vld [vmem:[%s172 + $0x78] sm:$0xf]
      %v214 = vld [vmem:[%s172 + $0x7c] sm:$0xf]
      %v215 = vld [vmem:[%s172 + $0x80] sm:$0x1]
      %v216 = vld [vmem:[%s172 + $0x84] sm:$0xf]
      %v217 = vld [vmem:[%s172 + $0x88] sm:$0xf]
      %v218 = vld [vmem:[%s172 + $0x8c] sm:$0x1]
      %v219 = vld [vmem:[%s172 + $0x90] sm:$0xf]
      %v220 = vld [vmem:[%s172 + $0x94] sm:$0xf]
      %v221 = vld [vmem:[%s172 + $0x98] sm:$0x1]
      %v222 = vld [vmem:[%s172 + $0x9c] sm:$0xf]
      %v223 = vld [vmem:[%s172 + $0xa0] sm:$0xf]
      %v224 = vld [vmem:[%s172 + $0xa4] sm:$0x1]
      %v225 = vld [vmem:[%s172 + $0xa8] sm:$0xf]
      %v226 = vld [vmem:[%s172 + $0xac] sm:$0xf]
      %v227 = vld [vmem:[%s172 + $0xb0] sm:$0x1]
      %v228 = vld [vmem:[%s172 + $0xb4] sm:$0xf]
      %v229 = vld [vmem:[%s172 + $0xb8] sm:$0xf]
      %v230 = vld [vmem:[%s172 + $0xbc] sm:$0x1]
      %v263 = vunpack.c.l.b16 %v183
      %v264 = vunpack.c.l.b16 %v184
      %v265 = vunpack.c.l.b16 %v186
      %v266 = vunpack.c.l.b16 %v187
      %v267 = vunpack.c.l.b16 %v189
      %v268 = vunpack.c.l.b16 %v190
      %v269 = vunpack.c.l.b16 %v192
      %v270 = vunpack.c.l.b16 %v193
      %v271 = vunpack.c.l.b16 %v195
      %v272 = vunpack.c.l.b16 %v196
      %v273 = vunpack.c.l.b16 %v198
      %v274 = vunpack.c.l.b16 %v199
      %v275 = vunpack.c.l.b16 %v201
      %v276 = vunpack.c.l.b16 %v202
      %v277 = vunpack.c.l.b16 %v204
      %v278 = vunpack.c.l.b16 %v205
      %v279 = vunpack.c.l.b16 %v207
      %v280 = vunpack.c.l.b16 %v208
      %v281 = vunpack.c.l.b16 %v210
      %v282 = vunpack.c.l.b16 %v211
      %v283 = vunpack.c.l.b16 %v213
      %v284 = vunpack.c.l.b16 %v214
      %v285 = vunpack.c.l.b16 %v216
      %v286 = vunpack.c.l.b16 %v217
      %v287 = vunpack.c.l.b16 %v219
      %v288 = vunpack.c.l.b16 %v220
      %v289 = vunpack.c.l.b16 %v222
      %v290 = vunpack.c.l.b16 %v223
      %v291 = vunpack.c.l.b16 %v225
      %v292 = vunpack.c.l.b16 %v226
      %v293 = vunpack.c.l.b16 %v228
      %v294 = vunpack.c.l.b16 %v229
      %v295 = vpack.c.b16 %v264, %v263
      %v296 = vpack.c.b16 %v266, %v265
      %v297 = vpack.c.b16 %v268, %v267
      %v298 = vpack.c.b16 %v270, %v269
      %v299 = vpack.c.b16 %v272, %v271
      %v300 = vpack.c.b16 %v274, %v273
      %v301 = vpack.c.b16 %v276, %v275
      %v302 = vpack.c.b16 %v278, %v277
      %v303 = vpack.c.b16 %v280, %v279
      %v304 = vpack.c.b16 %v282, %v281
      %v305 = vpack.c.b16 %v284, %v283
      %v306 = vpack.c.b16 %v286, %v285
      %v307 = vpack.c.b16 %v288, %v287
      %v308 = vpack.c.b16 %v290, %v289
      %v309 = vpack.c.b16 %v292, %v291
      %v310 = vpack.c.b16 %v294, %v293
      %v343 = vunpack.c.l.b16 %v185
      %v344 = vunpack.c.l.b16 %v188
      %v345 = vunpack.c.l.b16 %v191
      %v346 = vunpack.c.l.b16 %v194
      %v347 = vunpack.c.l.b16 %v197
      %v348 = vunpack.c.l.b16 %v200
      %v349 = vunpack.c.l.b16 %v203
      %v350 = vunpack.c.l.b16 %v206
      %v351 = vunpack.c.l.b16 %v209
      %v352 = vunpack.c.l.b16 %v212
      %v353 = vunpack.c.l.b16 %v215
      %v354 = vunpack.c.l.b16 %v218
      %v355 = vunpack.c.l.b16 %v221
      %v356 = vunpack.c.l.b16 %v224
      %v357 = vunpack.c.l.b16 %v227
      %v358 = vunpack.c.l.b16 %v230
      %v359 = vpack.c.b16 %v343, %v343
      %v360 = vpack.c.b16 %v344, %v344
      %v361 = vpack.c.b16 %v345, %v345
      %v362 = vpack.c.b16 %v346, %v346
      %v363 = vpack.c.b16 %v347, %v347
      %v364 = vpack.c.b16 %v348, %v348
      %v365 = vpack.c.b16 %v349, %v349
      %v366 = vpack.c.b16 %v350, %v350
      %v367 = vpack.c.b16 %v351, %v351
      %v368 = vpack.c.b16 %v352, %v352
      %v369 = vpack.c.b16 %v353, %v353
      %v370 = vpack.c.b16 %v354, %v354
      %v371 = vpack.c.b16 %v355, %v355
      %v372 = vpack.c.b16 %v356, %v356
      %v373 = vpack.c.b16 %v357, %v357
      %v374 = vpack.c.b16 %v358, %v358
      %vm375 = vsmask.f32 7424
      %v377 = vshrl.u32 %v295, 16
      %v379 = vshll.u32 %v295, 16
      %v381 = vrot.slane %v379, 1
      %v382 = vor.u32 %v377, %v381
      %v384 = vshll.u32 %v359, 16
      %v386 = vrot.slane %v384, 1
      %v387 = vsel %vm375, %v382, %v386
      %v389 = vshrl.u32 %v296, 16
      %v391 = vshll.u32 %v296, 16
      %v393 = vrot.slane %v391, 1
      %v394 = vor.u32 %v389, %v393
      %v396 = vshll.u32 %v360, 16
      %v398 = vrot.slane %v396, 1
      %v399 = vsel %vm375, %v394, %v398
      %v401 = vshrl.u32 %v297, 16
      %v403 = vshll.u32 %v297, 16
      %v405 = vrot.slane %v403, 1
      %v406 = vor.u32 %v401, %v405
      %v408 = vshll.u32 %v361, 16
      %v410 = vrot.slane %v408, 1
      %v411 = vsel %vm375, %v406, %v410
      %v413 = vshrl.u32 %v298, 16
      %v415 = vshll.u32 %v298, 16
      %v417 = vrot.slane %v415, 1
      %v418 = vor.u32 %v413, %v417
      %v420 = vshll.u32 %v362, 16
      %v422 = vrot.slane %v420, 1
      %v423 = vsel %vm375, %v418, %v422
      %v425 = vshrl.u32 %v299, 16
      %v427 = vshll.u32 %v299, 16
      %v429 = vrot.slane %v427, 1
      %v430 = vor.u32 %v425, %v429
      %v432 = vshll.u32 %v363, 16
      %v434 = vrot.slane %v432, 1
      %v435 = vsel %vm375, %v430, %v434
      %v437 = vshrl.u32 %v300, 16
      %v439 = vshll.u32 %v300, 16
      %v441 = vrot.slane %v439, 1
      %v442 = vor.u32 %v437, %v441
      %v444 = vshll.u32 %v364, 16
      %v446 = vrot.slane %v444, 1
      %v447 = vsel %vm375, %v442, %v446
      %v449 = vshrl.u32 %v301, 16
      %v451 = vshll.u32 %v301, 16
      %v453 = vrot.slane %v451, 1
      %v454 = vor.u32 %v449, %v453
      %v456 = vshll.u32 %v365, 16
      %v458 = vrot.slane %v456, 1
      %v459 = vsel %vm375, %v454, %v458
      %v461 = vshrl.u32 %v302, 16
      %v463 = vshll.u32 %v302, 16
      %v465 = vrot.slane %v463, 1
      %v466 = vor.u32 %v461, %v465
      %v468 = vshll.u32 %v366, 16
      %v470 = vrot.slane %v468, 1
      %v471 = vsel %vm375, %v466, %v470
      %v473 = vshrl.u32 %v303, 16
      %v475 = vshll.u32 %v303, 16
      %v477 = vrot.slane %v475, 1
      %v478 = vor.u32 %v473, %v477
      %v480 = vshll.u32 %v367, 16
      %v482 = vrot.slane %v480, 1
      %v483 = vsel %vm375, %v478, %v482
      %v485 = vshrl.u32 %v304, 16
      %v487 = vshll.u32 %v304, 16
      %v489 = vrot.slane %v487, 1
      %v490 = vor.u32 %v485, %v489
      %v492 = vshll.u32 %v368, 16
      %v494 = vrot.slane %v492, 1
      %v495 = vsel %vm375, %v490, %v494
      %v497 = vshrl.u32 %v305, 16
      %v499 = vshll.u32 %v305, 16
      %v501 = vrot.slane %v499, 1
      %v502 = vor.u32 %v497, %v501
      %v504 = vshll.u32 %v369, 16
      %v506 = vrot.slane %v504, 1
      %v507 = vsel %vm375, %v502, %v506
      %v509 = vshrl.u32 %v306, 16
      %v511 = vshll.u32 %v306, 16
      %v513 = vrot.slane %v511, 1
      %v514 = vor.u32 %v509, %v513
      %v516 = vshll.u32 %v370, 16
      %v518 = vrot.slane %v516, 1
      %v519 = vsel %vm375, %v514, %v518
      %v521 = vshrl.u32 %v307, 16
      %v523 = vshll.u32 %v307, 16
      %v525 = vrot.slane %v523, 1
      %v526 = vor.u32 %v521, %v525
      %v528 = vshll.u32 %v371, 16
      %v530 = vrot.slane %v528, 1
      %v531 = vsel %vm375, %v526, %v530
      %v533 = vshrl.u32 %v308, 16
      %v535 = vshll.u32 %v308, 16
      %v537 = vrot.slane %v535, 1
      %v538 = vor.u32 %v533, %v537
      %v540 = vshll.u32 %v372, 16
      %v542 = vrot.slane %v540, 1
      %v543 = vsel %vm375, %v538, %v542
      %v545 = vshrl.u32 %v309, 16
      %v547 = vshll.u32 %v309, 16
      %v549 = vrot.slane %v547, 1
      %v550 = vor.u32 %v545, %v549
      %v552 = vshll.u32 %v373, 16
      %v554 = vrot.slane %v552, 1
      %v555 = vsel %vm375, %v550, %v554
      %v557 = vshrl.u32 %v310, 16
      %v559 = vshll.u32 %v310, 16
      %v561 = vrot.slane %v559, 1
      %v562 = vor.u32 %v557, %v561
      %v564 = vshll.u32 %v374, 16
      %v566 = vrot.slane %v564, 1
      %v567 = vsel %vm375, %v562, %v566
      %vm584 = vcmask 1046528
      %v585 = vrot.slane %v295, 1
      %v586 = vrot.slane %v359, 1
      %v587 = vsel %vm584, %v585, %v586
      %v588 = vrot.slane %v296, 1
      %v589 = vrot.slane %v360, 1
      %v590 = vsel %vm584, %v588, %v589
      %v591 = vrot.slane %v297, 1
      %v592 = vrot.slane %v361, 1
      %v593 = vsel %vm584, %v591, %v592
      %v594 = vrot.slane %v298, 1
      %v595 = vrot.slane %v362, 1
      %v596 = vsel %vm584, %v594, %v595
      %v597 = vrot.slane %v299, 1
      %v598 = vrot.slane %v363, 1
      %v599 = vsel %vm584, %v597, %v598
      %v600 = vrot.slane %v300, 1
      %v601 = vrot.slane %v364, 1
      %v602 = vsel %vm584, %v600, %v601
      %v603 = vrot.slane %v301, 1
      %v604 = vrot.slane %v365, 1
      %v605 = vsel %vm584, %v603, %v604
      %v606 = vrot.slane %v302, 1
      %v607 = vrot.slane %v366, 1
      %v608 = vsel %vm584, %v606, %v607
      %v609 = vrot.slane %v303, 1
      %v610 = vrot.slane %v367, 1
      %v611 = vsel %vm584, %v609, %v610
      %v612 = vrot.slane %v304, 1
      %v613 = vrot.slane %v368, 1
      %v614 = vsel %vm584, %v612, %v613
      %v615 = vrot.slane %v305, 1
      %v616 = vrot.slane %v369, 1
      %v617 = vsel %vm584, %v615, %v616
      %v618 = vrot.slane %v306, 1
      %v619 = vrot.slane %v370, 1
      %v620 = vsel %vm584, %v618, %v619
      %v621 = vrot.slane %v307, 1
      %v622 = vrot.slane %v371, 1
      %v623 = vsel %vm584, %v621, %v622
      %v624 = vrot.slane %v308, 1
      %v625 = vrot.slane %v372, 1
      %v626 = vsel %vm584, %v624, %v625
      %v627 = vrot.slane %v309, 1
      %v628 = vrot.slane %v373, 1
      %v629 = vsel %vm584, %v627, %v628
      %v630 = vrot.slane %v310, 1
      %v631 = vrot.slane %v374, 1
      %v632 = vsel %vm584, %v630, %v631
      %v649 = vld [vmem:[%s1] sm:$0xf]
      %v650 = vld [vmem:[%s1 + $0x4] sm:$0xf]
      %v651 = vld [vmem:[%s1 + $0x8] sm:$0xf]
      %v652 = vld [vmem:[%s1 + $0xc] sm:$0xf]
      %v653 = vld [vmem:[%s1 + $0x10] sm:$0xf]
      %v654 = vld [vmem:[%s1 + $0x14] sm:$0xf]
      %v655 = vld [vmem:[%s1 + $0x18] sm:$0xf]
      %v656 = vld [vmem:[%s1 + $0x1c] sm:$0xf]
      %v657 = vld [vmem:[%s1 + $0x20] sm:$0xf]
      %v658 = vld [vmem:[%s1 + $0x24] sm:$0xf]
      %v659 = vld [vmem:[%s1 + $0x28] sm:$0xf]
      %v660 = vld [vmem:[%s1 + $0x2c] sm:$0xf]
      %v661 = vld [vmem:[%s1 + $0x30] sm:$0xf]
      %v662 = vld [vmem:[%s1 + $0x34] sm:$0xf]
      %v663 = vld [vmem:[%s1 + $0x38] sm:$0xf]
      %v664 = vld [vmem:[%s1 + $0x3c] sm:$0xf]
      %v665 = vld [vmem:[%s1 + $0x40] sm:$0xf]
      %v666 = vld [vmem:[%s1 + $0x44] sm:$0xf]
      %v667 = vld [vmem:[%s1 + $0x48] sm:$0xf]
      %v668 = vld [vmem:[%s1 + $0x4c] sm:$0xf]
      %v669 = vld [vmem:[%s1 + $0x50] sm:$0xf]
      %v670 = vld [vmem:[%s1 + $0x54] sm:$0xf]
      %v671 = vld [vmem:[%s1 + $0x58] sm:$0xf]
      %v672 = vld [vmem:[%s1 + $0x5c] sm:$0xf]
      %v673 = vld [vmem:[%s1 + $0x60] sm:$0xf]
      %v674 = vld [vmem:[%s1 + $0x64] sm:$0xf]
      %v675 = vld [vmem:[%s1 + $0x68] sm:$0xf]
      %v676 = vld [vmem:[%s1 + $0x6c] sm:$0xf]
      %v677 = vld [vmem:[%s1 + $0x70] sm:$0xf]
      %v678 = vld [vmem:[%s1 + $0x74] sm:$0xf]
      %v679 = vld [vmem:[%s1 + $0x78] sm:$0xf]
      %v680 = vld [vmem:[%s1 + $0x7c] sm:$0xf]
      %v681 = vld [vmem:[%s1 + $0x80] sm:$0xf]
      %v682 = vld [vmem:[%s1 + $0x84] sm:$0xf]
      %v683 = vld [vmem:[%s1 + $0x88] sm:$0xf]
      %v684 = vld [vmem:[%s1 + $0x8c] sm:$0xf]
      %v685 = vld [vmem:[%s1 + $0x90] sm:$0xf]
      %v686 = vld [vmem:[%s1 + $0x94] sm:$0xf]
      %v687 = vld [vmem:[%s1 + $0x98] sm:$0xf]
      %v688 = vld [vmem:[%s1 + $0x9c] sm:$0xf]
      %v689 = vld [vmem:[%s1 + $0xa0] sm:$0xf]
      %v690 = vld [vmem:[%s1 + $0xa4] sm:$0xf]
      %v691 = vld [vmem:[%s1 + $0xa8] sm:$0xf]
      %v692 = vld [vmem:[%s1 + $0xac] sm:$0xf]
      %v693 = vld [vmem:[%s1 + $0xb0] sm:$0xf]
      %v694 = vld [vmem:[%s1 + $0xb4] sm:$0xf]
      %v695 = vld [vmem:[%s1 + $0xb8] sm:$0xf]
      %v696 = vld [vmem:[%s1 + $0xbc] sm:$0xf]
      %s697 = scalar_lea.vmem %s172, 12
      %v698 = vld [vmem:[%s697] sm:$0xf]
      %v699 = vld [vmem:[%s697 + $0x4] sm:$0xf]
      %v700 = vld [vmem:[%s697 + $0x8] sm:$0x1]
      %v701 = vld [vmem:[%s697 + $0xc] sm:$0xf]
      %v702 = vld [vmem:[%s697 + $0x10] sm:$0xf]
      %v703 = vld [vmem:[%s697 + $0x14] sm:$0x1]
      %v704 = vld [vmem:[%s697 + $0x18] sm:$0xf]
      %v705 = vld [vmem:[%s697 + $0x1c] sm:$0xf]
      %v706 = vld [vmem:[%s697 + $0x20] sm:$0x1]
      %v707 = vld [vmem:[%s697 + $0x24] sm:$0xf]
      %v708 = vld [vmem:[%s697 + $0x28] sm:$0xf]
      %v709 = vld [vmem:[%s697 + $0x2c] sm:$0x1]
      %v710 = vld [vmem:[%s697 + $0x30] sm:$0xf]
      %v711 = vld [vmem:[%s697 + $0x34] sm:$0xf]
      %v712 = vld [vmem:[%s697 + $0x38] sm:$0x1]
      %v713 = vld [vmem:[%s697 + $0x3c] sm:$0xf]
      %v714 = vld [vmem:[%s697 + $0x40] sm:$0xf]
      %v715 = vld [vmem:[%s697 + $0x44] sm:$0x1]
      %v716 = vld [vmem:[%s697 + $0x48] sm:$0xf]
      %v717 = vld [vmem:[%s697 + $0x4c] sm:$0xf]
      %v718 = vld [vmem:[%s697 + $0x50] sm:$0x1]
      %v719 = vld [vmem:[%s697 + $0x54] sm:$0xf]
      %v720 = vld [vmem:[%s697 + $0x58] sm:$0xf]
      %v721 = vld [vmem:[%s697 + $0x5c] sm:$0x1]
      %v722 = vld [vmem:[%s697 + $0x60] sm:$0xf]
      %v723 = vld [vmem:[%s697 + $0x64] sm:$0xf]
      %v724 = vld [vmem:[%s697 + $0x68] sm:$0x1]
      %v725 = vld [vmem:[%s697 + $0x6c] sm:$0xf]
      %v726 = vld [vmem:[%s697 + $0x70] sm:$0xf]
      %v727 = vld [vmem:[%s697 + $0x74] sm:$0x1]
      %v728 = vld [vmem:[%s697 + $0x78] sm:$0xf]
      %v729 = vld [vmem:[%s697 + $0x7c] sm:$0xf]
      %v730 = vld [vmem:[%s697 + $0x80] sm:$0x1]
      %v731 = vld [vmem:[%s697 + $0x84] sm:$0xf]
      %v732 = vld [vmem:[%s697 + $0x88] sm:$0xf]
      %v733 = vld [vmem:[%s697 + $0x8c] sm:$0x1]
      %v734 = vld [vmem:[%s697 + $0x90] sm:$0xf]
      %v735 = vld [vmem:[%s697 + $0x94] sm:$0xf]
      %v736 = vld [vmem:[%s697 + $0x98] sm:$0x1]
      %v737 = vld [vmem:[%s697 + $0x9c] sm:$0xf]
      %v738 = vld [vmem:[%s697 + $0xa0] sm:$0xf]
      %v739 = vld [vmem:[%s697 + $0xa4] sm:$0x1]
      %v740 = vld [vmem:[%s697 + $0xa8] sm:$0xf]
      %v741 = vld [vmem:[%s697 + $0xac] sm:$0xf]
      %v742 = vld [vmem:[%s697 + $0xb0] sm:$0x1]
      %v743 = vld [vmem:[%s697 + $0xb4] sm:$0xf]
      %v744 = vld [vmem:[%s697 + $0xb8] sm:$0xf]
      %v745 = vld [vmem:[%s697 + $0xbc] sm:$0x1]
      %v778 = vunpack.c.l.b16 %v698
      %v779 = vunpack.c.l.b16 %v699
      %v780 = vunpack.c.l.b16 %v701
      %v781 = vunpack.c.l.b16 %v702
      %v782 = vunpack.c.l.b16 %v704
      %v783 = vunpack.c.l.b16 %v705
      %v784 = vunpack.c.l.b16 %v707
      %v785 = vunpack.c.l.b16 %v708
      %v786 = vunpack.c.l.b16 %v710
      %v787 = vunpack.c.l.b16 %v711
      %v788 = vunpack.c.l.b16 %v713
      %v789 = vunpack.c.l.b16 %v714
      %v790 = vunpack.c.l.b16 %v716
      %v791 = vunpack.c.l.b16 %v717
      %v792 = vunpack.c.l.b16 %v719
      %v793 = vunpack.c.l.b16 %v720
      %v794 = vunpack.c.l.b16 %v722
      %v795 = vunpack.c.l.b16 %v723
      %v796 = vunpack.c.l.b16 %v725
      %v797 = vunpack.c.l.b16 %v726
      %v798 = vunpack.c.l.b16 %v728
      %v799 = vunpack.c.l.b16 %v729
      %v800 = vunpack.c.l.b16 %v731
      %v801 = vunpack.c.l.b16 %v732
      %v802 = vunpack.c.l.b16 %v734
      %v803 = vunpack.c.l.b16 %v735
      %v804 = vunpack.c.l.b16 %v737
      %v805 = vunpack.c.l.b16 %v738
      %v806 = vunpack.c.l.b16 %v740
      %v807 = vunpack.c.l.b16 %v741
      %v808 = vunpack.c.l.b16 %v743
      %v809 = vunpack.c.l.b16 %v744
      %v810 = vpack.c.b16 %v779, %v778
      %v811 = vpack.c.b16 %v781, %v780
      %v812 = vpack.c.b16 %v783, %v782
      %v813 = vpack.c.b16 %v785, %v784
      %v814 = vpack.c.b16 %v787, %v786
      %v815 = vpack.c.b16 %v789, %v788
      %v816 = vpack.c.b16 %v791, %v790
      %v817 = vpack.c.b16 %v793, %v792
      %v818 = vpack.c.b16 %v795, %v794
      %v819 = vpack.c.b16 %v797, %v796
      %v820 = vpack.c.b16 %v799, %v798
      %v821 = vpack.c.b16 %v801, %v800
      %v822 = vpack.c.b16 %v803, %v802
      %v823 = vpack.c.b16 %v805, %v804
      %v824 = vpack.c.b16 %v807, %v806
      %v825 = vpack.c.b16 %v809, %v808
      %v858 = vunpack.c.l.b16 %v700
      %v859 = vunpack.c.l.b16 %v703
      %v860 = vunpack.c.l.b16 %v706
      %v861 = vunpack.c.l.b16 %v709
      %v862 = vunpack.c.l.b16 %v712
      %v863 = vunpack.c.l.b16 %v715
      %v864 = vunpack.c.l.b16 %v718
      %v865 = vunpack.c.l.b16 %v721
      %v866 = vunpack.c.l.b16 %v724
      %v867 = vunpack.c.l.b16 %v727
      %v868 = vunpack.c.l.b16 %v730
      %v869 = vunpack.c.l.b16 %v733
      %v870 = vunpack.c.l.b16 %v736
      %v871 = vunpack.c.l.b16 %v739
      %v872 = vunpack.c.l.b16 %v742
      %v873 = vunpack.c.l.b16 %v745
      %v874 = vpack.c.b16 %v858, %v858
      %v875 = vpack.c.b16 %v859, %v859
      %v876 = vpack.c.b16 %v860, %v860
      %v877 = vpack.c.b16 %v861, %v861
      %v878 = vpack.c.b16 %v862, %v862
      %v879 = vpack.c.b16 %v863, %v863
      %v880 = vpack.c.b16 %v864, %v864
      %v881 = vpack.c.b16 %v865, %v865
      %v882 = vpack.c.b16 %v866, %v866
      %v883 = vpack.c.b16 %v867, %v867
      %v884 = vpack.c.b16 %v868, %v868
      %v885 = vpack.c.b16 %v869, %v869
      %v886 = vpack.c.b16 %v870, %v870
      %v887 = vpack.c.b16 %v871, %v871
      %v888 = vpack.c.b16 %v872, %v872
      %v889 = vpack.c.b16 %v873, %v873
      %v891 = vshrl.u32 %v810, 16
      %v893 = vshll.u32 %v810, 16
      %v895 = vrot.slane %v893, 1
      %v896 = vor.u32 %v891, %v895
      %v898 = vshll.u32 %v874, 16
      %v900 = vrot.slane %v898, 1
      %v901 = vsel %vm375, %v896, %v900
      %v903 = vshrl.u32 %v811, 16
      %v905 = vshll.u32 %v811, 16
      %v907 = vrot.slane %v905, 1
      %v908 = vor.u32 %v903, %v907
      %v910 = vshll.u32 %v875, 16
      %v912 = vrot.slane %v910, 1
      %v913 = vsel %vm375, %v908, %v912
      %v915 = vshrl.u32 %v812, 16
      %v917 = vshll.u32 %v812, 16
      %v919 = vrot.slane %v917, 1
      %v920 = vor.u32 %v915, %v919
      %v922 = vshll.u32 %v876, 16
      %v924 = vrot.slane %v922, 1
      %v925 = vsel %vm375, %v920, %v924
      %v927 = vshrl.u32 %v813, 16
      %v929 = vshll.u32 %v813, 16
      %v931 = vrot.slane %v929, 1
      %v932 = vor.u32 %v927, %v931
      %v934 = vshll.u32 %v877, 16
      %v936 = vrot.slane %v934, 1
      %v937 = vsel %vm375, %v932, %v936
      %v939 = vshrl.u32 %v814, 16
      %v941 = vshll.u32 %v814, 16
      %v943 = vrot.slane %v941, 1
      %v944 = vor.u32 %v939, %v943
      %v946 = vshll.u32 %v878, 16
      %v948 = vrot.slane %v946, 1
      %v949 = vsel %vm375, %v944, %v948
      %v951 = vshrl.u32 %v815, 16
      %v953 = vshll.u32 %v815, 16
      %v955 = vrot.slane %v953, 1
      %v956 = vor.u32 %v951, %v955
      %v958 = vshll.u32 %v879, 16
      %v960 = vrot.slane %v958, 1
      %v961 = vsel %vm375, %v956, %v960
      %v963 = vshrl.u32 %v816, 16
      %v965 = vshll.u32 %v816, 16
      %v967 = vrot.slane %v965, 1
      %v968 = vor.u32 %v963, %v967
      %v970 = vshll.u32 %v880, 16
      %v972 = vrot.slane %v970, 1
      %v973 = vsel %vm375, %v968, %v972
      %v975 = vshrl.u32 %v817, 16
      %v977 = vshll.u32 %v817, 16
      %v979 = vrot.slane %v977, 1
      %v980 = vor.u32 %v975, %v979
      %v982 = vshll.u32 %v881, 16
      %v984 = vrot.slane %v982, 1
      %v985 = vsel %vm375, %v980, %v984
      %v987 = vshrl.u32 %v818, 16
      %v989 = vshll.u32 %v818, 16
      %v991 = vrot.slane %v989, 1
      %v992 = vor.u32 %v987, %v991
      %v994 = vshll.u32 %v882, 16
      %v996 = vrot.slane %v994, 1
      %v997 = vsel %vm375, %v992, %v996
      %v999 = vshrl.u32 %v819, 16
      %v1001 = vshll.u32 %v819, 16
      %v1003 = vrot.slane %v1001, 1
      %v1004 = vor.u32 %v999, %v1003
      %v1006 = vshll.u32 %v883, 16
      %v1008 = vrot.slane %v1006, 1
      %v1009 = vsel %vm375, %v1004, %v1008
      %v1011 = vshrl.u32 %v820, 16
      %v1013 = vshll.u32 %v820, 16
      %v1015 = vrot.slane %v1013, 1
      %v1016 = vor.u32 %v1011, %v1015
      %v1018 = vshll.u32 %v884, 16
      %v1020 = vrot.slane %v1018, 1
      %v1021 = vsel %vm375, %v1016, %v1020
      %v1023 = vshrl.u32 %v821, 16
      %v1025 = vshll.u32 %v821, 16
      %v1027 = vrot.slane %v1025, 1
      %v1028 = vor.u32 %v1023, %v1027
      %v1030 = vshll.u32 %v885, 16
      %v1032 = vrot.slane %v1030, 1
      %v1033 = vsel %vm375, %v1028, %v1032
      %v1035 = vshrl.u32 %v822, 16
      %v1037 = vshll.u32 %v822, 16
      %v1039 = vrot.slane %v1037, 1
      %v1040 = vor.u32 %v1035, %v1039
      %v1042 = vshll.u32 %v886, 16
      %v1044 = vrot.slane %v1042, 1
      %v1045 = vsel %vm375, %v1040, %v1044
      %v1047 = vshrl.u32 %v823, 16
      %v1049 = vshll.u32 %v823, 16
      %v1051 = vrot.slane %v1049, 1
      %v1052 = vor.u32 %v1047, %v1051
      %v1054 = vshll.u32 %v887, 16
      %v1056 = vrot.slane %v1054, 1
      %v1057 = vsel %vm375, %v1052, %v1056
      %v1059 = vshrl.u32 %v824, 16
      %v1061 = vshll.u32 %v824, 16
      %v1063 = vrot.slane %v1061, 1
      %v1064 = vor.u32 %v1059, %v1063
      %v1066 = vshll.u32 %v888, 16
      %v1068 = vrot.slane %v1066, 1
      %v1069 = vsel %vm375, %v1064, %v1068
      %v1071 = vshrl.u32 %v825, 16
      %v1073 = vshll.u32 %v825, 16
      %v1075 = vrot.slane %v1073, 1
      %v1076 = vor.u32 %v1071, %v1075
      %v1078 = vshll.u32 %v889, 16
      %v1080 = vrot.slane %v1078, 1
      %v1081 = vsel %vm375, %v1076, %v1080
      %v1098 = vrot.slane %v810, 1
      %v1099 = vrot.slane %v874, 1
      %v1100 = vsel %vm584, %v1098, %v1099
      %v1101 = vrot.slane %v811, 1
      %v1102 = vrot.slane %v875, 1
      %v1103 = vsel %vm584, %v1101, %v1102
      %v1104 = vrot.slane %v812, 1
      %v1105 = vrot.slane %v876, 1
      %v1106 = vsel %vm584, %v1104, %v1105
      %v1107 = vrot.slane %v813, 1
      %v1108 = vrot.slane %v877, 1
      %v1109 = vsel %vm584, %v1107, %v1108
      %v1110 = vrot.slane %v814, 1
      %v1111 = vrot.slane %v878, 1
      %v1112 = vsel %vm584, %v1110, %v1111
      %v1113 = vrot.slane %v815, 1
      %v1114 = vrot.slane %v879, 1
      %v1115 = vsel %vm584, %v1113, %v1114
      %v1116 = vrot.slane %v816, 1
      %v1117 = vrot.slane %v880, 1
      %v1118 = vsel %vm584, %v1116, %v1117
      %v1119 = vrot.slane %v817, 1
      %v1120 = vrot.slane %v881, 1
      %v1121 = vsel %vm584, %v1119, %v1120
      %v1122 = vrot.slane %v818, 1
      %v1123 = vrot.slane %v882, 1
      %v1124 = vsel %vm584, %v1122, %v1123
      %v1125 = vrot.slane %v819, 1
      %v1126 = vrot.slane %v883, 1
      %v1127 = vsel %vm584, %v1125, %v1126
      %v1128 = vrot.slane %v820, 1
      %v1129 = vrot.slane %v884, 1
      %v1130 = vsel %vm584, %v1128, %v1129
      %v1131 = vrot.slane %v821, 1
      %v1132 = vrot.slane %v885, 1
      %v1133 = vsel %vm584, %v1131, %v1132
      %v1134 = vrot.slane %v822, 1
      %v1135 = vrot.slane %v886, 1
      %v1136 = vsel %vm584, %v1134, %v1135
      %v1137 = vrot.slane %v823, 1
      %v1138 = vrot.slane %v887, 1
      %v1139 = vsel %vm584, %v1137, %v1138
      %v1140 = vrot.slane %v824, 1
      %v1141 = vrot.slane %v888, 1
      %v1142 = vsel %vm584, %v1140, %v1141
      %v1143 = vrot.slane %v825, 1
      %v1144 = vrot.slane %v889, 1
      %v1145 = vsel %vm584, %v1143, %v1144
      %s1162 = scalar_lea.vmem %s1, 192
      %v1163 = vld [vmem:[%s1162] sm:$0xf]
      %v1164 = vld [vmem:[%s1162 + $0x4] sm:$0xf]
      %v1165 = vld [vmem:[%s1162 + $0x8] sm:$0xf]
      %v1166 = vld [vmem:[%s1162 + $0xc] sm:$0xf]
      %v1167 = vld [vmem:[%s1162 + $0x10] sm:$0xf]
      %v1168 = vld [vmem:[%s1162 + $0x14] sm:$0xf]
      %v1169 = vld [vmem:[%s1162 + $0x18] sm:$0xf]
      %v1170 = vld [vmem:[%s1162 + $0x1c] sm:$0xf]
      %v1171 = vld [vmem:[%s1162 + $0x20] sm:$0xf]
      %v1172 = vld [vmem:[%s1162 + $0x24] sm:$0xf]
      %v1173 = vld [vmem:[%s1162 + $0x28] sm:$0xf]
      %v1174 = vld [vmem:[%s1162 + $0x2c] sm:$0xf]
      %v1175 = vld [vmem:[%s1162 + $0x30] sm:$0xf]
      %v1176 = vld [vmem:[%s1162 + $0x34] sm:$0xf]
      %v1177 = vld [vmem:[%s1162 + $0x38] sm:$0xf]
      %v1178 = vld [vmem:[%s1162 + $0x3c] sm:$0xf]
      %v1179 = vld [vmem:[%s1162 + $0x40] sm:$0xf]
      %v1180 = vld [vmem:[%s1162 + $0x44] sm:$0xf]
      %v1181 = vld [vmem:[%s1162 + $0x48] sm:$0xf]
      %v1182 = vld [vmem:[%s1162 + $0x4c] sm:$0xf]
      %v1183 = vld [vmem:[%s1162 + $0x50] sm:$0xf]
      %v1184 = vld [vmem:[%s1162 + $0x54] sm:$0xf]
      %v1185 = vld [vmem:[%s1162 + $0x58] sm:$0xf]
      %v1186 = vld [vmem:[%s1162 + $0x5c] sm:$0xf]
      %v1187 = vld [vmem:[%s1162 + $0x60] sm:$0xf]
      %v1188 = vld [vmem:[%s1162 + $0x64] sm:$0xf]
      %v1189 = vld [vmem:[%s1162 + $0x68] sm:$0xf]
      %v1190 = vld [vmem:[%s1162 + $0x6c] sm:$0xf]
      %v1191 = vld [vmem:[%s1162 + $0x70] sm:$0xf]
      %v1192 = vld [vmem:[%s1162 + $0x74] sm:$0xf]
      %v1193 = vld [vmem:[%s1162 + $0x78] sm:$0xf]
      %v1194 = vld [vmem:[%s1162 + $0x7c] sm:$0xf]
      %v1195 = vld [vmem:[%s1162 + $0x80] sm:$0xf]
      %v1196 = vld [vmem:[%s1162 + $0x84] sm:$0xf]
      %v1197 = vld [vmem:[%s1162 + $0x88] sm:$0xf]
      %v1198 = vld [vmem:[%s1162 + $0x8c] sm:$0xf]
      %v1199 = vld [vmem:[%s1162 + $0x90] sm:$0xf]
      %v1200 = vld [vmem:[%s1162 + $0x94] sm:$0xf]
      %v1201 = vld [vmem:[%s1162 + $0x98] sm:$0xf]
      %v1202 = vld [vmem:[%s1162 + $0x9c] sm:$0xf]
      %v1203 = vld [vmem:[%s1162 + $0xa0] sm:$0xf]
      %v1204 = vld [vmem:[%s1162 + $0xa4] sm:$0xf]
      %v1205 = vld [vmem:[%s1162 + $0xa8] sm:$0xf]
      %v1206 = vld [vmem:[%s1162 + $0xac] sm:$0xf]
      %v1207 = vld [vmem:[%s1162 + $0xb0] sm:$0xf]
      %v1208 = vld [vmem:[%s1162 + $0xb4] sm:$0xf]
      %v1209 = vld [vmem:[%s1162 + $0xb8] sm:$0xf]
      %v1210 = vld [vmem:[%s1162 + $0xbc] sm:$0xf]
      %v1259 = vunpack.c.l.b16 %v1163
      %v1260 = vunpack.c.l.b16 %v1164
      %v1261 = vunpack.c.l.b16 %v1165
      %v1262 = vunpack.c.l.b16 %v1166
      %v1263 = vunpack.c.l.b16 %v1167
      %v1264 = vunpack.c.l.b16 %v1168
      %v1265 = vunpack.c.l.b16 %v1169
      %v1266 = vunpack.c.l.b16 %v1170
      %v1267 = vunpack.c.l.b16 %v1171
      %v1268 = vunpack.c.l.b16 %v1172
      %v1269 = vunpack.c.l.b16 %v1173
      %v1270 = vunpack.c.l.b16 %v1174
      %v1271 = vunpack.c.l.b16 %v1175
      %v1272 = vunpack.c.l.b16 %v1176
      %v1273 = vunpack.c.l.b16 %v1177
      %v1274 = vunpack.c.l.b16 %v1178
      %v1275 = vunpack.c.l.b16 %v1179
      %v1276 = vunpack.c.l.b16 %v1180
      %v1277 = vunpack.c.l.b16 %v1181
      %v1278 = vunpack.c.l.b16 %v1182
      %v1279 = vunpack.c.l.b16 %v1183
      %v1280 = vunpack.c.l.b16 %v1184
      %v1281 = vunpack.c.l.b16 %v1185
      %v1282 = vunpack.c.l.b16 %v1186
      %v1283 = vunpack.c.l.b16 %v1187
      %v1284 = vunpack.c.l.b16 %v1188
      %v1285 = vunpack.c.l.b16 %v1189
      %v1286 = vunpack.c.l.b16 %v1190
      %v1287 = vunpack.c.l.b16 %v1191
      %v1288 = vunpack.c.l.b16 %v1192
      %v1289 = vunpack.c.l.b16 %v1193
      %v1290 = vunpack.c.l.b16 %v1194
      %v1291 = vunpack.c.l.b16 %v1195
      %v1292 = vunpack.c.l.b16 %v1196
      %v1293 = vunpack.c.l.b16 %v1197
      %v1294 = vunpack.c.l.b16 %v1198
      %v1295 = vunpack.c.l.b16 %v1199
      %v1296 = vunpack.c.l.b16 %v1200
      %v1297 = vunpack.c.l.b16 %v1201
      %v1298 = vunpack.c.l.b16 %v1202
      %v1299 = vunpack.c.l.b16 %v1203
      %v1300 = vunpack.c.l.b16 %v1204
      %v1301 = vunpack.c.l.b16 %v1205
      %v1302 = vunpack.c.l.b16 %v1206
      %v1303 = vunpack.c.l.b16 %v1207
      %v1304 = vunpack.c.l.b16 %v1208
      %v1305 = vunpack.c.l.b16 %v1209
      %v1306 = vunpack.c.l.b16 %v1210
      %v1307 = vpack.c.b16 %v1260, %v1259
      %v1308 = vpack.c.b16 %v1262, %v1261
      %v1309 = vpack.c.b16 %v1264, %v1263
      %v1310 = vpack.c.b16 %v1266, %v1265
      %v1311 = vpack.c.b16 %v1268, %v1267
      %v1312 = vpack.c.b16 %v1270, %v1269
      %v1313 = vpack.c.b16 %v1272, %v1271
      %v1314 = vpack.c.b16 %v1274, %v1273
      %v1315 = vpack.c.b16 %v1276, %v1275
      %v1316 = vpack.c.b16 %v1278, %v1277
      %v1317 = vpack.c.b16 %v1280, %v1279
      %v1318 = vpack.c.b16 %v1282, %v1281
      %v1319 = vpack.c.b16 %v1284, %v1283
      %v1320 = vpack.c.b16 %v1286, %v1285
      %v1321 = vpack.c.b16 %v1288, %v1287
      %v1322 = vpack.c.b16 %v1290, %v1289
      %v1323 = vpack.c.b16 %v1292, %v1291
      %v1324 = vpack.c.b16 %v1294, %v1293
      %v1325 = vpack.c.b16 %v1296, %v1295
      %v1326 = vpack.c.b16 %v1298, %v1297
      %v1327 = vpack.c.b16 %v1300, %v1299
      %v1328 = vpack.c.b16 %v1302, %v1301
      %v1329 = vpack.c.b16 %v1304, %v1303
      %v1330 = vpack.c.b16 %v1306, %v1305
      %1355 = vmatprep.subr.bf16.mxu0 0
      %1356 = vmatpush1.bf16.msra.mxu0 %v1314
      %1357 = vmatprep.subr.bf16.mxu0 0
      %1358 = vmatpush1.bf16.msra.mxu0 %v1313
      %1359 = vmatprep.subr.bf16.mxu0 0
      %1360 = vmatpush1.bf16.msra.mxu0 %v1312
      %1361 = vmatprep.subr.bf16.mxu0 0
      %1362 = vmatpush1.bf16.msra.mxu0 %v1311
      %1363 = vmatprep.subr.bf16.mxu0 0
      %1364 = vmatpush1.bf16.msra.mxu0 %v1310
      %1365 = vmatprep.subr.bf16.mxu0 0
      %1366 = vmatpush1.bf16.msra.mxu0 %v1309
      %1367 = vmatprep.subr.bf16.mxu0 0
      %1368 = vmatpush1.bf16.msra.mxu0 %v1308
      %1369 = vmatprep.subr.bf16.mxu0 0
      %1370 = vmatpush1.bf16.msra.mxu0 %v1307
      %1371 = vmatprep.subr.bf16.mxu0 0
      %1372 = vmatpush2.bf16.msra.mxu0 %v1322
      %1373 = vmatprep.subr.bf16.mxu0 0
      %1374 = vmatpush2.bf16.msra.mxu0 %v1321
      %1375 = vmatprep.subr.bf16.mxu0 0
      %1376 = vmatpush2.bf16.msra.mxu0 %v1320
      %1377 = vmatprep.subr.bf16.mxu0 0
      %1378 = vmatpush2.bf16.msra.mxu0 %v1319
      %1379 = vmatprep.subr.bf16.mxu0 0
      %1380 = vmatpush2.bf16.msra.mxu0 %v1318
      %1381 = vmatprep.subr.bf16.mxu0 0
      %1382 = vmatpush2.bf16.msra.mxu0 %v1317
      %1383 = vmatprep.subr.bf16.mxu0 0
      %1384 = vmatpush2.bf16.msra.mxu0 %v1316
      %1385 = vmatprep.subr.bf16.mxu0 0
      %1386 = vmatpush2.bf16.msra.mxu0 %v1315
      %1387 = vmatprep.mubr.bf16.mxu0 %v901
      %1388 = vmatmul.mubr.bf16.gmra.mxu0 %v810
      %v1389 = vpop.f32.mrf.mxu0
      %v1390 = vadd.f32 0.0, %v1389
      %v1391 = vpop.f32.mrf.mxu0
      %v1392 = vpop.f32.mrf.mxu0
      %v1393 = vadd.f32 0.0, %v1392
      %v1394 = vpop.f32.mrf.mxu0
      %1395 = vmatprep.mubr.bf16.mxu0 %v913
      %1396 = vmatmul.mubr.bf16.gmra.mxu0 %v811
      %v1397 = vpop.f32.mrf.mxu0
      %v1398 = vadd.f32 0.0, %v1397
      %v1399 = vpop.f32.mrf.mxu0
      %v1400 = vpop.f32.mrf.mxu0
      %v1401 = vadd.f32 0.0, %v1400
      %v1402 = vpop.f32.mrf.mxu0
      %1403 = vmatprep.mubr.bf16.mxu0 %v925
      %1404 = vmatmul.mubr.bf16.gmra.mxu0 %v812
      %v1405 = vpop.f32.mrf.mxu0
      %v1406 = vadd.f32 0.0, %v1405
      %v1407 = vpop.f32.mrf.mxu0
      %v1408 = vpop.f32.mrf.mxu0
      %v1409 = vadd.f32 0.0, %v1408
      %v1410 = vpop.f32.mrf.mxu0
      %1411 = vmatprep.mubr.bf16.mxu0 %v937
      %1412 = vmatmul.mubr.bf16.gmra.mxu0 %v813
      %v1413 = vpop.f32.mrf.mxu0
      %v1414 = vadd.f32 0.0, %v1413
      %v1415 = vpop.f32.mrf.mxu0
      %v1416 = vpop.f32.mrf.mxu0
      %v1417 = vadd.f32 0.0, %v1416
      %v1418 = vpop.f32.mrf.mxu0
      %1419 = vmatprep.mubr.bf16.mxu0 %v949
      %1420 = vmatmul.mubr.bf16.gmra.mxu0 %v814
      %v1421 = vpop.f32.mrf.mxu0
      %v1422 = vadd.f32 0.0, %v1421
      %v1423 = vpop.f32.mrf.mxu0
      %v1424 = vpop.f32.mrf.mxu0
      %v1425 = vadd.f32 0.0, %v1424
      %v1426 = vpop.f32.mrf.mxu0
      %1427 = vmatprep.mubr.bf16.mxu0 %v961
      %1428 = vmatmul.mubr.bf16.gmra.mxu0 %v815
      %v1429 = vpop.f32.mrf.mxu0
      %v1430 = vadd.f32 0.0, %v1429
      %v1431 = vpop.f32.mrf.mxu0
      %v1432 = vpop.f32.mrf.mxu0
      %v1433 = vadd.f32 0.0, %v1432
      %v1434 = vpop.f32.mrf.mxu0
      %1435 = vmatprep.mubr.bf16.mxu0 %v973
      %1436 = vmatmul.mubr.bf16.gmra.mxu0 %v816
      %v1437 = vpop.f32.mrf.mxu0
      %v1438 = vadd.f32 0.0, %v1437
      %v1439 = vpop.f32.mrf.mxu0
      %v1440 = vpop.f32.mrf.mxu0
      %v1441 = vadd.f32 0.0, %v1440
      %v1442 = vpop.f32.mrf.mxu0
      %1443 = vmatprep.mubr.bf16.mxu0 %v985
      %1444 = vmatmul.mubr.bf16.gmra.mxu0 %v817
      %v1445 = vpop.f32.mrf.mxu0
      %v1446 = vadd.f32 0.0, %v1445
      %v1447 = vpop.f32.mrf.mxu0
      %v1448 = vpop.f32.mrf.mxu0
      %v1449 = vadd.f32 0.0, %v1448
      %v1450 = vpop.f32.mrf.mxu0
      %1451 = vmatprep.mubr.bf16.mxu0 %v997
      %1452 = vmatmul.mubr.bf16.gmra.mxu0 %v818
      %v1453 = vpop.f32.mrf.mxu0
      %v1454 = vadd.f32 0.0, %v1453
      %v1455 = vpop.f32.mrf.mxu0
      %v1456 = vpop.f32.mrf.mxu0
      %v1457 = vadd.f32 0.0, %v1456
      %v1458 = vpop.f32.mrf.mxu0
      %1459 = vmatprep.mubr.bf16.mxu0 %v1009
      %1460 = vmatmul.mubr.bf16.gmra.mxu0 %v819
      %v1461 = vpop.f32.mrf.mxu0
      %v1462 = vadd.f32 0.0, %v1461
      %v1463 = vpop.f32.mrf.mxu0
      %v1464 = vpop.f32.mrf.mxu0
      %v1465 = vadd.f32 0.0, %v1464
      %v1466 = vpop.f32.mrf.mxu0
      %1467 = vmatprep.mubr.bf16.mxu0 %v1021
      %1468 = vmatmul.mubr.bf16.gmra.mxu0 %v820
      %v1469 = vpop.f32.mrf.mxu0
      %v1470 = vadd.f32 0.0, %v1469
      %v1471 = vpop.f32.mrf.mxu0
      %v1472 = vpop.f32.mrf.mxu0
      %v1473 = vadd.f32 0.0, %v1472
      %v1474 = vpop.f32.mrf.mxu0
      %1475 = vmatprep.mubr.bf16.mxu0 %v1033
      %1476 = vmatmul.mubr.bf16.gmra.mxu0 %v821
      %v1477 = vpop.f32.mrf.mxu0
      %v1478 = vadd.f32 0.0, %v1477
      %v1479 = vpop.f32.mrf.mxu0
      %v1480 = vpop.f32.mrf.mxu0
      %v1481 = vadd.f32 0.0, %v1480
      %v1482 = vpop.f32.mrf.mxu0
      %1483 = vmatprep.mubr.bf16.mxu0 %v1045
      %1484 = vmatmul.mubr.bf16.gmra.mxu0 %v822
      %v1485 = vpop.f32.mrf.mxu0
      %v1486 = vadd.f32 0.0, %v1485
      %v1487 = vpop.f32.mrf.mxu0
      %v1488 = vpop.f32.mrf.mxu0
      %v1489 = vadd.f32 0.0, %v1488
      %v1490 = vpop.f32.mrf.mxu0
      %1491 = vmatprep.mubr.bf16.mxu0 %v1057
      %1492 = vmatmul.mubr.bf16.gmra.mxu0 %v823
      %v1493 = vpop.f32.mrf.mxu0
      %v1494 = vadd.f32 0.0, %v1493
      %v1495 = vpop.f32.mrf.mxu0
      %v1496 = vpop.f32.mrf.mxu0
      %v1497 = vadd.f32 0.0, %v1496
      %v1498 = vpop.f32.mrf.mxu0
      %1499 = vmatprep.mubr.bf16.mxu0 %v1069
      %1500 = vmatmul.mubr.bf16.gmra.mxu0 %v824
      %v1501 = vpop.f32.mrf.mxu0
      %v1502 = vadd.f32 0.0, %v1501
      %v1503 = vpop.f32.mrf.mxu0
      %v1504 = vpop.f32.mrf.mxu0
      %v1505 = vadd.f32 0.0, %v1504
      %v1506 = vpop.f32.mrf.mxu0
      %1507 = vmatprep.mubr.bf16.mxu0 %v1081
      %1508 = vmatmul.mubr.bf16.gmra.mxu0 %v825
      %v1509 = vpop.f32.mrf.mxu0
      %v1510 = vadd.f32 0.0, %v1509
      %v1511 = vpop.f32.mrf.mxu0
      %v1512 = vpop.f32.mrf.mxu0
      %v1513 = vadd.f32 0.0, %v1512
      %v1514 = vpop.f32.mrf.mxu0
      %1515 = vdwg.mxu0
      %1516 = vmatprep.subr.bf16.mxu0 0
      %1517 = vmatpush1.bf16.msra.mxu0 %v1330
      %1518 = vmatprep.subr.bf16.mxu0 0
      %1519 = vmatpush1.bf16.msra.mxu0 %v1329
      %1520 = vmatprep.subr.bf16.mxu0 0
      %1521 = vmatpush1.bf16.msra.mxu0 %v1328
      %1522 = vmatprep.subr.bf16.mxu0 0
      %1523 = vmatpush1.bf16.msra.mxu0 %v1327
      %1524 = vmatprep.subr.bf16.mxu0 0
      %1525 = vmatpush1.bf16.msra.mxu0 %v1326
      %1526 = vmatprep.subr.bf16.mxu0 0
      %1527 = vmatpush1.bf16.msra.mxu0 %v1325
      %1528 = vmatprep.subr.bf16.mxu0 0
      %1529 = vmatpush1.bf16.msra.mxu0 %v1324
      %1530 = vmatprep.subr.bf16.mxu0 0
      %1531 = vmatpush1.bf16.msra.mxu0 %v1323
      %1532 = vmatprep.subr.bf16.mxu0 0
      %1533 = vmatpush2.bf16.msra.mxu0 0
      %1534 = vmatprep.subr.bf16.mxu0 0
      %1535 = vmatpush2.bf16.msra.mxu0 0
      %1536 = vmatprep.subr.bf16.mxu0 0
      %1537 = vmatpush2.bf16.msra.mxu0 0
      %1538 = vmatprep.subr.bf16.mxu0 0
      %1539 = vmatpush2.bf16.msra.mxu0 0
      %1540 = vmatprep.subr.bf16.mxu0 0
      %1541 = vmatpush2.bf16.msra.mxu0 0
      %1542 = vmatprep.subr.bf16.mxu0 0
      %1543 = vmatpush2.bf16.msra.mxu0 0
      %1544 = vmatprep.subr.bf16.mxu0 0
      %1545 = vmatpush2.bf16.msra.mxu0 0
      %1546 = vmatprep.subr.bf16.mxu0 0
      %1547 = vmatpush2.bf16.msra.mxu0 0
      %1548 = vmatprep.mubr.bf16.mxu0 0
      %1549 = vmatmul.mubr.bf16.gmra.mxu0 %v1100
      %v1550 = vpop.f32.mrf.mxu0
      %v1551 = vadd.f32 %v1390, %v1550
      %v1552 = vpop.f32.mrf.mxu0
      %v1553 = vpop.f32.mrf.mxu0
      %v1554 = vadd.f32 %v1393, %v1553
      %v1555 = vpop.f32.mrf.mxu0
      %1556 = vmatprep.mubr.bf16.mxu0 0
      %1557 = vmatmul.mubr.bf16.gmra.mxu0 %v1103
      %v1558 = vpop.f32.mrf.mxu0
      %v1559 = vadd.f32 %v1398, %v1558
      %v1560 = vpop.f32.mrf.mxu0
      %v1561 = vpop.f32.mrf.mxu0
      %v1562 = vadd.f32 %v1401, %v1561
      %v1563 = vpop.f32.mrf.mxu0
      %1564 = vmatprep.mubr.bf16.mxu0 0
      %1565 = vmatmul.mubr.bf16.gmra.mxu0 %v1106
      %v1566 = vpop.f32.mrf.mxu0
      %v1567 = vadd.f32 %v1406, %v1566
      %v1568 = vpop.f32.mrf.mxu0
      %v1569 = vpop.f32.mrf.mxu0
      %v1570 = vadd.f32 %v1409, %v1569
      %v1571 = vpop.f32.mrf.mxu0
      %1572 = vmatprep.mubr.bf16.mxu0 0
      %1573 = vmatmul.mubr.bf16.gmra.mxu0 %v1109
      %v1574 = vpop.f32.mrf.mxu0
      %v1575 = vadd.f32 %v1414, %v1574
      %v1576 = vpop.f32.mrf.mxu0
      %v1577 = vpop.f32.mrf.mxu0
      %v1578 = vadd.f32 %v1417, %v1577
      %v1579 = vpop.f32.mrf.mxu0
      %1580 = vmatprep.mubr.bf16.mxu0 0
      %1581 = vmatmul.mubr.bf16.gmra.mxu0 %v1112
      %v1582 = vpop.f32.mrf.mxu0
      %v1583 = vadd.f32 %v1422, %v1582
      %v1584 = vpop.f32.mrf.mxu0
      %v1585 = vpop.f32.mrf.mxu0
      %v1586 = vadd.f32 %v1425, %v1585
      %v1587 = vpop.f32.mrf.mxu0
      %1588 = vmatprep.mubr.bf16.mxu0 0
      %1589 = vmatmul.mubr.bf16.gmra.mxu0 %v1115
      %v1590 = vpop.f32.mrf.mxu0
      %v1591 = vadd.f32 %v1430, %v1590
      %v1592 = vpop.f32.mrf.mxu0
      %v1593 = vpop.f32.mrf.mxu0
      %v1594 = vadd.f32 %v1433, %v1593
      %v1595 = vpop.f32.mrf.mxu0
      %1596 = vmatprep.mubr.bf16.mxu0 0
      %1597 = vmatmul.mubr.bf16.gmra.mxu0 %v1118
      %v1598 = vpop.f32.mrf.mxu0
      %v1599 = vadd.f32 %v1438, %v1598
      %v1600 = vpop.f32.mrf.mxu0
      %v1601 = vpop.f32.mrf.mxu0
      %v1602 = vadd.f32 %v1441, %v1601
      %v1603 = vpop.f32.mrf.mxu0
      %1604 = vmatprep.mubr.bf16.mxu0 0
      %1605 = vmatmul.mubr.bf16.gmra.mxu0 %v1121
      %v1606 = vpop.f32.mrf.mxu0
      %v1607 = vadd.f32 %v1446, %v1606
      %v1608 = vpop.f32.mrf.mxu0
      %v1609 = vpop.f32.mrf.mxu0
      %v1610 = vadd.f32 %v1449, %v1609
      %v1611 = vpop.f32.mrf.mxu0
      %1612 = vmatprep.mubr.bf16.mxu0 0
      %1613 = vmatmul.mubr.bf16.gmra.mxu0 %v1124
      %v1614 = vpop.f32.mrf.mxu0
      %v1615 = vadd.f32 %v1454, %v1614
      %v1616 = vpop.f32.mrf.mxu0
      %v1617 = vpop.f32.mrf.mxu0
      %v1618 = vadd.f32 %v1457, %v1617
      %v1619 = vpop.f32.mrf.mxu0
      %1620 = vmatprep.mubr.bf16.mxu0 0
      %1621 = vmatmul.mubr.bf16.gmra.mxu0 %v1127
      %v1622 = vpop.f32.mrf.mxu0
      %v1623 = vadd.f32 %v1462, %v1622
      %v1624 = vpop.f32.mrf.mxu0
      %v1625 = vpop.f32.mrf.mxu0
      %v1626 = vadd.f32 %v1465, %v1625
      %v1627 = vpop.f32.mrf.mxu0
      %1628 = vmatprep.mubr.bf16.mxu0 0
      %1629 = vmatmul.mubr.bf16.gmra.mxu0 %v1130
      %v1630 = vpop.f32.mrf.mxu0
      %v1631 = vadd.f32 %v1470, %v1630
      %v1632 = vpop.f32.mrf.mxu0
      %v1633 = vpop.f32.mrf.mxu0
      %v1634 = vadd.f32 %v1473, %v1633
      %v1635 = vpop.f32.mrf.mxu0
      %1636 = vmatprep.mubr.bf16.mxu0 0
      %1637 = vmatmul.mubr.bf16.gmra.mxu0 %v1133
      %v1638 = vpop.f32.mrf.mxu0
      %v1639 = vadd.f32 %v1478, %v1638
      %v1640 = vpop.f32.mrf.mxu0
      %v1641 = vpop.f32.mrf.mxu0
      %v1642 = vadd.f32 %v1481, %v1641
      %v1643 = vpop.f32.mrf.mxu0
      %1644 = vmatprep.mubr.bf16.mxu0 0
      %1645 = vmatmul.mubr.bf16.gmra.mxu0 %v1136
      %v1646 = vpop.f32.mrf.mxu0
      %v1647 = vadd.f32 %v1486, %v1646
      %v1648 = vpop.f32.mrf.mxu0
      %v1649 = vpop.f32.mrf.mxu0
      %v1650 = vadd.f32 %v1489, %v1649
      %v1651 = vpop.f32.mrf.mxu0
      %1652 = vmatprep.mubr.bf16.mxu0 0
      %1653 = vmatmul.mubr.bf16.gmra.mxu0 %v1139
      %v1654 = vpop.f32.mrf.mxu0
      %v1655 = vadd.f32 %v1494, %v1654
      %v1656 = vpop.f32.mrf.mxu0
      %v1657 = vpop.f32.mrf.mxu0
      %v1658 = vadd.f32 %v1497, %v1657
      %v1659 = vpop.f32.mrf.mxu0
      %1660 = vmatprep.mubr.bf16.mxu0 0
      %1661 = vmatmul.mubr.bf16.gmra.mxu0 %v1142
      %v1662 = vpop.f32.mrf.mxu0
      %v1663 = vadd.f32 %v1502, %v1662
      %v1664 = vpop.f32.mrf.mxu0
      %v1665 = vpop.f32.mrf.mxu0
      %v1666 = vadd.f32 %v1505, %v1665
      %v1667 = vpop.f32.mrf.mxu0
      %1668 = vmatprep.mubr.bf16.mxu0 0
      %1669 = vmatmul.mubr.bf16.gmra.mxu0 %v1145
      %v1670 = vpop.f32.mrf.mxu0
      %v1671 = vadd.f32 %v1510, %v1670
      %v1672 = vpop.f32.mrf.mxu0
      %v1673 = vpop.f32.mrf.mxu0
      %v1674 = vadd.f32 %v1513, %v1673
      %v1675 = vpop.f32.mrf.mxu0
      %1676 = vdwg.mxu0
      %v1725 = vunpack.c.l.b16 %v649
      %v1726 = vunpack.c.l.b16 %v650
      %v1727 = vunpack.c.l.b16 %v651
      %v1728 = vunpack.c.l.b16 %v652
      %v1729 = vunpack.c.l.b16 %v653
      %v1730 = vunpack.c.l.b16 %v654
      %v1731 = vunpack.c.l.b16 %v655
      %v1732 = vunpack.c.l.b16 %v656
      %v1733 = vunpack.c.l.b16 %v657
      %v1734 = vunpack.c.l.b16 %v658
      %v1735 = vunpack.c.l.b16 %v659
      %v1736 = vunpack.c.l.b16 %v660
      %v1737 = vunpack.c.l.b16 %v661
      %v1738 = vunpack.c.l.b16 %v662
      %v1739 = vunpack.c.l.b16 %v663
      %v1740 = vunpack.c.l.b16 %v664
      %v1741 = vunpack.c.l.b16 %v665
      %v1742 = vunpack.c.l.b16 %v666
      %v1743 = vunpack.c.l.b16 %v667
      %v1744 = vunpack.c.l.b16 %v668
      %v1745 = vunpack.c.l.b16 %v669
      %v1746 = vunpack.c.l.b16 %v670
      %v1747 = vunpack.c.l.b16 %v671
      %v1748 = vunpack.c.l.b16 %v672
      %v1749 = vunpack.c.l.b16 %v673
      %v1750 = vunpack.c.l.b16 %v674
      %v1751 = vunpack.c.l.b16 %v675
      %v1752 = vunpack.c.l.b16 %v676
      %v1753 = vunpack.c.l.b16 %v677
      %v1754 = vunpack.c.l.b16 %v678
      %v1755 = vunpack.c.l.b16 %v679
      %v1756 = vunpack.c.l.b16 %v680
      %v1757 = vunpack.c.l.b16 %v681
      %v1758 = vunpack.c.l.b16 %v682
      %v1759 = vunpack.c.l.b16 %v683
      %v1760 = vunpack.c.l.b16 %v684
      %v1761 = vunpack.c.l.b16 %v685
      %v1762 = vunpack.c.l.b16 %v686
      %v1763 = vunpack.c.l.b16 %v687
      %v1764 = vunpack.c.l.b16 %v688
      %v1765 = vunpack.c.l.b16 %v689
      %v1766 = vunpack.c.l.b16 %v690
      %v1767 = vunpack.c.l.b16 %v691
      %v1768 = vunpack.c.l.b16 %v692
      %v1769 = vunpack.c.l.b16 %v693
      %v1770 = vunpack.c.l.b16 %v694
      %v1771 = vunpack.c.l.b16 %v695
      %v1772 = vunpack.c.l.b16 %v696
      %v1773 = vpack.c.b16 %v1726, %v1725
      %v1774 = vpack.c.b16 %v1728, %v1727
      %v1775 = vpack.c.b16 %v1730, %v1729
      %v1776 = vpack.c.b16 %v1732, %v1731
      %v1777 = vpack.c.b16 %v1734, %v1733
      %v1778 = vpack.c.b16 %v1736, %v1735
      %v1779 = vpack.c.b16 %v1738, %v1737
      %v1780 = vpack.c.b16 %v1740, %v1739
      %v1781 = vpack.c.b16 %v1742, %v1741
      %v1782 = vpack.c.b16 %v1744, %v1743
      %v1783 = vpack.c.b16 %v1746, %v1745
      %v1784 = vpack.c.b16 %v1748, %v1747
      %v1785 = vpack.c.b16 %v1750, %v1749
      %v1786 = vpack.c.b16 %v1752, %v1751
      %v1787 = vpack.c.b16 %v1754, %v1753
      %v1788 = vpack.c.b16 %v1756, %v1755
      %v1789 = vpack.c.b16 %v1758, %v1757
      %v1790 = vpack.c.b16 %v1760, %v1759
      %v1791 = vpack.c.b16 %v1762, %v1761
      %v1792 = vpack.c.b16 %v1764, %v1763
      %v1793 = vpack.c.b16 %v1766, %v1765
      %v1794 = vpack.c.b16 %v1768, %v1767
      %v1795 = vpack.c.b16 %v1770, %v1769
      %v1796 = vpack.c.b16 %v1772, %v1771
      %1821 = vmatprep.subr.bf16.mxu0 0
      %1822 = vmatpush1.bf16.msra.mxu0 %v1780
      %1823 = vmatprep.subr.bf16.mxu0 0
      %1824 = vmatpush1.bf16.msra.mxu0 %v1779
      %1825 = vmatprep.subr.bf16.mxu0 0
      %1826 = vmatpush1.bf16.msra.mxu0 %v1778
      %1827 = vmatprep.subr.bf16.mxu0 0
      %1828 = vmatpush1.bf16.msra.mxu0 %v1777
      %1829 = vmatprep.subr.bf16.mxu0 0
      %1830 = vmatpush1.bf16.msra.mxu0 %v1776
      %1831 = vmatprep.subr.bf16.mxu0 0
      %1832 = vmatpush1.bf16.msra.mxu0 %v1775
      %1833 = vmatprep.subr.bf16.mxu0 0
      %1834 = vmatpush1.bf16.msra.mxu0 %v1774
      %1835 = vmatprep.subr.bf16.mxu0 0
      %1836 = vmatpush1.bf16.msra.mxu0 %v1773
      %1837 = vmatprep.subr.bf16.mxu0 0
      %1838 = vmatpush2.bf16.msra.mxu0 %v1788
      %1839 = vmatprep.subr.bf16.mxu0 0
      %1840 = vmatpush2.bf16.msra.mxu0 %v1787
      %1841 = vmatprep.subr.bf16.mxu0 0
      %1842 = vmatpush2.bf16.msra.mxu0 %v1786
      %1843 = vmatprep.subr.bf16.mxu0 0
      %1844 = vmatpush2.bf16.msra.mxu0 %v1785
      %1845 = vmatprep.subr.bf16.mxu0 0
      %1846 = vmatpush2.bf16.msra.mxu0 %v1784
      %1847 = vmatprep.subr.bf16.mxu0 0
      %1848 = vmatpush2.bf16.msra.mxu0 %v1783
      %1849 = vmatprep.subr.bf16.mxu0 0
      %1850 = vmatpush2.bf16.msra.mxu0 %v1782
      %1851 = vmatprep.subr.bf16.mxu0 0
      %1852 = vmatpush2.bf16.msra.mxu0 %v1781
      %1853 = vmatprep.mubr.bf16.mxu0 %v387
      %1854 = vmatmul.mubr.bf16.gmra.mxu0 %v295
      %v1855 = vpop.f32.mrf.mxu0
      %v1856 = vadd.f32 %v1551, %v1855
      %v1857 = vpop.f32.mrf.mxu0
      %v1858 = vpop.f32.mrf.mxu0
      %v1859 = vadd.f32 %v1554, %v1858
      %v1860 = vpop.f32.mrf.mxu0
      %1861 = vmatprep.mubr.bf16.mxu0 %v399
      %1862 = vmatmul.mubr.bf16.gmra.mxu0 %v296
      %v1863 = vpop.f32.mrf.mxu0
      %v1864 = vadd.f32 %v1559, %v1863
      %v1865 = vpop.f32.mrf.mxu0
      %v1866 = vpop.f32.mrf.mxu0
      %v1867 = vadd.f32 %v1562, %v1866
      %v1868 = vpop.f32.mrf.mxu0
      %1869 = vmatprep.mubr.bf16.mxu0 %v411
      %1870 = vmatmul.mubr.bf16.gmra.mxu0 %v297
      %v1871 = vpop.f32.mrf.mxu0
      %v1872 = vadd.f32 %v1567, %v1871
      %v1873 = vpop.f32.mrf.mxu0
      %v1874 = vpop.f32.mrf.mxu0
      %v1875 = vadd.f32 %v1570, %v1874
      %v1876 = vpop.f32.mrf.mxu0
      %1877 = vmatprep.mubr.bf16.mxu0 %v423
      %1878 = vmatmul.mubr.bf16.gmra.mxu0 %v298
      %v1879 = vpop.f32.mrf.mxu0
      %v1880 = vadd.f32 %v1575, %v1879
      %v1881 = vpop.f32.mrf.mxu0
      %v1882 = vpop.f32.mrf.mxu0
      %v1883 = vadd.f32 %v1578, %v1882
      %v1884 = vpop.f32.mrf.mxu0
      %1885 = vmatprep.mubr.bf16.mxu0 %v435
      %1886 = vmatmul.mubr.bf16.gmra.mxu0 %v299
      %v1887 = vpop.f32.mrf.mxu0
      %v1888 = vadd.f32 %v1583, %v1887
      %v1889 = vpop.f32.mrf.mxu0
      %v1890 = vpop.f32.mrf.mxu0
      %v1891 = vadd.f32 %v1586, %v1890
      %v1892 = vpop.f32.mrf.mxu0
      %1893 = vmatprep.mubr.bf16.mxu0 %v447
      %1894 = vmatmul.mubr.bf16.gmra.mxu0 %v300
      %v1895 = vpop.f32.mrf.mxu0
      %v1896 = vadd.f32 %v1591, %v1895
      %v1897 = vpop.f32.mrf.mxu0
      %v1898 = vpop.f32.mrf.mxu0
      %v1899 = vadd.f32 %v1594, %v1898
      %v1900 = vpop.f32.mrf.mxu0
      %1901 = vmatprep.mubr.bf16.mxu0 %v459
      %1902 = vmatmul.mubr.bf16.gmra.mxu0 %v301
      %v1903 = vpop.f32.mrf.mxu0
      %v1904 = vadd.f32 %v1599, %v1903
      %v1905 = vpop.f32.mrf.mxu0
      %v1906 = vpop.f32.mrf.mxu0
      %v1907 = vadd.f32 %v1602, %v1906
      %v1908 = vpop.f32.mrf.mxu0
      %1909 = vmatprep.mubr.bf16.mxu0 %v471
      %1910 = vmatmul.mubr.bf16.gmra.mxu0 %v302
      %v1911 = vpop.f32.mrf.mxu0
      %v1912 = vadd.f32 %v1607, %v1911
      %v1913 = vpop.f32.mrf.mxu0
      %v1914 = vpop.f32.mrf.mxu0
      %v1915 = vadd.f32 %v1610, %v1914
      %v1916 = vpop.f32.mrf.mxu0
      %1917 = vmatprep.mubr.bf16.mxu0 %v483
      %1918 = vmatmul.mubr.bf16.gmra.mxu0 %v303
      %v1919 = vpop.f32.mrf.mxu0
      %v1920 = vadd.f32 %v1615, %v1919
      %v1921 = vpop.f32.mrf.mxu0
      %v1922 = vpop.f32.mrf.mxu0
      %v1923 = vadd.f32 %v1618, %v1922
      %v1924 = vpop.f32.mrf.mxu0
      %1925 = vmatprep.mubr.bf16.mxu0 %v495
      %1926 = vmatmul.mubr.bf16.gmra.mxu0 %v304
      %v1927 = vpop.f32.mrf.mxu0
      %v1928 = vadd.f32 %v1623, %v1927
      %v1929 = vpop.f32.mrf.mxu0
      %v1930 = vpop.f32.mrf.mxu0
      %v1931 = vadd.f32 %v1626, %v1930
      %v1932 = vpop.f32.mrf.mxu0
      %1933 = vmatprep.mubr.bf16.mxu0 %v507
      %1934 = vmatmul.mubr.bf16.gmra.mxu0 %v305
      %v1935 = vpop.f32.mrf.mxu0
      %v1936 = vadd.f32 %v1631, %v1935
      %v1937 = vpop.f32.mrf.mxu0
      %v1938 = vpop.f32.mrf.mxu0
      %v1939 = vadd.f32 %v1634, %v1938
      %v1940 = vpop.f32.mrf.mxu0
      %1941 = vmatprep.mubr.bf16.mxu0 %v519
      %1942 = vmatmul.mubr.bf16.gmra.mxu0 %v306
      %v1943 = vpop.f32.mrf.mxu0
      %v1944 = vadd.f32 %v1639, %v1943
      %v1945 = vpop.f32.mrf.mxu0
      %v1946 = vpop.f32.mrf.mxu0
      %v1947 = vadd.f32 %v1642, %v1946
      %v1948 = vpop.f32.mrf.mxu0
      %1949 = vmatprep.mubr.bf16.mxu0 %v531
      %1950 = vmatmul.mubr.bf16.gmra.mxu0 %v307
      %v1951 = vpop.f32.mrf.mxu0
      %v1952 = vadd.f32 %v1647, %v1951
      %v1953 = vpop.f32.mrf.mxu0
      %v1954 = vpop.f32.mrf.mxu0
      %v1955 = vadd.f32 %v1650, %v1954
      %v1956 = vpop.f32.mrf.mxu0
      %1957 = vmatprep.mubr.bf16.mxu0 %v543
      %1958 = vmatmul.mubr.bf16.gmra.mxu0 %v308
      %v1959 = vpop.f32.mrf.mxu0
      %v1960 = vadd.f32 %v1655, %v1959
      %v1961 = vpop.f32.mrf.mxu0
      %v1962 = vpop.f32.mrf.mxu0
      %v1963 = vadd.f32 %v1658, %v1962
      %v1964 = vpop.f32.mrf.mxu0
      %1965 = vmatprep.mubr.bf16.mxu0 %v555
      %1966 = vmatmul.mubr.bf16.gmra.mxu0 %v309
      %v1967 = vpop.f32.mrf.mxu0
      %v1968 = vadd.f32 %v1663, %v1967
      %v1969 = vpop.f32.mrf.mxu0
      %v1970 = vpop.f32.mrf.mxu0
      %v1971 = vadd.f32 %v1666, %v1970
      %v1972 = vpop.f32.mrf.mxu0
      %1973 = vmatprep.mubr.bf16.mxu0 %v567
      %1974 = vmatmul.mubr.bf16.gmra.mxu0 %v310
      %v1975 = vpop.f32.mrf.mxu0
      %v1976 = vadd.f32 %v1671, %v1975
      %v1977 = vpop.f32.mrf.mxu0
      %v1978 = vpop.f32.mrf.mxu0
      %v1979 = vadd.f32 %v1674, %v1978
      %v1980 = vpop.f32.mrf.mxu0
      %1981 = vdwg.mxu0
      %1982 = vmatprep.subr.bf16.mxu0 0
      %1983 = vmatpush1.bf16.msra.mxu0 %v1796
      %1984 = vmatprep.subr.bf16.mxu0 0
      %1985 = vmatpush1.bf16.msra.mxu0 %v1795
      %1986 = vmatprep.subr.bf16.mxu0 0
      %1987 = vmatpush1.bf16.msra.mxu0 %v1794
      %1988 = vmatprep.subr.bf16.mxu0 0
      %1989 = vmatpush1.bf16.msra.mxu0 %v1793
      %1990 = vmatprep.subr.bf16.mxu0 0
      %1991 = vmatpush1.bf16.msra.mxu0 %v1792
      %1992 = vmatprep.subr.bf16.mxu0 0
      %1993 = vmatpush1.bf16.msra.mxu0 %v1791
      %1994 = vmatprep.subr.bf16.mxu0 0
      %1995 = vmatpush1.bf16.msra.mxu0 %v1790
      %1996 = vmatprep.subr.bf16.mxu0 0
      %1997 = vmatpush1.bf16.msra.mxu0 %v1789
      %1998 = vmatprep.subr.bf16.mxu0 0
      %1999 = vmatpush2.bf16.msra.mxu0 0
      %2000 = vmatprep.subr.bf16.mxu0 0
      %2001 = vmatpush2.bf16.msra.mxu0 0
      %2002 = vmatprep.subr.bf16.mxu0 0
      %2003 = vmatpush2.bf16.msra.mxu0 0
      %2004 = vmatprep.subr.bf16.mxu0 0
      %2005 = vmatpush2.bf16.msra.mxu0 0
      %2006 = vmatprep.subr.bf16.mxu0 0
      %2007 = vmatpush2.bf16.msra.mxu0 0
      %2008 = vmatprep.subr.bf16.mxu0 0
      %2009 = vmatpush2.bf16.msra.mxu0 0
      %2010 = vmatprep.subr.bf16.mxu0 0
      %2011 = vmatpush2.bf16.msra.mxu0 0
      %2012 = vmatprep.subr.bf16.mxu0 0
      %2013 = vmatpush2.bf16.msra.mxu0 0
      %2014 = vmatprep.mubr.bf16.mxu0 0
      %2015 = vmatmul.mubr.bf16.gmra.mxu0 %v587
      %v2016 = vpop.f32.mrf.mxu0
      %v2017 = vadd.f32 %v1856, %v2016
      %v2018 = vpop.f32.mrf.mxu0
      %v2019 = vpop.f32.mrf.mxu0
      %v2020 = vadd.f32 %v1859, %v2019
      %v2021 = vpop.f32.mrf.mxu0
      %2022 = vmatprep.mubr.bf16.mxu0 0
      %2023 = vmatmul.mubr.bf16.gmra.mxu0 %v590
      %v2024 = vpop.f32.mrf.mxu0
      %v2025 = vadd.f32 %v1864, %v2024
      %v2026 = vpop.f32.mrf.mxu0
      %v2027 = vpop.f32.mrf.mxu0
      %v2028 = vadd.f32 %v1867, %v2027
      %v2029 = vpop.f32.mrf.mxu0
      %2030 = vmatprep.mubr.bf16.mxu0 0
      %2031 = vmatmul.mubr.bf16.gmra.mxu0 %v593
      %v2032 = vpop.f32.mrf.mxu0
      %v2033 = vadd.f32 %v1872, %v2032
      %v2034 = vpop.f32.mrf.mxu0
      %v2035 = vpop.f32.mrf.mxu0
      %v2036 = vadd.f32 %v1875, %v2035
      %v2037 = vpop.f32.mrf.mxu0
      %2038 = vmatprep.mubr.bf16.mxu0 0
      %2039 = vmatmul.mubr.bf16.gmra.mxu0 %v596
      %v2040 = vpop.f32.mrf.mxu0
      %v2041 = vadd.f32 %v1880, %v2040
      %v2042 = vpop.f32.mrf.mxu0
      %v2043 = vpop.f32.mrf.mxu0
      %v2044 = vadd.f32 %v1883, %v2043
      %v2045 = vpop.f32.mrf.mxu0
      %2046 = vmatprep.mubr.bf16.mxu0 0
      %2047 = vmatmul.mubr.bf16.gmra.mxu0 %v599
      %v2048 = vpop.f32.mrf.mxu0
      %v2049 = vadd.f32 %v1888, %v2048
      %v2050 = vpop.f32.mrf.mxu0
      %v2051 = vpop.f32.mrf.mxu0
      %v2052 = vadd.f32 %v1891, %v2051
      %v2053 = vpop.f32.mrf.mxu0
      %2054 = vmatprep.mubr.bf16.mxu0 0
      %2055 = vmatmul.mubr.bf16.gmra.mxu0 %v602
      %v2056 = vpop.f32.mrf.mxu0
      %v2057 = vadd.f32 %v1896, %v2056
      %v2058 = vpop.f32.mrf.mxu0
      %v2059 = vpop.f32.mrf.mxu0
      %v2060 = vadd.f32 %v1899, %v2059
      %v2061 = vpop.f32.mrf.mxu0
      %2062 = vmatprep.mubr.bf16.mxu0 0
      %2063 = vmatmul.mubr.bf16.gmra.mxu0 %v605
      %v2064 = vpop.f32.mrf.mxu0
      %v2065 = vadd.f32 %v1904, %v2064
      %v2066 = vpop.f32.mrf.mxu0
      %v2067 = vpop.f32.mrf.mxu0
      %v2068 = vadd.f32 %v1907, %v2067
      %v2069 = vpop.f32.mrf.mxu0
      %2070 = vmatprep.mubr.bf16.mxu0 0
      %2071 = vmatmul.mubr.bf16.gmra.mxu0 %v608
      %v2072 = vpop.f32.mrf.mxu0
      %v2073 = vadd.f32 %v1912, %v2072
      %v2074 = vpop.f32.mrf.mxu0
      %v2075 = vpop.f32.mrf.mxu0
      %v2076 = vadd.f32 %v1915, %v2075
      %v2077 = vpop.f32.mrf.mxu0
      %2078 = vmatprep.mubr.bf16.mxu0 0
      %2079 = vmatmul.mubr.bf16.gmra.mxu0 %v611
      %v2080 = vpop.f32.mrf.mxu0
      %v2081 = vadd.f32 %v1920, %v2080
      %v2082 = vpop.f32.mrf.mxu0
      %v2083 = vpop.f32.mrf.mxu0
      %v2084 = vadd.f32 %v1923, %v2083
      %v2085 = vpop.f32.mrf.mxu0
      %2086 = vmatprep.mubr.bf16.mxu0 0
      %2087 = vmatmul.mubr.bf16.gmra.mxu0 %v614
      %v2088 = vpop.f32.mrf.mxu0
      %v2089 = vadd.f32 %v1928, %v2088
      %v2090 = vpop.f32.mrf.mxu0
      %v2091 = vpop.f32.mrf.mxu0
      %v2092 = vadd.f32 %v1931, %v2091
      %v2093 = vpop.f32.mrf.mxu0
      %2094 = vmatprep.mubr.bf16.mxu0 0
      %2095 = vmatmul.mubr.bf16.gmra.mxu0 %v617
      %v2096 = vpop.f32.mrf.mxu0
      %v2097 = vadd.f32 %v1936, %v2096
      %v2098 = vpop.f32.mrf.mxu0
      %v2099 = vpop.f32.mrf.mxu0
      %v2100 = vadd.f32 %v1939, %v2099
      %v2101 = vpop.f32.mrf.mxu0
      %2102 = vmatprep.mubr.bf16.mxu0 0
      %2103 = vmatmul.mubr.bf16.gmra.mxu0 %v620
      %v2104 = vpop.f32.mrf.mxu0
      %v2105 = vadd.f32 %v1944, %v2104
      %v2106 = vpop.f32.mrf.mxu0
      %v2107 = vpop.f32.mrf.mxu0
      %v2108 = vadd.f32 %v1947, %v2107
      %v2109 = vpop.f32.mrf.mxu0
      %2110 = vmatprep.mubr.bf16.mxu0 0
      %2111 = vmatmul.mubr.bf16.gmra.mxu0 %v623
      %v2112 = vpop.f32.mrf.mxu0
      %v2113 = vadd.f32 %v1952, %v2112
      %v2114 = vpop.f32.mrf.mxu0
      %v2115 = vpop.f32.mrf.mxu0
      %v2116 = vadd.f32 %v1955, %v2115
      %v2117 = vpop.f32.mrf.mxu0
      %2118 = vmatprep.mubr.bf16.mxu0 0
      %2119 = vmatmul.mubr.bf16.gmra.mxu0 %v626
      %v2120 = vpop.f32.mrf.mxu0
      %v2121 = vadd.f32 %v1960, %v2120
      %v2122 = vpop.f32.mrf.mxu0
      %v2123 = vpop.f32.mrf.mxu0
      %v2124 = vadd.f32 %v1963, %v2123
      %v2125 = vpop.f32.mrf.mxu0
      %2126 = vmatprep.mubr.bf16.mxu0 0
      %2127 = vmatmul.mubr.bf16.gmra.mxu0 %v629
      %v2128 = vpop.f32.mrf.mxu0
      %v2129 = vadd.f32 %v1968, %v2128
      %v2130 = vpop.f32.mrf.mxu0
      %v2131 = vpop.f32.mrf.mxu0
      %v2132 = vadd.f32 %v1971, %v2131
      %v2133 = vpop.f32.mrf.mxu0
      %2134 = vmatprep.mubr.bf16.mxu0 0
      %2135 = vmatmul.mubr.bf16.gmra.mxu0 %v632
      %v2136 = vpop.f32.mrf.mxu0
      %v2137 = vadd.f32 %v1976, %v2136
      %v2138 = vpop.f32.mrf.mxu0
      %v2139 = vpop.f32.mrf.mxu0
      %v2140 = vadd.f32 %v1979, %v2139
      %v2141 = vpop.f32.mrf.mxu0
      %2142 = vdwg.mxu0
      %s2143 = scalar_lea.vmem %s172, 24
      %v2144 = vld [vmem:[%s2143] sm:$0xf]
      %v2145 = vld [vmem:[%s2143 + $0x4] sm:$0xf]
      %v2146 = vld [vmem:[%s2143 + $0x8] sm:$0x1]
      %v2147 = vld [vmem:[%s2143 + $0xc] sm:$0xf]
      %v2148 = vld [vmem:[%s2143 + $0x10] sm:$0xf]
      %v2149 = vld [vmem:[%s2143 + $0x14] sm:$0x1]
      %v2150 = vld [vmem:[%s2143 + $0x18] sm:$0xf]
      %v2151 = vld [vmem:[%s2143 + $0x1c] sm:$0xf]
      %v2152 = vld [vmem:[%s2143 + $0x20] sm:$0x1]
      %v2153 = vld [vmem:[%s2143 + $0x24] sm:$0xf]
      %v2154 = vld [vmem:[%s2143 + $0x28] sm:$0xf]
      %v2155 = vld [vmem:[%s2143 + $0x2c] sm:$0x1]
      %v2156 = vld [vmem:[%s2143 + $0x30] sm:$0xf]
      %v2157 = vld [vmem:[%s2143 + $0x34] sm:$0xf]
      %v2158 = vld [vmem:[%s2143 + $0x38] sm:$0x1]
      %v2159 = vld [vmem:[%s2143 + $0x3c] sm:$0xf]
      %v2160 = vld [vmem:[%s2143 + $0x40] sm:$0xf]
      %v2161 = vld [vmem:[%s2143 + $0x44] sm:$0x1]
      %v2162 = vld [vmem:[%s2143 + $0x48] sm:$0xf]
      %v2163 = vld [vmem:[%s2143 + $0x4c] sm:$0xf]
      %v2164 = vld [vmem:[%s2143 + $0x50] sm:$0x1]
      %v2165 = vld [vmem:[%s2143 + $0x54] sm:$0xf]
      %v2166 = vld [vmem:[%s2143 + $0x58] sm:$0xf]
      %v2167 = vld [vmem:[%s2143 + $0x5c] sm:$0x1]
      %v2168 = vld [vmem:[%s2143 + $0x60] sm:$0xf]
      %v2169 = vld [vmem:[%s2143 + $0x64] sm:$0xf]
      %v2170 = vld [vmem:[%s2143 + $0x68] sm:$0x1]
      %v2171 = vld [vmem:[%s2143 + $0x6c] sm:$0xf]
      %v2172 = vld [vmem:[%s2143 + $0x70] sm:$0xf]
      %v2173 = vld [vmem:[%s2143 + $0x74] sm:$0x1]
      %v2174 = vld [vmem:[%s2143 + $0x78] sm:$0xf]
      %v2175 = vld [vmem:[%s2143 + $0x7c] sm:$0xf]
      %v2176 = vld [vmem:[%s2143 + $0x80] sm:$0x1]
      %v2177 = vld [vmem:[%s2143 + $0x84] sm:$0xf]
      %v2178 = vld [vmem:[%s2143 + $0x88] sm:$0xf]
      %v2179 = vld [vmem:[%s2143 + $0x8c] sm:$0x1]
      %v2180 = vld [vmem:[%s2143 + $0x90] sm:$0xf]
      %v2181 = vld [vmem:[%s2143 + $0x94] sm:$0xf]
      %v2182 = vld [vmem:[%s2143 + $0x98] sm:$0x1]
      %v2183 = vld [vmem:[%s2143 + $0x9c] sm:$0xf]
      %v2184 = vld [vmem:[%s2143 + $0xa0] sm:$0xf]
      %v2185 = vld [vmem:[%s2143 + $0xa4] sm:$0x1]
      %v2186 = vld [vmem:[%s2143 + $0xa8] sm:$0xf]
      %v2187 = vld [vmem:[%s2143 + $0xac] sm:$0xf]
      %v2188 = vld [vmem:[%s2143 + $0xb0] sm:$0x1]
      %v2189 = vld [vmem:[%s2143 + $0xb4] sm:$0xf]
      %v2190 = vld [vmem:[%s2143 + $0xb8] sm:$0xf]
      %v2191 = vld [vmem:[%s2143 + $0xbc] sm:$0x1]
      %v2224 = vunpack.c.l.b16 %v2144
      %v2225 = vunpack.c.l.b16 %v2145
      %v2226 = vunpack.c.l.b16 %v2147
      %v2227 = vunpack.c.l.b16 %v2148
      %v2228 = vunpack.c.l.b16 %v2150
      %v2229 = vunpack.c.l.b16 %v2151
      %v2230 = vunpack.c.l.b16 %v2153
      %v2231 = vunpack.c.l.b16 %v2154
      %v2232 = vunpack.c.l.b16 %v2156
      %v2233 = vunpack.c.l.b16 %v2157
      %v2234 = vunpack.c.l.b16 %v2159
      %v2235 = vunpack.c.l.b16 %v2160
      %v2236 = vunpack.c.l.b16 %v2162
      %v2237 = vunpack.c.l.b16 %v2163
      %v2238 = vunpack.c.l.b16 %v2165
      %v2239 = vunpack.c.l.b16 %v2166
      %v2240 = vunpack.c.l.b16 %v2168
      %v2241 = vunpack.c.l.b16 %v2169
      %v2242 = vunpack.c.l.b16 %v2171
      %v2243 = vunpack.c.l.b16 %v2172
      %v2244 = vunpack.c.l.b16 %v2174
      %v2245 = vunpack.c.l.b16 %v2175
      %v2246 = vunpack.c.l.b16 %v2177
      %v2247 = vunpack.c.l.b16 %v2178
      %v2248 = vunpack.c.l.b16 %v2180
      %v2249 = vunpack.c.l.b16 %v2181
      %v2250 = vunpack.c.l.b16 %v2183
      %v2251 = vunpack.c.l.b16 %v2184
      %v2252 = vunpack.c.l.b16 %v2186
      %v2253 = vunpack.c.l.b16 %v2187
      %v2254 = vunpack.c.l.b16 %v2189
      %v2255 = vunpack.c.l.b16 %v2190
      %v2256 = vpack.c.b16 %v2225, %v2224
      %v2257 = vpack.c.b16 %v2227, %v2226
      %v2258 = vpack.c.b16 %v2229, %v2228
      %v2259 = vpack.c.b16 %v2231, %v2230
      %v2260 = vpack.c.b16 %v2233, %v2232
      %v2261 = vpack.c.b16 %v2235, %v2234
      %v2262 = vpack.c.b16 %v2237, %v2236
      %v2263 = vpack.c.b16 %v2239, %v2238
      %v2264 = vpack.c.b16 %v2241, %v2240
      %v2265 = vpack.c.b16 %v2243, %v2242
      %v2266 = vpack.c.b16 %v2245, %v2244
      %v2267 = vpack.c.b16 %v2247, %v2246
      %v2268 = vpack.c.b16 %v2249, %v2248
      %v2269 = vpack.c.b16 %v2251, %v2250
      %v2270 = vpack.c.b16 %v2253, %v2252
      %v2271 = vpack.c.b16 %v2255, %v2254
      %v2304 = vunpack.c.l.b16 %v2146
      %v2305 = vunpack.c.l.b16 %v2149
      %v2306 = vunpack.c.l.b16 %v2152
      %v2307 = vunpack.c.l.b16 %v2155
      %v2308 = vunpack.c.l.b16 %v2158
      %v2309 = vunpack.c.l.b16 %v2161
      %v2310 = vunpack.c.l.b16 %v2164
      %v2311 = vunpack.c.l.b16 %v2167
      %v2312 = vunpack.c.l.b16 %v2170
      %v2313 = vunpack.c.l.b16 %v2173
      %v2314 = vunpack.c.l.b16 %v2176
      %v2315 = vunpack.c.l.b16 %v2179
      %v2316 = vunpack.c.l.b16 %v2182
      %v2317 = vunpack.c.l.b16 %v2185
      %v2318 = vunpack.c.l.b16 %v2188
      %v2319 = vunpack.c.l.b16 %v2191
      %v2320 = vpack.c.b16 %v2304, %v2304
      %v2321 = vpack.c.b16 %v2305, %v2305
      %v2322 = vpack.c.b16 %v2306, %v2306
      %v2323 = vpack.c.b16 %v2307, %v2307
      %v2324 = vpack.c.b16 %v2308, %v2308
      %v2325 = vpack.c.b16 %v2309, %v2309
      %v2326 = vpack.c.b16 %v2310, %v2310
      %v2327 = vpack.c.b16 %v2311, %v2311
      %v2328 = vpack.c.b16 %v2312, %v2312
      %v2329 = vpack.c.b16 %v2313, %v2313
      %v2330 = vpack.c.b16 %v2314, %v2314
      %v2331 = vpack.c.b16 %v2315, %v2315
      %v2332 = vpack.c.b16 %v2316, %v2316
      %v2333 = vpack.c.b16 %v2317, %v2317
      %v2334 = vpack.c.b16 %v2318, %v2318
      %v2335 = vpack.c.b16 %v2319, %v2319
      %v2337 = vshrl.u32 %v2256, 16
      %v2339 = vshll.u32 %v2256, 16
      %v2341 = vrot.slane %v2339, 1
      %v2342 = vor.u32 %v2337, %v2341
      %v2344 = vshll.u32 %v2320, 16
      %v2346 = vrot.slane %v2344, 1
      %v2347 = vsel %vm375, %v2342, %v2346
      %v2349 = vshrl.u32 %v2257, 16
      %v2351 = vshll.u32 %v2257, 16
      %v2353 = vrot.slane %v2351, 1
      %v2354 = vor.u32 %v2349, %v2353
      %v2356 = vshll.u32 %v2321, 16
      %v2358 = vrot.slane %v2356, 1
      %v2359 = vsel %vm375, %v2354, %v2358
      %v2361 = vshrl.u32 %v2258, 16
      %v2363 = vshll.u32 %v2258, 16
      %v2365 = vrot.slane %v2363, 1
      %v2366 = vor.u32 %v2361, %v2365
      %v2368 = vshll.u32 %v2322, 16
      %v2370 = vrot.slane %v2368, 1
      %v2371 = vsel %vm375, %v2366, %v2370
      %v2373 = vshrl.u32 %v2259, 16
      %v2375 = vshll.u32 %v2259, 16
      %v2377 = vrot.slane %v2375, 1
      %v2378 = vor.u32 %v2373, %v2377
      %v2380 = vshll.u32 %v2323, 16
      %v2382 = vrot.slane %v2380, 1
      %v2383 = vsel %vm375, %v2378, %v2382
      %v2385 = vshrl.u32 %v2260, 16
      %v2387 = vshll.u32 %v2260, 16
      %v2389 = vrot.slane %v2387, 1
      %v2390 = vor.u32 %v2385, %v2389
      %v2392 = vshll.u32 %v2324, 16
      %v2394 = vrot.slane %v2392, 1
      %v2395 = vsel %vm375, %v2390, %v2394
      %v2397 = vshrl.u32 %v2261, 16
      %v2399 = vshll.u32 %v2261, 16
      %v2401 = vrot.slane %v2399, 1
      %v2402 = vor.u32 %v2397, %v2401
      %v2404 = vshll.u32 %v2325, 16
      %v2406 = vrot.slane %v2404, 1
      %v2407 = vsel %vm375, %v2402, %v2406
      %v2409 = vshrl.u32 %v2262, 16
      %v2411 = vshll.u32 %v2262, 16
      %v2413 = vrot.slane %v2411, 1
      %v2414 = vor.u32 %v2409, %v2413
      %v2416 = vshll.u32 %v2326, 16
      %v2418 = vrot.slane %v2416, 1
      %v2419 = vsel %vm375, %v2414, %v2418
      %v2421 = vshrl.u32 %v2263, 16
      %v2423 = vshll.u32 %v2263, 16
      %v2425 = vrot.slane %v2423, 1
      %v2426 = vor.u32 %v2421, %v2425
      %v2428 = vshll.u32 %v2327, 16
      %v2430 = vrot.slane %v2428, 1
      %v2431 = vsel %vm375, %v2426, %v2430
      %v2433 = vshrl.u32 %v2264, 16
      %v2435 = vshll.u32 %v2264, 16
      %v2437 = vrot.slane %v2435, 1
      %v2438 = vor.u32 %v2433, %v2437
      %v2440 = vshll.u32 %v2328, 16
      %v2442 = vrot.slane %v2440, 1
      %v2443 = vsel %vm375, %v2438, %v2442
      %v2445 = vshrl.u32 %v2265, 16
      %v2447 = vshll.u32 %v2265, 16
      %v2449 = vrot.slane %v2447, 1
      %v2450 = vor.u32 %v2445, %v2449
      %v2452 = vshll.u32 %v2329, 16
      %v2454 = vrot.slane %v2452, 1
      %v2455 = vsel %vm375, %v2450, %v2454
      %v2457 = vshrl.u32 %v2266, 16
      %v2459 = vshll.u32 %v2266, 16
      %v2461 = vrot.slane %v2459, 1
      %v2462 = vor.u32 %v2457, %v2461
      %v2464 = vshll.u32 %v2330, 16
      %v2466 = vrot.slane %v2464, 1
      %v2467 = vsel %vm375, %v2462, %v2466
      %v2469 = vshrl.u32 %v2267, 16
      %v2471 = vshll.u32 %v2267, 16
      %v2473 = vrot.slane %v2471, 1
      %v2474 = vor.u32 %v2469, %v2473
      %v2476 = vshll.u32 %v2331, 16
      %v2478 = vrot.slane %v2476, 1
      %v2479 = vsel %vm375, %v2474, %v2478
      %v2481 = vshrl.u32 %v2268, 16
      %v2483 = vshll.u32 %v2268, 16
      %v2485 = vrot.slane %v2483, 1
      %v2486 = vor.u32 %v2481, %v2485
      %v2488 = vshll.u32 %v2332, 16
      %v2490 = vrot.slane %v2488, 1
      %v2491 = vsel %vm375, %v2486, %v2490
      %v2493 = vshrl.u32 %v2269, 16
      %v2495 = vshll.u32 %v2269, 16
      %v2497 = vrot.slane %v2495, 1
      %v2498 = vor.u32 %v2493, %v2497
      %v2500 = vshll.u32 %v2333, 16
      %v2502 = vrot.slane %v2500, 1
      %v2503 = vsel %vm375, %v2498, %v2502
      %v2505 = vshrl.u32 %v2270, 16
      %v2507 = vshll.u32 %v2270, 16
      %v2509 = vrot.slane %v2507, 1
      %v2510 = vor.u32 %v2505, %v2509
      %v2512 = vshll.u32 %v2334, 16
      %v2514 = vrot.slane %v2512, 1
      %v2515 = vsel %vm375, %v2510, %v2514
      %v2517 = vshrl.u32 %v2271, 16
      %v2519 = vshll.u32 %v2271, 16
      %v2521 = vrot.slane %v2519, 1
      %v2522 = vor.u32 %v2517, %v2521
      %v2524 = vshll.u32 %v2335, 16
      %v2526 = vrot.slane %v2524, 1
      %v2527 = vsel %vm375, %v2522, %v2526
      %v2544 = vrot.slane %v2256, 1
      %v2545 = vrot.slane %v2320, 1
      %v2546 = vsel %vm584, %v2544, %v2545
      %v2547 = vrot.slane %v2257, 1
      %v2548 = vrot.slane %v2321, 1
      %v2549 = vsel %vm584, %v2547, %v2548
      %v2550 = vrot.slane %v2258, 1
      %v2551 = vrot.slane %v2322, 1
      %v2552 = vsel %vm584, %v2550, %v2551
      %v2553 = vrot.slane %v2259, 1
      %v2554 = vrot.slane %v2323, 1
      %v2555 = vsel %vm584, %v2553, %v2554
      %v2556 = vrot.slane %v2260, 1
      %v2557 = vrot.slane %v2324, 1
      %v2558 = vsel %vm584, %v2556, %v2557
      %v2559 = vrot.slane %v2261, 1
      %v2560 = vrot.slane %v2325, 1
      %v2561 = vsel %vm584, %v2559, %v2560
      %v2562 = vrot.slane %v2262, 1
      %v2563 = vrot.slane %v2326, 1
      %v2564 = vsel %vm584, %v2562, %v2563
      %v2565 = vrot.slane %v2263, 1
      %v2566 = vrot.slane %v2327, 1
      %v2567 = vsel %vm584, %v2565, %v2566
      %v2568 = vrot.slane %v2264, 1
      %v2569 = vrot.slane %v2328, 1
      %v2570 = vsel %vm584, %v2568, %v2569
      %v2571 = vrot.slane %v2265, 1
      %v2572 = vrot.slane %v2329, 1
      %v2573 = vsel %vm584, %v2571, %v2572
      %v2574 = vrot.slane %v2266, 1
      %v2575 = vrot.slane %v2330, 1
      %v2576 = vsel %vm584, %v2574, %v2575
      %v2577 = vrot.slane %v2267, 1
      %v2578 = vrot.slane %v2331, 1
      %v2579 = vsel %vm584, %v2577, %v2578
      %v2580 = vrot.slane %v2268, 1
      %v2581 = vrot.slane %v2332, 1
      %v2582 = vsel %vm584, %v2580, %v2581
      %v2583 = vrot.slane %v2269, 1
      %v2584 = vrot.slane %v2333, 1
      %v2585 = vsel %vm584, %v2583, %v2584
      %v2586 = vrot.slane %v2270, 1
      %v2587 = vrot.slane %v2334, 1
      %v2588 = vsel %vm584, %v2586, %v2587
      %v2589 = vrot.slane %v2271, 1
      %v2590 = vrot.slane %v2335, 1
      %v2591 = vsel %vm584, %v2589, %v2590
      %s2608 = scalar_lea.vmem %s1, 384
      %v2609 = vld [vmem:[%s2608] sm:$0xf]
      %v2610 = vld [vmem:[%s2608 + $0x4] sm:$0xf]
      %v2611 = vld [vmem:[%s2608 + $0x8] sm:$0xf]
      %v2612 = vld [vmem:[%s2608 + $0xc] sm:$0xf]
      %v2613 = vld [vmem:[%s2608 + $0x10] sm:$0xf]
      %v2614 = vld [vmem:[%s2608 + $0x14] sm:$0xf]
      %v2615 = vld [vmem:[%s2608 + $0x18] sm:$0xf]
      %v2616 = vld [vmem:[%s2608 + $0x1c] sm:$0xf]
      %v2617 = vld [vmem:[%s2608 + $0x20] sm:$0xf]
      %v2618 = vld [vmem:[%s2608 + $0x24] sm:$0xf]
      %v2619 = vld [vmem:[%s2608 + $0x28] sm:$0xf]
      %v2620 = vld [vmem:[%s2608 + $0x2c] sm:$0xf]
      %v2621 = vld [vmem:[%s2608 + $0x30] sm:$0xf]
      %v2622 = vld [vmem:[%s2608 + $0x34] sm:$0xf]
      %v2623 = vld [vmem:[%s2608 + $0x38] sm:$0xf]
      %v2624 = vld [vmem:[%s2608 + $0x3c] sm:$0xf]
      %v2625 = vld [vmem:[%s2608 + $0x40] sm:$0xf]
      %v2626 = vld [vmem:[%s2608 + $0x44] sm:$0xf]
      %v2627 = vld [vmem:[%s2608 + $0x48] sm:$0xf]
      %v2628 = vld [vmem:[%s2608 + $0x4c] sm:$0xf]
      %v2629 = vld [vmem:[%s2608 + $0x50] sm:$0xf]
      %v2630 = vld [vmem:[%s2608 + $0x54] sm:$0xf]
      %v2631 = vld [vmem:[%s2608 + $0x58] sm:$0xf]
      %v2632 = vld [vmem:[%s2608 + $0x5c] sm:$0xf]
      %v2633 = vld [vmem:[%s2608 + $0x60] sm:$0xf]
      %v2634 = vld [vmem:[%s2608 + $0x64] sm:$0xf]
      %v2635 = vld [vmem:[%s2608 + $0x68] sm:$0xf]
      %v2636 = vld [vmem:[%s2608 + $0x6c] sm:$0xf]
      %v2637 = vld [vmem:[%s2608 + $0x70] sm:$0xf]
      %v2638 = vld [vmem:[%s2608 + $0x74] sm:$0xf]
      %v2639 = vld [vmem:[%s2608 + $0x78] sm:$0xf]
      %v2640 = vld [vmem:[%s2608 + $0x7c] sm:$0xf]
      %v2641 = vld [vmem:[%s2608 + $0x80] sm:$0xf]
      %v2642 = vld [vmem:[%s2608 + $0x84] sm:$0xf]
      %v2643 = vld [vmem:[%s2608 + $0x88] sm:$0xf]
      %v2644 = vld [vmem:[%s2608 + $0x8c] sm:$0xf]
      %v2645 = vld [vmem:[%s2608 + $0x90] sm:$0xf]
      %v2646 = vld [vmem:[%s2608 + $0x94] sm:$0xf]
      %v2647 = vld [vmem:[%s2608 + $0x98] sm:$0xf]
      %v2648 = vld [vmem:[%s2608 + $0x9c] sm:$0xf]
      %v2649 = vld [vmem:[%s2608 + $0xa0] sm:$0xf]
      %v2650 = vld [vmem:[%s2608 + $0xa4] sm:$0xf]
      %v2651 = vld [vmem:[%s2608 + $0xa8] sm:$0xf]
      %v2652 = vld [vmem:[%s2608 + $0xac] sm:$0xf]
      %v2653 = vld [vmem:[%s2608 + $0xb0] sm:$0xf]
      %v2654 = vld [vmem:[%s2608 + $0xb4] sm:$0xf]
      %v2655 = vld [vmem:[%s2608 + $0xb8] sm:$0xf]
      %v2656 = vld [vmem:[%s2608 + $0xbc] sm:$0xf]
      %v2705 = vunpack.c.l.b16 %v2609
      %v2706 = vunpack.c.l.b16 %v2610
      %v2707 = vunpack.c.l.b16 %v2611
      %v2708 = vunpack.c.l.b16 %v2612
      %v2709 = vunpack.c.l.b16 %v2613
      %v2710 = vunpack.c.l.b16 %v2614
      %v2711 = vunpack.c.l.b16 %v2615
      %v2712 = vunpack.c.l.b16 %v2616
      %v2713 = vunpack.c.l.b16 %v2617
      %v2714 = vunpack.c.l.b16 %v2618
      %v2715 = vunpack.c.l.b16 %v2619
      %v2716 = vunpack.c.l.b16 %v2620
      %v2717 = vunpack.c.l.b16 %v2621
      %v2718 = vunpack.c.l.b16 %v2622
      %v2719 = vunpack.c.l.b16 %v2623
      %v2720 = vunpack.c.l.b16 %v2624
      %v2721 = vunpack.c.l.b16 %v2625
      %v2722 = vunpack.c.l.b16 %v2626
      %v2723 = vunpack.c.l.b16 %v2627
      %v2724 = vunpack.c.l.b16 %v2628
      %v2725 = vunpack.c.l.b16 %v2629
      %v2726 = vunpack.c.l.b16 %v2630
      %v2727 = vunpack.c.l.b16 %v2631
      %v2728 = vunpack.c.l.b16 %v2632
      %v2729 = vunpack.c.l.b16 %v2633
      %v2730 = vunpack.c.l.b16 %v2634
      %v2731 = vunpack.c.l.b16 %v2635
      %v2732 = vunpack.c.l.b16 %v2636
      %v2733 = vunpack.c.l.b16 %v2637
      %v2734 = vunpack.c.l.b16 %v2638
      %v2735 = vunpack.c.l.b16 %v2639
      %v2736 = vunpack.c.l.b16 %v2640
      %v2737 = vunpack.c.l.b16 %v2641
      %v2738 = vunpack.c.l.b16 %v2642
      %v2739 = vunpack.c.l.b16 %v2643
      %v2740 = vunpack.c.l.b16 %v2644
      %v2741 = vunpack.c.l.b16 %v2645
      %v2742 = vunpack.c.l.b16 %v2646
      %v2743 = vunpack.c.l.b16 %v2647
      %v2744 = vunpack.c.l.b16 %v2648
      %v2745 = vunpack.c.l.b16 %v2649
      %v2746 = vunpack.c.l.b16 %v2650
      %v2747 = vunpack.c.l.b16 %v2651
      %v2748 = vunpack.c.l.b16 %v2652
      %v2749 = vunpack.c.l.b16 %v2653
      %v2750 = vunpack.c.l.b16 %v2654
      %v2751 = vunpack.c.l.b16 %v2655
      %v2752 = vunpack.c.l.b16 %v2656
      %v2753 = vpack.c.b16 %v2706, %v2705
      %v2754 = vpack.c.b16 %v2708, %v2707
      %v2755 = vpack.c.b16 %v2710, %v2709
      %v2756 = vpack.c.b16 %v2712, %v2711
      %v2757 = vpack.c.b16 %v2714, %v2713
      %v2758 = vpack.c.b16 %v2716, %v2715
      %v2759 = vpack.c.b16 %v2718, %v2717
      %v2760 = vpack.c.b16 %v2720, %v2719
      %v2761 = vpack.c.b16 %v2722, %v2721
      %v2762 = vpack.c.b16 %v2724, %v2723
      %v2763 = vpack.c.b16 %v2726, %v2725
      %v2764 = vpack.c.b16 %v2728, %v2727
      %v2765 = vpack.c.b16 %v2730, %v2729
      %v2766 = vpack.c.b16 %v2732, %v2731
      %v2767 = vpack.c.b16 %v2734, %v2733
      %v2768 = vpack.c.b16 %v2736, %v2735
      %v2769 = vpack.c.b16 %v2738, %v2737
      %v2770 = vpack.c.b16 %v2740, %v2739
      %v2771 = vpack.c.b16 %v2742, %v2741
      %v2772 = vpack.c.b16 %v2744, %v2743
      %v2773 = vpack.c.b16 %v2746, %v2745
      %v2774 = vpack.c.b16 %v2748, %v2747
      %v2775 = vpack.c.b16 %v2750, %v2749
      %v2776 = vpack.c.b16 %v2752, %v2751
      %2801 = vmatprep.subr.bf16.mxu0 0
      %2802 = vmatpush1.bf16.msra.mxu0 %v2760
      %2803 = vmatprep.subr.bf16.mxu0 0
      %2804 = vmatpush1.bf16.msra.mxu0 %v2759
      %2805 = vmatprep.subr.bf16.mxu0 0
      %2806 = vmatpush1.bf16.msra.mxu0 %v2758
      %2807 = vmatprep.subr.bf16.mxu0 0
      %2808 = vmatpush1.bf16.msra.mxu0 %v2757
      %2809 = vmatprep.subr.bf16.mxu0 0
      %2810 = vmatpush1.bf16.msra.mxu0 %v2756
      %2811 = vmatprep.subr.bf16.mxu0 0
      %2812 = vmatpush1.bf16.msra.mxu0 %v2755
      %2813 = vmatprep.subr.bf16.mxu0 0
      %2814 = vmatpush1.bf16.msra.mxu0 %v2754
      %2815 = vmatprep.subr.bf16.mxu0 0
      %2816 = vmatpush1.bf16.msra.mxu0 %v2753
      %2817 = vmatprep.subr.bf16.mxu0 0
      %2818 = vmatpush2.bf16.msra.mxu0 %v2768
      %2819 = vmatprep.subr.bf16.mxu0 0
      %2820 = vmatpush2.bf16.msra.mxu0 %v2767
      %2821 = vmatprep.subr.bf16.mxu0 0
      %2822 = vmatpush2.bf16.msra.mxu0 %v2766
      %2823 = vmatprep.subr.bf16.mxu0 0
      %2824 = vmatpush2.bf16.msra.mxu0 %v2765
      %2825 = vmatprep.subr.bf16.mxu0 0
      %2826 = vmatpush2.bf16.msra.mxu0 %v2764
      %2827 = vmatprep.subr.bf16.mxu0 0
      %2828 = vmatpush2.bf16.msra.mxu0 %v2763
      %2829 = vmatprep.subr.bf16.mxu0 0
      %2830 = vmatpush2.bf16.msra.mxu0 %v2762
      %2831 = vmatprep.subr.bf16.mxu0 0
      %2832 = vmatpush2.bf16.msra.mxu0 %v2761
      %2833 = vmatprep.mubr.bf16.mxu0 %v2347
      %2834 = vmatmul.mubr.bf16.gmra.mxu0 %v2256
      %v2835 = vpop.f32.mrf.mxu0
      %v2836 = vadd.f32 0.0, %v2835
      %v2837 = vpop.f32.mrf.mxu0
      %v2838 = vpop.f32.mrf.mxu0
      %v2839 = vadd.f32 0.0, %v2838
      %v2840 = vpop.f32.mrf.mxu0
      %2841 = vmatprep.mubr.bf16.mxu0 %v2359
      %2842 = vmatmul.mubr.bf16.gmra.mxu0 %v2257
      %v2843 = vpop.f32.mrf.mxu0
      %v2844 = vadd.f32 0.0, %v2843
      %v2845 = vpop.f32.mrf.mxu0
      %v2846 = vpop.f32.mrf.mxu0
      %v2847 = vadd.f32 0.0, %v2846
      %v2848 = vpop.f32.mrf.mxu0
      %2849 = vmatprep.mubr.bf16.mxu0 %v2371
      %2850 = vmatmul.mubr.bf16.gmra.mxu0 %v2258
      %v2851 = vpop.f32.mrf.mxu0
      %v2852 = vadd.f32 0.0, %v2851
      %v2853 = vpop.f32.mrf.mxu0
      %v2854 = vpop.f32.mrf.mxu0
      %v2855 = vadd.f32 0.0, %v2854
      %v2856 = vpop.f32.mrf.mxu0
      %2857 = vmatprep.mubr.bf16.mxu0 %v2383
      %2858 = vmatmul.mubr.bf16.gmra.mxu0 %v2259
      %v2859 = vpop.f32.mrf.mxu0
      %v2860 = vadd.f32 0.0, %v2859
      %v2861 = vpop.f32.mrf.mxu0
      %v2862 = vpop.f32.mrf.mxu0
      %v2863 = vadd.f32 0.0, %v2862
      %v2864 = vpop.f32.mrf.mxu0
      %2865 = vmatprep.mubr.bf16.mxu0 %v2395
      %2866 = vmatmul.mubr.bf16.gmra.mxu0 %v2260
      %v2867 = vpop.f32.mrf.mxu0
      %v2868 = vadd.f32 0.0, %v2867
      %v2869 = vpop.f32.mrf.mxu0
      %v2870 = vpop.f32.mrf.mxu0
      %v2871 = vadd.f32 0.0, %v2870
      %v2872 = vpop.f32.mrf.mxu0
      %2873 = vmatprep.mubr.bf16.mxu0 %v2407
      %2874 = vmatmul.mubr.bf16.gmra.mxu0 %v2261
      %v2875 = vpop.f32.mrf.mxu0
      %v2876 = vadd.f32 0.0, %v2875
      %v2877 = vpop.f32.mrf.mxu0
      %v2878 = vpop.f32.mrf.mxu0
      %v2879 = vadd.f32 0.0, %v2878
      %v2880 = vpop.f32.mrf.mxu0
      %2881 = vmatprep.mubr.bf16.mxu0 %v2419
      %2882 = vmatmul.mubr.bf16.gmra.mxu0 %v2262
      %v2883 = vpop.f32.mrf.mxu0
      %v2884 = vadd.f32 0.0, %v2883
      %v2885 = vpop.f32.mrf.mxu0
      %v2886 = vpop.f32.mrf.mxu0
      %v2887 = vadd.f32 0.0, %v2886
      %v2888 = vpop.f32.mrf.mxu0
      %2889 = vmatprep.mubr.bf16.mxu0 %v2431
      %2890 = vmatmul.mubr.bf16.gmra.mxu0 %v2263
      %v2891 = vpop.f32.mrf.mxu0
      %v2892 = vadd.f32 0.0, %v2891
      %v2893 = vpop.f32.mrf.mxu0
      %v2894 = vpop.f32.mrf.mxu0
      %v2895 = vadd.f32 0.0, %v2894
      %v2896 = vpop.f32.mrf.mxu0
      %2897 = vmatprep.mubr.bf16.mxu0 %v2443
      %2898 = vmatmul.mubr.bf16.gmra.mxu0 %v2264
      %v2899 = vpop.f32.mrf.mxu0
      %v2900 = vadd.f32 0.0, %v2899
      %v2901 = vpop.f32.mrf.mxu0
      %v2902 = vpop.f32.mrf.mxu0
      %v2903 = vadd.f32 0.0, %v2902
      %v2904 = vpop.f32.mrf.mxu0
      %2905 = vmatprep.mubr.bf16.mxu0 %v2455
      %2906 = vmatmul.mubr.bf16.gmra.mxu0 %v2265
      %v2907 = vpop.f32.mrf.mxu0
      %v2908 = vadd.f32 0.0, %v2907
      %v2909 = vpop.f32.mrf.mxu0
      %v2910 = vpop.f32.mrf.mxu0
      %v2911 = vadd.f32 0.0, %v2910
      %v2912 = vpop.f32.mrf.mxu0
      %2913 = vmatprep.mubr.bf16.mxu0 %v2467
      %2914 = vmatmul.mubr.bf16.gmra.mxu0 %v2266
      %v2915 = vpop.f32.mrf.mxu0
      %v2916 = vadd.f32 0.0, %v2915
      %v2917 = vpop.f32.mrf.mxu0
      %v2918 = vpop.f32.mrf.mxu0
      %v2919 = vadd.f32 0.0, %v2918
      %v2920 = vpop.f32.mrf.mxu0
      %2921 = vmatprep.mubr.bf16.mxu0 %v2479
      %2922 = vmatmul.mubr.bf16.gmra.mxu0 %v2267
      %v2923 = vpop.f32.mrf.mxu0
      %v2924 = vadd.f32 0.0, %v2923
      %v2925 = vpop.f32.mrf.mxu0
      %v2926 = vpop.f32.mrf.mxu0
      %v2927 = vadd.f32 0.0, %v2926
      %v2928 = vpop.f32.mrf.mxu0
      %2929 = vmatprep.mubr.bf16.mxu0 %v2491
      %2930 = vmatmul.mubr.bf16.gmra.mxu0 %v2268
      %v2931 = vpop.f32.mrf.mxu0
      %v2932 = vadd.f32 0.0, %v2931
      %v2933 = vpop.f32.mrf.mxu0
      %v2934 = vpop.f32.mrf.mxu0
      %v2935 = vadd.f32 0.0, %v2934
      %v2936 = vpop.f32.mrf.mxu0
      %2937 = vmatprep.mubr.bf16.mxu0 %v2503
      %2938 = vmatmul.mubr.bf16.gmra.mxu0 %v2269
      %v2939 = vpop.f32.mrf.mxu0
      %v2940 = vadd.f32 0.0, %v2939
      %v2941 = vpop.f32.mrf.mxu0
      %v2942 = vpop.f32.mrf.mxu0
      %v2943 = vadd.f32 0.0, %v2942
      %v2944 = vpop.f32.mrf.mxu0
      %2945 = vmatprep.mubr.bf16.mxu0 %v2515
      %2946 = vmatmul.mubr.bf16.gmra.mxu0 %v2270
      %v2947 = vpop.f32.mrf.mxu0
      %v2948 = vadd.f32 0.0, %v2947
      %v2949 = vpop.f32.mrf.mxu0
      %v2950 = vpop.f32.mrf.mxu0
      %v2951 = vadd.f32 0.0, %v2950
      %v2952 = vpop.f32.mrf.mxu0
      %2953 = vmatprep.mubr.bf16.mxu0 %v2527
      %2954 = vmatmul.mubr.bf16.gmra.mxu0 %v2271
      %v2955 = vpop.f32.mrf.mxu0
      %v2956 = vadd.f32 0.0, %v2955
      %v2957 = vpop.f32.mrf.mxu0
      %v2958 = vpop.f32.mrf.mxu0
      %v2959 = vadd.f32 0.0, %v2958
      %v2960 = vpop.f32.mrf.mxu0
      %2961 = vdwg.mxu0
      %2962 = vmatprep.subr.bf16.mxu0 0
      %2963 = vmatpush1.bf16.msra.mxu0 %v2776
      %2964 = vmatprep.subr.bf16.mxu0 0
      %2965 = vmatpush1.bf16.msra.mxu0 %v2775
      %2966 = vmatprep.subr.bf16.mxu0 0
      %2967 = vmatpush1.bf16.msra.mxu0 %v2774
      %2968 = vmatprep.subr.bf16.mxu0 0
      %2969 = vmatpush1.bf16.msra.mxu0 %v2773
      %2970 = vmatprep.subr.bf16.mxu0 0
      %2971 = vmatpush1.bf16.msra.mxu0 %v2772
      %2972 = vmatprep.subr.bf16.mxu0 0
      %2973 = vmatpush1.bf16.msra.mxu0 %v2771
      %2974 = vmatprep.subr.bf16.mxu0 0
      %2975 = vmatpush1.bf16.msra.mxu0 %v2770
      %2976 = vmatprep.subr.bf16.mxu0 0
      %2977 = vmatpush1.bf16.msra.mxu0 %v2769
      %2978 = vmatprep.subr.bf16.mxu0 0
      %2979 = vmatpush2.bf16.msra.mxu0 0
      %2980 = vmatprep.subr.bf16.mxu0 0
      %2981 = vmatpush2.bf16.msra.mxu0 0
      %2982 = vmatprep.subr.bf16.mxu0 0
      %2983 = vmatpush2.bf16.msra.mxu0 0
      %2984 = vmatprep.subr.bf16.mxu0 0
      %2985 = vmatpush2.bf16.msra.mxu0 0
      %2986 = vmatprep.subr.bf16.mxu0 0
      %2987 = vmatpush2.bf16.msra.mxu0 0
      %2988 = vmatprep.subr.bf16.mxu0 0
      %2989 = vmatpush2.bf16.msra.mxu0 0
      %2990 = vmatprep.subr.bf16.mxu0 0
      %2991 = vmatpush2.bf16.msra.mxu0 0
      %2992 = vmatprep.subr.bf16.mxu0 0
      %2993 = vmatpush2.bf16.msra.mxu0 0
      %2994 = vmatprep.mubr.bf16.mxu0 0
      %2995 = vmatmul.mubr.bf16.gmra.mxu0 %v2546
      %v2996 = vpop.f32.mrf.mxu0
      %v2997 = vadd.f32 %v2836, %v2996
      %v2998 = vpop.f32.mrf.mxu0
      %v2999 = vpop.f32.mrf.mxu0
      %v3000 = vadd.f32 %v2839, %v2999
      %v3001 = vpop.f32.mrf.mxu0
      %3002 = vmatprep.mubr.bf16.mxu0 0
      %3003 = vmatmul.mubr.bf16.gmra.mxu0 %v2549
      %v3004 = vpop.f32.mrf.mxu0
      %v3005 = vadd.f32 %v2844, %v3004
      %v3006 = vpop.f32.mrf.mxu0
      %v3007 = vpop.f32.mrf.mxu0
      %v3008 = vadd.f32 %v2847, %v3007
      %v3009 = vpop.f32.mrf.mxu0
      %3010 = vmatprep.mubr.bf16.mxu0 0
      %3011 = vmatmul.mubr.bf16.gmra.mxu0 %v2552
      %v3012 = vpop.f32.mrf.mxu0
      %v3013 = vadd.f32 %v2852, %v3012
      %v3014 = vpop.f32.mrf.mxu0
      %v3015 = vpop.f32.mrf.mxu0
      %v3016 = vadd.f32 %v2855, %v3015
      %v3017 = vpop.f32.mrf.mxu0
      %3018 = vmatprep.mubr.bf16.mxu0 0
      %3019 = vmatmul.mubr.bf16.gmra.mxu0 %v2555
      %v3020 = vpop.f32.mrf.mxu0
      %v3021 = vadd.f32 %v2860, %v3020
      %v3022 = vpop.f32.mrf.mxu0
      %v3023 = vpop.f32.mrf.mxu0
      %v3024 = vadd.f32 %v2863, %v3023
      %v3025 = vpop.f32.mrf.mxu0
      %3026 = vmatprep.mubr.bf16.mxu0 0
      %3027 = vmatmul.mubr.bf16.gmra.mxu0 %v2558
      %v3028 = vpop.f32.mrf.mxu0
      %v3029 = vadd.f32 %v2868, %v3028
      %v3030 = vpop.f32.mrf.mxu0
      %v3031 = vpop.f32.mrf.mxu0
      %v3032 = vadd.f32 %v2871, %v3031
      %v3033 = vpop.f32.mrf.mxu0
      %3034 = vmatprep.mubr.bf16.mxu0 0
      %3035 = vmatmul.mubr.bf16.gmra.mxu0 %v2561
      %v3036 = vpop.f32.mrf.mxu0
      %v3037 = vadd.f32 %v2876, %v3036
      %v3038 = vpop.f32.mrf.mxu0
      %v3039 = vpop.f32.mrf.mxu0
      %v3040 = vadd.f32 %v2879, %v3039
      %v3041 = vpop.f32.mrf.mxu0
      %3042 = vmatprep.mubr.bf16.mxu0 0
      %3043 = vmatmul.mubr.bf16.gmra.mxu0 %v2564
      %v3044 = vpop.f32.mrf.mxu0
      %v3045 = vadd.f32 %v2884, %v3044
      %v3046 = vpop.f32.mrf.mxu0
      %v3047 = vpop.f32.mrf.mxu0
      %v3048 = vadd.f32 %v2887, %v3047
      %v3049 = vpop.f32.mrf.mxu0
      %3050 = vmatprep.mubr.bf16.mxu0 0
      %3051 = vmatmul.mubr.bf16.gmra.mxu0 %v2567
      %v3052 = vpop.f32.mrf.mxu0
      %v3053 = vadd.f32 %v2892, %v3052
      %v3054 = vpop.f32.mrf.mxu0
      %v3055 = vpop.f32.mrf.mxu0
      %v3056 = vadd.f32 %v2895, %v3055
      %v3057 = vpop.f32.mrf.mxu0
      %3058 = vmatprep.mubr.bf16.mxu0 0
      %3059 = vmatmul.mubr.bf16.gmra.mxu0 %v2570
      %v3060 = vpop.f32.mrf.mxu0
      %v3061 = vadd.f32 %v2900, %v3060
      %v3062 = vpop.f32.mrf.mxu0
      %v3063 = vpop.f32.mrf.mxu0
      %v3064 = vadd.f32 %v2903, %v3063
      %v3065 = vpop.f32.mrf.mxu0
      %3066 = vmatprep.mubr.bf16.mxu0 0
      %3067 = vmatmul.mubr.bf16.gmra.mxu0 %v2573
      %v3068 = vpop.f32.mrf.mxu0
      %v3069 = vadd.f32 %v2908, %v3068
      %v3070 = vpop.f32.mrf.mxu0
      %v3071 = vpop.f32.mrf.mxu0
      %v3072 = vadd.f32 %v2911, %v3071
      %v3073 = vpop.f32.mrf.mxu0
      %3074 = vmatprep.mubr.bf16.mxu0 0
      %3075 = vmatmul.mubr.bf16.gmra.mxu0 %v2576
      %v3076 = vpop.f32.mrf.mxu0
      %v3077 = vadd.f32 %v2916, %v3076
      %v3078 = vpop.f32.mrf.mxu0
      %v3079 = vpop.f32.mrf.mxu0
      %v3080 = vadd.f32 %v2919, %v3079
      %v3081 = vpop.f32.mrf.mxu0
      %3082 = vmatprep.mubr.bf16.mxu0 0
      %3083 = vmatmul.mubr.bf16.gmra.mxu0 %v2579
      %v3084 = vpop.f32.mrf.mxu0
      %v3085 = vadd.f32 %v2924, %v3084
      %v3086 = vpop.f32.mrf.mxu0
      %v3087 = vpop.f32.mrf.mxu0
      %v3088 = vadd.f32 %v2927, %v3087
      %v3089 = vpop.f32.mrf.mxu0
      %3090 = vmatprep.mubr.bf16.mxu0 0
      %3091 = vmatmul.mubr.bf16.gmra.mxu0 %v2582
      %v3092 = vpop.f32.mrf.mxu0
      %v3093 = vadd.f32 %v2932, %v3092
      %v3094 = vpop.f32.mrf.mxu0
      %v3095 = vpop.f32.mrf.mxu0
      %v3096 = vadd.f32 %v2935, %v3095
      %v3097 = vpop.f32.mrf.mxu0
      %3098 = vmatprep.mubr.bf16.mxu0 0
      %3099 = vmatmul.mubr.bf16.gmra.mxu0 %v2585
      %v3100 = vpop.f32.mrf.mxu0
      %v3101 = vadd.f32 %v2940, %v3100
      %v3102 = vpop.f32.mrf.mxu0
      %v3103 = vpop.f32.mrf.mxu0
      %v3104 = vadd.f32 %v2943, %v3103
      %v3105 = vpop.f32.mrf.mxu0
      %3106 = vmatprep.mubr.bf16.mxu0 0
      %3107 = vmatmul.mubr.bf16.gmra.mxu0 %v2588
      %v3108 = vpop.f32.mrf.mxu0
      %v3109 = vadd.f32 %v2948, %v3108
      %v3110 = vpop.f32.mrf.mxu0
      %v3111 = vpop.f32.mrf.mxu0
      %v3112 = vadd.f32 %v2951, %v3111
      %v3113 = vpop.f32.mrf.mxu0
      %3114 = vmatprep.mubr.bf16.mxu0 0
      %3115 = vmatmul.mubr.bf16.gmra.mxu0 %v2591
      %v3116 = vpop.f32.mrf.mxu0
      %v3117 = vadd.f32 %v2956, %v3116
      %v3118 = vpop.f32.mrf.mxu0
      %v3119 = vpop.f32.mrf.mxu0
      %v3120 = vadd.f32 %v2959, %v3119
      %v3121 = vpop.f32.mrf.mxu0
      %3122 = vdwg.mxu0
      %v3123 = vadd.f32 %v2017, %v2997
      %v3124 = vadd.f32 %v2020, %v3000
      %v3125 = vadd.f32 %v2025, %v3005
      %v3126 = vadd.f32 %v2028, %v3008
      %v3127 = vadd.f32 %v2033, %v3013
      %v3128 = vadd.f32 %v2036, %v3016
      %v3129 = vadd.f32 %v2041, %v3021
      %v3130 = vadd.f32 %v2044, %v3024
      %v3131 = vadd.f32 %v2049, %v3029
      %v3132 = vadd.f32 %v2052, %v3032
      %v3133 = vadd.f32 %v2057, %v3037
      %v3134 = vadd.f32 %v2060, %v3040
      %v3135 = vadd.f32 %v2065, %v3045
      %v3136 = vadd.f32 %v2068, %v3048
      %v3137 = vadd.f32 %v2073, %v3053
      %v3138 = vadd.f32 %v2076, %v3056
      %v3139 = vadd.f32 %v2081, %v3061
      %v3140 = vadd.f32 %v2084, %v3064
      %v3141 = vadd.f32 %v2089, %v3069
      %v3142 = vadd.f32 %v2092, %v3072
      %v3143 = vadd.f32 %v2097, %v3077
      %v3144 = vadd.f32 %v2100, %v3080
      %v3145 = vadd.f32 %v2105, %v3085
      %v3146 = vadd.f32 %v2108, %v3088
      %v3147 = vadd.f32 %v2113, %v3093
      %v3148 = vadd.f32 %v2116, %v3096
      %v3149 = vadd.f32 %v2121, %v3101
      %v3150 = vadd.f32 %v2124, %v3104
      %v3151 = vadd.f32 %v2129, %v3109
      %v3152 = vadd.f32 %v2132, %v3112
      %v3153 = vadd.f32 %v2137, %v3117
      %v3154 = vadd.f32 %v2140, %v3120
      %v3155 = vpack.c.bf16 %v3124, %v3123
      %v3156 = vpack.c.bf16 %v3126, %v3125
      %v3157 = vpack.c.bf16 %v3128, %v3127
      %v3158 = vpack.c.bf16 %v3130, %v3129
      %v3159 = vpack.c.bf16 %v3132, %v3131
      %v3160 = vpack.c.bf16 %v3134, %v3133
      %v3161 = vpack.c.bf16 %v3136, %v3135
      %v3162 = vpack.c.bf16 %v3138, %v3137
      %v3163 = vpack.c.bf16 %v3140, %v3139
      %v3164 = vpack.c.bf16 %v3142, %v3141
      %v3165 = vpack.c.bf16 %v3144, %v3143
      %v3166 = vpack.c.bf16 %v3146, %v3145
      %v3167 = vpack.c.bf16 %v3148, %v3147
      %v3168 = vpack.c.bf16 %v3150, %v3149
      %v3169 = vpack.c.bf16 %v3152, %v3151
      %v3170 = vpack.c.bf16 %v3154, %v3153
      %v3187 = vunpack.c.l.b16 %v3155
      %v3188 = vunpack.c.h.b16 %v3155
      %v3189 = vunpack.c.l.b16 %v3156
      %v3190 = vunpack.c.h.b16 %v3156
      %v3191 = vunpack.c.l.b16 %v3157
      %v3192 = vunpack.c.h.b16 %v3157
      %v3193 = vunpack.c.l.b16 %v3158
      %v3194 = vunpack.c.h.b16 %v3158
      %v3195 = vunpack.c.l.b16 %v3159
      %v3196 = vunpack.c.h.b16 %v3159
      %v3197 = vunpack.c.l.b16 %v3160
      %v3198 = vunpack.c.h.b16 %v3160
      %v3199 = vunpack.c.l.b16 %v3161
      %v3200 = vunpack.c.h.b16 %v3161
      %v3201 = vunpack.c.l.b16 %v3162
      %v3202 = vunpack.c.h.b16 %v3162
      %v3203 = vunpack.c.l.b16 %v3163
      %v3204 = vunpack.c.h.b16 %v3163
      %v3205 = vunpack.c.l.b16 %v3164
      %v3206 = vunpack.c.h.b16 %v3164
      %v3207 = vunpack.c.l.b16 %v3165
      %v3208 = vunpack.c.h.b16 %v3165
      %v3209 = vunpack.c.l.b16 %v3166
      %v3210 = vunpack.c.h.b16 %v3166
      %v3211 = vunpack.c.l.b16 %v3167
      %v3212 = vunpack.c.h.b16 %v3167
      %v3213 = vunpack.c.l.b16 %v3168
      %v3214 = vunpack.c.h.b16 %v3168
      %v3215 = vunpack.c.l.b16 %v3169
      %v3216 = vunpack.c.h.b16 %v3169
      %v3217 = vunpack.c.l.b16 %v3170
      %v3218 = vunpack.c.h.b16 %v3170
      %v3219 = vpack.c.b16 %v3187, %v3187
      %v3220 = vpack.c.b16 %v3188, %v3188
      %v3221 = vpack.c.b16 %v3189, %v3189
      %v3222 = vpack.c.b16 %v3190, %v3190
      %v3223 = vpack.c.b16 %v3191, %v3191
      %v3224 = vpack.c.b16 %v3192, %v3192
      %v3225 = vpack.c.b16 %v3193, %v3193
      %v3226 = vpack.c.b16 %v3194, %v3194
      %v3227 = vpack.c.b16 %v3195, %v3195
      %v3228 = vpack.c.b16 %v3196, %v3196
      %v3229 = vpack.c.b16 %v3197, %v3197
      %v3230 = vpack.c.b16 %v3198, %v3198
      %v3231 = vpack.c.b16 %v3199, %v3199
      %v3232 = vpack.c.b16 %v3200, %v3200
      %v3233 = vpack.c.b16 %v3201, %v3201
      %v3234 = vpack.c.b16 %v3202, %v3202
      %v3235 = vpack.c.b16 %v3203, %v3203
      %v3236 = vpack.c.b16 %v3204, %v3204
      %v3237 = vpack.c.b16 %v3205, %v3205
      %v3238 = vpack.c.b16 %v3206, %v3206
      %v3239 = vpack.c.b16 %v3207, %v3207
      %v3240 = vpack.c.b16 %v3208, %v3208
      %v3241 = vpack.c.b16 %v3209, %v3209
      %v3242 = vpack.c.b16 %v3210, %v3210
      %v3243 = vpack.c.b16 %v3211, %v3211
      %v3244 = vpack.c.b16 %v3212, %v3212
      %v3245 = vpack.c.b16 %v3213, %v3213
      %v3246 = vpack.c.b16 %v3214, %v3214
      %v3247 = vpack.c.b16 %v3215, %v3215
      %v3248 = vpack.c.b16 %v3216, %v3216
      %v3249 = vpack.c.b16 %v3217, %v3217
      %v3250 = vpack.c.b16 %v3218, %v3218
      %3283 = vst [vmem:[%s177] sm:$0xf] %v3219
      %3284 = vst [vmem:[%s177 + $0x4] sm:$0xf] %v3220
      %3285 = vst [vmem:[%s177 + $0x8] sm:$0xf] %v3221
      %3286 = vst [vmem:[%s177 + $0xc] sm:$0xf] %v3222
      %3287 = vst [vmem:[%s177 + $0x10] sm:$0xf] %v3223
      %3288 = vst [vmem:[%s177 + $0x14] sm:$0xf] %v3224
      %3289 = vst [vmem:[%s177 + $0x18] sm:$0xf] %v3225
      %3290 = vst [vmem:[%s177 + $0x1c] sm:$0xf] %v3226
      %3291 = vst [vmem:[%s177 + $0x20] sm:$0xf] %v3227
      %3292 = vst [vmem:[%s177 + $0x24] sm:$0xf] %v3228
      %3293 = vst [vmem:[%s177 + $0x28] sm:$0xf] %v3229
      %3294 = vst [vmem:[%s177 + $0x2c] sm:$0xf] %v3230
      %3295 = vst [vmem:[%s177 + $0x30] sm:$0xf] %v3231
      %3296 = vst [vmem:[%s177 + $0x34] sm:$0xf] %v3232
      %3297 = vst [vmem:[%s177 + $0x38] sm:$0xf] %v3233
      %3298 = vst [vmem:[%s177 + $0x3c] sm:$0xf] %v3234
      %3299 = vst [vmem:[%s177 + $0x40] sm:$0xf] %v3235
      %3300 = vst [vmem:[%s177 + $0x44] sm:$0xf] %v3236
      %3301 = vst [vmem:[%s177 + $0x48] sm:$0xf] %v3237
      %3302 = vst [vmem:[%s177 + $0x4c] sm:$0xf] %v3238
      %3303 = vst [vmem:[%s177 + $0x50] sm:$0xf] %v3239
      %3304 = vst [vmem:[%s177 + $0x54] sm:$0xf] %v3240
      %3305 = vst [vmem:[%s177 + $0x58] sm:$0xf] %v3241
      %3306 = vst [vmem:[%s177 + $0x5c] sm:$0xf] %v3242
      %3307 = vst [vmem:[%s177 + $0x60] sm:$0xf] %v3243
      %3308 = vst [vmem:[%s177 + $0x64] sm:$0xf] %v3244
      %3309 = vst [vmem:[%s177 + $0x68] sm:$0xf] %v3245
      %3310 = vst [vmem:[%s177 + $0x6c] sm:$0xf] %v3246
      %3311 = vst [vmem:[%s177 + $0x70] sm:$0xf] %v3247
      %3312 = vst [vmem:[%s177 + $0x74] sm:$0xf] %v3248
      %3313 = vst [vmem:[%s177 + $0x78] sm:$0xf] %v3249
      %3314 = vst [vmem:[%s177 + $0x7c] sm:$0xf] %v3250
      %v3315 = vadd.f32 %v3123, %v3124
      %v3316 = vadd.f32 %v3315, %v3125
      %v3317 = vadd.f32 %v3316, %v3126
      %v3318 = vadd.f32 %v3317, %v3127
      %v3319 = vadd.f32 %v3318, %v3128
      %v3320 = vadd.f32 %v3319, %v3129
      %v3321 = vadd.f32 %v3320, %v3130
      %v3322 = vadd.f32 %v3321, %v3131
      %v3323 = vadd.f32 %v3322, %v3132
      %v3324 = vadd.f32 %v3323, %v3133
      %v3325 = vadd.f32 %v3324, %v3134
      %v3326 = vadd.f32 %v3325, %v3135
      %v3327 = vadd.f32 %v3326, %v3136
      %v3328 = vadd.f32 %v3327, %v3137
      %v3329 = vadd.f32 %v3328, %v3138
      %v3330 = vadd.f32 %v3329, %v3139
      %v3331 = vadd.f32 %v3330, %v3140
      %v3332 = vadd.f32 %v3331, %v3141
      %v3333 = vadd.f32 %v3332, %v3142
      %v3334 = vadd.f32 %v3333, %v3143
      %v3335 = vadd.f32 %v3334, %v3144
      %v3336 = vadd.f32 %v3335, %v3145
      %v3337 = vadd.f32 %v3336, %v3146
      %v3338 = vadd.f32 %v3337, %v3147
      %v3339 = vadd.f32 %v3338, %v3148
      %v3340 = vadd.f32 %v3339, %v3149
      %v3341 = vadd.f32 %v3340, %v3150
      %v3342 = vadd.f32 %v3341, %v3151
      %v3343 = vadd.f32 %v3342, %v3152
      %v3344 = vadd.f32 %v3343, %v3153
      %v3345 = vadd.f32 %v3344, %v3154
      %v3346 = vrot.slane %v3345, 4
      %v3347 = vadd.f32 %v3345, %v3346
      %v3348 = vrot.slane %v3347, 2
      %v3349 = vadd.f32 %v3347, %v3348
      %v3350 = vrot.slane %v3349, 1
      %v3351 = vadd.f32 %v3349, %v3350
      %v3352 = vmul.f32 %v3123, %v3123
      %v3353 = vmul.f32 %v3124, %v3124
      %v3354 = vmul.f32 %v3125, %v3125
      %v3355 = vmul.f32 %v3126, %v3126
      %v3356 = vmul.f32 %v3127, %v3127
      %v3357 = vmul.f32 %v3128, %v3128
      %v3358 = vmul.f32 %v3129, %v3129
      %v3359 = vmul.f32 %v3130, %v3130
      %v3360 = vmul.f32 %v3131, %v3131
      %v3361 = vmul.f32 %v3132, %v3132
      %v3362 = vmul.f32 %v3133, %v3133
      %v3363 = vmul.f32 %v3134, %v3134
      %v3364 = vmul.f32 %v3135, %v3135
      %v3365 = vmul.f32 %v3136, %v3136
      %v3366 = vmul.f32 %v3137, %v3137
      %v3367 = vmul.f32 %v3138, %v3138
      %v3368 = vmul.f32 %v3139, %v3139
      %v3369 = vmul.f32 %v3140, %v3140
      %v3370 = vmul.f32 %v3141, %v3141
      %v3371 = vmul.f32 %v3142, %v3142
      %v3372 = vmul.f32 %v3143, %v3143
      %v3373 = vmul.f32 %v3144, %v3144
      %v3374 = vmul.f32 %v3145, %v3145
      %v3375 = vmul.f32 %v3146, %v3146
      %v3376 = vmul.f32 %v3147, %v3147
      %v3377 = vmul.f32 %v3148, %v3148
      %v3378 = vmul.f32 %v3149, %v3149
      %v3379 = vmul.f32 %v3150, %v3150
      %v3380 = vmul.f32 %v3151, %v3151
      %v3381 = vmul.f32 %v3152, %v3152
      %v3382 = vmul.f32 %v3153, %v3153
      %v3383 = vmul.f32 %v3154, %v3154
      %v3384 = vadd.f32 %v3352, %v3353
      %v3385 = vadd.f32 %v3384, %v3354
      %v3386 = vadd.f32 %v3385, %v3355
      %v3387 = vadd.f32 %v3386, %v3356
      %v3388 = vadd.f32 %v3387, %v3357
      %v3389 = vadd.f32 %v3388, %v3358
      %v3390 = vadd.f32 %v3389, %v3359
      %v3391 = vadd.f32 %v3390, %v3360
      %v3392 = vadd.f32 %v3391, %v3361
      %v3393 = vadd.f32 %v3392, %v3362
      %v3394 = vadd.f32 %v3393, %v3363
      %v3395 = vadd.f32 %v3394, %v3364
      %v3396 = vadd.f32 %v3395, %v3365
      %v3397 = vadd.f32 %v3396, %v3366
      %v3398 = vadd.f32 %v3397, %v3367
      %v3399 = vadd.f32 %v3398, %v3368
      %v3400 = vadd.f32 %v3399, %v3369
      %v3401 = vadd.f32 %v3400, %v3370
      %v3402 = vadd.f32 %v3401, %v3371
      %v3403 = vadd.f32 %v3402, %v3372
      %v3404 = vadd.f32 %v3403, %v3373
      %v3405 = vadd.f32 %v3404, %v3374
      %v3406 = vadd.f32 %v3405, %v3375
      %v3407 = vadd.f32 %v3406, %v3376
      %v3408 = vadd.f32 %v3407, %v3377
      %v3409 = vadd.f32 %v3408, %v3378
      %v3410 = vadd.f32 %v3409, %v3379
      %v3411 = vadd.f32 %v3410, %v3380
      %v3412 = vadd.f32 %v3411, %v3381
      %v3413 = vadd.f32 %v3412, %v3382
      %v3414 = vadd.f32 %v3413, %v3383
      %v3415 = vrot.slane %v3414, 4
      %v3416 = vadd.f32 %v3414, %v3415
      %v3417 = vrot.slane %v3416, 2
      %v3418 = vadd.f32 %v3416, %v3417
      %v3419 = vrot.slane %v3418, 1
      %v3420 = vadd.f32 %v3418, %v3419
      %vm3421 = vcmask 1040384
      %v3422 = vsel %vm3421, %v3351, %v3420
      %3423 = vst [vmem:[%s181] sm:$0x3] %v3422
      %p3424 = scmp.lt.s32.totalorder %s15, 1
      %s3425 = scalar_select %p3424, %s15, 1
      %s3426 = smul.addr %s3425, 32
      %s3427 = smul.addr %s3426, 4
      %s3428 = scalar_lea.vmem %s2, %s3427
      %p3429 = scmp.lt.s32.totalorder %s15, 1
      %s3430 = scalar_select %p3429, %s15, 1
      %s3431 = smul.addr %s3430, 2
      %s3432 = scalar_lea.vmem %s3, %s3431
      // Predicated region
      $region29: #{resnet_block_forward.3} parent=27 // pred_check
        %p3433 = pneg %p80
      $region30: #{resnet_block_forward.3} parent=27 // pred_check_branch
        %3435 = sbr.rel (%p3433) target = $region32
      $region31: #{resnet_block_forward.3} parent=27 // pred_region
        _
      $region32: #{resnet_block_forward.3} parent=27 // pred_fallthru
        _
      // Predicated region
      $region33: #{resnet_block_forward.3} parent=27 // pred_check
        %p3436 = pneg %p106
      $region34: #{resnet_block_forward.3} parent=27 // pred_check_branch
        %3438 = sbr.rel (%p3436) target = $region36
      $region35: #{resnet_block_forward.3} parent=27 // pred_region
        _
      $region36: #{resnet_block_forward.3} parent=27 // pred_fallthru
        _
    $region28: #{resnet_block_forward.3} parent=5 // pred_fallthru
      _
    %p3439 = scmp.le.s32.totalorder 2, %s10
    // Predicated region
    $region37: #{resnet_block_forward.3} parent=5 // pred_check
      %p3440 = pneg %p3439
    $region38: #{resnet_block_forward.3} parent=5 // pred_check_branch
      %3442 = sbr.rel (%p3440) target = $region40
    $region39: #{resnet_block_forward.3} parent=5 // pred_region
      %s3443 = ssub.s32 %s10, 2
      // Predicated region
      $region41: #{resnet_block_forward.3} parent=39 // pred_check
        %p3444 = pneg %p86
      $region42: #{resnet_block_forward.3} parent=39 // pred_check_branch
        %3446 = sbr.rel (%p3444) target = $region44
      $region43: #{resnet_block_forward.3} parent=39 // pred_region
        %p3447 = scmp.lt.s32.totalorder %s16, 1
        %s3448 = scalar_select %p3447, %s16, 1
        %s3449 = smul.addr %s3448, 32
        %s3450 = smul.addr %s3449, 4
        %s3451 = scalar_lea.vmem %s2, %s3450
      $region44: #{resnet_block_forward.3} parent=39 // pred_fallthru
        _
      // Predicated region
      $region45: #{resnet_block_forward.3} parent=39 // pred_check
        %p3452 = pneg %p112
      $region46: #{resnet_block_forward.3} parent=39 // pred_check_branch
        %3454 = sbr.rel (%p3452) target = $region48
      $region47: #{resnet_block_forward.3} parent=39 // pred_region
        %p3455 = scmp.lt.s32.totalorder %s16, 1
        %s3456 = scalar_select %p3455, %s16, 1
        %s3457 = smul.addr %s3456, 2
        %s3458 = scalar_lea.vmem %s3, %s3457
      $region48: #{resnet_block_forward.3} parent=39 // pred_fallthru
        _
    $region40: #{resnet_block_forward.3} parent=5 // pred_fallthru
      _
  $region6: #{resnet_block_forward.3} parent=0 // loop_footer
    %s14 = sadd.s32 1, %s10
  $region7: #{resnet_block_forward.3} parent=0 // loop_footer_branch
    %9 = sbr.rel target = $region3
  $region8: #{resnet_block_forward.3} parent=0 // loop_exit
    _

</llo_original>
